<compile_context>
chip_gen: v7x
topology: tpu7x:2x2x1
jax: 0.10.0
libtpu: 0.0.40
codegen_flags: <defaults>
</compile_context>

<pallas_src>
import functools

import jax
import jax.numpy as jnp
from jax.experimental import pallas as pl
from jax.experimental.pallas import tpu as pltpu

T = 28      # timesteps (image rows)
D = 28      # features per step (image cols)
H = 64      # real hidden size
HP = 128    # lane-padded hidden size
C = 10      # classes


def _round_up(n, m):
    return ((n + m - 1) // m) * m


def lstm_kernel(x_ref, wih_ref, whh_ref, b_ref, wfc_ref, bfc_ref, out_ref,
                xproj_ref, h_ref, c_ref):
    """One batch tile: LSTM recurrence + fc + softmax, all in VMEM.

    x_ref    : (T, TB, D)    bf16  time-major input tile
    wih_ref  : (D, 4*HP)     bf16  padded W_ih^T
    whh_ref  : (HP, 4*HP)    bf16  padded W_hh^T
    b_ref    : (1, 4*HP)     f32   padded (b_ih + b_hh)
    wfc_ref  : (HP, C)       f32   padded fc.weight^T
    bfc_ref  : (1, C)        f32   fc.bias
    out_ref  : (TB, C)       f32   softmax probabilities
    xproj_ref: (T*TB, 4*HP)  f32   scratch: hoisted input projection
    h_ref/c_ref: (TB, HP)    f32   scratch: recurrent state
    """
    tb = x_ref.shape[1]
    wih = wih_ref[...]
    whh = whh_ref[...]
    bias = jnp.broadcast_to(b_ref[...], (tb, 4 * HP))   # hoisted once

    # ---- prologue: input projection for every timestep (independent MXU
    #      work, off the serial critical path), bias folded in. ------------
    for t in range(T):
        xproj_ref[pl.ds(t * tb, tb), :] = (
            jnp.dot(x_ref[t], wih, preferred_element_type=jnp.float32) + bias)

    # ---- recurrence: fully unrolled; only dot(h, W_hh^T) is serial. -------
    h_ref[...] = jnp.zeros_like(h_ref)
    c_ref[...] = jnp.zeros_like(c_ref)
    for t in range(T):
        gates = xproj_ref[pl.ds(t * tb, tb), :] + jnp.dot(
            h_ref[...].astype(jnp.bfloat16), whh,
            preferred_element_type=jnp.float32)            # (TB, 4*HP)
        # gate order i, f, g, o — each slice is exactly one 128-lane tile.
        i_g = jax.nn.sigmoid(gates[:, 0 * HP:1 * HP])
        f_g = jax.nn.sigmoid(gates[:, 1 * HP:2 * HP])
        g_g = jnp.tanh(gates[:, 2 * HP:3 * HP])
        o_g = jax.nn.sigmoid(gates[:, 3 * HP:4 * HP])
        c_new = f_g * c_ref[...] + i_g * g_g
        c_ref[...] = c_new
        h_ref[...] = o_g * jnp.tanh(c_new)

    # ---- classifier head + numerically stable softmax. --------------------
    logits = jnp.dot(h_ref[...], wfc_ref[...],
                     preferred_element_type=jnp.float32) + bfc_ref[...]
    m = jnp.max(logits, axis=1, keepdims=True)
    e = jnp.exp(logits - m)
    out_ref[...] = e * pl.reciprocal(jnp.sum(e, axis=1, keepdims=True),
                                     approx=True)


def prepare_weights(params):
    """Pad hidden 64->128 per gate, transpose, cast matmul operands to bf16."""
    pad = HP - H

    def pad_gate_rows(w):                      # (4H, K) -> (4*HP, K)
        return jnp.pad(w.reshape(4, H, -1),
                       ((0, 0), (0, pad), (0, 0))).reshape(4 * HP, -1)

    wih_p = pad_gate_rows(params["w_ih"])                          # (4HP, D)
    whh_p = jnp.pad(pad_gate_rows(params["w_hh"]),
                    ((0, 0), (0, pad)))                            # (4HP, HP)
    bias_p = jnp.pad((params["b_ih"] + params["b_hh"]).reshape(4, H),
                     ((0, 0), (0, pad))).reshape(1, 4 * HP)
    wfc_p = jnp.pad(params["w_fc"], ((0, 0), (0, pad)))            # (C, HP)

    return (wih_p.T.astype(jnp.bfloat16),          # (D, 4HP)
            whh_p.T.astype(jnp.bfloat16),          # (HP, 4HP)
            bias_p.astype(jnp.float32),            # (1, 4HP)
            wfc_p.T.astype(jnp.float32),           # (HP, C)
            params["b_fc"].reshape(1, C).astype(jnp.float32))


@functools.partial(jax.jit, static_argnames=("block_b",))
def lstm_forward(x, params, *, block_b=256):
    """x: (B, 1, 28, 28) or (B, 28, 28). Returns (B, 10) softmax probs."""
    B = x.shape[0]
    x = x.reshape(B, T, D)                     # matches torch .view(B, 28, -1)

    # Batch tile: multiple of 8 sublanes, capped at block_b (256 fills the
    # MXU M dim on v6e/v7x; also fine on v5e).  Pad B so tiles divide evenly.
    tb = min(block_b, _round_up(B, 8))
    b_pad = _round_up(B, tb)
    if b_pad != B:
        x = jnp.pad(x, ((0, b_pad - B), (0, 0), (0, 0)))

    # Time-major + bf16 in one fused XLA pass; keeps every in-kernel access
    # a lane/sublane-aligned leading-dim slab.
    x_tm = jnp.transpose(x, (1, 0, 2)).astype(jnp.bfloat16)    # (T, b_pad, D)

    wih_t, whh_t, bias_p, wfc_t, bfc = prepare_weights(params)

    probs = pl.pallas_call(
        lstm_kernel,
        out_shape=jax.ShapeDtypeStruct((b_pad, C), jnp.float32),
        grid=(b_pad // tb,),
        in_specs=[
            pl.BlockSpec((T, tb, D), lambda b: (0, b, 0)),      # x tile
            pl.BlockSpec((D, 4 * HP), lambda b: (0, 0)),        # W_ih^T
            pl.BlockSpec((HP, 4 * HP), lambda b: (0, 0)),       # W_hh^T
            pl.BlockSpec((1, 4 * HP), lambda b: (0, 0)),        # bias
            pl.BlockSpec((HP, C), lambda b: (0, 0)),            # fc.weight^T
            pl.BlockSpec((1, C), lambda b: (0, 0)),             # fc.bias
        ],
        out_specs=pl.BlockSpec((tb, C), lambda b: (b, 0)),
        scratch_shapes=[
            pltpu.VMEM((T * tb, 4 * HP), jnp.float32),          # x_proj
            pltpu.VMEM((tb, HP), jnp.float32),                  # h
            pltpu.VMEM((tb, HP), jnp.float32),                  # c
        ],
        compiler_params=pltpu.CompilerParams(
            dimension_semantics=("parallel",),
            vmem_limit_bytes=48 * 1024 * 1024,   # > v5e 16MiB default, < v7x 64MiB
        ),
    )(x_tm, wih_t, whh_t, bias_p, wfc_t, bfc)

    return probs[:B]


def init_params(key, input_size=D, hidden_size=H, num_classes=C):
    """Deterministic init matching PyTorch shapes (uniform +-1/sqrt(H))."""
    k = jax.random.split(key, 6)
    s = 1.0 / jnp.sqrt(hidden_size)
    return {
        "w_ih": jax.random.uniform(k[0], (4 * hidden_size, input_size),
                                   jnp.float32, -s, s),
        "w_hh": jax.random.uniform(k[1], (4 * hidden_size, hidden_size),
                                   jnp.float32, -s, s),
        "b_ih": jax.random.uniform(k[2], (4 * hidden_size,), jnp.float32, -s, s),
        "b_hh": jax.random.uniform(k[3], (4 * hidden_size,), jnp.float32, -s, s),
        "w_fc": jax.random.uniform(k[4], (num_classes, hidden_size),
                                   jnp.float32, -s, s),
        "b_fc": jax.random.uniform(k[5], (num_classes,), jnp.float32, -s, s),
    }


def lstm_reference(x, params):
    """Pure-JAX reference mirroring the kernel's bf16 rounding of x / W."""
    B = x.shape[0]
    xr = x.reshape(B, T, D).astype(jnp.bfloat16).astype(jnp.float32)
    wih = params["w_ih"].astype(jnp.bfloat16).astype(jnp.float32)
    whh = params["w_hh"].astype(jnp.bfloat16).astype(jnp.float32)
    b = params["b_ih"] + params["b_hh"]
    h = jnp.zeros((B, H), jnp.float32)
    c = jnp.zeros((B, H), jnp.float32)
    for t in range(T):
        g = (xr[:, t, :] @ wih.T
             + h.astype(jnp.bfloat16).astype(jnp.float32) @ whh.T + b)
        i = jax.nn.sigmoid(g[:, 0 * H:1 * H])
        f = jax.nn.sigmoid(g[:, 1 * H:2 * H])
        gg = jnp.tanh(g[:, 2 * H:3 * H])
        o = jax.nn.sigmoid(g[:, 3 * H:4 * H])
        c = f * c + i * gg
        h = o * jnp.tanh(c)
    logits = h @ params["w_fc"].T + params["b_fc"]
    return jax.nn.softmax(logits, axis=1)


if __name__ == "__main__":
    key = jax.random.PRNGKey(0)
    k_x, k_p = jax.random.split(key)

    B = 2
    x = jax.random.normal(k_x, (B, 1, 28, 28), jnp.float32)  # MNIST-like NCHW
    params = init_params(k_p)

    probs = lstm_forward(x, params)
    jax.block_until_ready(probs)

    assert probs.shape == (B, 10)
    assert bool(jnp.all(jnp.isfinite(probs)))
    # softmax rows sum to 1 (approx-reciprocal denominator => loose atol)
    assert bool(jnp.allclose(jnp.sum(probs, axis=1), 1.0, atol=1e-2))

    ref = lstm_reference(x, params)
    assert bool(jnp.allclose(probs, ref, atol=1e-2, rtol=1e-2))

    print("KERNEL_OK")
</pallas_src>

<mosaic_0001>
module attributes {stable_mosaic.version = 11 : i64} {
  func.func @lstm_kernel(%arg0: i32, %arg1: memref<28x8x28xbf16, #tpu.memory_space<vmem>>, %arg2: memref<28x512xbf16, #tpu.memory_space<vmem>>, %arg3: memref<128x512xbf16, #tpu.memory_space<vmem>>, %arg4: memref<1x512xf32, #tpu.memory_space<vmem>>, %arg5: memref<128x10xf32, #tpu.memory_space<vmem>>, %arg6: memref<1x10xf32, #tpu.memory_space<vmem>>, %arg7: memref<8x10xf32, #tpu.memory_space<vmem>>, %arg8: memref<224x512xf32, #tpu.memory_space<vmem>>, %arg9: memref<8x128xf32, #tpu.memory_space<vmem>>, %arg10: memref<8x128xf32, #tpu.memory_space<vmem>>) attributes {dimension_semantics = [#tpu.dimension_semantics<parallel>], iteration_bounds = array<i64: 1>, scalar_prefetch = 0 : i64, scratch_operands = 3 : i64, tpu.core_type = #tpu.core_type<tc>, window_params = [{transform_indices = @transform_0, window_bounds = array<i64: 28, 8, 28>}, {pipeline_mode = #tpu.pipeline_mode<synchronous>, transform_indices = @transform_1, window_bounds = array<i64: 28, 512>}, {pipeline_mode = #tpu.pipeline_mode<synchronous>, transform_indices = @transform_2, window_bounds = array<i64: 128, 512>}, {pipeline_mode = #tpu.pipeline_mode<synchronous>, transform_indices = @transform_3, window_bounds = array<i64: 1, 512>}, {pipeline_mode = #tpu.pipeline_mode<synchronous>, transform_indices = @transform_4, window_bounds = array<i64: 128, 10>}, {pipeline_mode = #tpu.pipeline_mode<synchronous>, transform_indices = @transform_5, window_bounds = array<i64: 1, 10>}, {transform_indices = @transform_6, window_bounds = array<i64: 8, 10>}]} {
    %c0 = arith.constant 0 : index
    %c0_0 = arith.constant 0 : index
    %0 = vector.load %arg2[%c0, %c0_0] : memref<28x512xbf16, #tpu.memory_space<vmem>>, vector<28x512xbf16>
    %c0_1 = arith.constant 0 : index
    %c0_2 = arith.constant 0 : index
    %1 = vector.load %arg3[%c0_1, %c0_2] : memref<128x512xbf16, #tpu.memory_space<vmem>>, vector<128x512xbf16>
    %c0_3 = arith.constant 0 : index
    %c0_4 = arith.constant 0 : index
    %2 = vector.load %arg4[%c0_3, %c0_4] : memref<1x512xf32, #tpu.memory_space<vmem>>, vector<1x512xf32>
    %3 = vector.shape_cast %2 : vector<1x512xf32> to vector<1x512xf32>
    %4 = vector.broadcast %3 : vector<1x512xf32> to vector<8x512xf32>
    %c0_5 = arith.constant 0 : index
    %c0_6 = arith.constant 0 : index
    %c0_7 = arith.constant 0 : index
    %5 = vector.load %arg1[%c0_5, %c0_6, %c0_7] : memref<28x8x28xbf16, #tpu.memory_space<vmem>>, vector<1x8x28xbf16>
    %6 = vector.shape_cast %5 : vector<1x8x28xbf16> to vector<8x28xbf16>
    %cst = arith.constant dense<0.000000e+00> : vector<8x512xf32>
    %7 = tpu.matmul %6, %0, %cst {dimension_numbers = #tpu.dot_dimension_numbers<[1], [0], [0], [1], [0, 0, 1, 1], [], []>} : vector<8x28xbf16>, vector<28x512xbf16>, vector<8x512xf32> -> vector<8x512xf32>
    %8 = arith.addf %7, %4 : vector<8x512xf32>
    %c0_8 = arith.constant 0 : index
    %c0_9 = arith.constant 0 : index
    %9 = vector.load %arg8[%c0_8, %c0_9] : memref<224x512xf32, #tpu.memory_space<vmem>>, vector<8x512xf32>
    tpu.vector_store %arg8[%c0_8, %c0_9], %8 {strides = array<i32>} : memref<224x512xf32, #tpu.memory_space<vmem>>, vector<8x512xf32>,
    %c1 = arith.constant 1 : index
    %c0_10 = arith.constant 0 : index
    %c0_11 = arith.constant 0 : index
    %10 = vector.load %arg1[%c1, %c0_10, %c0_11] : memref<28x8x28xbf16, #tpu.memory_space<vmem>>, vector<1x8x28xbf16>
    %11 = vector.shape_cast %10 : vector<1x8x28xbf16> to vector<8x28xbf16>
    %cst_12 = arith.constant dense<0.000000e+00> : vector<8x512xf32>
    %12 = tpu.matmul %11, %0, %cst_12 {dimension_numbers = #tpu.dot_dimension_numbers<[1], [0], [0], [1], [0, 0, 1, 1], [], []>} : vector<8x28xbf16>, vector<28x512xbf16>, vector<8x512xf32> -> vector<8x512xf32>
    %13 = arith.addf %12, %4 : vector<8x512xf32>
    %c8 = arith.constant 8 : index
    %c0_13 = arith.constant 0 : index
    %14 = vector.load %arg8[%c8, %c0_13] : memref<224x512xf32, #tpu.memory_space<vmem>>, vector<8x512xf32>
    tpu.vector_store %arg8[%c8, %c0_13], %13 {strides = array<i32>} : memref<224x512xf32, #tpu.memory_space<vmem>>, vector<8x512xf32>,
    %c2 = arith.constant 2 : index
    %c0_14 = arith.constant 0 : index
    %c0_15 = arith.constant 0 : index
    %15 = vector.load %arg1[%c2, %c0_14, %c0_15] : memref<28x8x28xbf16, #tpu.memory_space<vmem>>, vector<1x8x28xbf16>
    %16 = vector.shape_cast %15 : vector<1x8x28xbf16> to vector<8x28xbf16>
    %cst_16 = arith.constant dense<0.000000e+00> : vector<8x512xf32>
    %17 = tpu.matmul %16, %0, %cst_16 {dimension_numbers = #tpu.dot_dimension_numbers<[1], [0], [0], [1], [0, 0, 1, 1], [], []>} : vector<8x28xbf16>, vector<28x512xbf16>, vector<8x512xf32> -> vector<8x512xf32>
    %18 = arith.addf %17, %4 : vector<8x512xf32>
    %c16 = arith.constant 16 : index
    %c0_17 = arith.constant 0 : index
    %19 = vector.load %arg8[%c16, %c0_17] : memref<224x512xf32, #tpu.memory_space<vmem>>, vector<8x512xf32>
    tpu.vector_store %arg8[%c16, %c0_17], %18 {strides = array<i32>} : memref<224x512xf32, #tpu.memory_space<vmem>>, vector<8x512xf32>,
    %c3 = arith.constant 3 : index
    %c0_18 = arith.constant 0 : index
    %c0_19 = arith.constant 0 : index
    %20 = vector.load %arg1[%c3, %c0_18, %c0_19] : memref<28x8x28xbf16, #tpu.memory_space<vmem>>, vector<1x8x28xbf16>
    %21 = vector.shape_cast %20 : vector<1x8x28xbf16> to vector<8x28xbf16>
    %cst_20 = arith.constant dense<0.000000e+00> : vector<8x512xf32>
    %22 = tpu.matmul %21, %0, %cst_20 {dimension_numbers = #tpu.dot_dimension_numbers<[1], [0], [0], [1], [0, 0, 1, 1], [], []>} : vector<8x28xbf16>, vector<28x512xbf16>, vector<8x512xf32> -> vector<8x512xf32>
    %23 = arith.addf %22, %4 : vector<8x512xf32>
    %c24 = arith.constant 24 : index
    %c0_21 = arith.constant 0 : index
    %24 = vector.load %arg8[%c24, %c0_21] : memref<224x512xf32, #tpu.memory_space<vmem>>, vector<8x512xf32>
    tpu.vector_store %arg8[%c24, %c0_21], %23 {strides = array<i32>} : memref<224x512xf32, #tpu.memory_space<vmem>>, vector<8x512xf32>,
    %c4 = arith.constant 4 : index
    %c0_22 = arith.constant 0 : index
    %c0_23 = arith.constant 0 : index
    %25 = vector.load %arg1[%c4, %c0_22, %c0_23] : memref<28x8x28xbf16, #tpu.memory_space<vmem>>, vector<1x8x28xbf16>
    %26 = vector.shape_cast %25 : vector<1x8x28xbf16> to vector<8x28xbf16>
    %cst_24 = arith.constant dense<0.000000e+00> : vector<8x512xf32>
    %27 = tpu.matmul %26, %0, %cst_24 {dimension_numbers = #tpu.dot_dimension_numbers<[1], [0], [0], [1], [0, 0, 1, 1], [], []>} : vector<8x28xbf16>, vector<28x512xbf16>, vector<8x512xf32> -> vector<8x512xf32>
    %28 = arith.addf %27, %4 : vector<8x512xf32>
    %c32 = arith.constant 32 : index
    %c0_25 = arith.constant 0 : index
    %29 = vector.load %arg8[%c32, %c0_25] : memref<224x512xf32, #tpu.memory_space<vmem>>, vector<8x512xf32>
    tpu.vector_store %arg8[%c32, %c0_25], %28 {strides = array<i32>} : memref<224x512xf32, #tpu.memory_space<vmem>>, vector<8x512xf32>,
    %c5 = arith.constant 5 : index
    %c0_26 = arith.constant 0 : index
    %c0_27 = arith.constant 0 : index
    %30 = vector.load %arg1[%c5, %c0_26, %c0_27] : memref<28x8x28xbf16, #tpu.memory_space<vmem>>, vector<1x8x28xbf16>
    %31 = vector.shape_cast %30 : vector<1x8x28xbf16> to vector<8x28xbf16>
    %cst_28 = arith.constant dense<0.000000e+00> : vector<8x512xf32>
    %32 = tpu.matmul %31, %0, %cst_28 {dimension_numbers = #tpu.dot_dimension_numbers<[1], [0], [0], [1], [0, 0, 1, 1], [], []>} : vector<8x28xbf16>, vector<28x512xbf16>, vector<8x512xf32> -> vector<8x512xf32>
    %33 = arith.addf %32, %4 : vector<8x512xf32>
    %c40 = arith.constant 40 : index
    %c0_29 = arith.constant 0 : index
    %34 = vector.load %arg8[%c40, %c0_29] : memref<224x512xf32, #tpu.memory_space<vmem>>, vector<8x512xf32>
    tpu.vector_store %arg8[%c40, %c0_29], %33 {strides = array<i32>} : memref<224x512xf32, #tpu.memory_space<vmem>>, vector<8x512xf32>,
    %c6 = arith.constant 6 : index
    %c0_30 = arith.constant 0 : index
    %c0_31 = arith.constant 0 : index
    %35 = vector.load %arg1[%c6, %c0_30, %c0_31] : memref<28x8x28xbf16, #tpu.memory_space<vmem>>, vector<1x8x28xbf16>
    %36 = vector.shape_cast %35 : vector<1x8x28xbf16> to vector<8x28xbf16>
    %cst_32 = arith.constant dense<0.000000e+00> : vector<8x512xf32>
    %37 = tpu.matmul %36, %0, %cst_32 {dimension_numbers = #tpu.dot_dimension_numbers<[1], [0], [0], [1], [0, 0, 1, 1], [], []>} : vector<8x28xbf16>, vector<28x512xbf16>, vector<8x512xf32> -> vector<8x512xf32>
    %38 = arith.addf %37, %4 : vector<8x512xf32>
    %c48 = arith.constant 48 : index
    %c0_33 = arith.constant 0 : index
    %39 = vector.load %arg8[%c48, %c0_33] : memref<224x512xf32, #tpu.memory_space<vmem>>, vector<8x512xf32>
    tpu.vector_store %arg8[%c48, %c0_33], %38 {strides = array<i32>} : memref<224x512xf32, #tpu.memory_space<vmem>>, vector<8x512xf32>,
    %c7 = arith.constant 7 : index
    %c0_34 = arith.constant 0 : index
    %c0_35 = arith.constant 0 : index
    %40 = vector.load %arg1[%c7, %c0_34, %c0_35] : memref<28x8x28xbf16, #tpu.memory_space<vmem>>, vector<1x8x28xbf16>
    %41 = vector.shape_cast %40 : vector<1x8x28xbf16> to vector<8x28xbf16>
    %cst_36 = arith.constant dense<0.000000e+00> : vector<8x512xf32>
    %42 = tpu.matmul %41, %0, %cst_36 {dimension_numbers = #tpu.dot_dimension_numbers<[1], [0], [0], [1], [0, 0, 1, 1], [], []>} : vector<8x28xbf16>, vector<28x512xbf16>, vector<8x512xf32> -> vector<8x512xf32>
    %43 = arith.addf %42, %4 : vector<8x512xf32>
    %c56 = arith.constant 56 : index
    %c0_37 = arith.constant 0 : index
    %44 = vector.load %arg8[%c56, %c0_37] : memref<224x512xf32, #tpu.memory_space<vmem>>, vector<8x512xf32>
    tpu.vector_store %arg8[%c56, %c0_37], %43 {strides = array<i32>} : memref<224x512xf32, #tpu.memory_space<vmem>>, vector<8x512xf32>,
    %c8_38 = arith.constant 8 : index
    %c0_39 = arith.constant 0 : index
    %c0_40 = arith.constant 0 : index
    %45 = vector.load %arg1[%c8_38, %c0_39, %c0_40] : memref<28x8x28xbf16, #tpu.memory_space<vmem>>, vector<1x8x28xbf16>
    %46 = vector.shape_cast %45 : vector<1x8x28xbf16> to vector<8x28xbf16>
    %cst_41 = arith.constant dense<0.000000e+00> : vector<8x512xf32>
    %47 = tpu.matmul %46, %0, %cst_41 {dimension_numbers = #tpu.dot_dimension_numbers<[1], [0], [0], [1], [0, 0, 1, 1], [], []>} : vector<8x28xbf16>, vector<28x512xbf16>, vector<8x512xf32> -> vector<8x512xf32>
    %48 = arith.addf %47, %4 : vector<8x512xf32>
    %c64 = arith.constant 64 : index
    %c0_42 = arith.constant 0 : index
    %49 = vector.load %arg8[%c64, %c0_42] : memref<224x512xf32, #tpu.memory_space<vmem>>, vector<8x512xf32>
    tpu.vector_store %arg8[%c64, %c0_42], %48 {strides = array<i32>} : memref<224x512xf32, #tpu.memory_space<vmem>>, vector<8x512xf32>,
    %c9 = arith.constant 9 : index
    %c0_43 = arith.constant 0 : index
    %c0_44 = arith.constant 0 : index
    %50 = vector.load %arg1[%c9, %c0_43, %c0_44] : memref<28x8x28xbf16, #tpu.memory_space<vmem>>, vector<1x8x28xbf16>
    %51 = vector.shape_cast %50 : vector<1x8x28xbf16> to vector<8x28xbf16>
    %cst_45 = arith.constant dense<0.000000e+00> : vector<8x512xf32>
    %52 = tpu.matmul %51, %0, %cst_45 {dimension_numbers = #tpu.dot_dimension_numbers<[1], [0], [0], [1], [0, 0, 1, 1], [], []>} : vector<8x28xbf16>, vector<28x512xbf16>, vector<8x512xf32> -> vector<8x512xf32>
    %53 = arith.addf %52, %4 : vector<8x512xf32>
    %c72 = arith.constant 72 : index
    %c0_46 = arith.constant 0 : index
    %54 = vector.load %arg8[%c72, %c0_46] : memref<224x512xf32, #tpu.memory_space<vmem>>, vector<8x512xf32>
    tpu.vector_store %arg8[%c72, %c0_46], %53 {strides = array<i32>} : memref<224x512xf32, #tpu.memory_space<vmem>>, vector<8x512xf32>,
    %c10 = arith.constant 10 : index
    %c0_47 = arith.constant 0 : index
    %c0_48 = arith.constant 0 : index
    %55 = vector.load %arg1[%c10, %c0_47, %c0_48] : memref<28x8x28xbf16, #tpu.memory_space<vmem>>, vector<1x8x28xbf16>
    %56 = vector.shape_cast %55 : vector<1x8x28xbf16> to vector<8x28xbf16>
    %cst_49 = arith.constant dense<0.000000e+00> : vector<8x512xf32>
    %57 = tpu.matmul %56, %0, %cst_49 {dimension_numbers = #tpu.dot_dimension_numbers<[1], [0], [0], [1], [0, 0, 1, 1], [], []>} : vector<8x28xbf16>, vector<28x512xbf16>, vector<8x512xf32> -> vector<8x512xf32>
    %58 = arith.addf %57, %4 : vector<8x512xf32>
    %c80 = arith.constant 80 : index
    %c0_50 = arith.constant 0 : index
    %59 = vector.load %arg8[%c80, %c0_50] : memref<224x512xf32, #tpu.memory_space<vmem>>, vector<8x512xf32>
    tpu.vector_store %arg8[%c80, %c0_50], %58 {strides = array<i32>} : memref<224x512xf32, #tpu.memory_space<vmem>>, vector<8x512xf32>,
    %c11 = arith.constant 11 : index
    %c0_51 = arith.constant 0 : index
    %c0_52 = arith.constant 0 : index
    %60 = vector.load %arg1[%c11, %c0_51, %c0_52] : memref<28x8x28xbf16, #tpu.memory_space<vmem>>, vector<1x8x28xbf16>
    %61 = vector.shape_cast %60 : vector<1x8x28xbf16> to vector<8x28xbf16>
    %cst_53 = arith.constant dense<0.000000e+00> : vector<8x512xf32>
    %62 = tpu.matmul %61, %0, %cst_53 {dimension_numbers = #tpu.dot_dimension_numbers<[1], [0], [0], [1], [0, 0, 1, 1], [], []>} : vector<8x28xbf16>, vector<28x512xbf16>, vector<8x512xf32> -> vector<8x512xf32>
    %63 = arith.addf %62, %4 : vector<8x512xf32>
    %c88 = arith.constant 88 : index
    %c0_54 = arith.constant 0 : index
    %64 = vector.load %arg8[%c88, %c0_54] : memref<224x512xf32, #tpu.memory_space<vmem>>, vector<8x512xf32>
    tpu.vector_store %arg8[%c88, %c0_54], %63 {strides = array<i32>} : memref<224x512xf32, #tpu.memory_space<vmem>>, vector<8x512xf32>,
    %c12 = arith.constant 12 : index
    %c0_55 = arith.constant 0 : index
    %c0_56 = arith.constant 0 : index
    %65 = vector.load %arg1[%c12, %c0_55, %c0_56] : memref<28x8x28xbf16, #tpu.memory_space<vmem>>, vector<1x8x28xbf16>
    %66 = vector.shape_cast %65 : vector<1x8x28xbf16> to vector<8x28xbf16>
    %cst_57 = arith.constant dense<0.000000e+00> : vector<8x512xf32>
    %67 = tpu.matmul %66, %0, %cst_57 {dimension_numbers = #tpu.dot_dimension_numbers<[1], [0], [0], [1], [0, 0, 1, 1], [], []>} : vector<8x28xbf16>, vector<28x512xbf16>, vector<8x512xf32> -> vector<8x512xf32>
    %68 = arith.addf %67, %4 : vector<8x512xf32>
    %c96 = arith.constant 96 : index
    %c0_58 = arith.constant 0 : index
    %69 = vector.load %arg8[%c96, %c0_58] : memref<224x512xf32, #tpu.memory_space<vmem>>, vector<8x512xf32>
    tpu.vector_store %arg8[%c96, %c0_58], %68 {strides = array<i32>} : memref<224x512xf32, #tpu.memory_space<vmem>>, vector<8x512xf32>,
    %c13 = arith.constant 13 : index
    %c0_59 = arith.constant 0 : index
    %c0_60 = arith.constant 0 : index
    %70 = vector.load %arg1[%c13, %c0_59, %c0_60] : memref<28x8x28xbf16, #tpu.memory_space<vmem>>, vector<1x8x28xbf16>
    %71 = vector.shape_cast %70 : vector<1x8x28xbf16> to vector<8x28xbf16>
    %cst_61 = arith.constant dense<0.000000e+00> : vector<8x512xf32>
    %72 = tpu.matmul %71, %0, %cst_61 {dimension_numbers = #tpu.dot_dimension_numbers<[1], [0], [0], [1], [0, 0, 1, 1], [], []>} : vector<8x28xbf16>, vector<28x512xbf16>, vector<8x512xf32> -> vector<8x512xf32>
    %73 = arith.addf %72, %4 : vector<8x512xf32>
    %c104 = arith.constant 104 : index
    %c0_62 = arith.constant 0 : index
    %74 = vector.load %arg8[%c104, %c0_62] : memref<224x512xf32, #tpu.memory_space<vmem>>, vector<8x512xf32>
    tpu.vector_store %arg8[%c104, %c0_62], %73 {strides = array<i32>} : memref<224x512xf32, #tpu.memory_space<vmem>>, vector<8x512xf32>,
    %c14 = arith.constant 14 : index
    %c0_63 = arith.constant 0 : index
    %c0_64 = arith.constant 0 : index
    %75 = vector.load %arg1[%c14, %c0_63, %c0_64] : memref<28x8x28xbf16, #tpu.memory_space<vmem>>, vector<1x8x28xbf16>
    %76 = vector.shape_cast %75 : vector<1x8x28xbf16> to vector<8x28xbf16>
    %cst_65 = arith.constant dense<0.000000e+00> : vector<8x512xf32>
    %77 = tpu.matmul %76, %0, %cst_65 {dimension_numbers = #tpu.dot_dimension_numbers<[1], [0], [0], [1], [0, 0, 1, 1], [], []>} : vector<8x28xbf16>, vector<28x512xbf16>, vector<8x512xf32> -> vector<8x512xf32>
    %78 = arith.addf %77, %4 : vector<8x512xf32>
    %c112 = arith.constant 112 : index
    %c0_66 = arith.constant 0 : index
    %79 = vector.load %arg8[%c112, %c0_66] : memref<224x512xf32, #tpu.memory_space<vmem>>, vector<8x512xf32>
    tpu.vector_store %arg8[%c112, %c0_66], %78 {strides = array<i32>} : memref<224x512xf32, #tpu.memory_space<vmem>>, vector<8x512xf32>,
    %c15 = arith.constant 15 : index
    %c0_67 = arith.constant 0 : index
    %c0_68 = arith.constant 0 : index
    %80 = vector.load %arg1[%c15, %c0_67, %c0_68] : memref<28x8x28xbf16, #tpu.memory_space<vmem>>, vector<1x8x28xbf16>
    %81 = vector.shape_cast %80 : vector<1x8x28xbf16> to vector<8x28xbf16>
    %cst_69 = arith.constant dense<0.000000e+00> : vector<8x512xf32>
    %82 = tpu.matmul %81, %0, %cst_69 {dimension_numbers = #tpu.dot_dimension_numbers<[1], [0], [0], [1], [0, 0, 1, 1], [], []>} : vector<8x28xbf16>, vector<28x512xbf16>, vector<8x512xf32> -> vector<8x512xf32>
    %83 = arith.addf %82, %4 : vector<8x512xf32>
    %c120 = arith.constant 120 : index
    %c0_70 = arith.constant 0 : index
    %84 = vector.load %arg8[%c120, %c0_70] : memref<224x512xf32, #tpu.memory_space<vmem>>, vector<8x512xf32>
    tpu.vector_store %arg8[%c120, %c0_70], %83 {strides = array<i32>} : memref<224x512xf32, #tpu.memory_space<vmem>>, vector<8x512xf32>,
    %c16_71 = arith.constant 16 : index
    %c0_72 = arith.constant 0 : index
    %c0_73 = arith.constant 0 : index
    %85 = vector.load %arg1[%c16_71, %c0_72, %c0_73] : memref<28x8x28xbf16, #tpu.memory_space<vmem>>, vector<1x8x28xbf16>
    %86 = vector.shape_cast %85 : vector<1x8x28xbf16> to vector<8x28xbf16>
    %cst_74 = arith.constant dense<0.000000e+00> : vector<8x512xf32>
    %87 = tpu.matmul %86, %0, %cst_74 {dimension_numbers = #tpu.dot_dimension_numbers<[1], [0], [0], [1], [0, 0, 1, 1], [], []>} : vector<8x28xbf16>, vector<28x512xbf16>, vector<8x512xf32> -> vector<8x512xf32>
    %88 = arith.addf %87, %4 : vector<8x512xf32>
    %c128 = arith.constant 128 : index
    %c0_75 = arith.constant 0 : index
    %89 = vector.load %arg8[%c128, %c0_75] : memref<224x512xf32, #tpu.memory_space<vmem>>, vector<8x512xf32>
    tpu.vector_store %arg8[%c128, %c0_75], %88 {strides = array<i32>} : memref<224x512xf32, #tpu.memory_space<vmem>>, vector<8x512xf32>,
    %c17 = arith.constant 17 : index
    %c0_76 = arith.constant 0 : index
    %c0_77 = arith.constant 0 : index
    %90 = vector.load %arg1[%c17, %c0_76, %c0_77] : memref<28x8x28xbf16, #tpu.memory_space<vmem>>, vector<1x8x28xbf16>
    %91 = vector.shape_cast %90 : vector<1x8x28xbf16> to vector<8x28xbf16>
    %cst_78 = arith.constant dense<0.000000e+00> : vector<8x512xf32>
    %92 = tpu.matmul %91, %0, %cst_78 {dimension_numbers = #tpu.dot_dimension_numbers<[1], [0], [0], [1], [0, 0, 1, 1], [], []>} : vector<8x28xbf16>, vector<28x512xbf16>, vector<8x512xf32> -> vector<8x512xf32>
    %93 = arith.addf %92, %4 : vector<8x512xf32>
    %c136 = arith.constant 136 : index
    %c0_79 = arith.constant 0 : index
    %94 = vector.load %arg8[%c136, %c0_79] : memref<224x512xf32, #tpu.memory_space<vmem>>, vector<8x512xf32>
    tpu.vector_store %arg8[%c136, %c0_79], %93 {strides = array<i32>} : memref<224x512xf32, #tpu.memory_space<vmem>>, vector<8x512xf32>,
    %c18 = arith.constant 18 : index
    %c0_80 = arith.constant 0 : index
    %c0_81 = arith.constant 0 : index
    %95 = vector.load %arg1[%c18, %c0_80, %c0_81] : memref<28x8x28xbf16, #tpu.memory_space<vmem>>, vector<1x8x28xbf16>
    %96 = vector.shape_cast %95 : vector<1x8x28xbf16> to vector<8x28xbf16>
    %cst_82 = arith.constant dense<0.000000e+00> : vector<8x512xf32>
    %97 = tpu.matmul %96, %0, %cst_82 {dimension_numbers = #tpu.dot_dimension_numbers<[1], [0], [0], [1], [0, 0, 1, 1], [], []>} : vector<8x28xbf16>, vector<28x512xbf16>, vector<8x512xf32> -> vector<8x512xf32>
    %98 = arith.addf %97, %4 : vector<8x512xf32>
    %c144 = arith.constant 144 : index
    %c0_83 = arith.constant 0 : index
    %99 = vector.load %arg8[%c144, %c0_83] : memref<224x512xf32, #tpu.memory_space<vmem>>, vector<8x512xf32>
    tpu.vector_store %arg8[%c144, %c0_83], %98 {strides = array<i32>} : memref<224x512xf32, #tpu.memory_space<vmem>>, vector<8x512xf32>,
    %c19 = arith.constant 19 : index
    %c0_84 = arith.constant 0 : index
    %c0_85 = arith.constant 0 : index
    %100 = vector.load %arg1[%c19, %c0_84, %c0_85] : memref<28x8x28xbf16, #tpu.memory_space<vmem>>, vector<1x8x28xbf16>
    %101 = vector.shape_cast %100 : vector<1x8x28xbf16> to vector<8x28xbf16>
    %cst_86 = arith.constant dense<0.000000e+00> : vector<8x512xf32>
    %102 = tpu.matmul %101, %0, %cst_86 {dimension_numbers = #tpu.dot_dimension_numbers<[1], [0], [0], [1], [0, 0, 1, 1], [], []>} : vector<8x28xbf16>, vector<28x512xbf16>, vector<8x512xf32> -> vector<8x512xf32>
    %103 = arith.addf %102, %4 : vector<8x512xf32>
    %c152 = arith.constant 152 : index
    %c0_87 = arith.constant 0 : index
    %104 = vector.load %arg8[%c152, %c0_87] : memref<224x512xf32, #tpu.memory_space<vmem>>, vector<8x512xf32>
    tpu.vector_store %arg8[%c152, %c0_87], %103 {strides = array<i32>} : memref<224x512xf32, #tpu.memory_space<vmem>>, vector<8x512xf32>,
    %c20 = arith.constant 20 : index
    %c0_88 = arith.constant 0 : index
    %c0_89 = arith.constant 0 : index
    %105 = vector.load %arg1[%c20, %c0_88, %c0_89] : memref<28x8x28xbf16, #tpu.memory_space<vmem>>, vector<1x8x28xbf16>
    %106 = vector.shape_cast %105 : vector<1x8x28xbf16> to vector<8x28xbf16>
    %cst_90 = arith.constant dense<0.000000e+00> : vector<8x512xf32>
    %107 = tpu.matmul %106, %0, %cst_90 {dimension_numbers = #tpu.dot_dimension_numbers<[1], [0], [0], [1], [0, 0, 1, 1], [], []>} : vector<8x28xbf16>, vector<28x512xbf16>, vector<8x512xf32> -> vector<8x512xf32>
    %108 = arith.addf %107, %4 : vector<8x512xf32>
    %c160 = arith.constant 160 : index
    %c0_91 = arith.constant 0 : index
    %109 = vector.load %arg8[%c160, %c0_91] : memref<224x512xf32, #tpu.memory_space<vmem>>, vector<8x512xf32>
    tpu.vector_store %arg8[%c160, %c0_91], %108 {strides = array<i32>} : memref<224x512xf32, #tpu.memory_space<vmem>>, vector<8x512xf32>,
    %c21 = arith.constant 21 : index
    %c0_92 = arith.constant 0 : index
    %c0_93 = arith.constant 0 : index
    %110 = vector.load %arg1[%c21, %c0_92, %c0_93] : memref<28x8x28xbf16, #tpu.memory_space<vmem>>, vector<1x8x28xbf16>
    %111 = vector.shape_cast %110 : vector<1x8x28xbf16> to vector<8x28xbf16>
    %cst_94 = arith.constant dense<0.000000e+00> : vector<8x512xf32>
    %112 = tpu.matmul %111, %0, %cst_94 {dimension_numbers = #tpu.dot_dimension_numbers<[1], [0], [0], [1], [0, 0, 1, 1], [], []>} : vector<8x28xbf16>, vector<28x512xbf16>, vector<8x512xf32> -> vector<8x512xf32>
    %113 = arith.addf %112, %4 : vector<8x512xf32>
    %c168 = arith.constant 168 : index
    %c0_95 = arith.constant 0 : index
    %114 = vector.load %arg8[%c168, %c0_95] : memref<224x512xf32, #tpu.memory_space<vmem>>, vector<8x512xf32>
    tpu.vector_store %arg8[%c168, %c0_95], %113 {strides = array<i32>} : memref<224x512xf32, #tpu.memory_space<vmem>>, vector<8x512xf32>,
    %c22 = arith.constant 22 : index
    %c0_96 = arith.constant 0 : index
    %c0_97 = arith.constant 0 : index
    %115 = vector.load %arg1[%c22, %c0_96, %c0_97] : memref<28x8x28xbf16, #tpu.memory_space<vmem>>, vector<1x8x28xbf16>
    %116 = vector.shape_cast %115 : vector<1x8x28xbf16> to vector<8x28xbf16>
    %cst_98 = arith.constant dense<0.000000e+00> : vector<8x512xf32>
    %117 = tpu.matmul %116, %0, %cst_98 {dimension_numbers = #tpu.dot_dimension_numbers<[1], [0], [0], [1], [0, 0, 1, 1], [], []>} : vector<8x28xbf16>, vector<28x512xbf16>, vector<8x512xf32> -> vector<8x512xf32>
    %118 = arith.addf %117, %4 : vector<8x512xf32>
    %c176 = arith.constant 176 : index
    %c0_99 = arith.constant 0 : index
    %119 = vector.load %arg8[%c176, %c0_99] : memref<224x512xf32, #tpu.memory_space<vmem>>, vector<8x512xf32>
    tpu.vector_store %arg8[%c176, %c0_99], %118 {strides = array<i32>} : memref<224x512xf32, #tpu.memory_space<vmem>>, vector<8x512xf32>,
    %c23 = arith.constant 23 : index
    %c0_100 = arith.constant 0 : index
    %c0_101 = arith.constant 0 : index
    %120 = vector.load %arg1[%c23, %c0_100, %c0_101] : memref<28x8x28xbf16, #tpu.memory_space<vmem>>, vector<1x8x28xbf16>
    %121 = vector.shape_cast %120 : vector<1x8x28xbf16> to vector<8x28xbf16>
    %cst_102 = arith.constant dense<0.000000e+00> : vector<8x512xf32>
    %122 = tpu.matmul %121, %0, %cst_102 {dimension_numbers = #tpu.dot_dimension_numbers<[1], [0], [0], [1], [0, 0, 1, 1], [], []>} : vector<8x28xbf16>, vector<28x512xbf16>, vector<8x512xf32> -> vector<8x512xf32>
    %123 = arith.addf %122, %4 : vector<8x512xf32>
    %c184 = arith.constant 184 : index
    %c0_103 = arith.constant 0 : index
    %124 = vector.load %arg8[%c184, %c0_103] : memref<224x512xf32, #tpu.memory_space<vmem>>, vector<8x512xf32>
    tpu.vector_store %arg8[%c184, %c0_103], %123 {strides = array<i32>} : memref<224x512xf32, #tpu.memory_space<vmem>>, vector<8x512xf32>,
    %c24_104 = arith.constant 24 : index
    %c0_105 = arith.constant 0 : index
    %c0_106 = arith.constant 0 : index
    %125 = vector.load %arg1[%c24_104, %c0_105, %c0_106] : memref<28x8x28xbf16, #tpu.memory_space<vmem>>, vector<1x8x28xbf16>
    %126 = vector.shape_cast %125 : vector<1x8x28xbf16> to vector<8x28xbf16>
    %cst_107 = arith.constant dense<0.000000e+00> : vector<8x512xf32>
    %127 = tpu.matmul %126, %0, %cst_107 {dimension_numbers = #tpu.dot_dimension_numbers<[1], [0], [0], [1], [0, 0, 1, 1], [], []>} : vector<8x28xbf16>, vector<28x512xbf16>, vector<8x512xf32> -> vector<8x512xf32>
    %128 = arith.addf %127, %4 : vector<8x512xf32>
    %c192 = arith.constant 192 : index
    %c0_108 = arith.constant 0 : index
    %129 = vector.load %arg8[%c192, %c0_108] : memref<224x512xf32, #tpu.memory_space<vmem>>, vector<8x512xf32>
    tpu.vector_store %arg8[%c192, %c0_108], %128 {strides = array<i32>} : memref<224x512xf32, #tpu.memory_space<vmem>>, vector<8x512xf32>,
    %c25 = arith.constant 25 : index
    %c0_109 = arith.constant 0 : index
    %c0_110 = arith.constant 0 : index
    %130 = vector.load %arg1[%c25, %c0_109, %c0_110] : memref<28x8x28xbf16, #tpu.memory_space<vmem>>, vector<1x8x28xbf16>
    %131 = vector.shape_cast %130 : vector<1x8x28xbf16> to vector<8x28xbf16>
    %cst_111 = arith.constant dense<0.000000e+00> : vector<8x512xf32>
    %132 = tpu.matmul %131, %0, %cst_111 {dimension_numbers = #tpu.dot_dimension_numbers<[1], [0], [0], [1], [0, 0, 1, 1], [], []>} : vector<8x28xbf16>, vector<28x512xbf16>, vector<8x512xf32> -> vector<8x512xf32>
    %133 = arith.addf %132, %4 : vector<8x512xf32>
    %c200 = arith.constant 200 : index
    %c0_112 = arith.constant 0 : index
    %134 = vector.load %arg8[%c200, %c0_112] : memref<224x512xf32, #tpu.memory_space<vmem>>, vector<8x512xf32>
    tpu.vector_store %arg8[%c200, %c0_112], %133 {strides = array<i32>} : memref<224x512xf32, #tpu.memory_space<vmem>>, vector<8x512xf32>,
    %c26 = arith.constant 26 : index
    %c0_113 = arith.constant 0 : index
    %c0_114 = arith.constant 0 : index
    %135 = vector.load %arg1[%c26, %c0_113, %c0_114] : memref<28x8x28xbf16, #tpu.memory_space<vmem>>, vector<1x8x28xbf16>
    %136 = vector.shape_cast %135 : vector<1x8x28xbf16> to vector<8x28xbf16>
    %cst_115 = arith.constant dense<0.000000e+00> : vector<8x512xf32>
    %137 = tpu.matmul %136, %0, %cst_115 {dimension_numbers = #tpu.dot_dimension_numbers<[1], [0], [0], [1], [0, 0, 1, 1], [], []>} : vector<8x28xbf16>, vector<28x512xbf16>, vector<8x512xf32> -> vector<8x512xf32>
    %138 = arith.addf %137, %4 : vector<8x512xf32>
    %c208 = arith.constant 208 : index
    %c0_116 = arith.constant 0 : index
    %139 = vector.load %arg8[%c208, %c0_116] : memref<224x512xf32, #tpu.memory_space<vmem>>, vector<8x512xf32>
    tpu.vector_store %arg8[%c208, %c0_116], %138 {strides = array<i32>} : memref<224x512xf32, #tpu.memory_space<vmem>>, vector<8x512xf32>,
    %c27 = arith.constant 27 : index
    %c0_117 = arith.constant 0 : index
    %c0_118 = arith.constant 0 : index
    %140 = vector.load %arg1[%c27, %c0_117, %c0_118] : memref<28x8x28xbf16, #tpu.memory_space<vmem>>, vector<1x8x28xbf16>
    %141 = vector.shape_cast %140 : vector<1x8x28xbf16> to vector<8x28xbf16>
    %cst_119 = arith.constant dense<0.000000e+00> : vector<8x512xf32>
    %142 = tpu.matmul %141, %0, %cst_119 {dimension_numbers = #tpu.dot_dimension_numbers<[1], [0], [0], [1], [0, 0, 1, 1], [], []>} : vector<8x28xbf16>, vector<28x512xbf16>, vector<8x512xf32> -> vector<8x512xf32>
    %143 = arith.addf %142, %4 : vector<8x512xf32>
    %c216 = arith.constant 216 : index
    %c0_120 = arith.constant 0 : index
    %144 = vector.load %arg8[%c216, %c0_120] : memref<224x512xf32, #tpu.memory_space<vmem>>, vector<8x512xf32>
    tpu.vector_store %arg8[%c216, %c0_120], %143 {strides = array<i32>} : memref<224x512xf32, #tpu.memory_space<vmem>>, vector<8x512xf32>,
    %cst_121 = arith.constant 0.000000e+00 : f32
    %145 = vector.broadcast %cst_121 : f32 to vector<8x128xf32>
    %c0_122 = arith.constant 0 : index
    %c0_123 = arith.constant 0 : index
    %146 = vector.load %arg9[%c0_122, %c0_123] : memref<8x128xf32, #tpu.memory_space<vmem>>, vector<8x128xf32>
    tpu.vector_store %arg9[%c0_122, %c0_123], %145 {strides = array<i32>} : memref<8x128xf32, #tpu.memory_space<vmem>>, vector<8x128xf32>,
    %cst_124 = arith.constant 0.000000e+00 : f32
    %147 = vector.broadcast %cst_124 : f32 to vector<8x128xf32>
    %c0_125 = arith.constant 0 : index
    %c0_126 = arith.constant 0 : index
    %148 = vector.load %arg10[%c0_125, %c0_126] : memref<8x128xf32, #tpu.memory_space<vmem>>, vector<8x128xf32>
    tpu.vector_store %arg10[%c0_125, %c0_126], %147 {strides = array<i32>} : memref<8x128xf32, #tpu.memory_space<vmem>>, vector<8x128xf32>,
    %c0_127 = arith.constant 0 : index
    %c0_128 = arith.constant 0 : index
    %149 = vector.load %arg8[%c0_127, %c0_128] : memref<224x512xf32, #tpu.memory_space<vmem>>, vector<8x512xf32>
    %c0_129 = arith.constant 0 : index
    %c0_130 = arith.constant 0 : index
    %150 = vector.load %arg9[%c0_129, %c0_130] : memref<8x128xf32, #tpu.memory_space<vmem>>, vector<8x128xf32>
    %151 = arith.truncf %150 : vector<8x128xf32> to vector<8x128xbf16>
    %cst_131 = arith.constant dense<0.000000e+00> : vector<8x512xf32>
    %152 = tpu.matmul %151, %1, %cst_131 {dimension_numbers = #tpu.dot_dimension_numbers<[1], [0], [0], [1], [0, 0, 1, 1], [], []>} : vector<8x128xbf16>, vector<128x512xbf16>, vector<8x512xf32> -> vector<8x512xf32>
    %153 = arith.addf %149, %152 : vector<8x512xf32>
    %154 = vector.extract_strided_slice %153 {offsets = [0, 0], sizes = [8, 128], strides = [1, 1]} : vector<8x512xf32> to vector<8x128xf32>
    %155 = arith.negf %154 : vector<8x128xf32>
    %156 = math.exp %155 : vector<8x128xf32>
    %cst_132 = arith.constant 1.000000e+00 : f32
    %157 = vector.broadcast %cst_132 : f32 to vector<8x128xf32>
    %158 = arith.addf %157, %156 : vector<8x128xf32>
    %159 = arith.divf %157, %158 : vector<8x128xf32>
    %160 = vector.extract_strided_slice %153 {offsets = [0, 128], sizes = [8, 128], strides = [1, 1]} : vector<8x512xf32> to vector<8x128xf32>
    %161 = arith.negf %160 : vector<8x128xf32>
    %162 = math.exp %161 : vector<8x128xf32>
    %cst_133 = arith.constant 1.000000e+00 : f32
    %163 = vector.broadcast %cst_133 : f32 to vector<8x128xf32>
    %164 = arith.addf %163, %162 : vector<8x128xf32>
    %165 = arith.divf %163, %164 : vector<8x128xf32>
    %166 = vector.extract_strided_slice %153 {offsets = [0, 256], sizes = [8, 128], strides = [1, 1]} : vector<8x512xf32> to vector<8x128xf32>
    %167 = math.tanh %166 : vector<8x128xf32>
    %168 = vector.extract_strided_slice %153 {offsets = [0, 384], sizes = [8, 128], strides = [1, 1]} : vector<8x512xf32> to vector<8x128xf32>
    %169 = arith.negf %168 : vector<8x128xf32>
    %170 = math.exp %169 : vector<8x128xf32>
    %cst_134 = arith.constant 1.000000e+00 : f32
    %171 = vector.broadcast %cst_134 : f32 to vector<8x128xf32>
    %172 = arith.addf %171, %170 : vector<8x128xf32>
    %173 = arith.divf %171, %172 : vector<8x128xf32>
    %c0_135 = arith.constant 0 : index
    %c0_136 = arith.constant 0 : index
    %174 = vector.load %arg10[%c0_135, %c0_136] : memref<8x128xf32, #tpu.memory_space<vmem>>, vector<8x128xf32>
    %175 = arith.mulf %165, %174 : vector<8x128xf32>
    %176 = arith.mulf %159, %167 : vector<8x128xf32>
    %177 = arith.addf %175, %176 : vector<8x128xf32>
    %c0_137 = arith.constant 0 : index
    %c0_138 = arith.constant 0 : index
    %178 = vector.load %arg10[%c0_137, %c0_138] : memref<8x128xf32, #tpu.memory_space<vmem>>, vector<8x128xf32>
    tpu.vector_store %arg10[%c0_137, %c0_138], %177 {strides = array<i32>} : memref<8x128xf32, #tpu.memory_space<vmem>>, vector<8x128xf32>,
    %179 = math.tanh %177 : vector<8x128xf32>
    %180 = arith.mulf %173, %179 : vector<8x128xf32>
    %c0_139 = arith.constant 0 : index
    %c0_140 = arith.constant 0 : index
    %181 = vector.load %arg9[%c0_139, %c0_140] : memref<8x128xf32, #tpu.memory_space<vmem>>, vector<8x128xf32>
    tpu.vector_store %arg9[%c0_139, %c0_140], %180 {strides = array<i32>} : memref<8x128xf32, #tpu.memory_space<vmem>>, vector<8x128xf32>,
    %c8_141 = arith.constant 8 : index
    %c0_142 = arith.constant 0 : index
    %182 = vector.load %arg8[%c8_141, %c0_142] : memref<224x512xf32, #tpu.memory_space<vmem>>, vector<8x512xf32>
    %c0_143 = arith.constant 0 : index
    %c0_144 = arith.constant 0 : index
    %183 = vector.load %arg9[%c0_143, %c0_144] : memref<8x128xf32, #tpu.memory_space<vmem>>, vector<8x128xf32>
    %184 = arith.truncf %183 : vector<8x128xf32> to vector<8x128xbf16>
    %cst_145 = arith.constant dense<0.000000e+00> : vector<8x512xf32>
    %185 = tpu.matmul %184, %1, %cst_145 {dimension_numbers = #tpu.dot_dimension_numbers<[1], [0], [0], [1], [0, 0, 1, 1], [], []>} : vector<8x128xbf16>, vector<128x512xbf16>, vector<8x512xf32> -> vector<8x512xf32>
    %186 = arith.addf %182, %185 : vector<8x512xf32>
    %187 = vector.extract_strided_slice %186 {offsets = [0, 0], sizes = [8, 128], strides = [1, 1]} : vector<8x512xf32> to vector<8x128xf32>
    %188 = arith.negf %187 : vector<8x128xf32>
    %189 = math.exp %188 : vector<8x128xf32>
    %cst_146 = arith.constant 1.000000e+00 : f32
    %190 = vector.broadcast %cst_146 : f32 to vector<8x128xf32>
    %191 = arith.addf %190, %189 : vector<8x128xf32>
    %192 = arith.divf %190, %191 : vector<8x128xf32>
    %193 = vector.extract_strided_slice %186 {offsets = [0, 128], sizes = [8, 128], strides = [1, 1]} : vector<8x512xf32> to vector<8x128xf32>
    %194 = arith.negf %193 : vector<8x128xf32>
    %195 = math.exp %194 : vector<8x128xf32>
    %cst_147 = arith.constant 1.000000e+00 : f32
    %196 = vector.broadcast %cst_147 : f32 to vector<8x128xf32>
    %197 = arith.addf %196, %195 : vector<8x128xf32>
    %198 = arith.divf %196, %197 : vector<8x128xf32>
    %199 = vector.extract_strided_slice %186 {offsets = [0, 256], sizes = [8, 128], strides = [1, 1]} : vector<8x512xf32> to vector<8x128xf32>
    %200 = math.tanh %199 : vector<8x128xf32>
    %201 = vector.extract_strided_slice %186 {offsets = [0, 384], sizes = [8, 128], strides = [1, 1]} : vector<8x512xf32> to vector<8x128xf32>
    %202 = arith.negf %201 : vector<8x128xf32>
    %203 = math.exp %202 : vector<8x128xf32>
    %cst_148 = arith.constant 1.000000e+00 : f32
    %204 = vector.broadcast %cst_148 : f32 to vector<8x128xf32>
    %205 = arith.addf %204, %203 : vector<8x128xf32>
    %206 = arith.divf %204, %205 : vector<8x128xf32>
    %c0_149 = arith.constant 0 : index
    %c0_150 = arith.constant 0 : index
    %207 = vector.load %arg10[%c0_149, %c0_150] : memref<8x128xf32, #tpu.memory_space<vmem>>, vector<8x128xf32>
    %208 = arith.mulf %198, %207 : vector<8x128xf32>
    %209 = arith.mulf %192, %200 : vector<8x128xf32>
    %210 = arith.addf %208, %209 : vector<8x128xf32>
    %c0_151 = arith.constant 0 : index
    %c0_152 = arith.constant 0 : index
    %211 = vector.load %arg10[%c0_151, %c0_152] : memref<8x128xf32, #tpu.memory_space<vmem>>, vector<8x128xf32>
    tpu.vector_store %arg10[%c0_151, %c0_152], %210 {strides = array<i32>} : memref<8x128xf32, #tpu.memory_space<vmem>>, vector<8x128xf32>,
    %212 = math.tanh %210 : vector<8x128xf32>
    %213 = arith.mulf %206, %212 : vector<8x128xf32>
    %c0_153 = arith.constant 0 : index
    %c0_154 = arith.constant 0 : index
    %214 = vector.load %arg9[%c0_153, %c0_154] : memref<8x128xf32, #tpu.memory_space<vmem>>, vector<8x128xf32>
    tpu.vector_store %arg9[%c0_153, %c0_154], %213 {strides = array<i32>} : memref<8x128xf32, #tpu.memory_space<vmem>>, vector<8x128xf32>,
    %c16_155 = arith.constant 16 : index
    %c0_156 = arith.constant 0 : index
    %215 = vector.load %arg8[%c16_155, %c0_156] : memref<224x512xf32, #tpu.memory_space<vmem>>, vector<8x512xf32>
    %c0_157 = arith.constant 0 : index
    %c0_158 = arith.constant 0 : index
    %216 = vector.load %arg9[%c0_157, %c0_158] : memref<8x128xf32, #tpu.memory_space<vmem>>, vector<8x128xf32>
    %217 = arith.truncf %216 : vector<8x128xf32> to vector<8x128xbf16>
    %cst_159 = arith.constant dense<0.000000e+00> : vector<8x512xf32>
    %218 = tpu.matmul %217, %1, %cst_159 {dimension_numbers = #tpu.dot_dimension_numbers<[1], [0], [0], [1], [0, 0, 1, 1], [], []>} : vector<8x128xbf16>, vector<128x512xbf16>, vector<8x512xf32> -> vector<8x512xf32>
    %219 = arith.addf %215, %218 : vector<8x512xf32>
    %220 = vector.extract_strided_slice %219 {offsets = [0, 0], sizes = [8, 128], strides = [1, 1]} : vector<8x512xf32> to vector<8x128xf32>
    %221 = arith.negf %220 : vector<8x128xf32>
    %222 = math.exp %221 : vector<8x128xf32>
    %cst_160 = arith.constant 1.000000e+00 : f32
    %223 = vector.broadcast %cst_160 : f32 to vector<8x128xf32>
    %224 = arith.addf %223, %222 : vector<8x128xf32>
    %225 = arith.divf %223, %224 : vector<8x128xf32>
    %226 = vector.extract_strided_slice %219 {offsets = [0, 128], sizes = [8, 128], strides = [1, 1]} : vector<8x512xf32> to vector<8x128xf32>
    %227 = arith.negf %226 : vector<8x128xf32>
    %228 = math.exp %227 : vector<8x128xf32>
    %cst_161 = arith.constant 1.000000e+00 : f32
    %229 = vector.broadcast %cst_161 : f32 to vector<8x128xf32>
    %230 = arith.addf %229, %228 : vector<8x128xf32>
    %231 = arith.divf %229, %230 : vector<8x128xf32>
    %232 = vector.extract_strided_slice %219 {offsets = [0, 256], sizes = [8, 128], strides = [1, 1]} : vector<8x512xf32> to vector<8x128xf32>
    %233 = math.tanh %232 : vector<8x128xf32>
    %234 = vector.extract_strided_slice %219 {offsets = [0, 384], sizes = [8, 128], strides = [1, 1]} : vector<8x512xf32> to vector<8x128xf32>
    %235 = arith.negf %234 : vector<8x128xf32>
    %236 = math.exp %235 : vector<8x128xf32>
    %cst_162 = arith.constant 1.000000e+00 : f32
    %237 = vector.broadcast %cst_162 : f32 to vector<8x128xf32>
    %238 = arith.addf %237, %236 : vector<8x128xf32>
    %239 = arith.divf %237, %238 : vector<8x128xf32>
    %c0_163 = arith.constant 0 : index
    %c0_164 = arith.constant 0 : index
    %240 = vector.load %arg10[%c0_163, %c0_164] : memref<8x128xf32, #tpu.memory_space<vmem>>, vector<8x128xf32>
    %241 = arith.mulf %231, %240 : vector<8x128xf32>
    %242 = arith.mulf %225, %233 : vector<8x128xf32>
    %243 = arith.addf %241, %242 : vector<8x128xf32>
    %c0_165 = arith.constant 0 : index
    %c0_166 = arith.constant 0 : index
    %244 = vector.load %arg10[%c0_165, %c0_166] : memref<8x128xf32, #tpu.memory_space<vmem>>, vector<8x128xf32>
    tpu.vector_store %arg10[%c0_165, %c0_166], %243 {strides = array<i32>} : memref<8x128xf32, #tpu.memory_space<vmem>>, vector<8x128xf32>,
    %245 = math.tanh %243 : vector<8x128xf32>
    %246 = arith.mulf %239, %245 : vector<8x128xf32>
    %c0_167 = arith.constant 0 : index
    %c0_168 = arith.constant 0 : index
    %247 = vector.load %arg9[%c0_167, %c0_168] : memref<8x128xf32, #tpu.memory_space<vmem>>, vector<8x128xf32>
    tpu.vector_store %arg9[%c0_167, %c0_168], %246 {strides = array<i32>} : memref<8x128xf32, #tpu.memory_space<vmem>>, vector<8x128xf32>,
    %c24_169 = arith.constant 24 : index
    %c0_170 = arith.constant 0 : index
    %248 = vector.load %arg8[%c24_169, %c0_170] : memref<224x512xf32, #tpu.memory_space<vmem>>, vector<8x512xf32>
    %c0_171 = arith.constant 0 : index
    %c0_172 = arith.constant 0 : index
    %249 = vector.load %arg9[%c0_171, %c0_172] : memref<8x128xf32, #tpu.memory_space<vmem>>, vector<8x128xf32>
    %250 = arith.truncf %249 : vector<8x128xf32> to vector<8x128xbf16>
    %cst_173 = arith.constant dense<0.000000e+00> : vector<8x512xf32>
    %251 = tpu.matmul %250, %1, %cst_173 {dimension_numbers = #tpu.dot_dimension_numbers<[1], [0], [0], [1], [0, 0, 1, 1], [], []>} : vector<8x128xbf16>, vector<128x512xbf16>, vector<8x512xf32> -> vector<8x512xf32>
    %252 = arith.addf %248, %251 : vector<8x512xf32>
    %253 = vector.extract_strided_slice %252 {offsets = [0, 0], sizes = [8, 128], strides = [1, 1]} : vector<8x512xf32> to vector<8x128xf32>
    %254 = arith.negf %253 : vector<8x128xf32>
    %255 = math.exp %254 : vector<8x128xf32>
    %cst_174 = arith.constant 1.000000e+00 : f32
    %256 = vector.broadcast %cst_174 : f32 to vector<8x128xf32>
    %257 = arith.addf %256, %255 : vector<8x128xf32>
    %258 = arith.divf %256, %257 : vector<8x128xf32>
    %259 = vector.extract_strided_slice %252 {offsets = [0, 128], sizes = [8, 128], strides = [1, 1]} : vector<8x512xf32> to vector<8x128xf32>
    %260 = arith.negf %259 : vector<8x128xf32>
    %261 = math.exp %260 : vector<8x128xf32>
    %cst_175 = arith.constant 1.000000e+00 : f32
    %262 = vector.broadcast %cst_175 : f32 to vector<8x128xf32>
    %263 = arith.addf %262, %261 : vector<8x128xf32>
    %264 = arith.divf %262, %263 : vector<8x128xf32>
    %265 = vector.extract_strided_slice %252 {offsets = [0, 256], sizes = [8, 128], strides = [1, 1]} : vector<8x512xf32> to vector<8x128xf32>
    %266 = math.tanh %265 : vector<8x128xf32>
    %267 = vector.extract_strided_slice %252 {offsets = [0, 384], sizes = [8, 128], strides = [1, 1]} : vector<8x512xf32> to vector<8x128xf32>
    %268 = arith.negf %267 : vector<8x128xf32>
    %269 = math.exp %268 : vector<8x128xf32>
    %cst_176 = arith.constant 1.000000e+00 : f32
    %270 = vector.broadcast %cst_176 : f32 to vector<8x128xf32>
    %271 = arith.addf %270, %269 : vector<8x128xf32>
    %272 = arith.divf %270, %271 : vector<8x128xf32>
    %c0_177 = arith.constant 0 : index
    %c0_178 = arith.constant 0 : index
    %273 = vector.load %arg10[%c0_177, %c0_178] : memref<8x128xf32, #tpu.memory_space<vmem>>, vector<8x128xf32>
    %274 = arith.mulf %264, %273 : vector<8x128xf32>
    %275 = arith.mulf %258, %266 : vector<8x128xf32>
    %276 = arith.addf %274, %275 : vector<8x128xf32>
    %c0_179 = arith.constant 0 : index
    %c0_180 = arith.constant 0 : index
    %277 = vector.load %arg10[%c0_179, %c0_180] : memref<8x128xf32, #tpu.memory_space<vmem>>, vector<8x128xf32>
    tpu.vector_store %arg10[%c0_179, %c0_180], %276 {strides = array<i32>} : memref<8x128xf32, #tpu.memory_space<vmem>>, vector<8x128xf32>,
    %278 = math.tanh %276 : vector<8x128xf32>
    %279 = arith.mulf %272, %278 : vector<8x128xf32>
    %c0_181 = arith.constant 0 : index
    %c0_182 = arith.constant 0 : index
    %280 = vector.load %arg9[%c0_181, %c0_182] : memref<8x128xf32, #tpu.memory_space<vmem>>, vector<8x128xf32>
    tpu.vector_store %arg9[%c0_181, %c0_182], %279 {strides = array<i32>} : memref<8x128xf32, #tpu.memory_space<vmem>>, vector<8x128xf32>,
    %c32_183 = arith.constant 32 : index
    %c0_184 = arith.constant 0 : index
    %281 = vector.load %arg8[%c32_183, %c0_184] : memref<224x512xf32, #tpu.memory_space<vmem>>, vector<8x512xf32>
    %c0_185 = arith.constant 0 : index
    %c0_186 = arith.constant 0 : index
    %282 = vector.load %arg9[%c0_185, %c0_186] : memref<8x128xf32, #tpu.memory_space<vmem>>, vector<8x128xf32>
    %283 = arith.truncf %282 : vector<8x128xf32> to vector<8x128xbf16>
    %cst_187 = arith.constant dense<0.000000e+00> : vector<8x512xf32>
    %284 = tpu.matmul %283, %1, %cst_187 {dimension_numbers = #tpu.dot_dimension_numbers<[1], [0], [0], [1], [0, 0, 1, 1], [], []>} : vector<8x128xbf16>, vector<128x512xbf16>, vector<8x512xf32> -> vector<8x512xf32>
    %285 = arith.addf %281, %284 : vector<8x512xf32>
    %286 = vector.extract_strided_slice %285 {offsets = [0, 0], sizes = [8, 128], strides = [1, 1]} : vector<8x512xf32> to vector<8x128xf32>
    %287 = arith.negf %286 : vector<8x128xf32>
    %288 = math.exp %287 : vector<8x128xf32>
    %cst_188 = arith.constant 1.000000e+00 : f32
    %289 = vector.broadcast %cst_188 : f32 to vector<8x128xf32>
    %290 = arith.addf %289, %288 : vector<8x128xf32>
    %291 = arith.divf %289, %290 : vector<8x128xf32>
    %292 = vector.extract_strided_slice %285 {offsets = [0, 128], sizes = [8, 128], strides = [1, 1]} : vector<8x512xf32> to vector<8x128xf32>
    %293 = arith.negf %292 : vector<8x128xf32>
    %294 = math.exp %293 : vector<8x128xf32>
    %cst_189 = arith.constant 1.000000e+00 : f32
    %295 = vector.broadcast %cst_189 : f32 to vector<8x128xf32>
    %296 = arith.addf %295, %294 : vector<8x128xf32>
    %297 = arith.divf %295, %296 : vector<8x128xf32>
    %298 = vector.extract_strided_slice %285 {offsets = [0, 256], sizes = [8, 128], strides = [1, 1]} : vector<8x512xf32> to vector<8x128xf32>
    %299 = math.tanh %298 : vector<8x128xf32>
    %300 = vector.extract_strided_slice %285 {offsets = [0, 384], sizes = [8, 128], strides = [1, 1]} : vector<8x512xf32> to vector<8x128xf32>
    %301 = arith.negf %300 : vector<8x128xf32>
    %302 = math.exp %301 : vector<8x128xf32>
    %cst_190 = arith.constant 1.000000e+00 : f32
    %303 = vector.broadcast %cst_190 : f32 to vector<8x128xf32>
    %304 = arith.addf %303, %302 : vector<8x128xf32>
    %305 = arith.divf %303, %304 : vector<8x128xf32>
    %c0_191 = arith.constant 0 : index
    %c0_192 = arith.constant 0 : index
    %306 = vector.load %arg10[%c0_191, %c0_192] : memref<8x128xf32, #tpu.memory_space<vmem>>, vector<8x128xf32>
    %307 = arith.mulf %297, %306 : vector<8x128xf32>
    %308 = arith.mulf %291, %299 : vector<8x128xf32>
    %309 = arith.addf %307, %308 : vector<8x128xf32>
    %c0_193 = arith.constant 0 : index
    %c0_194 = arith.constant 0 : index
    %310 = vector.load %arg10[%c0_193, %c0_194] : memref<8x128xf32, #tpu.memory_space<vmem>>, vector<8x128xf32>
    tpu.vector_store %arg10[%c0_193, %c0_194], %309 {strides = array<i32>} : memref<8x128xf32, #tpu.memory_space<vmem>>, vector<8x128xf32>,
    %311 = math.tanh %309 : vector<8x128xf32>
    %312 = arith.mulf %305, %311 : vector<8x128xf32>
    %c0_195 = arith.constant 0 : index
    %c0_196 = arith.constant 0 : index
    %313 = vector.load %arg9[%c0_195, %c0_196] : memref<8x128xf32, #tpu.memory_space<vmem>>, vector<8x128xf32>
    tpu.vector_store %arg9[%c0_195, %c0_196], %312 {strides = array<i32>} : memref<8x128xf32, #tpu.memory_space<vmem>>, vector<8x128xf32>,
    %c40_197 = arith.constant 40 : index
    %c0_198 = arith.constant 0 : index
    %314 = vector.load %arg8[%c40_197, %c0_198] : memref<224x512xf32, #tpu.memory_space<vmem>>, vector<8x512xf32>
    %c0_199 = arith.constant 0 : index
    %c0_200 = arith.constant 0 : index
    %315 = vector.load %arg9[%c0_199, %c0_200] : memref<8x128xf32, #tpu.memory_space<vmem>>, vector<8x128xf32>
    %316 = arith.truncf %315 : vector<8x128xf32> to vector<8x128xbf16>
    %cst_201 = arith.constant dense<0.000000e+00> : vector<8x512xf32>
    %317 = tpu.matmul %316, %1, %cst_201 {dimension_numbers = #tpu.dot_dimension_numbers<[1], [0], [0], [1], [0, 0, 1, 1], [], []>} : vector<8x128xbf16>, vector<128x512xbf16>, vector<8x512xf32> -> vector<8x512xf32>
    %318 = arith.addf %314, %317 : vector<8x512xf32>
    %319 = vector.extract_strided_slice %318 {offsets = [0, 0], sizes = [8, 128], strides = [1, 1]} : vector<8x512xf32> to vector<8x128xf32>
    %320 = arith.negf %319 : vector<8x128xf32>
    %321 = math.exp %320 : vector<8x128xf32>
    %cst_202 = arith.constant 1.000000e+00 : f32
    %322 = vector.broadcast %cst_202 : f32 to vector<8x128xf32>
    %323 = arith.addf %322, %321 : vector<8x128xf32>
    %324 = arith.divf %322, %323 : vector<8x128xf32>
    %325 = vector.extract_strided_slice %318 {offsets = [0, 128], sizes = [8, 128], strides = [1, 1]} : vector<8x512xf32> to vector<8x128xf32>
    %326 = arith.negf %325 : vector<8x128xf32>
    %327 = math.exp %326 : vector<8x128xf32>
    %cst_203 = arith.constant 1.000000e+00 : f32
    %328 = vector.broadcast %cst_203 : f32 to vector<8x128xf32>
    %329 = arith.addf %328, %327 : vector<8x128xf32>
    %330 = arith.divf %328, %329 : vector<8x128xf32>
    %331 = vector.extract_strided_slice %318 {offsets = [0, 256], sizes = [8, 128], strides = [1, 1]} : vector<8x512xf32> to vector<8x128xf32>
    %332 = math.tanh %331 : vector<8x128xf32>
    %333 = vector.extract_strided_slice %318 {offsets = [0, 384], sizes = [8, 128], strides = [1, 1]} : vector<8x512xf32> to vector<8x128xf32>
    %334 = arith.negf %333 : vector<8x128xf32>
    %335 = math.exp %334 : vector<8x128xf32>
    %cst_204 = arith.constant 1.000000e+00 : f32
    %336 = vector.broadcast %cst_204 : f32 to vector<8x128xf32>
    %337 = arith.addf %336, %335 : vector<8x128xf32>
    %338 = arith.divf %336, %337 : vector<8x128xf32>
    %c0_205 = arith.constant 0 : index
    %c0_206 = arith.constant 0 : index
    %339 = vector.load %arg10[%c0_205, %c0_206] : memref<8x128xf32, #tpu.memory_space<vmem>>, vector<8x128xf32>
    %340 = arith.mulf %330, %339 : vector<8x128xf32>
    %341 = arith.mulf %324, %332 : vector<8x128xf32>
    %342 = arith.addf %340, %341 : vector<8x128xf32>
    %c0_207 = arith.constant 0 : index
    %c0_208 = arith.constant 0 : index
    %343 = vector.load %arg10[%c0_207, %c0_208] : memref<8x128xf32, #tpu.memory_space<vmem>>, vector<8x128xf32>
    tpu.vector_store %arg10[%c0_207, %c0_208], %342 {strides = array<i32>} : memref<8x128xf32, #tpu.memory_space<vmem>>, vector<8x128xf32>,
    %344 = math.tanh %342 : vector<8x128xf32>
    %345 = arith.mulf %338, %344 : vector<8x128xf32>
    %c0_209 = arith.constant 0 : index
    %c0_210 = arith.constant 0 : index
    %346 = vector.load %arg9[%c0_209, %c0_210] : memref<8x128xf32, #tpu.memory_space<vmem>>, vector<8x128xf32>
    tpu.vector_store %arg9[%c0_209, %c0_210], %345 {strides = array<i32>} : memref<8x128xf32, #tpu.memory_space<vmem>>, vector<8x128xf32>,
    %c48_211 = arith.constant 48 : index
    %c0_212 = arith.constant 0 : index
    %347 = vector.load %arg8[%c48_211, %c0_212] : memref<224x512xf32, #tpu.memory_space<vmem>>, vector<8x512xf32>
    %c0_213 = arith.constant 0 : index
    %c0_214 = arith.constant 0 : index
    %348 = vector.load %arg9[%c0_213, %c0_214] : memref<8x128xf32, #tpu.memory_space<vmem>>, vector<8x128xf32>
    %349 = arith.truncf %348 : vector<8x128xf32> to vector<8x128xbf16>
    %cst_215 = arith.constant dense<0.000000e+00> : vector<8x512xf32>
    %350 = tpu.matmul %349, %1, %cst_215 {dimension_numbers = #tpu.dot_dimension_numbers<[1], [0], [0], [1], [0, 0, 1, 1], [], []>} : vector<8x128xbf16>, vector<128x512xbf16>, vector<8x512xf32> -> vector<8x512xf32>
    %351 = arith.addf %347, %350 : vector<8x512xf32>
    %352 = vector.extract_strided_slice %351 {offsets = [0, 0], sizes = [8, 128], strides = [1, 1]} : vector<8x512xf32> to vector<8x128xf32>
    %353 = arith.negf %352 : vector<8x128xf32>
    %354 = math.exp %353 : vector<8x128xf32>
    %cst_216 = arith.constant 1.000000e+00 : f32
    %355 = vector.broadcast %cst_216 : f32 to vector<8x128xf32>
    %356 = arith.addf %355, %354 : vector<8x128xf32>
    %357 = arith.divf %355, %356 : vector<8x128xf32>
    %358 = vector.extract_strided_slice %351 {offsets = [0, 128], sizes = [8, 128], strides = [1, 1]} : vector<8x512xf32> to vector<8x128xf32>
    %359 = arith.negf %358 : vector<8x128xf32>
    %360 = math.exp %359 : vector<8x128xf32>
    %cst_217 = arith.constant 1.000000e+00 : f32
    %361 = vector.broadcast %cst_217 : f32 to vector<8x128xf32>
    %362 = arith.addf %361, %360 : vector<8x128xf32>
    %363 = arith.divf %361, %362 : vector<8x128xf32>
    %364 = vector.extract_strided_slice %351 {offsets = [0, 256], sizes = [8, 128], strides = [1, 1]} : vector<8x512xf32> to vector<8x128xf32>
    %365 = math.tanh %364 : vector<8x128xf32>
    %366 = vector.extract_strided_slice %351 {offsets = [0, 384], sizes = [8, 128], strides = [1, 1]} : vector<8x512xf32> to vector<8x128xf32>
    %367 = arith.negf %366 : vector<8x128xf32>
    %368 = math.exp %367 : vector<8x128xf32>
    %cst_218 = arith.constant 1.000000e+00 : f32
    %369 = vector.broadcast %cst_218 : f32 to vector<8x128xf32>
    %370 = arith.addf %369, %368 : vector<8x128xf32>
    %371 = arith.divf %369, %370 : vector<8x128xf32>
    %c0_219 = arith.constant 0 : index
    %c0_220 = arith.constant 0 : index
    %372 = vector.load %arg10[%c0_219, %c0_220] : memref<8x128xf32, #tpu.memory_space<vmem>>, vector<8x128xf32>
    %373 = arith.mulf %363, %372 : vector<8x128xf32>
    %374 = arith.mulf %357, %365 : vector<8x128xf32>
    %375 = arith.addf %373, %374 : vector<8x128xf32>
    %c0_221 = arith.constant 0 : index
    %c0_222 = arith.constant 0 : index
    %376 = vector.load %arg10[%c0_221, %c0_222] : memref<8x128xf32, #tpu.memory_space<vmem>>, vector<8x128xf32>
    tpu.vector_store %arg10[%c0_221, %c0_222], %375 {strides = array<i32>} : memref<8x128xf32, #tpu.memory_space<vmem>>, vector<8x128xf32>,
    %377 = math.tanh %375 : vector<8x128xf32>
    %378 = arith.mulf %371, %377 : vector<8x128xf32>
    %c0_223 = arith.constant 0 : index
    %c0_224 = arith.constant 0 : index
    %379 = vector.load %arg9[%c0_223, %c0_224] : memref<8x128xf32, #tpu.memory_space<vmem>>, vector<8x128xf32>
    tpu.vector_store %arg9[%c0_223, %c0_224], %378 {strides = array<i32>} : memref<8x128xf32, #tpu.memory_space<vmem>>, vector<8x128xf32>,
    %c56_225 = arith.constant 56 : index
    %c0_226 = arith.constant 0 : index
    %380 = vector.load %arg8[%c56_225, %c0_226] : memref<224x512xf32, #tpu.memory_space<vmem>>, vector<8x512xf32>
    %c0_227 = arith.constant 0 : index
    %c0_228 = arith.constant 0 : index
    %381 = vector.load %arg9[%c0_227, %c0_228] : memref<8x128xf32, #tpu.memory_space<vmem>>, vector<8x128xf32>
    %382 = arith.truncf %381 : vector<8x128xf32> to vector<8x128xbf16>
    %cst_229 = arith.constant dense<0.000000e+00> : vector<8x512xf32>
    %383 = tpu.matmul %382, %1, %cst_229 {dimension_numbers = #tpu.dot_dimension_numbers<[1], [0], [0], [1], [0, 0, 1, 1], [], []>} : vector<8x128xbf16>, vector<128x512xbf16>, vector<8x512xf32> -> vector<8x512xf32>
    %384 = arith.addf %380, %383 : vector<8x512xf32>
    %385 = vector.extract_strided_slice %384 {offsets = [0, 0], sizes = [8, 128], strides = [1, 1]} : vector<8x512xf32> to vector<8x128xf32>
    %386 = arith.negf %385 : vector<8x128xf32>
    %387 = math.exp %386 : vector<8x128xf32>
    %cst_230 = arith.constant 1.000000e+00 : f32
    %388 = vector.broadcast %cst_230 : f32 to vector<8x128xf32>
    %389 = arith.addf %388, %387 : vector<8x128xf32>
    %390 = arith.divf %388, %389 : vector<8x128xf32>
    %391 = vector.extract_strided_slice %384 {offsets = [0, 128], sizes = [8, 128], strides = [1, 1]} : vector<8x512xf32> to vector<8x128xf32>
    %392 = arith.negf %391 : vector<8x128xf32>
    %393 = math.exp %392 : vector<8x128xf32>
    %cst_231 = arith.constant 1.000000e+00 : f32
    %394 = vector.broadcast %cst_231 : f32 to vector<8x128xf32>
    %395 = arith.addf %394, %393 : vector<8x128xf32>
    %396 = arith.divf %394, %395 : vector<8x128xf32>
    %397 = vector.extract_strided_slice %384 {offsets = [0, 256], sizes = [8, 128], strides = [1, 1]} : vector<8x512xf32> to vector<8x128xf32>
    %398 = math.tanh %397 : vector<8x128xf32>
    %399 = vector.extract_strided_slice %384 {offsets = [0, 384], sizes = [8, 128], strides = [1, 1]} : vector<8x512xf32> to vector<8x128xf32>
    %400 = arith.negf %399 : vector<8x128xf32>
    %401 = math.exp %400 : vector<8x128xf32>
    %cst_232 = arith.constant 1.000000e+00 : f32
    %402 = vector.broadcast %cst_232 : f32 to vector<8x128xf32>
    %403 = arith.addf %402, %401 : vector<8x128xf32>
    %404 = arith.divf %402, %403 : vector<8x128xf32>
    %c0_233 = arith.constant 0 : index
    %c0_234 = arith.constant 0 : index
    %405 = vector.load %arg10[%c0_233, %c0_234] : memref<8x128xf32, #tpu.memory_space<vmem>>, vector<8x128xf32>
    %406 = arith.mulf %396, %405 : vector<8x128xf32>
    %407 = arith.mulf %390, %398 : vector<8x128xf32>
    %408 = arith.addf %406, %407 : vector<8x128xf32>
    %c0_235 = arith.constant 0 : index
    %c0_236 = arith.constant 0 : index
    %409 = vector.load %arg10[%c0_235, %c0_236] : memref<8x128xf32, #tpu.memory_space<vmem>>, vector<8x128xf32>
    tpu.vector_store %arg10[%c0_235, %c0_236], %408 {strides = array<i32>} : memref<8x128xf32, #tpu.memory_space<vmem>>, vector<8x128xf32>,
    %410 = math.tanh %408 : vector<8x128xf32>
    %411 = arith.mulf %404, %410 : vector<8x128xf32>
    %c0_237 = arith.constant 0 : index
    %c0_238 = arith.constant 0 : index
    %412 = vector.load %arg9[%c0_237, %c0_238] : memref<8x128xf32, #tpu.memory_space<vmem>>, vector<8x128xf32>
    tpu.vector_store %arg9[%c0_237, %c0_238], %411 {strides = array<i32>} : memref<8x128xf32, #tpu.memory_space<vmem>>, vector<8x128xf32>,
    %c64_239 = arith.constant 64 : index
    %c0_240 = arith.constant 0 : index
    %413 = vector.load %arg8[%c64_239, %c0_240] : memref<224x512xf32, #tpu.memory_space<vmem>>, vector<8x512xf32>
    %c0_241 = arith.constant 0 : index
    %c0_242 = arith.constant 0 : index
    %414 = vector.load %arg9[%c0_241, %c0_242] : memref<8x128xf32, #tpu.memory_space<vmem>>, vector<8x128xf32>
    %415 = arith.truncf %414 : vector<8x128xf32> to vector<8x128xbf16>
    %cst_243 = arith.constant dense<0.000000e+00> : vector<8x512xf32>
    %416 = tpu.matmul %415, %1, %cst_243 {dimension_numbers = #tpu.dot_dimension_numbers<[1], [0], [0], [1], [0, 0, 1, 1], [], []>} : vector<8x128xbf16>, vector<128x512xbf16>, vector<8x512xf32> -> vector<8x512xf32>
    %417 = arith.addf %413, %416 : vector<8x512xf32>
    %418 = vector.extract_strided_slice %417 {offsets = [0, 0], sizes = [8, 128], strides = [1, 1]} : vector<8x512xf32> to vector<8x128xf32>
    %419 = arith.negf %418 : vector<8x128xf32>
    %420 = math.exp %419 : vector<8x128xf32>
    %cst_244 = arith.constant 1.000000e+00 : f32
    %421 = vector.broadcast %cst_244 : f32 to vector<8x128xf32>
    %422 = arith.addf %421, %420 : vector<8x128xf32>
    %423 = arith.divf %421, %422 : vector<8x128xf32>
    %424 = vector.extract_strided_slice %417 {offsets = [0, 128], sizes = [8, 128], strides = [1, 1]} : vector<8x512xf32> to vector<8x128xf32>
    %425 = arith.negf %424 : vector<8x128xf32>
    %426 = math.exp %425 : vector<8x128xf32>
    %cst_245 = arith.constant 1.000000e+00 : f32
    %427 = vector.broadcast %cst_245 : f32 to vector<8x128xf32>
    %428 = arith.addf %427, %426 : vector<8x128xf32>
    %429 = arith.divf %427, %428 : vector<8x128xf32>
    %430 = vector.extract_strided_slice %417 {offsets = [0, 256], sizes = [8, 128], strides = [1, 1]} : vector<8x512xf32> to vector<8x128xf32>
    %431 = math.tanh %430 : vector<8x128xf32>
    %432 = vector.extract_strided_slice %417 {offsets = [0, 384], sizes = [8, 128], strides = [1, 1]} : vector<8x512xf32> to vector<8x128xf32>
    %433 = arith.negf %432 : vector<8x128xf32>
    %434 = math.exp %433 : vector<8x128xf32>
    %cst_246 = arith.constant 1.000000e+00 : f32
    %435 = vector.broadcast %cst_246 : f32 to vector<8x128xf32>
    %436 = arith.addf %435, %434 : vector<8x128xf32>
    %437 = arith.divf %435, %436 : vector<8x128xf32>
    %c0_247 = arith.constant 0 : index
    %c0_248 = arith.constant 0 : index
    %438 = vector.load %arg10[%c0_247, %c0_248] : memref<8x128xf32, #tpu.memory_space<vmem>>, vector<8x128xf32>
    %439 = arith.mulf %429, %438 : vector<8x128xf32>
    %440 = arith.mulf %423, %431 : vector<8x128xf32>
    %441 = arith.addf %439, %440 : vector<8x128xf32>
    %c0_249 = arith.constant 0 : index
    %c0_250 = arith.constant 0 : index
    %442 = vector.load %arg10[%c0_249, %c0_250] : memref<8x128xf32, #tpu.memory_space<vmem>>, vector<8x128xf32>
    tpu.vector_store %arg10[%c0_249, %c0_250], %441 {strides = array<i32>} : memref<8x128xf32, #tpu.memory_space<vmem>>, vector<8x128xf32>,
    %443 = math.tanh %441 : vector<8x128xf32>
    %444 = arith.mulf %437, %443 : vector<8x128xf32>
    %c0_251 = arith.constant 0 : index
    %c0_252 = arith.constant 0 : index
    %445 = vector.load %arg9[%c0_251, %c0_252] : memref<8x128xf32, #tpu.memory_space<vmem>>, vector<8x128xf32>
    tpu.vector_store %arg9[%c0_251, %c0_252], %444 {strides = array<i32>} : memref<8x128xf32, #tpu.memory_space<vmem>>, vector<8x128xf32>,
    %c72_253 = arith.constant 72 : index
    %c0_254 = arith.constant 0 : index
    %446 = vector.load %arg8[%c72_253, %c0_254] : memref<224x512xf32, #tpu.memory_space<vmem>>, vector<8x512xf32>
    %c0_255 = arith.constant 0 : index
    %c0_256 = arith.constant 0 : index
    %447 = vector.load %arg9[%c0_255, %c0_256] : memref<8x128xf32, #tpu.memory_space<vmem>>, vector<8x128xf32>
    %448 = arith.truncf %447 : vector<8x128xf32> to vector<8x128xbf16>
    %cst_257 = arith.constant dense<0.000000e+00> : vector<8x512xf32>
    %449 = tpu.matmul %448, %1, %cst_257 {dimension_numbers = #tpu.dot_dimension_numbers<[1], [0], [0], [1], [0, 0, 1, 1], [], []>} : vector<8x128xbf16>, vector<128x512xbf16>, vector<8x512xf32> -> vector<8x512xf32>
    %450 = arith.addf %446, %449 : vector<8x512xf32>
    %451 = vector.extract_strided_slice %450 {offsets = [0, 0], sizes = [8, 128], strides = [1, 1]} : vector<8x512xf32> to vector<8x128xf32>
    %452 = arith.negf %451 : vector<8x128xf32>
    %453 = math.exp %452 : vector<8x128xf32>
    %cst_258 = arith.constant 1.000000e+00 : f32
    %454 = vector.broadcast %cst_258 : f32 to vector<8x128xf32>
    %455 = arith.addf %454, %453 : vector<8x128xf32>
    %456 = arith.divf %454, %455 : vector<8x128xf32>
    %457 = vector.extract_strided_slice %450 {offsets = [0, 128], sizes = [8, 128], strides = [1, 1]} : vector<8x512xf32> to vector<8x128xf32>
    %458 = arith.negf %457 : vector<8x128xf32>
    %459 = math.exp %458 : vector<8x128xf32>
    %cst_259 = arith.constant 1.000000e+00 : f32
    %460 = vector.broadcast %cst_259 : f32 to vector<8x128xf32>
    %461 = arith.addf %460, %459 : vector<8x128xf32>
    %462 = arith.divf %460, %461 : vector<8x128xf32>
    %463 = vector.extract_strided_slice %450 {offsets = [0, 256], sizes = [8, 128], strides = [1, 1]} : vector<8x512xf32> to vector<8x128xf32>
    %464 = math.tanh %463 : vector<8x128xf32>
    %465 = vector.extract_strided_slice %450 {offsets = [0, 384], sizes = [8, 128], strides = [1, 1]} : vector<8x512xf32> to vector<8x128xf32>
    %466 = arith.negf %465 : vector<8x128xf32>
    %467 = math.exp %466 : vector<8x128xf32>
    %cst_260 = arith.constant 1.000000e+00 : f32
    %468 = vector.broadcast %cst_260 : f32 to vector<8x128xf32>
    %469 = arith.addf %468, %467 : vector<8x128xf32>
    %470 = arith.divf %468, %469 : vector<8x128xf32>
    %c0_261 = arith.constant 0 : index
    %c0_262 = arith.constant 0 : index
    %471 = vector.load %arg10[%c0_261, %c0_262] : memref<8x128xf32, #tpu.memory_space<vmem>>, vector<8x128xf32>
    %472 = arith.mulf %462, %471 : vector<8x128xf32>
    %473 = arith.mulf %456, %464 : vector<8x128xf32>
    %474 = arith.addf %472, %473 : vector<8x128xf32>
    %c0_263 = arith.constant 0 : index
    %c0_264 = arith.constant 0 : index
    %475 = vector.load %arg10[%c0_263, %c0_264] : memref<8x128xf32, #tpu.memory_space<vmem>>, vector<8x128xf32>
    tpu.vector_store %arg10[%c0_263, %c0_264], %474 {strides = array<i32>} : memref<8x128xf32, #tpu.memory_space<vmem>>, vector<8x128xf32>,
    %476 = math.tanh %474 : vector<8x128xf32>
    %477 = arith.mulf %470, %476 : vector<8x128xf32>
    %c0_265 = arith.constant 0 : index
    %c0_266 = arith.constant 0 : index
    %478 = vector.load %arg9[%c0_265, %c0_266] : memref<8x128xf32, #tpu.memory_space<vmem>>, vector<8x128xf32>
    tpu.vector_store %arg9[%c0_265, %c0_266], %477 {strides = array<i32>} : memref<8x128xf32, #tpu.memory_space<vmem>>, vector<8x128xf32>,
    %c80_267 = arith.constant 80 : index
    %c0_268 = arith.constant 0 : index
    %479 = vector.load %arg8[%c80_267, %c0_268] : memref<224x512xf32, #tpu.memory_space<vmem>>, vector<8x512xf32>
    %c0_269 = arith.constant 0 : index
    %c0_270 = arith.constant 0 : index
    %480 = vector.load %arg9[%c0_269, %c0_270] : memref<8x128xf32, #tpu.memory_space<vmem>>, vector<8x128xf32>
    %481 = arith.truncf %480 : vector<8x128xf32> to vector<8x128xbf16>
    %cst_271 = arith.constant dense<0.000000e+00> : vector<8x512xf32>
    %482 = tpu.matmul %481, %1, %cst_271 {dimension_numbers = #tpu.dot_dimension_numbers<[1], [0], [0], [1], [0, 0, 1, 1], [], []>} : vector<8x128xbf16>, vector<128x512xbf16>, vector<8x512xf32> -> vector<8x512xf32>
    %483 = arith.addf %479, %482 : vector<8x512xf32>
    %484 = vector.extract_strided_slice %483 {offsets = [0, 0], sizes = [8, 128], strides = [1, 1]} : vector<8x512xf32> to vector<8x128xf32>
    %485 = arith.negf %484 : vector<8x128xf32>
    %486 = math.exp %485 : vector<8x128xf32>
    %cst_272 = arith.constant 1.000000e+00 : f32
    %487 = vector.broadcast %cst_272 : f32 to vector<8x128xf32>
    %488 = arith.addf %487, %486 : vector<8x128xf32>
    %489 = arith.divf %487, %488 : vector<8x128xf32>
    %490 = vector.extract_strided_slice %483 {offsets = [0, 128], sizes = [8, 128], strides = [1, 1]} : vector<8x512xf32> to vector<8x128xf32>
    %491 = arith.negf %490 : vector<8x128xf32>
    %492 = math.exp %491 : vector<8x128xf32>
    %cst_273 = arith.constant 1.000000e+00 : f32
    %493 = vector.broadcast %cst_273 : f32 to vector<8x128xf32>
    %494 = arith.addf %493, %492 : vector<8x128xf32>
    %495 = arith.divf %493, %494 : vector<8x128xf32>
    %496 = vector.extract_strided_slice %483 {offsets = [0, 256], sizes = [8, 128], strides = [1, 1]} : vector<8x512xf32> to vector<8x128xf32>
    %497 = math.tanh %496 : vector<8x128xf32>
    %498 = vector.extract_strided_slice %483 {offsets = [0, 384], sizes = [8, 128], strides = [1, 1]} : vector<8x512xf32> to vector<8x128xf32>
    %499 = arith.negf %498 : vector<8x128xf32>
    %500 = math.exp %499 : vector<8x128xf32>
    %cst_274 = arith.constant 1.000000e+00 : f32
    %501 = vector.broadcast %cst_274 : f32 to vector<8x128xf32>
    %502 = arith.addf %501, %500 : vector<8x128xf32>
    %503 = arith.divf %501, %502 : vector<8x128xf32>
    %c0_275 = arith.constant 0 : index
    %c0_276 = arith.constant 0 : index
    %504 = vector.load %arg10[%c0_275, %c0_276] : memref<8x128xf32, #tpu.memory_space<vmem>>, vector<8x128xf32>
    %505 = arith.mulf %495, %504 : vector<8x128xf32>
    %506 = arith.mulf %489, %497 : vector<8x128xf32>
    %507 = arith.addf %505, %506 : vector<8x128xf32>
    %c0_277 = arith.constant 0 : index
    %c0_278 = arith.constant 0 : index
    %508 = vector.load %arg10[%c0_277, %c0_278] : memref<8x128xf32, #tpu.memory_space<vmem>>, vector<8x128xf32>
    tpu.vector_store %arg10[%c0_277, %c0_278], %507 {strides = array<i32>} : memref<8x128xf32, #tpu.memory_space<vmem>>, vector<8x128xf32>,
    %509 = math.tanh %507 : vector<8x128xf32>
    %510 = arith.mulf %503, %509 : vector<8x128xf32>
    %c0_279 = arith.constant 0 : index
    %c0_280 = arith.constant 0 : index
    %511 = vector.load %arg9[%c0_279, %c0_280] : memref<8x128xf32, #tpu.memory_space<vmem>>, vector<8x128xf32>
    tpu.vector_store %arg9[%c0_279, %c0_280], %510 {strides = array<i32>} : memref<8x128xf32, #tpu.memory_space<vmem>>, vector<8x128xf32>,
    %c88_281 = arith.constant 88 : index
    %c0_282 = arith.constant 0 : index
    %512 = vector.load %arg8[%c88_281, %c0_282] : memref<224x512xf32, #tpu.memory_space<vmem>>, vector<8x512xf32>
    %c0_283 = arith.constant 0 : index
    %c0_284 = arith.constant 0 : index
    %513 = vector.load %arg9[%c0_283, %c0_284] : memref<8x128xf32, #tpu.memory_space<vmem>>, vector<8x128xf32>
    %514 = arith.truncf %513 : vector<8x128xf32> to vector<8x128xbf16>
    %cst_285 = arith.constant dense<0.000000e+00> : vector<8x512xf32>
    %515 = tpu.matmul %514, %1, %cst_285 {dimension_numbers = #tpu.dot_dimension_numbers<[1], [0], [0], [1], [0, 0, 1, 1], [], []>} : vector<8x128xbf16>, vector<128x512xbf16>, vector<8x512xf32> -> vector<8x512xf32>
    %516 = arith.addf %512, %515 : vector<8x512xf32>
    %517 = vector.extract_strided_slice %516 {offsets = [0, 0], sizes = [8, 128], strides = [1, 1]} : vector<8x512xf32> to vector<8x128xf32>
    %518 = arith.negf %517 : vector<8x128xf32>
    %519 = math.exp %518 : vector<8x128xf32>
    %cst_286 = arith.constant 1.000000e+00 : f32
    %520 = vector.broadcast %cst_286 : f32 to vector<8x128xf32>
    %521 = arith.addf %520, %519 : vector<8x128xf32>
    %522 = arith.divf %520, %521 : vector<8x128xf32>
    %523 = vector.extract_strided_slice %516 {offsets = [0, 128], sizes = [8, 128], strides = [1, 1]} : vector<8x512xf32> to vector<8x128xf32>
    %524 = arith.negf %523 : vector<8x128xf32>
    %525 = math.exp %524 : vector<8x128xf32>
    %cst_287 = arith.constant 1.000000e+00 : f32
    %526 = vector.broadcast %cst_287 : f32 to vector<8x128xf32>
    %527 = arith.addf %526, %525 : vector<8x128xf32>
    %528 = arith.divf %526, %527 : vector<8x128xf32>
    %529 = vector.extract_strided_slice %516 {offsets = [0, 256], sizes = [8, 128], strides = [1, 1]} : vector<8x512xf32> to vector<8x128xf32>
    %530 = math.tanh %529 : vector<8x128xf32>
    %531 = vector.extract_strided_slice %516 {offsets = [0, 384], sizes = [8, 128], strides = [1, 1]} : vector<8x512xf32> to vector<8x128xf32>
    %532 = arith.negf %531 : vector<8x128xf32>
    %533 = math.exp %532 : vector<8x128xf32>
    %cst_288 = arith.constant 1.000000e+00 : f32
    %534 = vector.broadcast %cst_288 : f32 to vector<8x128xf32>
    %535 = arith.addf %534, %533 : vector<8x128xf32>
    %536 = arith.divf %534, %535 : vector<8x128xf32>
    %c0_289 = arith.constant 0 : index
    %c0_290 = arith.constant 0 : index
    %537 = vector.load %arg10[%c0_289, %c0_290] : memref<8x128xf32, #tpu.memory_space<vmem>>, vector<8x128xf32>
    %538 = arith.mulf %528, %537 : vector<8x128xf32>
    %539 = arith.mulf %522, %530 : vector<8x128xf32>
    %540 = arith.addf %538, %539 : vector<8x128xf32>
    %c0_291 = arith.constant 0 : index
    %c0_292 = arith.constant 0 : index
    %541 = vector.load %arg10[%c0_291, %c0_292] : memref<8x128xf32, #tpu.memory_space<vmem>>, vector<8x128xf32>
    tpu.vector_store %arg10[%c0_291, %c0_292], %540 {strides = array<i32>} : memref<8x128xf32, #tpu.memory_space<vmem>>, vector<8x128xf32>,
    %542 = math.tanh %540 : vector<8x128xf32>
    %543 = arith.mulf %536, %542 : vector<8x128xf32>
    %c0_293 = arith.constant 0 : index
    %c0_294 = arith.constant 0 : index
    %544 = vector.load %arg9[%c0_293, %c0_294] : memref<8x128xf32, #tpu.memory_space<vmem>>, vector<8x128xf32>
    tpu.vector_store %arg9[%c0_293, %c0_294], %543 {strides = array<i32>} : memref<8x128xf32, #tpu.memory_space<vmem>>, vector<8x128xf32>,
    %c96_295 = arith.constant 96 : index
    %c0_296 = arith.constant 0 : index
    %545 = vector.load %arg8[%c96_295, %c0_296] : memref<224x512xf32, #tpu.memory_space<vmem>>, vector<8x512xf32>
    %c0_297 = arith.constant 0 : index
    %c0_298 = arith.constant 0 : index
    %546 = vector.load %arg9[%c0_297, %c0_298] : memref<8x128xf32, #tpu.memory_space<vmem>>, vector<8x128xf32>
    %547 = arith.truncf %546 : vector<8x128xf32> to vector<8x128xbf16>
    %cst_299 = arith.constant dense<0.000000e+00> : vector<8x512xf32>
    %548 = tpu.matmul %547, %1, %cst_299 {dimension_numbers = #tpu.dot_dimension_numbers<[1], [0], [0], [1], [0, 0, 1, 1], [], []>} : vector<8x128xbf16>, vector<128x512xbf16>, vector<8x512xf32> -> vector<8x512xf32>
    %549 = arith.addf %545, %548 : vector<8x512xf32>
    %550 = vector.extract_strided_slice %549 {offsets = [0, 0], sizes = [8, 128], strides = [1, 1]} : vector<8x512xf32> to vector<8x128xf32>
    %551 = arith.negf %550 : vector<8x128xf32>
    %552 = math.exp %551 : vector<8x128xf32>
    %cst_300 = arith.constant 1.000000e+00 : f32
    %553 = vector.broadcast %cst_300 : f32 to vector<8x128xf32>
    %554 = arith.addf %553, %552 : vector<8x128xf32>
    %555 = arith.divf %553, %554 : vector<8x128xf32>
    %556 = vector.extract_strided_slice %549 {offsets = [0, 128], sizes = [8, 128], strides = [1, 1]} : vector<8x512xf32> to vector<8x128xf32>
    %557 = arith.negf %556 : vector<8x128xf32>
    %558 = math.exp %557 : vector<8x128xf32>
    %cst_301 = arith.constant 1.000000e+00 : f32
    %559 = vector.broadcast %cst_301 : f32 to vector<8x128xf32>
    %560 = arith.addf %559, %558 : vector<8x128xf32>
    %561 = arith.divf %559, %560 : vector<8x128xf32>
    %562 = vector.extract_strided_slice %549 {offsets = [0, 256], sizes = [8, 128], strides = [1, 1]} : vector<8x512xf32> to vector<8x128xf32>
    %563 = math.tanh %562 : vector<8x128xf32>
    %564 = vector.extract_strided_slice %549 {offsets = [0, 384], sizes = [8, 128], strides = [1, 1]} : vector<8x512xf32> to vector<8x128xf32>
    %565 = arith.negf %564 : vector<8x128xf32>
    %566 = math.exp %565 : vector<8x128xf32>
    %cst_302 = arith.constant 1.000000e+00 : f32
    %567 = vector.broadcast %cst_302 : f32 to vector<8x128xf32>
    %568 = arith.addf %567, %566 : vector<8x128xf32>
    %569 = arith.divf %567, %568 : vector<8x128xf32>
    %c0_303 = arith.constant 0 : index
    %c0_304 = arith.constant 0 : index
    %570 = vector.load %arg10[%c0_303, %c0_304] : memref<8x128xf32, #tpu.memory_space<vmem>>, vector<8x128xf32>
    %571 = arith.mulf %561, %570 : vector<8x128xf32>
    %572 = arith.mulf %555, %563 : vector<8x128xf32>
    %573 = arith.addf %571, %572 : vector<8x128xf32>
    %c0_305 = arith.constant 0 : index
    %c0_306 = arith.constant 0 : index
    %574 = vector.load %arg10[%c0_305, %c0_306] : memref<8x128xf32, #tpu.memory_space<vmem>>, vector<8x128xf32>
    tpu.vector_store %arg10[%c0_305, %c0_306], %573 {strides = array<i32>} : memref<8x128xf32, #tpu.memory_space<vmem>>, vector<8x128xf32>,
    %575 = math.tanh %573 : vector<8x128xf32>
    %576 = arith.mulf %569, %575 : vector<8x128xf32>
    %c0_307 = arith.constant 0 : index
    %c0_308 = arith.constant 0 : index
    %577 = vector.load %arg9[%c0_307, %c0_308] : memref<8x128xf32, #tpu.memory_space<vmem>>, vector<8x128xf32>
    tpu.vector_store %arg9[%c0_307, %c0_308], %576 {strides = array<i32>} : memref<8x128xf32, #tpu.memory_space<vmem>>, vector<8x128xf32>,
    %c104_309 = arith.constant 104 : index
    %c0_310 = arith.constant 0 : index
    %578 = vector.load %arg8[%c104_309, %c0_310] : memref<224x512xf32, #tpu.memory_space<vmem>>, vector<8x512xf32>
    %c0_311 = arith.constant 0 : index
    %c0_312 = arith.constant 0 : index
    %579 = vector.load %arg9[%c0_311, %c0_312] : memref<8x128xf32, #tpu.memory_space<vmem>>, vector<8x128xf32>
    %580 = arith.truncf %579 : vector<8x128xf32> to vector<8x128xbf16>
    %cst_313 = arith.constant dense<0.000000e+00> : vector<8x512xf32>
    %581 = tpu.matmul %580, %1, %cst_313 {dimension_numbers = #tpu.dot_dimension_numbers<[1], [0], [0], [1], [0, 0, 1, 1], [], []>} : vector<8x128xbf16>, vector<128x512xbf16>, vector<8x512xf32> -> vector<8x512xf32>
    %582 = arith.addf %578, %581 : vector<8x512xf32>
    %583 = vector.extract_strided_slice %582 {offsets = [0, 0], sizes = [8, 128], strides = [1, 1]} : vector<8x512xf32> to vector<8x128xf32>
    %584 = arith.negf %583 : vector<8x128xf32>
    %585 = math.exp %584 : vector<8x128xf32>
    %cst_314 = arith.constant 1.000000e+00 : f32
    %586 = vector.broadcast %cst_314 : f32 to vector<8x128xf32>
    %587 = arith.addf %586, %585 : vector<8x128xf32>
    %588 = arith.divf %586, %587 : vector<8x128xf32>
    %589 = vector.extract_strided_slice %582 {offsets = [0, 128], sizes = [8, 128], strides = [1, 1]} : vector<8x512xf32> to vector<8x128xf32>
    %590 = arith.negf %589 : vector<8x128xf32>
    %591 = math.exp %590 : vector<8x128xf32>
    %cst_315 = arith.constant 1.000000e+00 : f32
    %592 = vector.broadcast %cst_315 : f32 to vector<8x128xf32>
    %593 = arith.addf %592, %591 : vector<8x128xf32>
    %594 = arith.divf %592, %593 : vector<8x128xf32>
    %595 = vector.extract_strided_slice %582 {offsets = [0, 256], sizes = [8, 128], strides = [1, 1]} : vector<8x512xf32> to vector<8x128xf32>
    %596 = math.tanh %595 : vector<8x128xf32>
    %597 = vector.extract_strided_slice %582 {offsets = [0, 384], sizes = [8, 128], strides = [1, 1]} : vector<8x512xf32> to vector<8x128xf32>
    %598 = arith.negf %597 : vector<8x128xf32>
    %599 = math.exp %598 : vector<8x128xf32>
    %cst_316 = arith.constant 1.000000e+00 : f32
    %600 = vector.broadcast %cst_316 : f32 to vector<8x128xf32>
    %601 = arith.addf %600, %599 : vector<8x128xf32>
    %602 = arith.divf %600, %601 : vector<8x128xf32>
    %c0_317 = arith.constant 0 : index
    %c0_318 = arith.constant 0 : index
    %603 = vector.load %arg10[%c0_317, %c0_318] : memref<8x128xf32, #tpu.memory_space<vmem>>, vector<8x128xf32>
    %604 = arith.mulf %594, %603 : vector<8x128xf32>
    %605 = arith.mulf %588, %596 : vector<8x128xf32>
    %606 = arith.addf %604, %605 : vector<8x128xf32>
    %c0_319 = arith.constant 0 : index
    %c0_320 = arith.constant 0 : index
    %607 = vector.load %arg10[%c0_319, %c0_320] : memref<8x128xf32, #tpu.memory_space<vmem>>, vector<8x128xf32>
    tpu.vector_store %arg10[%c0_319, %c0_320], %606 {strides = array<i32>} : memref<8x128xf32, #tpu.memory_space<vmem>>, vector<8x128xf32>,
    %608 = math.tanh %606 : vector<8x128xf32>
    %609 = arith.mulf %602, %608 : vector<8x128xf32>
    %c0_321 = arith.constant 0 : index
    %c0_322 = arith.constant 0 : index
    %610 = vector.load %arg9[%c0_321, %c0_322] : memref<8x128xf32, #tpu.memory_space<vmem>>, vector<8x128xf32>
    tpu.vector_store %arg9[%c0_321, %c0_322], %609 {strides = array<i32>} : memref<8x128xf32, #tpu.memory_space<vmem>>, vector<8x128xf32>,
    %c112_323 = arith.constant 112 : index
    %c0_324 = arith.constant 0 : index
    %611 = vector.load %arg8[%c112_323, %c0_324] : memref<224x512xf32, #tpu.memory_space<vmem>>, vector<8x512xf32>
    %c0_325 = arith.constant 0 : index
    %c0_326 = arith.constant 0 : index
    %612 = vector.load %arg9[%c0_325, %c0_326] : memref<8x128xf32, #tpu.memory_space<vmem>>, vector<8x128xf32>
    %613 = arith.truncf %612 : vector<8x128xf32> to vector<8x128xbf16>
    %cst_327 = arith.constant dense<0.000000e+00> : vector<8x512xf32>
    %614 = tpu.matmul %613, %1, %cst_327 {dimension_numbers = #tpu.dot_dimension_numbers<[1], [0], [0], [1], [0, 0, 1, 1], [], []>} : vector<8x128xbf16>, vector<128x512xbf16>, vector<8x512xf32> -> vector<8x512xf32>
    %615 = arith.addf %611, %614 : vector<8x512xf32>
    %616 = vector.extract_strided_slice %615 {offsets = [0, 0], sizes = [8, 128], strides = [1, 1]} : vector<8x512xf32> to vector<8x128xf32>
    %617 = arith.negf %616 : vector<8x128xf32>
    %618 = math.exp %617 : vector<8x128xf32>
    %cst_328 = arith.constant 1.000000e+00 : f32
    %619 = vector.broadcast %cst_328 : f32 to vector<8x128xf32>
    %620 = arith.addf %619, %618 : vector<8x128xf32>
    %621 = arith.divf %619, %620 : vector<8x128xf32>
    %622 = vector.extract_strided_slice %615 {offsets = [0, 128], sizes = [8, 128], strides = [1, 1]} : vector<8x512xf32> to vector<8x128xf32>
    %623 = arith.negf %622 : vector<8x128xf32>
    %624 = math.exp %623 : vector<8x128xf32>
    %cst_329 = arith.constant 1.000000e+00 : f32
    %625 = vector.broadcast %cst_329 : f32 to vector<8x128xf32>
    %626 = arith.addf %625, %624 : vector<8x128xf32>
    %627 = arith.divf %625, %626 : vector<8x128xf32>
    %628 = vector.extract_strided_slice %615 {offsets = [0, 256], sizes = [8, 128], strides = [1, 1]} : vector<8x512xf32> to vector<8x128xf32>
    %629 = math.tanh %628 : vector<8x128xf32>
    %630 = vector.extract_strided_slice %615 {offsets = [0, 384], sizes = [8, 128], strides = [1, 1]} : vector<8x512xf32> to vector<8x128xf32>
    %631 = arith.negf %630 : vector<8x128xf32>
    %632 = math.exp %631 : vector<8x128xf32>
    %cst_330 = arith.constant 1.000000e+00 : f32
    %633 = vector.broadcast %cst_330 : f32 to vector<8x128xf32>
    %634 = arith.addf %633, %632 : vector<8x128xf32>
    %635 = arith.divf %633, %634 : vector<8x128xf32>
    %c0_331 = arith.constant 0 : index
    %c0_332 = arith.constant 0 : index
    %636 = vector.load %arg10[%c0_331, %c0_332] : memref<8x128xf32, #tpu.memory_space<vmem>>, vector<8x128xf32>
    %637 = arith.mulf %627, %636 : vector<8x128xf32>
    %638 = arith.mulf %621, %629 : vector<8x128xf32>
    %639 = arith.addf %637, %638 : vector<8x128xf32>
    %c0_333 = arith.constant 0 : index
    %c0_334 = arith.constant 0 : index
    %640 = vector.load %arg10[%c0_333, %c0_334] : memref<8x128xf32, #tpu.memory_space<vmem>>, vector<8x128xf32>
    tpu.vector_store %arg10[%c0_333, %c0_334], %639 {strides = array<i32>} : memref<8x128xf32, #tpu.memory_space<vmem>>, vector<8x128xf32>,
    %641 = math.tanh %639 : vector<8x128xf32>
    %642 = arith.mulf %635, %641 : vector<8x128xf32>
    %c0_335 = arith.constant 0 : index
    %c0_336 = arith.constant 0 : index
    %643 = vector.load %arg9[%c0_335, %c0_336] : memref<8x128xf32, #tpu.memory_space<vmem>>, vector<8x128xf32>
    tpu.vector_store %arg9[%c0_335, %c0_336], %642 {strides = array<i32>} : memref<8x128xf32, #tpu.memory_space<vmem>>, vector<8x128xf32>,
    %c120_337 = arith.constant 120 : index
    %c0_338 = arith.constant 0 : index
    %644 = vector.load %arg8[%c120_337, %c0_338] : memref<224x512xf32, #tpu.memory_space<vmem>>, vector<8x512xf32>
    %c0_339 = arith.constant 0 : index
    %c0_340 = arith.constant 0 : index
    %645 = vector.load %arg9[%c0_339, %c0_340] : memref<8x128xf32, #tpu.memory_space<vmem>>, vector<8x128xf32>
    %646 = arith.truncf %645 : vector<8x128xf32> to vector<8x128xbf16>
    %cst_341 = arith.constant dense<0.000000e+00> : vector<8x512xf32>
    %647 = tpu.matmul %646, %1, %cst_341 {dimension_numbers = #tpu.dot_dimension_numbers<[1], [0], [0], [1], [0, 0, 1, 1], [], []>} : vector<8x128xbf16>, vector<128x512xbf16>, vector<8x512xf32> -> vector<8x512xf32>
    %648 = arith.addf %644, %647 : vector<8x512xf32>
    %649 = vector.extract_strided_slice %648 {offsets = [0, 0], sizes = [8, 128], strides = [1, 1]} : vector<8x512xf32> to vector<8x128xf32>
    %650 = arith.negf %649 : vector<8x128xf32>
    %651 = math.exp %650 : vector<8x128xf32>
    %cst_342 = arith.constant 1.000000e+00 : f32
    %652 = vector.broadcast %cst_342 : f32 to vector<8x128xf32>
    %653 = arith.addf %652, %651 : vector<8x128xf32>
    %654 = arith.divf %652, %653 : vector<8x128xf32>
    %655 = vector.extract_strided_slice %648 {offsets = [0, 128], sizes = [8, 128], strides = [1, 1]} : vector<8x512xf32> to vector<8x128xf32>
    %656 = arith.negf %655 : vector<8x128xf32>
    %657 = math.exp %656 : vector<8x128xf32>
    %cst_343 = arith.constant 1.000000e+00 : f32
    %658 = vector.broadcast %cst_343 : f32 to vector<8x128xf32>
    %659 = arith.addf %658, %657 : vector<8x128xf32>
    %660 = arith.divf %658, %659 : vector<8x128xf32>
    %661 = vector.extract_strided_slice %648 {offsets = [0, 256], sizes = [8, 128], strides = [1, 1]} : vector<8x512xf32> to vector<8x128xf32>
    %662 = math.tanh %661 : vector<8x128xf32>
    %663 = vector.extract_strided_slice %648 {offsets = [0, 384], sizes = [8, 128], strides = [1, 1]} : vector<8x512xf32> to vector<8x128xf32>
    %664 = arith.negf %663 : vector<8x128xf32>
    %665 = math.exp %664 : vector<8x128xf32>
    %cst_344 = arith.constant 1.000000e+00 : f32
    %666 = vector.broadcast %cst_344 : f32 to vector<8x128xf32>
    %667 = arith.addf %666, %665 : vector<8x128xf32>
    %668 = arith.divf %666, %667 : vector<8x128xf32>
    %c0_345 = arith.constant 0 : index
    %c0_346 = arith.constant 0 : index
    %669 = vector.load %arg10[%c0_345, %c0_346] : memref<8x128xf32, #tpu.memory_space<vmem>>, vector<8x128xf32>
    %670 = arith.mulf %660, %669 : vector<8x128xf32>
    %671 = arith.mulf %654, %662 : vector<8x128xf32>
    %672 = arith.addf %670, %671 : vector<8x128xf32>
    %c0_347 = arith.constant 0 : index
    %c0_348 = arith.constant 0 : index
    %673 = vector.load %arg10[%c0_347, %c0_348] : memref<8x128xf32, #tpu.memory_space<vmem>>, vector<8x128xf32>
    tpu.vector_store %arg10[%c0_347, %c0_348], %672 {strides = array<i32>} : memref<8x128xf32, #tpu.memory_space<vmem>>, vector<8x128xf32>,
    %674 = math.tanh %672 : vector<8x128xf32>
    %675 = arith.mulf %668, %674 : vector<8x128xf32>
    %c0_349 = arith.constant 0 : index
    %c0_350 = arith.constant 0 : index
    %676 = vector.load %arg9[%c0_349, %c0_350] : memref<8x128xf32, #tpu.memory_space<vmem>>, vector<8x128xf32>
    tpu.vector_store %arg9[%c0_349, %c0_350], %675 {strides = array<i32>} : memref<8x128xf32, #tpu.memory_space<vmem>>, vector<8x128xf32>,
    %c128_351 = arith.constant 128 : index
    %c0_352 = arith.constant 0 : index
    %677 = vector.load %arg8[%c128_351, %c0_352] : memref<224x512xf32, #tpu.memory_space<vmem>>, vector<8x512xf32>
    %c0_353 = arith.constant 0 : index
    %c0_354 = arith.constant 0 : index
    %678 = vector.load %arg9[%c0_353, %c0_354] : memref<8x128xf32, #tpu.memory_space<vmem>>, vector<8x128xf32>
    %679 = arith.truncf %678 : vector<8x128xf32> to vector<8x128xbf16>
    %cst_355 = arith.constant dense<0.000000e+00> : vector<8x512xf32>
    %680 = tpu.matmul %679, %1, %cst_355 {dimension_numbers = #tpu.dot_dimension_numbers<[1], [0], [0], [1], [0, 0, 1, 1], [], []>} : vector<8x128xbf16>, vector<128x512xbf16>, vector<8x512xf32> -> vector<8x512xf32>
    %681 = arith.addf %677, %680 : vector<8x512xf32>
    %682 = vector.extract_strided_slice %681 {offsets = [0, 0], sizes = [8, 128], strides = [1, 1]} : vector<8x512xf32> to vector<8x128xf32>
    %683 = arith.negf %682 : vector<8x128xf32>
    %684 = math.exp %683 : vector<8x128xf32>
    %cst_356 = arith.constant 1.000000e+00 : f32
    %685 = vector.broadcast %cst_356 : f32 to vector<8x128xf32>
    %686 = arith.addf %685, %684 : vector<8x128xf32>
    %687 = arith.divf %685, %686 : vector<8x128xf32>
    %688 = vector.extract_strided_slice %681 {offsets = [0, 128], sizes = [8, 128], strides = [1, 1]} : vector<8x512xf32> to vector<8x128xf32>
    %689 = arith.negf %688 : vector<8x128xf32>
    %690 = math.exp %689 : vector<8x128xf32>
    %cst_357 = arith.constant 1.000000e+00 : f32
    %691 = vector.broadcast %cst_357 : f32 to vector<8x128xf32>
    %692 = arith.addf %691, %690 : vector<8x128xf32>
    %693 = arith.divf %691, %692 : vector<8x128xf32>
    %694 = vector.extract_strided_slice %681 {offsets = [0, 256], sizes = [8, 128], strides = [1, 1]} : vector<8x512xf32> to vector<8x128xf32>
    %695 = math.tanh %694 : vector<8x128xf32>
    %696 = vector.extract_strided_slice %681 {offsets = [0, 384], sizes = [8, 128], strides = [1, 1]} : vector<8x512xf32> to vector<8x128xf32>
    %697 = arith.negf %696 : vector<8x128xf32>
    %698 = math.exp %697 : vector<8x128xf32>
    %cst_358 = arith.constant 1.000000e+00 : f32
    %699 = vector.broadcast %cst_358 : f32 to vector<8x128xf32>
    %700 = arith.addf %699, %698 : vector<8x128xf32>
    %701 = arith.divf %699, %700 : vector<8x128xf32>
    %c0_359 = arith.constant 0 : index
    %c0_360 = arith.constant 0 : index
    %702 = vector.load %arg10[%c0_359, %c0_360] : memref<8x128xf32, #tpu.memory_space<vmem>>, vector<8x128xf32>
    %703 = arith.mulf %693, %702 : vector<8x128xf32>
    %704 = arith.mulf %687, %695 : vector<8x128xf32>
    %705 = arith.addf %703, %704 : vector<8x128xf32>
    %c0_361 = arith.constant 0 : index
    %c0_362 = arith.constant 0 : index
    %706 = vector.load %arg10[%c0_361, %c0_362] : memref<8x128xf32, #tpu.memory_space<vmem>>, vector<8x128xf32>
    tpu.vector_store %arg10[%c0_361, %c0_362], %705 {strides = array<i32>} : memref<8x128xf32, #tpu.memory_space<vmem>>, vector<8x128xf32>,
    %707 = math.tanh %705 : vector<8x128xf32>
    %708 = arith.mulf %701, %707 : vector<8x128xf32>
    %c0_363 = arith.constant 0 : index
    %c0_364 = arith.constant 0 : index
    %709 = vector.load %arg9[%c0_363, %c0_364] : memref<8x128xf32, #tpu.memory_space<vmem>>, vector<8x128xf32>
    tpu.vector_store %arg9[%c0_363, %c0_364], %708 {strides = array<i32>} : memref<8x128xf32, #tpu.memory_space<vmem>>, vector<8x128xf32>,
    %c136_365 = arith.constant 136 : index
    %c0_366 = arith.constant 0 : index
    %710 = vector.load %arg8[%c136_365, %c0_366] : memref<224x512xf32, #tpu.memory_space<vmem>>, vector<8x512xf32>
    %c0_367 = arith.constant 0 : index
    %c0_368 = arith.constant 0 : index
    %711 = vector.load %arg9[%c0_367, %c0_368] : memref<8x128xf32, #tpu.memory_space<vmem>>, vector<8x128xf32>
    %712 = arith.truncf %711 : vector<8x128xf32> to vector<8x128xbf16>
    %cst_369 = arith.constant dense<0.000000e+00> : vector<8x512xf32>
    %713 = tpu.matmul %712, %1, %cst_369 {dimension_numbers = #tpu.dot_dimension_numbers<[1], [0], [0], [1], [0, 0, 1, 1], [], []>} : vector<8x128xbf16>, vector<128x512xbf16>, vector<8x512xf32> -> vector<8x512xf32>
    %714 = arith.addf %710, %713 : vector<8x512xf32>
    %715 = vector.extract_strided_slice %714 {offsets = [0, 0], sizes = [8, 128], strides = [1, 1]} : vector<8x512xf32> to vector<8x128xf32>
    %716 = arith.negf %715 : vector<8x128xf32>
    %717 = math.exp %716 : vector<8x128xf32>
    %cst_370 = arith.constant 1.000000e+00 : f32
    %718 = vector.broadcast %cst_370 : f32 to vector<8x128xf32>
    %719 = arith.addf %718, %717 : vector<8x128xf32>
    %720 = arith.divf %718, %719 : vector<8x128xf32>
    %721 = vector.extract_strided_slice %714 {offsets = [0, 128], sizes = [8, 128], strides = [1, 1]} : vector<8x512xf32> to vector<8x128xf32>
    %722 = arith.negf %721 : vector<8x128xf32>
    %723 = math.exp %722 : vector<8x128xf32>
    %cst_371 = arith.constant 1.000000e+00 : f32
    %724 = vector.broadcast %cst_371 : f32 to vector<8x128xf32>
    %725 = arith.addf %724, %723 : vector<8x128xf32>
    %726 = arith.divf %724, %725 : vector<8x128xf32>
    %727 = vector.extract_strided_slice %714 {offsets = [0, 256], sizes = [8, 128], strides = [1, 1]} : vector<8x512xf32> to vector<8x128xf32>
    %728 = math.tanh %727 : vector<8x128xf32>
    %729 = vector.extract_strided_slice %714 {offsets = [0, 384], sizes = [8, 128], strides = [1, 1]} : vector<8x512xf32> to vector<8x128xf32>
    %730 = arith.negf %729 : vector<8x128xf32>
    %731 = math.exp %730 : vector<8x128xf32>
    %cst_372 = arith.constant 1.000000e+00 : f32
    %732 = vector.broadcast %cst_372 : f32 to vector<8x128xf32>
    %733 = arith.addf %732, %731 : vector<8x128xf32>
    %734 = arith.divf %732, %733 : vector<8x128xf32>
    %c0_373 = arith.constant 0 : index
    %c0_374 = arith.constant 0 : index
    %735 = vector.load %arg10[%c0_373, %c0_374] : memref<8x128xf32, #tpu.memory_space<vmem>>, vector<8x128xf32>
    %736 = arith.mulf %726, %735 : vector<8x128xf32>
    %737 = arith.mulf %720, %728 : vector<8x128xf32>
    %738 = arith.addf %736, %737 : vector<8x128xf32>
    %c0_375 = arith.constant 0 : index
    %c0_376 = arith.constant 0 : index
    %739 = vector.load %arg10[%c0_375, %c0_376] : memref<8x128xf32, #tpu.memory_space<vmem>>, vector<8x128xf32>
    tpu.vector_store %arg10[%c0_375, %c0_376], %738 {strides = array<i32>} : memref<8x128xf32, #tpu.memory_space<vmem>>, vector<8x128xf32>,
    %740 = math.tanh %738 : vector<8x128xf32>
    %741 = arith.mulf %734, %740 : vector<8x128xf32>
    %c0_377 = arith.constant 0 : index
    %c0_378 = arith.constant 0 : index
    %742 = vector.load %arg9[%c0_377, %c0_378] : memref<8x128xf32, #tpu.memory_space<vmem>>, vector<8x128xf32>
    tpu.vector_store %arg9[%c0_377, %c0_378], %741 {strides = array<i32>} : memref<8x128xf32, #tpu.memory_space<vmem>>, vector<8x128xf32>,
    %c144_379 = arith.constant 144 : index
    %c0_380 = arith.constant 0 : index
    %743 = vector.load %arg8[%c144_379, %c0_380] : memref<224x512xf32, #tpu.memory_space<vmem>>, vector<8x512xf32>
    %c0_381 = arith.constant 0 : index
    %c0_382 = arith.constant 0 : index
    %744 = vector.load %arg9[%c0_381, %c0_382] : memref<8x128xf32, #tpu.memory_space<vmem>>, vector<8x128xf32>
    %745 = arith.truncf %744 : vector<8x128xf32> to vector<8x128xbf16>
    %cst_383 = arith.constant dense<0.000000e+00> : vector<8x512xf32>
    %746 = tpu.matmul %745, %1, %cst_383 {dimension_numbers = #tpu.dot_dimension_numbers<[1], [0], [0], [1], [0, 0, 1, 1], [], []>} : vector<8x128xbf16>, vector<128x512xbf16>, vector<8x512xf32> -> vector<8x512xf32>
    %747 = arith.addf %743, %746 : vector<8x512xf32>
    %748 = vector.extract_strided_slice %747 {offsets = [0, 0], sizes = [8, 128], strides = [1, 1]} : vector<8x512xf32> to vector<8x128xf32>
    %749 = arith.negf %748 : vector<8x128xf32>
    %750 = math.exp %749 : vector<8x128xf32>
    %cst_384 = arith.constant 1.000000e+00 : f32
    %751 = vector.broadcast %cst_384 : f32 to vector<8x128xf32>
    %752 = arith.addf %751, %750 : vector<8x128xf32>
    %753 = arith.divf %751, %752 : vector<8x128xf32>
    %754 = vector.extract_strided_slice %747 {offsets = [0, 128], sizes = [8, 128], strides = [1, 1]} : vector<8x512xf32> to vector<8x128xf32>
    %755 = arith.negf %754 : vector<8x128xf32>
    %756 = math.exp %755 : vector<8x128xf32>
    %cst_385 = arith.constant 1.000000e+00 : f32
    %757 = vector.broadcast %cst_385 : f32 to vector<8x128xf32>
    %758 = arith.addf %757, %756 : vector<8x128xf32>
    %759 = arith.divf %757, %758 : vector<8x128xf32>
    %760 = vector.extract_strided_slice %747 {offsets = [0, 256], sizes = [8, 128], strides = [1, 1]} : vector<8x512xf32> to vector<8x128xf32>
    %761 = math.tanh %760 : vector<8x128xf32>
    %762 = vector.extract_strided_slice %747 {offsets = [0, 384], sizes = [8, 128], strides = [1, 1]} : vector<8x512xf32> to vector<8x128xf32>
    %763 = arith.negf %762 : vector<8x128xf32>
    %764 = math.exp %763 : vector<8x128xf32>
    %cst_386 = arith.constant 1.000000e+00 : f32
    %765 = vector.broadcast %cst_386 : f32 to vector<8x128xf32>
    %766 = arith.addf %765, %764 : vector<8x128xf32>
    %767 = arith.divf %765, %766 : vector<8x128xf32>
    %c0_387 = arith.constant 0 : index
    %c0_388 = arith.constant 0 : index
    %768 = vector.load %arg10[%c0_387, %c0_388] : memref<8x128xf32, #tpu.memory_space<vmem>>, vector<8x128xf32>
    %769 = arith.mulf %759, %768 : vector<8x128xf32>
    %770 = arith.mulf %753, %761 : vector<8x128xf32>
    %771 = arith.addf %769, %770 : vector<8x128xf32>
    %c0_389 = arith.constant 0 : index
    %c0_390 = arith.constant 0 : index
    %772 = vector.load %arg10[%c0_389, %c0_390] : memref<8x128xf32, #tpu.memory_space<vmem>>, vector<8x128xf32>
    tpu.vector_store %arg10[%c0_389, %c0_390], %771 {strides = array<i32>} : memref<8x128xf32, #tpu.memory_space<vmem>>, vector<8x128xf32>,
    %773 = math.tanh %771 : vector<8x128xf32>
    %774 = arith.mulf %767, %773 : vector<8x128xf32>
    %c0_391 = arith.constant 0 : index
    %c0_392 = arith.constant 0 : index
    %775 = vector.load %arg9[%c0_391, %c0_392] : memref<8x128xf32, #tpu.memory_space<vmem>>, vector<8x128xf32>
    tpu.vector_store %arg9[%c0_391, %c0_392], %774 {strides = array<i32>} : memref<8x128xf32, #tpu.memory_space<vmem>>, vector<8x128xf32>,
    %c152_393 = arith.constant 152 : index
    %c0_394 = arith.constant 0 : index
    %776 = vector.load %arg8[%c152_393, %c0_394] : memref<224x512xf32, #tpu.memory_space<vmem>>, vector<8x512xf32>
    %c0_395 = arith.constant 0 : index
    %c0_396 = arith.constant 0 : index
    %777 = vector.load %arg9[%c0_395, %c0_396] : memref<8x128xf32, #tpu.memory_space<vmem>>, vector<8x128xf32>
    %778 = arith.truncf %777 : vector<8x128xf32> to vector<8x128xbf16>
    %cst_397 = arith.constant dense<0.000000e+00> : vector<8x512xf32>
    %779 = tpu.matmul %778, %1, %cst_397 {dimension_numbers = #tpu.dot_dimension_numbers<[1], [0], [0], [1], [0, 0, 1, 1], [], []>} : vector<8x128xbf16>, vector<128x512xbf16>, vector<8x512xf32> -> vector<8x512xf32>
    %780 = arith.addf %776, %779 : vector<8x512xf32>
    %781 = vector.extract_strided_slice %780 {offsets = [0, 0], sizes = [8, 128], strides = [1, 1]} : vector<8x512xf32> to vector<8x128xf32>
    %782 = arith.negf %781 : vector<8x128xf32>
    %783 = math.exp %782 : vector<8x128xf32>
    %cst_398 = arith.constant 1.000000e+00 : f32
    %784 = vector.broadcast %cst_398 : f32 to vector<8x128xf32>
    %785 = arith.addf %784, %783 : vector<8x128xf32>
    %786 = arith.divf %784, %785 : vector<8x128xf32>
    %787 = vector.extract_strided_slice %780 {offsets = [0, 128], sizes = [8, 128], strides = [1, 1]} : vector<8x512xf32> to vector<8x128xf32>
    %788 = arith.negf %787 : vector<8x128xf32>
    %789 = math.exp %788 : vector<8x128xf32>
    %cst_399 = arith.constant 1.000000e+00 : f32
    %790 = vector.broadcast %cst_399 : f32 to vector<8x128xf32>
    %791 = arith.addf %790, %789 : vector<8x128xf32>
    %792 = arith.divf %790, %791 : vector<8x128xf32>
    %793 = vector.extract_strided_slice %780 {offsets = [0, 256], sizes = [8, 128], strides = [1, 1]} : vector<8x512xf32> to vector<8x128xf32>
    %794 = math.tanh %793 : vector<8x128xf32>
    %795 = vector.extract_strided_slice %780 {offsets = [0, 384], sizes = [8, 128], strides = [1, 1]} : vector<8x512xf32> to vector<8x128xf32>
    %796 = arith.negf %795 : vector<8x128xf32>
    %797 = math.exp %796 : vector<8x128xf32>
    %cst_400 = arith.constant 1.000000e+00 : f32
    %798 = vector.broadcast %cst_400 : f32 to vector<8x128xf32>
    %799 = arith.addf %798, %797 : vector<8x128xf32>
    %800 = arith.divf %798, %799 : vector<8x128xf32>
    %c0_401 = arith.constant 0 : index
    %c0_402 = arith.constant 0 : index
    %801 = vector.load %arg10[%c0_401, %c0_402] : memref<8x128xf32, #tpu.memory_space<vmem>>, vector<8x128xf32>
    %802 = arith.mulf %792, %801 : vector<8x128xf32>
    %803 = arith.mulf %786, %794 : vector<8x128xf32>
    %804 = arith.addf %802, %803 : vector<8x128xf32>
    %c0_403 = arith.constant 0 : index
    %c0_404 = arith.constant 0 : index
    %805 = vector.load %arg10[%c0_403, %c0_404] : memref<8x128xf32, #tpu.memory_space<vmem>>, vector<8x128xf32>
    tpu.vector_store %arg10[%c0_403, %c0_404], %804 {strides = array<i32>} : memref<8x128xf32, #tpu.memory_space<vmem>>, vector<8x128xf32>,
    %806 = math.tanh %804 : vector<8x128xf32>
    %807 = arith.mulf %800, %806 : vector<8x128xf32>
    %c0_405 = arith.constant 0 : index
    %c0_406 = arith.constant 0 : index
    %808 = vector.load %arg9[%c0_405, %c0_406] : memref<8x128xf32, #tpu.memory_space<vmem>>, vector<8x128xf32>
    tpu.vector_store %arg9[%c0_405, %c0_406], %807 {strides = array<i32>} : memref<8x128xf32, #tpu.memory_space<vmem>>, vector<8x128xf32>,
    %c160_407 = arith.constant 160 : index
    %c0_408 = arith.constant 0 : index
    %809 = vector.load %arg8[%c160_407, %c0_408] : memref<224x512xf32, #tpu.memory_space<vmem>>, vector<8x512xf32>
    %c0_409 = arith.constant 0 : index
    %c0_410 = arith.constant 0 : index
    %810 = vector.load %arg9[%c0_409, %c0_410] : memref<8x128xf32, #tpu.memory_space<vmem>>, vector<8x128xf32>
    %811 = arith.truncf %810 : vector<8x128xf32> to vector<8x128xbf16>
    %cst_411 = arith.constant dense<0.000000e+00> : vector<8x512xf32>
    %812 = tpu.matmul %811, %1, %cst_411 {dimension_numbers = #tpu.dot_dimension_numbers<[1], [0], [0], [1], [0, 0, 1, 1], [], []>} : vector<8x128xbf16>, vector<128x512xbf16>, vector<8x512xf32> -> vector<8x512xf32>
    %813 = arith.addf %809, %812 : vector<8x512xf32>
    %814 = vector.extract_strided_slice %813 {offsets = [0, 0], sizes = [8, 128], strides = [1, 1]} : vector<8x512xf32> to vector<8x128xf32>
    %815 = arith.negf %814 : vector<8x128xf32>
    %816 = math.exp %815 : vector<8x128xf32>
    %cst_412 = arith.constant 1.000000e+00 : f32
    %817 = vector.broadcast %cst_412 : f32 to vector<8x128xf32>
    %818 = arith.addf %817, %816 : vector<8x128xf32>
    %819 = arith.divf %817, %818 : vector<8x128xf32>
    %820 = vector.extract_strided_slice %813 {offsets = [0, 128], sizes = [8, 128], strides = [1, 1]} : vector<8x512xf32> to vector<8x128xf32>
    %821 = arith.negf %820 : vector<8x128xf32>
    %822 = math.exp %821 : vector<8x128xf32>
    %cst_413 = arith.constant 1.000000e+00 : f32
    %823 = vector.broadcast %cst_413 : f32 to vector<8x128xf32>
    %824 = arith.addf %823, %822 : vector<8x128xf32>
    %825 = arith.divf %823, %824 : vector<8x128xf32>
    %826 = vector.extract_strided_slice %813 {offsets = [0, 256], sizes = [8, 128], strides = [1, 1]} : vector<8x512xf32> to vector<8x128xf32>
    %827 = math.tanh %826 : vector<8x128xf32>
    %828 = vector.extract_strided_slice %813 {offsets = [0, 384], sizes = [8, 128], strides = [1, 1]} : vector<8x512xf32> to vector<8x128xf32>
    %829 = arith.negf %828 : vector<8x128xf32>
    %830 = math.exp %829 : vector<8x128xf32>
    %cst_414 = arith.constant 1.000000e+00 : f32
    %831 = vector.broadcast %cst_414 : f32 to vector<8x128xf32>
    %832 = arith.addf %831, %830 : vector<8x128xf32>
    %833 = arith.divf %831, %832 : vector<8x128xf32>
    %c0_415 = arith.constant 0 : index
    %c0_416 = arith.constant 0 : index
    %834 = vector.load %arg10[%c0_415, %c0_416] : memref<8x128xf32, #tpu.memory_space<vmem>>, vector<8x128xf32>
    %835 = arith.mulf %825, %834 : vector<8x128xf32>
    %836 = arith.mulf %819, %827 : vector<8x128xf32>
    %837 = arith.addf %835, %836 : vector<8x128xf32>
    %c0_417 = arith.constant 0 : index
    %c0_418 = arith.constant 0 : index
    %838 = vector.load %arg10[%c0_417, %c0_418] : memref<8x128xf32, #tpu.memory_space<vmem>>, vector<8x128xf32>
    tpu.vector_store %arg10[%c0_417, %c0_418], %837 {strides = array<i32>} : memref<8x128xf32, #tpu.memory_space<vmem>>, vector<8x128xf32>,
    %839 = math.tanh %837 : vector<8x128xf32>
    %840 = arith.mulf %833, %839 : vector<8x128xf32>
    %c0_419 = arith.constant 0 : index
    %c0_420 = arith.constant 0 : index
    %841 = vector.load %arg9[%c0_419, %c0_420] : memref<8x128xf32, #tpu.memory_space<vmem>>, vector<8x128xf32>
    tpu.vector_store %arg9[%c0_419, %c0_420], %840 {strides = array<i32>} : memref<8x128xf32, #tpu.memory_space<vmem>>, vector<8x128xf32>,
    %c168_421 = arith.constant 168 : index
    %c0_422 = arith.constant 0 : index
    %842 = vector.load %arg8[%c168_421, %c0_422] : memref<224x512xf32, #tpu.memory_space<vmem>>, vector<8x512xf32>
    %c0_423 = arith.constant 0 : index
    %c0_424 = arith.constant 0 : index
    %843 = vector.load %arg9[%c0_423, %c0_424] : memref<8x128xf32, #tpu.memory_space<vmem>>, vector<8x128xf32>
    %844 = arith.truncf %843 : vector<8x128xf32> to vector<8x128xbf16>
    %cst_425 = arith.constant dense<0.000000e+00> : vector<8x512xf32>
    %845 = tpu.matmul %844, %1, %cst_425 {dimension_numbers = #tpu.dot_dimension_numbers<[1], [0], [0], [1], [0, 0, 1, 1], [], []>} : vector<8x128xbf16>, vector<128x512xbf16>, vector<8x512xf32> -> vector<8x512xf32>
    %846 = arith.addf %842, %845 : vector<8x512xf32>
    %847 = vector.extract_strided_slice %846 {offsets = [0, 0], sizes = [8, 128], strides = [1, 1]} : vector<8x512xf32> to vector<8x128xf32>
    %848 = arith.negf %847 : vector<8x128xf32>
    %849 = math.exp %848 : vector<8x128xf32>
    %cst_426 = arith.constant 1.000000e+00 : f32
    %850 = vector.broadcast %cst_426 : f32 to vector<8x128xf32>
    %851 = arith.addf %850, %849 : vector<8x128xf32>
    %852 = arith.divf %850, %851 : vector<8x128xf32>
    %853 = vector.extract_strided_slice %846 {offsets = [0, 128], sizes = [8, 128], strides = [1, 1]} : vector<8x512xf32> to vector<8x128xf32>
    %854 = arith.negf %853 : vector<8x128xf32>
    %855 = math.exp %854 : vector<8x128xf32>
    %cst_427 = arith.constant 1.000000e+00 : f32
    %856 = vector.broadcast %cst_427 : f32 to vector<8x128xf32>
    %857 = arith.addf %856, %855 : vector<8x128xf32>
    %858 = arith.divf %856, %857 : vector<8x128xf32>
    %859 = vector.extract_strided_slice %846 {offsets = [0, 256], sizes = [8, 128], strides = [1, 1]} : vector<8x512xf32> to vector<8x128xf32>
    %860 = math.tanh %859 : vector<8x128xf32>
    %861 = vector.extract_strided_slice %846 {offsets = [0, 384], sizes = [8, 128], strides = [1, 1]} : vector<8x512xf32> to vector<8x128xf32>
    %862 = arith.negf %861 : vector<8x128xf32>
    %863 = math.exp %862 : vector<8x128xf32>
    %cst_428 = arith.constant 1.000000e+00 : f32
    %864 = vector.broadcast %cst_428 : f32 to vector<8x128xf32>
    %865 = arith.addf %864, %863 : vector<8x128xf32>
    %866 = arith.divf %864, %865 : vector<8x128xf32>
    %c0_429 = arith.constant 0 : index
    %c0_430 = arith.constant 0 : index
    %867 = vector.load %arg10[%c0_429, %c0_430] : memref<8x128xf32, #tpu.memory_space<vmem>>, vector<8x128xf32>
    %868 = arith.mulf %858, %867 : vector<8x128xf32>
    %869 = arith.mulf %852, %860 : vector<8x128xf32>
    %870 = arith.addf %868, %869 : vector<8x128xf32>
    %c0_431 = arith.constant 0 : index
    %c0_432 = arith.constant 0 : index
    %871 = vector.load %arg10[%c0_431, %c0_432] : memref<8x128xf32, #tpu.memory_space<vmem>>, vector<8x128xf32>
    tpu.vector_store %arg10[%c0_431, %c0_432], %870 {strides = array<i32>} : memref<8x128xf32, #tpu.memory_space<vmem>>, vector<8x128xf32>,
    %872 = math.tanh %870 : vector<8x128xf32>
    %873 = arith.mulf %866, %872 : vector<8x128xf32>
    %c0_433 = arith.constant 0 : index
    %c0_434 = arith.constant 0 : index
    %874 = vector.load %arg9[%c0_433, %c0_434] : memref<8x128xf32, #tpu.memory_space<vmem>>, vector<8x128xf32>
    tpu.vector_store %arg9[%c0_433, %c0_434], %873 {strides = array<i32>} : memref<8x128xf32, #tpu.memory_space<vmem>>, vector<8x128xf32>,
    %c176_435 = arith.constant 176 : index
    %c0_436 = arith.constant 0 : index
    %875 = vector.load %arg8[%c176_435, %c0_436] : memref<224x512xf32, #tpu.memory_space<vmem>>, vector<8x512xf32>
    %c0_437 = arith.constant 0 : index
    %c0_438 = arith.constant 0 : index
    %876 = vector.load %arg9[%c0_437, %c0_438] : memref<8x128xf32, #tpu.memory_space<vmem>>, vector<8x128xf32>
    %877 = arith.truncf %876 : vector<8x128xf32> to vector<8x128xbf16>
    %cst_439 = arith.constant dense<0.000000e+00> : vector<8x512xf32>
    %878 = tpu.matmul %877, %1, %cst_439 {dimension_numbers = #tpu.dot_dimension_numbers<[1], [0], [0], [1], [0, 0, 1, 1], [], []>} : vector<8x128xbf16>, vector<128x512xbf16>, vector<8x512xf32> -> vector<8x512xf32>
    %879 = arith.addf %875, %878 : vector<8x512xf32>
    %880 = vector.extract_strided_slice %879 {offsets = [0, 0], sizes = [8, 128], strides = [1, 1]} : vector<8x512xf32> to vector<8x128xf32>
    %881 = arith.negf %880 : vector<8x128xf32>
    %882 = math.exp %881 : vector<8x128xf32>
    %cst_440 = arith.constant 1.000000e+00 : f32
    %883 = vector.broadcast %cst_440 : f32 to vector<8x128xf32>
    %884 = arith.addf %883, %882 : vector<8x128xf32>
    %885 = arith.divf %883, %884 : vector<8x128xf32>
    %886 = vector.extract_strided_slice %879 {offsets = [0, 128], sizes = [8, 128], strides = [1, 1]} : vector<8x512xf32> to vector<8x128xf32>
    %887 = arith.negf %886 : vector<8x128xf32>
    %888 = math.exp %887 : vector<8x128xf32>
    %cst_441 = arith.constant 1.000000e+00 : f32
    %889 = vector.broadcast %cst_441 : f32 to vector<8x128xf32>
    %890 = arith.addf %889, %888 : vector<8x128xf32>
    %891 = arith.divf %889, %890 : vector<8x128xf32>
    %892 = vector.extract_strided_slice %879 {offsets = [0, 256], sizes = [8, 128], strides = [1, 1]} : vector<8x512xf32> to vector<8x128xf32>
    %893 = math.tanh %892 : vector<8x128xf32>
    %894 = vector.extract_strided_slice %879 {offsets = [0, 384], sizes = [8, 128], strides = [1, 1]} : vector<8x512xf32> to vector<8x128xf32>
    %895 = arith.negf %894 : vector<8x128xf32>
    %896 = math.exp %895 : vector<8x128xf32>
    %cst_442 = arith.constant 1.000000e+00 : f32
    %897 = vector.broadcast %cst_442 : f32 to vector<8x128xf32>
    %898 = arith.addf %897, %896 : vector<8x128xf32>
    %899 = arith.divf %897, %898 : vector<8x128xf32>
    %c0_443 = arith.constant 0 : index
    %c0_444 = arith.constant 0 : index
    %900 = vector.load %arg10[%c0_443, %c0_444] : memref<8x128xf32, #tpu.memory_space<vmem>>, vector<8x128xf32>
    %901 = arith.mulf %891, %900 : vector<8x128xf32>
    %902 = arith.mulf %885, %893 : vector<8x128xf32>
    %903 = arith.addf %901, %902 : vector<8x128xf32>
    %c0_445 = arith.constant 0 : index
    %c0_446 = arith.constant 0 : index
    %904 = vector.load %arg10[%c0_445, %c0_446] : memref<8x128xf32, #tpu.memory_space<vmem>>, vector<8x128xf32>
    tpu.vector_store %arg10[%c0_445, %c0_446], %903 {strides = array<i32>} : memref<8x128xf32, #tpu.memory_space<vmem>>, vector<8x128xf32>,
    %905 = math.tanh %903 : vector<8x128xf32>
    %906 = arith.mulf %899, %905 : vector<8x128xf32>
    %c0_447 = arith.constant 0 : index
    %c0_448 = arith.constant 0 : index
    %907 = vector.load %arg9[%c0_447, %c0_448] : memref<8x128xf32, #tpu.memory_space<vmem>>, vector<8x128xf32>
    tpu.vector_store %arg9[%c0_447, %c0_448], %906 {strides = array<i32>} : memref<8x128xf32, #tpu.memory_space<vmem>>, vector<8x128xf32>,
    %c184_449 = arith.constant 184 : index
    %c0_450 = arith.constant 0 : index
    %908 = vector.load %arg8[%c184_449, %c0_450] : memref<224x512xf32, #tpu.memory_space<vmem>>, vector<8x512xf32>
    %c0_451 = arith.constant 0 : index
    %c0_452 = arith.constant 0 : index
    %909 = vector.load %arg9[%c0_451, %c0_452] : memref<8x128xf32, #tpu.memory_space<vmem>>, vector<8x128xf32>
    %910 = arith.truncf %909 : vector<8x128xf32> to vector<8x128xbf16>
    %cst_453 = arith.constant dense<0.000000e+00> : vector<8x512xf32>
    %911 = tpu.matmul %910, %1, %cst_453 {dimension_numbers = #tpu.dot_dimension_numbers<[1], [0], [0], [1], [0, 0, 1, 1], [], []>} : vector<8x128xbf16>, vector<128x512xbf16>, vector<8x512xf32> -> vector<8x512xf32>
    %912 = arith.addf %908, %911 : vector<8x512xf32>
    %913 = vector.extract_strided_slice %912 {offsets = [0, 0], sizes = [8, 128], strides = [1, 1]} : vector<8x512xf32> to vector<8x128xf32>
    %914 = arith.negf %913 : vector<8x128xf32>
    %915 = math.exp %914 : vector<8x128xf32>
    %cst_454 = arith.constant 1.000000e+00 : f32
    %916 = vector.broadcast %cst_454 : f32 to vector<8x128xf32>
    %917 = arith.addf %916, %915 : vector<8x128xf32>
    %918 = arith.divf %916, %917 : vector<8x128xf32>
    %919 = vector.extract_strided_slice %912 {offsets = [0, 128], sizes = [8, 128], strides = [1, 1]} : vector<8x512xf32> to vector<8x128xf32>
    %920 = arith.negf %919 : vector<8x128xf32>
    %921 = math.exp %920 : vector<8x128xf32>
    %cst_455 = arith.constant 1.000000e+00 : f32
    %922 = vector.broadcast %cst_455 : f32 to vector<8x128xf32>
    %923 = arith.addf %922, %921 : vector<8x128xf32>
    %924 = arith.divf %922, %923 : vector<8x128xf32>
    %925 = vector.extract_strided_slice %912 {offsets = [0, 256], sizes = [8, 128], strides = [1, 1]} : vector<8x512xf32> to vector<8x128xf32>
    %926 = math.tanh %925 : vector<8x128xf32>
    %927 = vector.extract_strided_slice %912 {offsets = [0, 384], sizes = [8, 128], strides = [1, 1]} : vector<8x512xf32> to vector<8x128xf32>
    %928 = arith.negf %927 : vector<8x128xf32>
    %929 = math.exp %928 : vector<8x128xf32>
    %cst_456 = arith.constant 1.000000e+00 : f32
    %930 = vector.broadcast %cst_456 : f32 to vector<8x128xf32>
    %931 = arith.addf %930, %929 : vector<8x128xf32>
    %932 = arith.divf %930, %931 : vector<8x128xf32>
    %c0_457 = arith.constant 0 : index
    %c0_458 = arith.constant 0 : index
    %933 = vector.load %arg10[%c0_457, %c0_458] : memref<8x128xf32, #tpu.memory_space<vmem>>, vector<8x128xf32>
    %934 = arith.mulf %924, %933 : vector<8x128xf32>
    %935 = arith.mulf %918, %926 : vector<8x128xf32>
    %936 = arith.addf %934, %935 : vector<8x128xf32>
    %c0_459 = arith.constant 0 : index
    %c0_460 = arith.constant 0 : index
    %937 = vector.load %arg10[%c0_459, %c0_460] : memref<8x128xf32, #tpu.memory_space<vmem>>, vector<8x128xf32>
    tpu.vector_store %arg10[%c0_459, %c0_460], %936 {strides = array<i32>} : memref<8x128xf32, #tpu.memory_space<vmem>>, vector<8x128xf32>,
    %938 = math.tanh %936 : vector<8x128xf32>
    %939 = arith.mulf %932, %938 : vector<8x128xf32>
    %c0_461 = arith.constant 0 : index
    %c0_462 = arith.constant 0 : index
    %940 = vector.load %arg9[%c0_461, %c0_462] : memref<8x128xf32, #tpu.memory_space<vmem>>, vector<8x128xf32>
    tpu.vector_store %arg9[%c0_461, %c0_462], %939 {strides = array<i32>} : memref<8x128xf32, #tpu.memory_space<vmem>>, vector<8x128xf32>,
    %c192_463 = arith.constant 192 : index
    %c0_464 = arith.constant 0 : index
    %941 = vector.load %arg8[%c192_463, %c0_464] : memref<224x512xf32, #tpu.memory_space<vmem>>, vector<8x512xf32>
    %c0_465 = arith.constant 0 : index
    %c0_466 = arith.constant 0 : index
    %942 = vector.load %arg9[%c0_465, %c0_466] : memref<8x128xf32, #tpu.memory_space<vmem>>, vector<8x128xf32>
    %943 = arith.truncf %942 : vector<8x128xf32> to vector<8x128xbf16>
    %cst_467 = arith.constant dense<0.000000e+00> : vector<8x512xf32>
    %944 = tpu.matmul %943, %1, %cst_467 {dimension_numbers = #tpu.dot_dimension_numbers<[1], [0], [0], [1], [0, 0, 1, 1], [], []>} : vector<8x128xbf16>, vector<128x512xbf16>, vector<8x512xf32> -> vector<8x512xf32>
    %945 = arith.addf %941, %944 : vector<8x512xf32>
    %946 = vector.extract_strided_slice %945 {offsets = [0, 0], sizes = [8, 128], strides = [1, 1]} : vector<8x512xf32> to vector<8x128xf32>
    %947 = arith.negf %946 : vector<8x128xf32>
    %948 = math.exp %947 : vector<8x128xf32>
    %cst_468 = arith.constant 1.000000e+00 : f32
    %949 = vector.broadcast %cst_468 : f32 to vector<8x128xf32>
    %950 = arith.addf %949, %948 : vector<8x128xf32>
    %951 = arith.divf %949, %950 : vector<8x128xf32>
    %952 = vector.extract_strided_slice %945 {offsets = [0, 128], sizes = [8, 128], strides = [1, 1]} : vector<8x512xf32> to vector<8x128xf32>
    %953 = arith.negf %952 : vector<8x128xf32>
    %954 = math.exp %953 : vector<8x128xf32>
    %cst_469 = arith.constant 1.000000e+00 : f32
    %955 = vector.broadcast %cst_469 : f32 to vector<8x128xf32>
    %956 = arith.addf %955, %954 : vector<8x128xf32>
    %957 = arith.divf %955, %956 : vector<8x128xf32>
    %958 = vector.extract_strided_slice %945 {offsets = [0, 256], sizes = [8, 128], strides = [1, 1]} : vector<8x512xf32> to vector<8x128xf32>
    %959 = math.tanh %958 : vector<8x128xf32>
    %960 = vector.extract_strided_slice %945 {offsets = [0, 384], sizes = [8, 128], strides = [1, 1]} : vector<8x512xf32> to vector<8x128xf32>
    %961 = arith.negf %960 : vector<8x128xf32>
    %962 = math.exp %961 : vector<8x128xf32>
    %cst_470 = arith.constant 1.000000e+00 : f32
    %963 = vector.broadcast %cst_470 : f32 to vector<8x128xf32>
    %964 = arith.addf %963, %962 : vector<8x128xf32>
    %965 = arith.divf %963, %964 : vector<8x128xf32>
    %c0_471 = arith.constant 0 : index
    %c0_472 = arith.constant 0 : index
    %966 = vector.load %arg10[%c0_471, %c0_472] : memref<8x128xf32, #tpu.memory_space<vmem>>, vector<8x128xf32>
    %967 = arith.mulf %957, %966 : vector<8x128xf32>
    %968 = arith.mulf %951, %959 : vector<8x128xf32>
    %969 = arith.addf %967, %968 : vector<8x128xf32>
    %c0_473 = arith.constant 0 : index
    %c0_474 = arith.constant 0 : index
    %970 = vector.load %arg10[%c0_473, %c0_474] : memref<8x128xf32, #tpu.memory_space<vmem>>, vector<8x128xf32>
    tpu.vector_store %arg10[%c0_473, %c0_474], %969 {strides = array<i32>} : memref<8x128xf32, #tpu.memory_space<vmem>>, vector<8x128xf32>,
    %971 = math.tanh %969 : vector<8x128xf32>
    %972 = arith.mulf %965, %971 : vector<8x128xf32>
    %c0_475 = arith.constant 0 : index
    %c0_476 = arith.constant 0 : index
    %973 = vector.load %arg9[%c0_475, %c0_476] : memref<8x128xf32, #tpu.memory_space<vmem>>, vector<8x128xf32>
    tpu.vector_store %arg9[%c0_475, %c0_476], %972 {strides = array<i32>} : memref<8x128xf32, #tpu.memory_space<vmem>>, vector<8x128xf32>,
    %c200_477 = arith.constant 200 : index
    %c0_478 = arith.constant 0 : index
    %974 = vector.load %arg8[%c200_477, %c0_478] : memref<224x512xf32, #tpu.memory_space<vmem>>, vector<8x512xf32>
    %c0_479 = arith.constant 0 : index
    %c0_480 = arith.constant 0 : index
    %975 = vector.load %arg9[%c0_479, %c0_480] : memref<8x128xf32, #tpu.memory_space<vmem>>, vector<8x128xf32>
    %976 = arith.truncf %975 : vector<8x128xf32> to vector<8x128xbf16>
    %cst_481 = arith.constant dense<0.000000e+00> : vector<8x512xf32>
    %977 = tpu.matmul %976, %1, %cst_481 {dimension_numbers = #tpu.dot_dimension_numbers<[1], [0], [0], [1], [0, 0, 1, 1], [], []>} : vector<8x128xbf16>, vector<128x512xbf16>, vector<8x512xf32> -> vector<8x512xf32>
    %978 = arith.addf %974, %977 : vector<8x512xf32>
    %979 = vector.extract_strided_slice %978 {offsets = [0, 0], sizes = [8, 128], strides = [1, 1]} : vector<8x512xf32> to vector<8x128xf32>
    %980 = arith.negf %979 : vector<8x128xf32>
    %981 = math.exp %980 : vector<8x128xf32>
    %cst_482 = arith.constant 1.000000e+00 : f32
    %982 = vector.broadcast %cst_482 : f32 to vector<8x128xf32>
    %983 = arith.addf %982, %981 : vector<8x128xf32>
    %984 = arith.divf %982, %983 : vector<8x128xf32>
    %985 = vector.extract_strided_slice %978 {offsets = [0, 128], sizes = [8, 128], strides = [1, 1]} : vector<8x512xf32> to vector<8x128xf32>
    %986 = arith.negf %985 : vector<8x128xf32>
    %987 = math.exp %986 : vector<8x128xf32>
    %cst_483 = arith.constant 1.000000e+00 : f32
    %988 = vector.broadcast %cst_483 : f32 to vector<8x128xf32>
    %989 = arith.addf %988, %987 : vector<8x128xf32>
    %990 = arith.divf %988, %989 : vector<8x128xf32>
    %991 = vector.extract_strided_slice %978 {offsets = [0, 256], sizes = [8, 128], strides = [1, 1]} : vector<8x512xf32> to vector<8x128xf32>
    %992 = math.tanh %991 : vector<8x128xf32>
    %993 = vector.extract_strided_slice %978 {offsets = [0, 384], sizes = [8, 128], strides = [1, 1]} : vector<8x512xf32> to vector<8x128xf32>
    %994 = arith.negf %993 : vector<8x128xf32>
    %995 = math.exp %994 : vector<8x128xf32>
    %cst_484 = arith.constant 1.000000e+00 : f32
    %996 = vector.broadcast %cst_484 : f32 to vector<8x128xf32>
    %997 = arith.addf %996, %995 : vector<8x128xf32>
    %998 = arith.divf %996, %997 : vector<8x128xf32>
    %c0_485 = arith.constant 0 : index
    %c0_486 = arith.constant 0 : index
    %999 = vector.load %arg10[%c0_485, %c0_486] : memref<8x128xf32, #tpu.memory_space<vmem>>, vector<8x128xf32>
    %1000 = arith.mulf %990, %999 : vector<8x128xf32>
    %1001 = arith.mulf %984, %992 : vector<8x128xf32>
    %1002 = arith.addf %1000, %1001 : vector<8x128xf32>
    %c0_487 = arith.constant 0 : index
    %c0_488 = arith.constant 0 : index
    %1003 = vector.load %arg10[%c0_487, %c0_488] : memref<8x128xf32, #tpu.memory_space<vmem>>, vector<8x128xf32>
    tpu.vector_store %arg10[%c0_487, %c0_488], %1002 {strides = array<i32>} : memref<8x128xf32, #tpu.memory_space<vmem>>, vector<8x128xf32>,
    %1004 = math.tanh %1002 : vector<8x128xf32>
    %1005 = arith.mulf %998, %1004 : vector<8x128xf32>
    %c0_489 = arith.constant 0 : index
    %c0_490 = arith.constant 0 : index
    %1006 = vector.load %arg9[%c0_489, %c0_490] : memref<8x128xf32, #tpu.memory_space<vmem>>, vector<8x128xf32>
    tpu.vector_store %arg9[%c0_489, %c0_490], %1005 {strides = array<i32>} : memref<8x128xf32, #tpu.memory_space<vmem>>, vector<8x128xf32>,
    %c208_491 = arith.constant 208 : index
    %c0_492 = arith.constant 0 : index
    %1007 = vector.load %arg8[%c208_491, %c0_492] : memref<224x512xf32, #tpu.memory_space<vmem>>, vector<8x512xf32>
    %c0_493 = arith.constant 0 : index
    %c0_494 = arith.constant 0 : index
    %1008 = vector.load %arg9[%c0_493, %c0_494] : memref<8x128xf32, #tpu.memory_space<vmem>>, vector<8x128xf32>
    %1009 = arith.truncf %1008 : vector<8x128xf32> to vector<8x128xbf16>
    %cst_495 = arith.constant dense<0.000000e+00> : vector<8x512xf32>
    %1010 = tpu.matmul %1009, %1, %cst_495 {dimension_numbers = #tpu.dot_dimension_numbers<[1], [0], [0], [1], [0, 0, 1, 1], [], []>} : vector<8x128xbf16>, vector<128x512xbf16>, vector<8x512xf32> -> vector<8x512xf32>
    %1011 = arith.addf %1007, %1010 : vector<8x512xf32>
    %1012 = vector.extract_strided_slice %1011 {offsets = [0, 0], sizes = [8, 128], strides = [1, 1]} : vector<8x512xf32> to vector<8x128xf32>
    %1013 = arith.negf %1012 : vector<8x128xf32>
    %1014 = math.exp %1013 : vector<8x128xf32>
    %cst_496 = arith.constant 1.000000e+00 : f32
    %1015 = vector.broadcast %cst_496 : f32 to vector<8x128xf32>
    %1016 = arith.addf %1015, %1014 : vector<8x128xf32>
    %1017 = arith.divf %1015, %1016 : vector<8x128xf32>
    %1018 = vector.extract_strided_slice %1011 {offsets = [0, 128], sizes = [8, 128], strides = [1, 1]} : vector<8x512xf32> to vector<8x128xf32>
    %1019 = arith.negf %1018 : vector<8x128xf32>
    %1020 = math.exp %1019 : vector<8x128xf32>
    %cst_497 = arith.constant 1.000000e+00 : f32
    %1021 = vector.broadcast %cst_497 : f32 to vector<8x128xf32>
    %1022 = arith.addf %1021, %1020 : vector<8x128xf32>
    %1023 = arith.divf %1021, %1022 : vector<8x128xf32>
    %1024 = vector.extract_strided_slice %1011 {offsets = [0, 256], sizes = [8, 128], strides = [1, 1]} : vector<8x512xf32> to vector<8x128xf32>
    %1025 = math.tanh %1024 : vector<8x128xf32>
    %1026 = vector.extract_strided_slice %1011 {offsets = [0, 384], sizes = [8, 128], strides = [1, 1]} : vector<8x512xf32> to vector<8x128xf32>
    %1027 = arith.negf %1026 : vector<8x128xf32>
    %1028 = math.exp %1027 : vector<8x128xf32>
    %cst_498 = arith.constant 1.000000e+00 : f32
    %1029 = vector.broadcast %cst_498 : f32 to vector<8x128xf32>
    %1030 = arith.addf %1029, %1028 : vector<8x128xf32>
    %1031 = arith.divf %1029, %1030 : vector<8x128xf32>
    %c0_499 = arith.constant 0 : index
    %c0_500 = arith.constant 0 : index
    %1032 = vector.load %arg10[%c0_499, %c0_500] : memref<8x128xf32, #tpu.memory_space<vmem>>, vector<8x128xf32>
    %1033 = arith.mulf %1023, %1032 : vector<8x128xf32>
    %1034 = arith.mulf %1017, %1025 : vector<8x128xf32>
    %1035 = arith.addf %1033, %1034 : vector<8x128xf32>
    %c0_501 = arith.constant 0 : index
    %c0_502 = arith.constant 0 : index
    %1036 = vector.load %arg10[%c0_501, %c0_502] : memref<8x128xf32, #tpu.memory_space<vmem>>, vector<8x128xf32>
    tpu.vector_store %arg10[%c0_501, %c0_502], %1035 {strides = array<i32>} : memref<8x128xf32, #tpu.memory_space<vmem>>, vector<8x128xf32>,
    %1037 = math.tanh %1035 : vector<8x128xf32>
    %1038 = arith.mulf %1031, %1037 : vector<8x128xf32>
    %c0_503 = arith.constant 0 : index
    %c0_504 = arith.constant 0 : index
    %1039 = vector.load %arg9[%c0_503, %c0_504] : memref<8x128xf32, #tpu.memory_space<vmem>>, vector<8x128xf32>
    tpu.vector_store %arg9[%c0_503, %c0_504], %1038 {strides = array<i32>} : memref<8x128xf32, #tpu.memory_space<vmem>>, vector<8x128xf32>,
    %c216_505 = arith.constant 216 : index
    %c0_506 = arith.constant 0 : index
    %1040 = vector.load %arg8[%c216_505, %c0_506] : memref<224x512xf32, #tpu.memory_space<vmem>>, vector<8x512xf32>
    %c0_507 = arith.constant 0 : index
    %c0_508 = arith.constant 0 : index
    %1041 = vector.load %arg9[%c0_507, %c0_508] : memref<8x128xf32, #tpu.memory_space<vmem>>, vector<8x128xf32>
    %1042 = arith.truncf %1041 : vector<8x128xf32> to vector<8x128xbf16>
    %cst_509 = arith.constant dense<0.000000e+00> : vector<8x512xf32>
    %1043 = tpu.matmul %1042, %1, %cst_509 {dimension_numbers = #tpu.dot_dimension_numbers<[1], [0], [0], [1], [0, 0, 1, 1], [], []>} : vector<8x128xbf16>, vector<128x512xbf16>, vector<8x512xf32> -> vector<8x512xf32>
    %1044 = arith.addf %1040, %1043 : vector<8x512xf32>
    %1045 = vector.extract_strided_slice %1044 {offsets = [0, 0], sizes = [8, 128], strides = [1, 1]} : vector<8x512xf32> to vector<8x128xf32>
    %1046 = arith.negf %1045 : vector<8x128xf32>
    %1047 = math.exp %1046 : vector<8x128xf32>
    %cst_510 = arith.constant 1.000000e+00 : f32
    %1048 = vector.broadcast %cst_510 : f32 to vector<8x128xf32>
    %1049 = arith.addf %1048, %1047 : vector<8x128xf32>
    %1050 = arith.divf %1048, %1049 : vector<8x128xf32>
    %1051 = vector.extract_strided_slice %1044 {offsets = [0, 128], sizes = [8, 128], strides = [1, 1]} : vector<8x512xf32> to vector<8x128xf32>
    %1052 = arith.negf %1051 : vector<8x128xf32>
    %1053 = math.exp %1052 : vector<8x128xf32>
    %cst_511 = arith.constant 1.000000e+00 : f32
    %1054 = vector.broadcast %cst_511 : f32 to vector<8x128xf32>
    %1055 = arith.addf %1054, %1053 : vector<8x128xf32>
    %1056 = arith.divf %1054, %1055 : vector<8x128xf32>
    %1057 = vector.extract_strided_slice %1044 {offsets = [0, 256], sizes = [8, 128], strides = [1, 1]} : vector<8x512xf32> to vector<8x128xf32>
    %1058 = math.tanh %1057 : vector<8x128xf32>
    %1059 = vector.extract_strided_slice %1044 {offsets = [0, 384], sizes = [8, 128], strides = [1, 1]} : vector<8x512xf32> to vector<8x128xf32>
    %1060 = arith.negf %1059 : vector<8x128xf32>
    %1061 = math.exp %1060 : vector<8x128xf32>
    %cst_512 = arith.constant 1.000000e+00 : f32
    %1062 = vector.broadcast %cst_512 : f32 to vector<8x128xf32>
    %1063 = arith.addf %1062, %1061 : vector<8x128xf32>
    %1064 = arith.divf %1062, %1063 : vector<8x128xf32>
    %c0_513 = arith.constant 0 : index
    %c0_514 = arith.constant 0 : index
    %1065 = vector.load %arg10[%c0_513, %c0_514] : memref<8x128xf32, #tpu.memory_space<vmem>>, vector<8x128xf32>
    %1066 = arith.mulf %1056, %1065 : vector<8x128xf32>
    %1067 = arith.mulf %1050, %1058 : vector<8x128xf32>
    %1068 = arith.addf %1066, %1067 : vector<8x128xf32>
    %c0_515 = arith.constant 0 : index
    %c0_516 = arith.constant 0 : index
    %1069 = vector.load %arg10[%c0_515, %c0_516] : memref<8x128xf32, #tpu.memory_space<vmem>>, vector<8x128xf32>
    tpu.vector_store %arg10[%c0_515, %c0_516], %1068 {strides = array<i32>} : memref<8x128xf32, #tpu.memory_space<vmem>>, vector<8x128xf32>,
    %1070 = math.tanh %1068 : vector<8x128xf32>
    %1071 = arith.mulf %1064, %1070 : vector<8x128xf32>
    %c0_517 = arith.constant 0 : index
    %c0_518 = arith.constant 0 : index
    %1072 = vector.load %arg9[%c0_517, %c0_518] : memref<8x128xf32, #tpu.memory_space<vmem>>, vector<8x128xf32>
    tpu.vector_store %arg9[%c0_517, %c0_518], %1071 {strides = array<i32>} : memref<8x128xf32, #tpu.memory_space<vmem>>, vector<8x128xf32>,
    %c0_519 = arith.constant 0 : index
    %c0_520 = arith.constant 0 : index
    %1073 = vector.load %arg9[%c0_519, %c0_520] : memref<8x128xf32, #tpu.memory_space<vmem>>, vector<8x128xf32>
    %c0_521 = arith.constant 0 : index
    %c0_522 = arith.constant 0 : index
    %1074 = vector.load %arg5[%c0_521, %c0_522] : memref<128x10xf32, #tpu.memory_space<vmem>>, vector<128x10xf32>
    %cst_523 = arith.constant dense<0.000000e+00> : vector<8x10xf32>
    %1075 = tpu.matmul %1073, %1074, %cst_523 {dimension_numbers = #tpu.dot_dimension_numbers<[1], [0], [0], [1], [0, 0, 1, 1], [], []>} : vector<8x128xf32>, vector<128x10xf32>, vector<8x10xf32> -> vector<8x10xf32>
    %c0_524 = arith.constant 0 : index
    %c0_525 = arith.constant 0 : index
    %1076 = vector.load %arg6[%c0_524, %c0_525] : memref<1x10xf32, #tpu.memory_space<vmem>>, vector<1x10xf32>
    %1077 = vector.broadcast %1076 : vector<1x10xf32> to vector<8x10xf32>
    %1078 = arith.addf %1075, %1077 : vector<8x10xf32>
    %cst_526 = arith.constant dense<0xFF800000> : vector<8xf32>
    %1079 = vector.multi_reduction <maximumf>, %1078, %cst_526 [1] : vector<8x10xf32> to vector<8xf32>
    %1080 = vector.shape_cast %1079 : vector<8xf32> to vector<8x1xf32>
    %1081 = vector.broadcast %1080 : vector<8x1xf32> to vector<8x10xf32>
    %1082 = arith.subf %1078, %1081 : vector<8x10xf32>
    %1083 = math.exp %1082 : vector<8x10xf32>
    %cst_527 = arith.constant dense<0.000000e+00> : vector<8xf32>
    %1084 = vector.multi_reduction <add>, %1083, %cst_527 [1] : vector<8x10xf32> to vector<8xf32>
    %1085 = vector.shape_cast %1084 : vector<8xf32> to vector<8x1xf32>
    %1086 = tpu.reciprocal %1085 {approx = true} : vector<8x1xf32> -> vector<8x1xf32>
    %1087 = vector.broadcast %1086 : vector<8x1xf32> to vector<8x10xf32>
    %1088 = arith.mulf %1083, %1087 : vector<8x10xf32>
    %c0_528 = arith.constant 0 : index
    %c0_529 = arith.constant 0 : index
    %1089 = vector.load %arg7[%c0_528, %c0_529] : memref<8x10xf32, #tpu.memory_space<vmem>>, vector<8x10xf32>
    tpu.vector_store %arg7[%c0_528, %c0_529], %1088 {strides = array<i32>} : memref<8x10xf32, #tpu.memory_space<vmem>>, vector<8x10xf32>,
    return
  }
  func.func @transform_0(%arg0: i32) -> (i32, i32, i32) {
    %c0_i32 = arith.constant 0 : i32
    %c0_i32_0 = arith.constant 0 : i32
    %c0_i32_1 = arith.constant 0 : i32
    return %c0_i32, %arg0, %c0_i32_0 : i32, i32, i32
  }
  func.func @transform_1(%arg0: i32) -> (i32, i32) {
    %c0_i32 = arith.constant 0 : i32
    %c0_i32_0 = arith.constant 0 : i32
    %c0_i32_1 = arith.constant 0 : i32
    return %c0_i32, %c0_i32_0 : i32, i32
  }
  func.func @transform_2(%arg0: i32) -> (i32, i32) {
    %c0_i32 = arith.constant 0 : i32
    %c0_i32_0 = arith.constant 0 : i32
    %c0_i32_1 = arith.constant 0 : i32
    return %c0_i32, %c0_i32_0 : i32, i32
  }
  func.func @transform_3(%arg0: i32) -> (i32, i32) {
    %c0_i32 = arith.constant 0 : i32
    %c0_i32_0 = arith.constant 0 : i32
    %c0_i32_1 = arith.constant 0 : i32
    return %c0_i32, %c0_i32_0 : i32, i32
  }
  func.func @transform_4(%arg0: i32) -> (i32, i32) {
    %c0_i32 = arith.constant 0 : i32
    %c0_i32_0 = arith.constant 0 : i32
    %c0_i32_1 = arith.constant 0 : i32
    return %c0_i32, %c0_i32_0 : i32, i32
  }
  func.func @transform_5(%arg0: i32) -> (i32, i32) {
    %c0_i32 = arith.constant 0 : i32
    %c0_i32_0 = arith.constant 0 : i32
    %c0_i32_1 = arith.constant 0 : i32
    return %c0_i32, %c0_i32_0 : i32, i32
  }
  func.func @transform_6(%arg0: i32) -> (i32, i32) {
    %c0_i32 = arith.constant 0 : i32
    %c0_i32_0 = arith.constant 0 : i32
    return %arg0, %c0_i32 : i32, i32
  }
}

</mosaic_0001>

<llo_original>
// kernel: lstm_forward.1
$region0: #{lstm_forward.1}
  #allocation0 [shape = 'u32[]', space=smem, size = 0x4, offset = 0x4, fixed_abs, tag = 'smem constant byte address 0x4 - core index']
  #allocation1 [shape = 'u32[144,128]{1,0:T(1,128)}', space=vmem, size = 0x12000, scoped, tag = 'internal scratch']
  #allocation2 [shape = 'f32[224,512]{1,0:T(8,128)}', space=vmem, size = 0x70000, scoped, tag = 'scratch operand']
  #allocation3 [shape = 'f32[8,128]{1,0:T(8,128)}', space=vmem, size = 0x1000, scoped, tag = 'scratch operand']
  #allocation4 [shape = 'f32[8,128]{1,0:T(8,128)}', space=vmem, size = 0x1000, scoped, tag = 'scratch operand']
  %s0 = inlined_call_operand.vmem [shape: bf16[28,8,28], index: 0, kind: input, shape index: {}]
  %s1 = inlined_call_operand.vmem [shape: bf16[28,512], index: 1, kind: input, shape index: {}]
  %s2 = inlined_call_operand.vmem [shape: bf16[128,512], index: 2, kind: input, shape index: {}]
  %s3 = inlined_call_operand.vmem [shape: f32[1,512], index: 3, kind: input, shape index: {}]
  %s4 = inlined_call_operand.vmem [shape: f32[128,10], index: 4, kind: input, shape index: {}]
  %s5 = inlined_call_operand.vmem [shape: f32[1,10], index: 5, kind: input, shape index: {}]
  %s6 = inlined_call_operand.vmem [shape: f32[8,10], index: 6, kind: output, shape index: {}]
  %s7 = sld [smem:[#allocation0]]
  $region34: #{lstm_forward.1} parent=0
    _
  %s9 = ssub.s32 1, %s7
  %s10 = scalar_select 0, %s9, %s7
  // Predicated region
  $region2: #{lstm_forward.1} parent=0 // pred_check
    _
  $region3: #{lstm_forward.1} parent=0 // pred_check_branch
    %12 = sbr.rel (0) target = $region5
  $region4: #{lstm_forward.1} parent=0 // pred_region
    _
  $region5: #{lstm_forward.1} parent=0 // pred_fallthru
    _
  // Predicated region
  $region6: #{lstm_forward.1} parent=0 // pred_check
    _
  $region7: #{lstm_forward.1} parent=0 // pred_check_branch
    %14 = sbr.rel (0) target = $region9
  $region8: #{lstm_forward.1} parent=0 // pred_region
    _
  $region9: #{lstm_forward.1} parent=0 // pred_fallthru
    _
  // Predicated region
  $region10: #{lstm_forward.1} parent=0 // pred_check
    _
  $region11: #{lstm_forward.1} parent=0 // pred_check_branch
    %16 = sbr.rel (0) target = $region13
  $region12: #{lstm_forward.1} parent=0 // pred_region
    _
  $region13: #{lstm_forward.1} parent=0 // pred_fallthru
    _
  // Predicated region
  $region14: #{lstm_forward.1} parent=0 // pred_check
    _
  $region15: #{lstm_forward.1} parent=0 // pred_check_branch
    %18 = sbr.rel (0) target = $region17
  $region16: #{lstm_forward.1} parent=0 // pred_region
    _
  $region17: #{lstm_forward.1} parent=0 // pred_fallthru
    _
  // Predicated region
  $region18: #{lstm_forward.1} parent=0 // pred_check
    _
  $region19: #{lstm_forward.1} parent=0 // pred_check_branch
    %20 = sbr.rel (0) target = $region21
  $region20: #{lstm_forward.1} parent=0 // pred_region
    _
  $region21: #{lstm_forward.1} parent=0 // pred_fallthru
    _
  // Predicated region
  $region22: #{lstm_forward.1} parent=0 // pred_check
    _
  $region23: #{lstm_forward.1} parent=0 // pred_check_branch
    %22 = sbr.rel (0) target = $region25
  $region24: #{lstm_forward.1} parent=0 // pred_region
    _
  $region25: #{lstm_forward.1} parent=0 // pred_fallthru
    _
  %v24 = vld [vmem:[%s1] sm:$0xff]
  %v25 = vld [vmem:[%s1 + $0x8] sm:$0xff]
  %v26 = vld [vmem:[%s1 + $0x10] sm:$0xff]
  %v27 = vld [vmem:[%s1 + $0x18] sm:$0xff]
  %v28 = vld [vmem:[%s1 + $0x20] sm:$0xff]
  %v29 = vld [vmem:[%s1 + $0x28] sm:$0xff]
  %v30 = vld [vmem:[%s1 + $0x30] sm:$0x33]
  %v31 = vld [vmem:[%s1 + $0x38] sm:$0x33]
  %v32 = vld [vmem:[%s2] sm:$0xff]
  %v33 = vld [vmem:[%s2 + $0x8] sm:$0xff]
  %v34 = vld [vmem:[%s2 + $0x10] sm:$0xff]
  %v35 = vld [vmem:[%s2 + $0x18] sm:$0xff]
  %v36 = vld [vmem:[%s2 + $0x20] sm:$0xff]
  %v37 = vld [vmem:[%s2 + $0x28] sm:$0xff]
  %v38 = vld [vmem:[%s2 + $0x30] sm:$0xff]
  %v39 = vld [vmem:[%s2 + $0x38] sm:$0xff]
  %v40 = vld [vmem:[%s2 + $0x40] sm:$0xff]
  %v41 = vld [vmem:[%s2 + $0x48] sm:$0xff]
  %v42 = vld [vmem:[%s2 + $0x50] sm:$0xff]
  %v43 = vld [vmem:[%s2 + $0x58] sm:$0xff]
  %v44 = vld [vmem:[%s2 + $0x60] sm:$0xff]
  %v45 = vld [vmem:[%s2 + $0x68] sm:$0xff]
  %v46 = vld [vmem:[%s2 + $0x70] sm:$0xff]
  %v47 = vld [vmem:[%s2 + $0x78] sm:$0xff]
  %v48 = vld [vmem:[%s2 + $0x80] sm:$0xff]
  %v49 = vld [vmem:[%s2 + $0x88] sm:$0xff]
  %v50 = vld [vmem:[%s2 + $0x90] sm:$0xff]
  %v51 = vld [vmem:[%s2 + $0x98] sm:$0xff]
  %v52 = vld [vmem:[%s2 + $0xa0] sm:$0xff]
  %v53 = vld [vmem:[%s2 + $0xa8] sm:$0xff]
  %v54 = vld [vmem:[%s2 + $0xb0] sm:$0xff]
  %v55 = vld [vmem:[%s2 + $0xb8] sm:$0xff]
  %v56 = vld [vmem:[%s2 + $0xc0] sm:$0xff]
  %v57 = vld [vmem:[%s2 + $0xc8] sm:$0xff]
  %v58 = vld [vmem:[%s2 + $0xd0] sm:$0xff]
  %v59 = vld [vmem:[%s2 + $0xd8] sm:$0xff]
  %v60 = vld [vmem:[%s2 + $0xe0] sm:$0xff]
  %v61 = vld [vmem:[%s2 + $0xe8] sm:$0xff]
  %v62 = vld [vmem:[%s2 + $0xf0] sm:$0xff]
  %v63 = vld [vmem:[%s2 + $0xf8] sm:$0xff]
  %v64 = vld [vmem:[%s3] sm:$0xf]
  %v66 = vlaneseq
  %v67 = vshrl.u32 %v66, 7
  %v68 = vsub.s32 0, %v67
  %v69 = vrot.slane %v64, %v68
  %v70 = vlaneseq
  %v71 = vshrl.u32 %v70, 7
  %v72 = vsub.s32 1, %v71
  %v73 = vrot.slane %v64, %v72
  %v74 = vlaneseq
  %v75 = vshrl.u32 %v74, 7
  %v76 = vsub.s32 2, %v75
  %v77 = vrot.slane %v64, %v76
  %v78 = vlaneseq
  %v79 = vshrl.u32 %v78, 7
  %v80 = vsub.s32 3, %v79
  %v81 = vrot.slane %v64, %v80
  %v86 = vld [vmem:[%s0] sm:$0xf]
  %v95 = vunpack.c.l.b16 %v24
  %v96 = vunpack.c.h.b16 %v24
  %v97 = vunpack.c.l.b16 %v25
  %v98 = vunpack.c.h.b16 %v25
  %v99 = vunpack.c.l.b16 %v26
  %v100 = vunpack.c.h.b16 %v26
  %v101 = vunpack.c.l.b16 %v27
  %v102 = vunpack.c.h.b16 %v27
  %v103 = vunpack.c.l.b16 %v28
  %v104 = vunpack.c.h.b16 %v28
  %v105 = vunpack.c.l.b16 %v29
  %v106 = vunpack.c.h.b16 %v29
  %v107 = vunpack.c.l.b16 %v30
  %v108 = vunpack.c.h.b16 %v30
  %v109 = vunpack.c.l.b16 %v31
  %v110 = vunpack.c.h.b16 %v31
  %v111 = vpack.c.b16 %v99, %v95
  %v112 = vpack.c.b16 %v100, %v96
  %v113 = vpack.c.b16 %v101, %v97
  %v114 = vpack.c.b16 %v102, %v98
  %v115 = vpack.c.b16 %v107, %v103
  %v116 = vpack.c.b16 %v108, %v104
  %v117 = vpack.c.b16 %v109, %v105
  %v118 = vpack.c.b16 %v110, %v106
  %vm123 = vcmask 228352
  %v125 = vsel %vm123, %v86, 0
  %vm127 = vcmask 1045504
  %v129 = vsel %vm127, %v115, 0
  %v132 = vsel %vm127, %v116, 0
  %v135 = vsel %vm127, %v117, 0
  %v138 = vsel %vm127, %v118, 0
  %140 = vmatprep.subr.bf16.mxu0 %v112
  %141 = vmatpush1.bf16.msra.mxu0 %v111
  %142 = vmatprep.subr.bf16.mxu0 %v132
  %143 = vmatpush1.bf16.msra.mxu0 %v129
  %144 = vmatprep.subr.bf16.mxu0 0
  %145 = vmatpush1.bf16.msra.mxu0 0
  %146 = vmatprep.subr.bf16.mxu0 0
  %147 = vmatpush1.bf16.msra.mxu0 0
  %148 = vmatprep.subr.bf16.mxu0 0
  %149 = vmatpush1.bf16.msra.mxu0 0
  %150 = vmatprep.subr.bf16.mxu0 0
  %151 = vmatpush1.bf16.msra.mxu0 0
  %152 = vmatprep.subr.bf16.mxu0 0
  %153 = vmatpush1.bf16.msra.mxu0 0
  %154 = vmatprep.subr.bf16.mxu0 0
  %155 = vmatpush1.bf16.msra.mxu0 0
  %156 = vmatprep.subr.bf16.mxu0 0
  %157 = vmatpush1.bf16.msra.mxu0 0
  %158 = vmatprep.subr.bf16.mxu0 0
  %159 = vmatpush1.bf16.msra.mxu0 0
  %160 = vmatprep.subr.bf16.mxu0 0
  %161 = vmatpush1.bf16.msra.mxu0 0
  %162 = vmatprep.subr.bf16.mxu0 0
  %163 = vmatpush1.bf16.msra.mxu0 0
  %164 = vmatprep.subr.bf16.mxu0 0
  %165 = vmatpush1.bf16.msra.mxu0 0
  %166 = vmatprep.subr.bf16.mxu0 0
  %167 = vmatpush1.bf16.msra.mxu0 0
  %168 = vmatprep.subr.bf16.mxu0 0
  %169 = vmatpush1.bf16.msra.mxu0 0
  %170 = vmatprep.subr.bf16.mxu0 0
  %171 = vmatpush1.bf16.msra.mxu0 0
  %172 = vmatprep.mubr.bf16.mxu0 0
  %173 = vmatmul.mubr.bf16.gmra.mrb[0].mxu0 %v125
  %v174 = vpop.f32.mrb[0].mxu0
  %v175 = vadd.f32 %v69, %v174
  %v176 = vpop.f32.mrb[0].mxu0
  %v177 = vadd.f32 %v73, %v176
  %v178 = vpop.f32.mrb[0].mxu0
  %v179 = vpop.f32.mrb[0].mxu0
  %180 = vdwg.mxu0
  %181 = vmatprep.subr.bf16.mxu0 %v114
  %182 = vmatpush1.bf16.msra.mxu0 %v113
  %183 = vmatprep.subr.bf16.mxu0 %v138
  %184 = vmatpush1.bf16.msra.mxu0 %v135
  %185 = vmatprep.subr.bf16.mxu0 0
  %186 = vmatpush1.bf16.msra.mxu0 0
  %187 = vmatprep.subr.bf16.mxu0 0
  %188 = vmatpush1.bf16.msra.mxu0 0
  %189 = vmatprep.subr.bf16.mxu0 0
  %190 = vmatpush1.bf16.msra.mxu0 0
  %191 = vmatprep.subr.bf16.mxu0 0
  %192 = vmatpush1.bf16.msra.mxu0 0
  %193 = vmatprep.subr.bf16.mxu0 0
  %194 = vmatpush1.bf16.msra.mxu0 0
  %195 = vmatprep.subr.bf16.mxu0 0
  %196 = vmatpush1.bf16.msra.mxu0 0
  %197 = vmatprep.subr.bf16.mxu0 0
  %198 = vmatpush1.bf16.msra.mxu0 0
  %199 = vmatprep.subr.bf16.mxu0 0
  %200 = vmatpush1.bf16.msra.mxu0 0
  %201 = vmatprep.subr.bf16.mxu0 0
  %202 = vmatpush1.bf16.msra.mxu0 0
  %203 = vmatprep.subr.bf16.mxu0 0
  %204 = vmatpush1.bf16.msra.mxu0 0
  %205 = vmatprep.subr.bf16.mxu0 0
  %206 = vmatpush1.bf16.msra.mxu0 0
  %207 = vmatprep.subr.bf16.mxu0 0
  %208 = vmatpush1.bf16.msra.mxu0 0
  %209 = vmatprep.subr.bf16.mxu0 0
  %210 = vmatpush1.bf16.msra.mxu0 0
  %211 = vmatprep.subr.bf16.mxu0 0
  %212 = vmatpush1.bf16.msra.mxu0 0
  %213 = vmatprep.mubr.bf16.mxu0 0
  %214 = vmatmul.mubr.bf16.gmra.mrb[0].mxu0 %v125
  %v215 = vpop.f32.mrb[0].mxu0
  %v216 = vadd.f32 %v77, %v215
  %v217 = vpop.f32.mrb[0].mxu0
  %v218 = vadd.f32 %v81, %v217
  %v219 = vpop.f32.mrb[0].mxu0
  %v220 = vpop.f32.mrb[0].mxu0
  %221 = vdwg.mxu0
  %222 = vst [vmem:[#allocation2] sm:$0xff] %v175
  %223 = vst [vmem:[#allocation2 + $0x8] sm:$0xff] %v177
  %224 = vst [vmem:[#allocation2 + $0x10] sm:$0xff] %v216
  %225 = vst [vmem:[#allocation2 + $0x18] sm:$0xff] %v218
  %s226 = scalar_lea.vmem %s0, 4
  %v227 = vld [vmem:[%s226] sm:$0xf]
  %v229 = vsel %vm123, %v227, 0
  %231 = vmatprep.subr.bf16.mxu0 %v112
  %232 = vmatpush1.bf16.msra.mxu0 %v111
  %233 = vmatprep.subr.bf16.mxu0 %v132
  %234 = vmatpush1.bf16.msra.mxu0 %v129
  %235 = vmatprep.subr.bf16.mxu0 0
  %236 = vmatpush1.bf16.msra.mxu0 0
  %237 = vmatprep.subr.bf16.mxu0 0
  %238 = vmatpush1.bf16.msra.mxu0 0
  %239 = vmatprep.subr.bf16.mxu0 0
  %240 = vmatpush1.bf16.msra.mxu0 0
  %241 = vmatprep.subr.bf16.mxu0 0
  %242 = vmatpush1.bf16.msra.mxu0 0
  %243 = vmatprep.subr.bf16.mxu0 0
  %244 = vmatpush1.bf16.msra.mxu0 0
  %245 = vmatprep.subr.bf16.mxu0 0
  %246 = vmatpush1.bf16.msra.mxu0 0
  %247 = vmatprep.subr.bf16.mxu0 0
  %248 = vmatpush1.bf16.msra.mxu0 0
  %249 = vmatprep.subr.bf16.mxu0 0
  %250 = vmatpush1.bf16.msra.mxu0 0
  %251 = vmatprep.subr.bf16.mxu0 0
  %252 = vmatpush1.bf16.msra.mxu0 0
  %253 = vmatprep.subr.bf16.mxu0 0
  %254 = vmatpush1.bf16.msra.mxu0 0
  %255 = vmatprep.subr.bf16.mxu0 0
  %256 = vmatpush1.bf16.msra.mxu0 0
  %257 = vmatprep.subr.bf16.mxu0 0
  %258 = vmatpush1.bf16.msra.mxu0 0
  %259 = vmatprep.subr.bf16.mxu0 0
  %260 = vmatpush1.bf16.msra.mxu0 0
  %261 = vmatprep.subr.bf16.mxu0 0
  %262 = vmatpush1.bf16.msra.mxu0 0
  %263 = vmatprep.mubr.bf16.mxu0 0
  %264 = vmatmul.mubr.bf16.gmra.mrb[0].mxu0 %v229
  %v265 = vpop.f32.mrb[0].mxu0
  %v266 = vadd.f32 %v69, %v265
  %v267 = vpop.f32.mrb[0].mxu0
  %v268 = vadd.f32 %v73, %v267
  %v269 = vpop.f32.mrb[0].mxu0
  %v270 = vpop.f32.mrb[0].mxu0
  %271 = vdwg.mxu0
  %272 = vmatprep.subr.bf16.mxu0 %v114
  %273 = vmatpush1.bf16.msra.mxu0 %v113
  %274 = vmatprep.subr.bf16.mxu0 %v138
  %275 = vmatpush1.bf16.msra.mxu0 %v135
  %276 = vmatprep.subr.bf16.mxu0 0
  %277 = vmatpush1.bf16.msra.mxu0 0
  %278 = vmatprep.subr.bf16.mxu0 0
  %279 = vmatpush1.bf16.msra.mxu0 0
  %280 = vmatprep.subr.bf16.mxu0 0
  %281 = vmatpush1.bf16.msra.mxu0 0
  %282 = vmatprep.subr.bf16.mxu0 0
  %283 = vmatpush1.bf16.msra.mxu0 0
  %284 = vmatprep.subr.bf16.mxu0 0
  %285 = vmatpush1.bf16.msra.mxu0 0
  %286 = vmatprep.subr.bf16.mxu0 0
  %287 = vmatpush1.bf16.msra.mxu0 0
  %288 = vmatprep.subr.bf16.mxu0 0
  %289 = vmatpush1.bf16.msra.mxu0 0
  %290 = vmatprep.subr.bf16.mxu0 0
  %291 = vmatpush1.bf16.msra.mxu0 0
  %292 = vmatprep.subr.bf16.mxu0 0
  %293 = vmatpush1.bf16.msra.mxu0 0
  %294 = vmatprep.subr.bf16.mxu0 0
  %295 = vmatpush1.bf16.msra.mxu0 0
  %296 = vmatprep.subr.bf16.mxu0 0
  %297 = vmatpush1.bf16.msra.mxu0 0
  %298 = vmatprep.subr.bf16.mxu0 0
  %299 = vmatpush1.bf16.msra.mxu0 0
  %300 = vmatprep.subr.bf16.mxu0 0
  %301 = vmatpush1.bf16.msra.mxu0 0
  %302 = vmatprep.subr.bf16.mxu0 0
  %303 = vmatpush1.bf16.msra.mxu0 0
  %304 = vmatprep.mubr.bf16.mxu0 0
  %305 = vmatmul.mubr.bf16.gmra.mrb[0].mxu0 %v229
  %v306 = vpop.f32.mrb[0].mxu0
  %v307 = vadd.f32 %v77, %v306
  %v308 = vpop.f32.mrb[0].mxu0
  %v309 = vadd.f32 %v81, %v308
  %v310 = vpop.f32.mrb[0].mxu0
  %v311 = vpop.f32.mrb[0].mxu0
  %312 = vdwg.mxu0
  %313 = vst [vmem:[#allocation2 + $0x20] sm:$0xff] %v266
  %314 = vst [vmem:[#allocation2 + $0x28] sm:$0xff] %v268
  %315 = vst [vmem:[#allocation2 + $0x30] sm:$0xff] %v307
  %316 = vst [vmem:[#allocation2 + $0x38] sm:$0xff] %v309
  %s317 = scalar_lea.vmem %s0, 8
  %v318 = vld [vmem:[%s317] sm:$0xf]
  %v320 = vsel %vm123, %v318, 0
  %322 = vmatprep.subr.bf16.mxu0 %v112
  %323 = vmatpush1.bf16.msra.mxu0 %v111
  %324 = vmatprep.subr.bf16.mxu0 %v132
  %325 = vmatpush1.bf16.msra.mxu0 %v129
  %326 = vmatprep.subr.bf16.mxu0 0
  %327 = vmatpush1.bf16.msra.mxu0 0
  %328 = vmatprep.subr.bf16.mxu0 0
  %329 = vmatpush1.bf16.msra.mxu0 0
  %330 = vmatprep.subr.bf16.mxu0 0
  %331 = vmatpush1.bf16.msra.mxu0 0
  %332 = vmatprep.subr.bf16.mxu0 0
  %333 = vmatpush1.bf16.msra.mxu0 0
  %334 = vmatprep.subr.bf16.mxu0 0
  %335 = vmatpush1.bf16.msra.mxu0 0
  %336 = vmatprep.subr.bf16.mxu0 0
  %337 = vmatpush1.bf16.msra.mxu0 0
  %338 = vmatprep.subr.bf16.mxu0 0
  %339 = vmatpush1.bf16.msra.mxu0 0
  %340 = vmatprep.subr.bf16.mxu0 0
  %341 = vmatpush1.bf16.msra.mxu0 0
  %342 = vmatprep.subr.bf16.mxu0 0
  %343 = vmatpush1.bf16.msra.mxu0 0
  %344 = vmatprep.subr.bf16.mxu0 0
  %345 = vmatpush1.bf16.msra.mxu0 0
  %346 = vmatprep.subr.bf16.mxu0 0
  %347 = vmatpush1.bf16.msra.mxu0 0
  %348 = vmatprep.subr.bf16.mxu0 0
  %349 = vmatpush1.bf16.msra.mxu0 0
  %350 = vmatprep.subr.bf16.mxu0 0
  %351 = vmatpush1.bf16.msra.mxu0 0
  %352 = vmatprep.subr.bf16.mxu0 0
  %353 = vmatpush1.bf16.msra.mxu0 0
  %354 = vmatprep.mubr.bf16.mxu0 0
  %355 = vmatmul.mubr.bf16.gmra.mrb[0].mxu0 %v320
  %v356 = vpop.f32.mrb[0].mxu0
  %v357 = vadd.f32 %v69, %v356
  %v358 = vpop.f32.mrb[0].mxu0
  %v359 = vadd.f32 %v73, %v358
  %v360 = vpop.f32.mrb[0].mxu0
  %v361 = vpop.f32.mrb[0].mxu0
  %362 = vdwg.mxu0
  %363 = vmatprep.subr.bf16.mxu0 %v114
  %364 = vmatpush1.bf16.msra.mxu0 %v113
  %365 = vmatprep.subr.bf16.mxu0 %v138
  %366 = vmatpush1.bf16.msra.mxu0 %v135
  %367 = vmatprep.subr.bf16.mxu0 0
  %368 = vmatpush1.bf16.msra.mxu0 0
  %369 = vmatprep.subr.bf16.mxu0 0
  %370 = vmatpush1.bf16.msra.mxu0 0
  %371 = vmatprep.subr.bf16.mxu0 0
  %372 = vmatpush1.bf16.msra.mxu0 0
  %373 = vmatprep.subr.bf16.mxu0 0
  %374 = vmatpush1.bf16.msra.mxu0 0
  %375 = vmatprep.subr.bf16.mxu0 0
  %376 = vmatpush1.bf16.msra.mxu0 0
  %377 = vmatprep.subr.bf16.mxu0 0
  %378 = vmatpush1.bf16.msra.mxu0 0
  %379 = vmatprep.subr.bf16.mxu0 0
  %380 = vmatpush1.bf16.msra.mxu0 0
  %381 = vmatprep.subr.bf16.mxu0 0
  %382 = vmatpush1.bf16.msra.mxu0 0
  %383 = vmatprep.subr.bf16.mxu0 0
  %384 = vmatpush1.bf16.msra.mxu0 0
  %385 = vmatprep.subr.bf16.mxu0 0
  %386 = vmatpush1.bf16.msra.mxu0 0
  %387 = vmatprep.subr.bf16.mxu0 0
  %388 = vmatpush1.bf16.msra.mxu0 0
  %389 = vmatprep.subr.bf16.mxu0 0
  %390 = vmatpush1.bf16.msra.mxu0 0
  %391 = vmatprep.subr.bf16.mxu0 0
  %392 = vmatpush1.bf16.msra.mxu0 0
  %393 = vmatprep.subr.bf16.mxu0 0
  %394 = vmatpush1.bf16.msra.mxu0 0
  %395 = vmatprep.mubr.bf16.mxu0 0
  %396 = vmatmul.mubr.bf16.gmra.mrb[0].mxu0 %v320
  %v397 = vpop.f32.mrb[0].mxu0
  %v398 = vadd.f32 %v77, %v397
  %v399 = vpop.f32.mrb[0].mxu0
  %v400 = vadd.f32 %v81, %v399
  %v401 = vpop.f32.mrb[0].mxu0
  %v402 = vpop.f32.mrb[0].mxu0
  %403 = vdwg.mxu0
  %404 = vst [vmem:[#allocation2 + $0x40] sm:$0xff] %v357
  %405 = vst [vmem:[#allocation2 + $0x48] sm:$0xff] %v359
  %406 = vst [vmem:[#allocation2 + $0x50] sm:$0xff] %v398
  %407 = vst [vmem:[#allocation2 + $0x58] sm:$0xff] %v400
  %s408 = scalar_lea.vmem %s0, 12
  %v409 = vld [vmem:[%s408] sm:$0xf]
  %v411 = vsel %vm123, %v409, 0
  %413 = vmatprep.subr.bf16.mxu0 %v112
  %414 = vmatpush1.bf16.msra.mxu0 %v111
  %415 = vmatprep.subr.bf16.mxu0 %v132
  %416 = vmatpush1.bf16.msra.mxu0 %v129
  %417 = vmatprep.subr.bf16.mxu0 0
  %418 = vmatpush1.bf16.msra.mxu0 0
  %419 = vmatprep.subr.bf16.mxu0 0
  %420 = vmatpush1.bf16.msra.mxu0 0
  %421 = vmatprep.subr.bf16.mxu0 0
  %422 = vmatpush1.bf16.msra.mxu0 0
  %423 = vmatprep.subr.bf16.mxu0 0
  %424 = vmatpush1.bf16.msra.mxu0 0
  %425 = vmatprep.subr.bf16.mxu0 0
  %426 = vmatpush1.bf16.msra.mxu0 0
  %427 = vmatprep.subr.bf16.mxu0 0
  %428 = vmatpush1.bf16.msra.mxu0 0
  %429 = vmatprep.subr.bf16.mxu0 0
  %430 = vmatpush1.bf16.msra.mxu0 0
  %431 = vmatprep.subr.bf16.mxu0 0
  %432 = vmatpush1.bf16.msra.mxu0 0
  %433 = vmatprep.subr.bf16.mxu0 0
  %434 = vmatpush1.bf16.msra.mxu0 0
  %435 = vmatprep.subr.bf16.mxu0 0
  %436 = vmatpush1.bf16.msra.mxu0 0
  %437 = vmatprep.subr.bf16.mxu0 0
  %438 = vmatpush1.bf16.msra.mxu0 0
  %439 = vmatprep.subr.bf16.mxu0 0
  %440 = vmatpush1.bf16.msra.mxu0 0
  %441 = vmatprep.subr.bf16.mxu0 0
  %442 = vmatpush1.bf16.msra.mxu0 0
  %443 = vmatprep.subr.bf16.mxu0 0
  %444 = vmatpush1.bf16.msra.mxu0 0
  %445 = vmatprep.mubr.bf16.mxu0 0
  %446 = vmatmul.mubr.bf16.gmra.mrb[0].mxu0 %v411
  %v447 = vpop.f32.mrb[0].mxu0
  %v448 = vadd.f32 %v69, %v447
  %v449 = vpop.f32.mrb[0].mxu0
  %v450 = vadd.f32 %v73, %v449
  %v451 = vpop.f32.mrb[0].mxu0
  %v452 = vpop.f32.mrb[0].mxu0
  %453 = vdwg.mxu0
  %454 = vmatprep.subr.bf16.mxu0 %v114
  %455 = vmatpush1.bf16.msra.mxu0 %v113
  %456 = vmatprep.subr.bf16.mxu0 %v138
  %457 = vmatpush1.bf16.msra.mxu0 %v135
  %458 = vmatprep.subr.bf16.mxu0 0
  %459 = vmatpush1.bf16.msra.mxu0 0
  %460 = vmatprep.subr.bf16.mxu0 0
  %461 = vmatpush1.bf16.msra.mxu0 0
  %462 = vmatprep.subr.bf16.mxu0 0
  %463 = vmatpush1.bf16.msra.mxu0 0
  %464 = vmatprep.subr.bf16.mxu0 0
  %465 = vmatpush1.bf16.msra.mxu0 0
  %466 = vmatprep.subr.bf16.mxu0 0
  %467 = vmatpush1.bf16.msra.mxu0 0
  %468 = vmatprep.subr.bf16.mxu0 0
  %469 = vmatpush1.bf16.msra.mxu0 0
  %470 = vmatprep.subr.bf16.mxu0 0
  %471 = vmatpush1.bf16.msra.mxu0 0
  %472 = vmatprep.subr.bf16.mxu0 0
  %473 = vmatpush1.bf16.msra.mxu0 0
  %474 = vmatprep.subr.bf16.mxu0 0
  %475 = vmatpush1.bf16.msra.mxu0 0
  %476 = vmatprep.subr.bf16.mxu0 0
  %477 = vmatpush1.bf16.msra.mxu0 0
  %478 = vmatprep.subr.bf16.mxu0 0
  %479 = vmatpush1.bf16.msra.mxu0 0
  %480 = vmatprep.subr.bf16.mxu0 0
  %481 = vmatpush1.bf16.msra.mxu0 0
  %482 = vmatprep.subr.bf16.mxu0 0
  %483 = vmatpush1.bf16.msra.mxu0 0
  %484 = vmatprep.subr.bf16.mxu0 0
  %485 = vmatpush1.bf16.msra.mxu0 0
  %486 = vmatprep.mubr.bf16.mxu0 0
  %487 = vmatmul.mubr.bf16.gmra.mrb[0].mxu0 %v411
  %v488 = vpop.f32.mrb[0].mxu0
  %v489 = vadd.f32 %v77, %v488
  %v490 = vpop.f32.mrb[0].mxu0
  %v491 = vadd.f32 %v81, %v490
  %v492 = vpop.f32.mrb[0].mxu0
  %v493 = vpop.f32.mrb[0].mxu0
  %494 = vdwg.mxu0
  %495 = vst [vmem:[#allocation2 + $0x60] sm:$0xff] %v448
  %496 = vst [vmem:[#allocation2 + $0x68] sm:$0xff] %v450
  %497 = vst [vmem:[#allocation2 + $0x70] sm:$0xff] %v489
  %498 = vst [vmem:[#allocation2 + $0x78] sm:$0xff] %v491
  %s499 = scalar_lea.vmem %s0, 16
  %v500 = vld [vmem:[%s499] sm:$0xf]
  %v502 = vsel %vm123, %v500, 0
  %504 = vmatprep.subr.bf16.mxu0 %v112
  %505 = vmatpush1.bf16.msra.mxu0 %v111
  %506 = vmatprep.subr.bf16.mxu0 %v132
  %507 = vmatpush1.bf16.msra.mxu0 %v129
  %508 = vmatprep.subr.bf16.mxu0 0
  %509 = vmatpush1.bf16.msra.mxu0 0
  %510 = vmatprep.subr.bf16.mxu0 0
  %511 = vmatpush1.bf16.msra.mxu0 0
  %512 = vmatprep.subr.bf16.mxu0 0
  %513 = vmatpush1.bf16.msra.mxu0 0
  %514 = vmatprep.subr.bf16.mxu0 0
  %515 = vmatpush1.bf16.msra.mxu0 0
  %516 = vmatprep.subr.bf16.mxu0 0
  %517 = vmatpush1.bf16.msra.mxu0 0
  %518 = vmatprep.subr.bf16.mxu0 0
  %519 = vmatpush1.bf16.msra.mxu0 0
  %520 = vmatprep.subr.bf16.mxu0 0
  %521 = vmatpush1.bf16.msra.mxu0 0
  %522 = vmatprep.subr.bf16.mxu0 0
  %523 = vmatpush1.bf16.msra.mxu0 0
  %524 = vmatprep.subr.bf16.mxu0 0
  %525 = vmatpush1.bf16.msra.mxu0 0
  %526 = vmatprep.subr.bf16.mxu0 0
  %527 = vmatpush1.bf16.msra.mxu0 0
  %528 = vmatprep.subr.bf16.mxu0 0
  %529 = vmatpush1.bf16.msra.mxu0 0
  %530 = vmatprep.subr.bf16.mxu0 0
  %531 = vmatpush1.bf16.msra.mxu0 0
  %532 = vmatprep.subr.bf16.mxu0 0
  %533 = vmatpush1.bf16.msra.mxu0 0
  %534 = vmatprep.subr.bf16.mxu0 0
  %535 = vmatpush1.bf16.msra.mxu0 0
  %536 = vmatprep.mubr.bf16.mxu0 0
  %537 = vmatmul.mubr.bf16.gmra.mrb[0].mxu0 %v502
  %v538 = vpop.f32.mrb[0].mxu0
  %v539 = vadd.f32 %v69, %v538
  %v540 = vpop.f32.mrb[0].mxu0
  %v541 = vadd.f32 %v73, %v540
  %v542 = vpop.f32.mrb[0].mxu0
  %v543 = vpop.f32.mrb[0].mxu0
  %544 = vdwg.mxu0
  %545 = vmatprep.subr.bf16.mxu0 %v114
  %546 = vmatpush1.bf16.msra.mxu0 %v113
  %547 = vmatprep.subr.bf16.mxu0 %v138
  %548 = vmatpush1.bf16.msra.mxu0 %v135
  %549 = vmatprep.subr.bf16.mxu0 0
  %550 = vmatpush1.bf16.msra.mxu0 0
  %551 = vmatprep.subr.bf16.mxu0 0
  %552 = vmatpush1.bf16.msra.mxu0 0
  %553 = vmatprep.subr.bf16.mxu0 0
  %554 = vmatpush1.bf16.msra.mxu0 0
  %555 = vmatprep.subr.bf16.mxu0 0
  %556 = vmatpush1.bf16.msra.mxu0 0
  %557 = vmatprep.subr.bf16.mxu0 0
  %558 = vmatpush1.bf16.msra.mxu0 0
  %559 = vmatprep.subr.bf16.mxu0 0
  %560 = vmatpush1.bf16.msra.mxu0 0
  %561 = vmatprep.subr.bf16.mxu0 0
  %562 = vmatpush1.bf16.msra.mxu0 0
  %563 = vmatprep.subr.bf16.mxu0 0
  %564 = vmatpush1.bf16.msra.mxu0 0
  %565 = vmatprep.subr.bf16.mxu0 0
  %566 = vmatpush1.bf16.msra.mxu0 0
  %567 = vmatprep.subr.bf16.mxu0 0
  %568 = vmatpush1.bf16.msra.mxu0 0
  %569 = vmatprep.subr.bf16.mxu0 0
  %570 = vmatpush1.bf16.msra.mxu0 0
  %571 = vmatprep.subr.bf16.mxu0 0
  %572 = vmatpush1.bf16.msra.mxu0 0
  %573 = vmatprep.subr.bf16.mxu0 0
  %574 = vmatpush1.bf16.msra.mxu0 0
  %575 = vmatprep.subr.bf16.mxu0 0
  %576 = vmatpush1.bf16.msra.mxu0 0
  %577 = vmatprep.mubr.bf16.mxu0 0
  %578 = vmatmul.mubr.bf16.gmra.mrb[0].mxu0 %v502
  %v579 = vpop.f32.mrb[0].mxu0
  %v580 = vadd.f32 %v77, %v579
  %v581 = vpop.f32.mrb[0].mxu0
  %v582 = vadd.f32 %v81, %v581
  %v583 = vpop.f32.mrb[0].mxu0
  %v584 = vpop.f32.mrb[0].mxu0
  %585 = vdwg.mxu0
  %586 = vst [vmem:[#allocation2 + $0x80] sm:$0xff] %v539
  %587 = vst [vmem:[#allocation2 + $0x88] sm:$0xff] %v541
  %588 = vst [vmem:[#allocation2 + $0x90] sm:$0xff] %v580
  %589 = vst [vmem:[#allocation2 + $0x98] sm:$0xff] %v582
  %s590 = scalar_lea.vmem %s0, 20
  %v591 = vld [vmem:[%s590] sm:$0xf]
  %v593 = vsel %vm123, %v591, 0
  %595 = vmatprep.subr.bf16.mxu0 %v112
  %596 = vmatpush1.bf16.msra.mxu0 %v111
  %597 = vmatprep.subr.bf16.mxu0 %v132
  %598 = vmatpush1.bf16.msra.mxu0 %v129
  %599 = vmatprep.subr.bf16.mxu0 0
  %600 = vmatpush1.bf16.msra.mxu0 0
  %601 = vmatprep.subr.bf16.mxu0 0
  %602 = vmatpush1.bf16.msra.mxu0 0
  %603 = vmatprep.subr.bf16.mxu0 0
  %604 = vmatpush1.bf16.msra.mxu0 0
  %605 = vmatprep.subr.bf16.mxu0 0
  %606 = vmatpush1.bf16.msra.mxu0 0
  %607 = vmatprep.subr.bf16.mxu0 0
  %608 = vmatpush1.bf16.msra.mxu0 0
  %609 = vmatprep.subr.bf16.mxu0 0
  %610 = vmatpush1.bf16.msra.mxu0 0
  %611 = vmatprep.subr.bf16.mxu0 0
  %612 = vmatpush1.bf16.msra.mxu0 0
  %613 = vmatprep.subr.bf16.mxu0 0
  %614 = vmatpush1.bf16.msra.mxu0 0
  %615 = vmatprep.subr.bf16.mxu0 0
  %616 = vmatpush1.bf16.msra.mxu0 0
  %617 = vmatprep.subr.bf16.mxu0 0
  %618 = vmatpush1.bf16.msra.mxu0 0
  %619 = vmatprep.subr.bf16.mxu0 0
  %620 = vmatpush1.bf16.msra.mxu0 0
  %621 = vmatprep.subr.bf16.mxu0 0
  %622 = vmatpush1.bf16.msra.mxu0 0
  %623 = vmatprep.subr.bf16.mxu0 0
  %624 = vmatpush1.bf16.msra.mxu0 0
  %625 = vmatprep.subr.bf16.mxu0 0
  %626 = vmatpush1.bf16.msra.mxu0 0
  %627 = vmatprep.mubr.bf16.mxu0 0
  %628 = vmatmul.mubr.bf16.gmra.mrb[0].mxu0 %v593
  %v629 = vpop.f32.mrb[0].mxu0
  %v630 = vadd.f32 %v69, %v629
  %v631 = vpop.f32.mrb[0].mxu0
  %v632 = vadd.f32 %v73, %v631
  %v633 = vpop.f32.mrb[0].mxu0
  %v634 = vpop.f32.mrb[0].mxu0
  %635 = vdwg.mxu0
  %636 = vmatprep.subr.bf16.mxu0 %v114
  %637 = vmatpush1.bf16.msra.mxu0 %v113
  %638 = vmatprep.subr.bf16.mxu0 %v138
  %639 = vmatpush1.bf16.msra.mxu0 %v135
  %640 = vmatprep.subr.bf16.mxu0 0
  %641 = vmatpush1.bf16.msra.mxu0 0
  %642 = vmatprep.subr.bf16.mxu0 0
  %643 = vmatpush1.bf16.msra.mxu0 0
  %644 = vmatprep.subr.bf16.mxu0 0
  %645 = vmatpush1.bf16.msra.mxu0 0
  %646 = vmatprep.subr.bf16.mxu0 0
  %647 = vmatpush1.bf16.msra.mxu0 0
  %648 = vmatprep.subr.bf16.mxu0 0
  %649 = vmatpush1.bf16.msra.mxu0 0
  %650 = vmatprep.subr.bf16.mxu0 0
  %651 = vmatpush1.bf16.msra.mxu0 0
  %652 = vmatprep.subr.bf16.mxu0 0
  %653 = vmatpush1.bf16.msra.mxu0 0
  %654 = vmatprep.subr.bf16.mxu0 0
  %655 = vmatpush1.bf16.msra.mxu0 0
  %656 = vmatprep.subr.bf16.mxu0 0
  %657 = vmatpush1.bf16.msra.mxu0 0
  %658 = vmatprep.subr.bf16.mxu0 0
  %659 = vmatpush1.bf16.msra.mxu0 0
  %660 = vmatprep.subr.bf16.mxu0 0
  %661 = vmatpush1.bf16.msra.mxu0 0
  %662 = vmatprep.subr.bf16.mxu0 0
  %663 = vmatpush1.bf16.msra.mxu0 0
  %664 = vmatprep.subr.bf16.mxu0 0
  %665 = vmatpush1.bf16.msra.mxu0 0
  %666 = vmatprep.subr.bf16.mxu0 0
  %667 = vmatpush1.bf16.msra.mxu0 0
  %668 = vmatprep.mubr.bf16.mxu0 0
  %669 = vmatmul.mubr.bf16.gmra.mrb[0].mxu0 %v593
  %v670 = vpop.f32.mrb[0].mxu0
  %v671 = vadd.f32 %v77, %v670
  %v672 = vpop.f32.mrb[0].mxu0
  %v673 = vadd.f32 %v81, %v672
  %v674 = vpop.f32.mrb[0].mxu0
  %v675 = vpop.f32.mrb[0].mxu0
  %676 = vdwg.mxu0
  %677 = vst [vmem:[#allocation2 + $0xa0] sm:$0xff] %v630
  %678 = vst [vmem:[#allocation2 + $0xa8] sm:$0xff] %v632
  %679 = vst [vmem:[#allocation2 + $0xb0] sm:$0xff] %v671
  %680 = vst [vmem:[#allocation2 + $0xb8] sm:$0xff] %v673
  %s681 = scalar_lea.vmem %s0, 24
  %v682 = vld [vmem:[%s681] sm:$0xf]
  %v684 = vsel %vm123, %v682, 0
  %686 = vmatprep.subr.bf16.mxu0 %v112
  %687 = vmatpush1.bf16.msra.mxu0 %v111
  %688 = vmatprep.subr.bf16.mxu0 %v132
  %689 = vmatpush1.bf16.msra.mxu0 %v129
  %690 = vmatprep.subr.bf16.mxu0 0
  %691 = vmatpush1.bf16.msra.mxu0 0
  %692 = vmatprep.subr.bf16.mxu0 0
  %693 = vmatpush1.bf16.msra.mxu0 0
  %694 = vmatprep.subr.bf16.mxu0 0
  %695 = vmatpush1.bf16.msra.mxu0 0
  %696 = vmatprep.subr.bf16.mxu0 0
  %697 = vmatpush1.bf16.msra.mxu0 0
  %698 = vmatprep.subr.bf16.mxu0 0
  %699 = vmatpush1.bf16.msra.mxu0 0
  %700 = vmatprep.subr.bf16.mxu0 0
  %701 = vmatpush1.bf16.msra.mxu0 0
  %702 = vmatprep.subr.bf16.mxu0 0
  %703 = vmatpush1.bf16.msra.mxu0 0
  %704 = vmatprep.subr.bf16.mxu0 0
  %705 = vmatpush1.bf16.msra.mxu0 0
  %706 = vmatprep.subr.bf16.mxu0 0
  %707 = vmatpush1.bf16.msra.mxu0 0
  %708 = vmatprep.subr.bf16.mxu0 0
  %709 = vmatpush1.bf16.msra.mxu0 0
  %710 = vmatprep.subr.bf16.mxu0 0
  %711 = vmatpush1.bf16.msra.mxu0 0
  %712 = vmatprep.subr.bf16.mxu0 0
  %713 = vmatpush1.bf16.msra.mxu0 0
  %714 = vmatprep.subr.bf16.mxu0 0
  %715 = vmatpush1.bf16.msra.mxu0 0
  %716 = vmatprep.subr.bf16.mxu0 0
  %717 = vmatpush1.bf16.msra.mxu0 0
  %718 = vmatprep.mubr.bf16.mxu0 0
  %719 = vmatmul.mubr.bf16.gmra.mrb[0].mxu0 %v684
  %v720 = vpop.f32.mrb[0].mxu0
  %v721 = vadd.f32 %v69, %v720
  %v722 = vpop.f32.mrb[0].mxu0
  %v723 = vadd.f32 %v73, %v722
  %v724 = vpop.f32.mrb[0].mxu0
  %v725 = vpop.f32.mrb[0].mxu0
  %726 = vdwg.mxu0
  %727 = vmatprep.subr.bf16.mxu0 %v114
  %728 = vmatpush1.bf16.msra.mxu0 %v113
  %729 = vmatprep.subr.bf16.mxu0 %v138
  %730 = vmatpush1.bf16.msra.mxu0 %v135
  %731 = vmatprep.subr.bf16.mxu0 0
  %732 = vmatpush1.bf16.msra.mxu0 0
  %733 = vmatprep.subr.bf16.mxu0 0
  %734 = vmatpush1.bf16.msra.mxu0 0
  %735 = vmatprep.subr.bf16.mxu0 0
  %736 = vmatpush1.bf16.msra.mxu0 0
  %737 = vmatprep.subr.bf16.mxu0 0
  %738 = vmatpush1.bf16.msra.mxu0 0
  %739 = vmatprep.subr.bf16.mxu0 0
  %740 = vmatpush1.bf16.msra.mxu0 0
  %741 = vmatprep.subr.bf16.mxu0 0
  %742 = vmatpush1.bf16.msra.mxu0 0
  %743 = vmatprep.subr.bf16.mxu0 0
  %744 = vmatpush1.bf16.msra.mxu0 0
  %745 = vmatprep.subr.bf16.mxu0 0
  %746 = vmatpush1.bf16.msra.mxu0 0
  %747 = vmatprep.subr.bf16.mxu0 0
  %748 = vmatpush1.bf16.msra.mxu0 0
  %749 = vmatprep.subr.bf16.mxu0 0
  %750 = vmatpush1.bf16.msra.mxu0 0
  %751 = vmatprep.subr.bf16.mxu0 0
  %752 = vmatpush1.bf16.msra.mxu0 0
  %753 = vmatprep.subr.bf16.mxu0 0
  %754 = vmatpush1.bf16.msra.mxu0 0
  %755 = vmatprep.subr.bf16.mxu0 0
  %756 = vmatpush1.bf16.msra.mxu0 0
  %757 = vmatprep.subr.bf16.mxu0 0
  %758 = vmatpush1.bf16.msra.mxu0 0
  %759 = vmatprep.mubr.bf16.mxu0 0
  %760 = vmatmul.mubr.bf16.gmra.mrb[0].mxu0 %v684
  %v761 = vpop.f32.mrb[0].mxu0
  %v762 = vadd.f32 %v77, %v761
  %v763 = vpop.f32.mrb[0].mxu0
  %v764 = vadd.f32 %v81, %v763
  %v765 = vpop.f32.mrb[0].mxu0
  %v766 = vpop.f32.mrb[0].mxu0
  %767 = vdwg.mxu0
  %768 = vst [vmem:[#allocation2 + $0xc0] sm:$0xff] %v721
  %769 = vst [vmem:[#allocation2 + $0xc8] sm:$0xff] %v723
  %770 = vst [vmem:[#allocation2 + $0xd0] sm:$0xff] %v762
  %771 = vst [vmem:[#allocation2 + $0xd8] sm:$0xff] %v764
  %s772 = scalar_lea.vmem %s0, 28
  %v773 = vld [vmem:[%s772] sm:$0xf]
  %v775 = vsel %vm123, %v773, 0
  %777 = vmatprep.subr.bf16.mxu0 %v112
  %778 = vmatpush1.bf16.msra.mxu0 %v111
  %779 = vmatprep.subr.bf16.mxu0 %v132
  %780 = vmatpush1.bf16.msra.mxu0 %v129
  %781 = vmatprep.subr.bf16.mxu0 0
  %782 = vmatpush1.bf16.msra.mxu0 0
  %783 = vmatprep.subr.bf16.mxu0 0
  %784 = vmatpush1.bf16.msra.mxu0 0
  %785 = vmatprep.subr.bf16.mxu0 0
  %786 = vmatpush1.bf16.msra.mxu0 0
  %787 = vmatprep.subr.bf16.mxu0 0
  %788 = vmatpush1.bf16.msra.mxu0 0
  %789 = vmatprep.subr.bf16.mxu0 0
  %790 = vmatpush1.bf16.msra.mxu0 0
  %791 = vmatprep.subr.bf16.mxu0 0
  %792 = vmatpush1.bf16.msra.mxu0 0
  %793 = vmatprep.subr.bf16.mxu0 0
  %794 = vmatpush1.bf16.msra.mxu0 0
  %795 = vmatprep.subr.bf16.mxu0 0
  %796 = vmatpush1.bf16.msra.mxu0 0
  %797 = vmatprep.subr.bf16.mxu0 0
  %798 = vmatpush1.bf16.msra.mxu0 0
  %799 = vmatprep.subr.bf16.mxu0 0
  %800 = vmatpush1.bf16.msra.mxu0 0
  %801 = vmatprep.subr.bf16.mxu0 0
  %802 = vmatpush1.bf16.msra.mxu0 0
  %803 = vmatprep.subr.bf16.mxu0 0
  %804 = vmatpush1.bf16.msra.mxu0 0
  %805 = vmatprep.subr.bf16.mxu0 0
  %806 = vmatpush1.bf16.msra.mxu0 0
  %807 = vmatprep.subr.bf16.mxu0 0
  %808 = vmatpush1.bf16.msra.mxu0 0
  %809 = vmatprep.mubr.bf16.mxu0 0
  %810 = vmatmul.mubr.bf16.gmra.mrb[0].mxu0 %v775
  %v811 = vpop.f32.mrb[0].mxu0
  %v812 = vadd.f32 %v69, %v811
  %v813 = vpop.f32.mrb[0].mxu0
  %v814 = vadd.f32 %v73, %v813
  %v815 = vpop.f32.mrb[0].mxu0
  %v816 = vpop.f32.mrb[0].mxu0
  %817 = vdwg.mxu0
  %818 = vmatprep.subr.bf16.mxu0 %v114
  %819 = vmatpush1.bf16.msra.mxu0 %v113
  %820 = vmatprep.subr.bf16.mxu0 %v138
  %821 = vmatpush1.bf16.msra.mxu0 %v135
  %822 = vmatprep.subr.bf16.mxu0 0
  %823 = vmatpush1.bf16.msra.mxu0 0
  %824 = vmatprep.subr.bf16.mxu0 0
  %825 = vmatpush1.bf16.msra.mxu0 0
  %826 = vmatprep.subr.bf16.mxu0 0
  %827 = vmatpush1.bf16.msra.mxu0 0
  %828 = vmatprep.subr.bf16.mxu0 0
  %829 = vmatpush1.bf16.msra.mxu0 0
  %830 = vmatprep.subr.bf16.mxu0 0
  %831 = vmatpush1.bf16.msra.mxu0 0
  %832 = vmatprep.subr.bf16.mxu0 0
  %833 = vmatpush1.bf16.msra.mxu0 0
  %834 = vmatprep.subr.bf16.mxu0 0
  %835 = vmatpush1.bf16.msra.mxu0 0
  %836 = vmatprep.subr.bf16.mxu0 0
  %837 = vmatpush1.bf16.msra.mxu0 0
  %838 = vmatprep.subr.bf16.mxu0 0
  %839 = vmatpush1.bf16.msra.mxu0 0
  %840 = vmatprep.subr.bf16.mxu0 0
  %841 = vmatpush1.bf16.msra.mxu0 0
  %842 = vmatprep.subr.bf16.mxu0 0
  %843 = vmatpush1.bf16.msra.mxu0 0
  %844 = vmatprep.subr.bf16.mxu0 0
  %845 = vmatpush1.bf16.msra.mxu0 0
  %846 = vmatprep.subr.bf16.mxu0 0
  %847 = vmatpush1.bf16.msra.mxu0 0
  %848 = vmatprep.subr.bf16.mxu0 0
  %849 = vmatpush1.bf16.msra.mxu0 0
  %850 = vmatprep.mubr.bf16.mxu0 0
  %851 = vmatmul.mubr.bf16.gmra.mrb[0].mxu0 %v775
  %v852 = vpop.f32.mrb[0].mxu0
  %v853 = vadd.f32 %v77, %v852
  %v854 = vpop.f32.mrb[0].mxu0
  %v855 = vadd.f32 %v81, %v854
  %v856 = vpop.f32.mrb[0].mxu0
  %v857 = vpop.f32.mrb[0].mxu0
  %858 = vdwg.mxu0
  %859 = vst [vmem:[#allocation2 + $0xe0] sm:$0xff] %v812
  %860 = vst [vmem:[#allocation2 + $0xe8] sm:$0xff] %v814
  %861 = vst [vmem:[#allocation2 + $0xf0] sm:$0xff] %v853
  %862 = vst [vmem:[#allocation2 + $0xf8] sm:$0xff] %v855
  %s863 = scalar_lea.vmem %s0, 32
  %v864 = vld [vmem:[%s863] sm:$0xf]
  %v866 = vsel %vm123, %v864, 0
  %868 = vmatprep.subr.bf16.mxu0 %v112
  %869 = vmatpush1.bf16.msra.mxu0 %v111
  %870 = vmatprep.subr.bf16.mxu0 %v132
  %871 = vmatpush1.bf16.msra.mxu0 %v129
  %872 = vmatprep.subr.bf16.mxu0 0
  %873 = vmatpush1.bf16.msra.mxu0 0
  %874 = vmatprep.subr.bf16.mxu0 0
  %875 = vmatpush1.bf16.msra.mxu0 0
  %876 = vmatprep.subr.bf16.mxu0 0
  %877 = vmatpush1.bf16.msra.mxu0 0
  %878 = vmatprep.subr.bf16.mxu0 0
  %879 = vmatpush1.bf16.msra.mxu0 0
  %880 = vmatprep.subr.bf16.mxu0 0
  %881 = vmatpush1.bf16.msra.mxu0 0
  %882 = vmatprep.subr.bf16.mxu0 0
  %883 = vmatpush1.bf16.msra.mxu0 0
  %884 = vmatprep.subr.bf16.mxu0 0
  %885 = vmatpush1.bf16.msra.mxu0 0
  %886 = vmatprep.subr.bf16.mxu0 0
  %887 = vmatpush1.bf16.msra.mxu0 0
  %888 = vmatprep.subr.bf16.mxu0 0
  %889 = vmatpush1.bf16.msra.mxu0 0
  %890 = vmatprep.subr.bf16.mxu0 0
  %891 = vmatpush1.bf16.msra.mxu0 0
  %892 = vmatprep.subr.bf16.mxu0 0
  %893 = vmatpush1.bf16.msra.mxu0 0
  %894 = vmatprep.subr.bf16.mxu0 0
  %895 = vmatpush1.bf16.msra.mxu0 0
  %896 = vmatprep.subr.bf16.mxu0 0
  %897 = vmatpush1.bf16.msra.mxu0 0
  %898 = vmatprep.subr.bf16.mxu0 0
  %899 = vmatpush1.bf16.msra.mxu0 0
  %900 = vmatprep.mubr.bf16.mxu0 0
  %901 = vmatmul.mubr.bf16.gmra.mrb[0].mxu0 %v866
  %v902 = vpop.f32.mrb[0].mxu0
  %v903 = vadd.f32 %v69, %v902
  %v904 = vpop.f32.mrb[0].mxu0
  %v905 = vadd.f32 %v73, %v904
  %v906 = vpop.f32.mrb[0].mxu0
  %v907 = vpop.f32.mrb[0].mxu0
  %908 = vdwg.mxu0
  %909 = vmatprep.subr.bf16.mxu0 %v114
  %910 = vmatpush1.bf16.msra.mxu0 %v113
  %911 = vmatprep.subr.bf16.mxu0 %v138
  %912 = vmatpush1.bf16.msra.mxu0 %v135
  %913 = vmatprep.subr.bf16.mxu0 0
  %914 = vmatpush1.bf16.msra.mxu0 0
  %915 = vmatprep.subr.bf16.mxu0 0
  %916 = vmatpush1.bf16.msra.mxu0 0
  %917 = vmatprep.subr.bf16.mxu0 0
  %918 = vmatpush1.bf16.msra.mxu0 0
  %919 = vmatprep.subr.bf16.mxu0 0
  %920 = vmatpush1.bf16.msra.mxu0 0
  %921 = vmatprep.subr.bf16.mxu0 0
  %922 = vmatpush1.bf16.msra.mxu0 0
  %923 = vmatprep.subr.bf16.mxu0 0
  %924 = vmatpush1.bf16.msra.mxu0 0
  %925 = vmatprep.subr.bf16.mxu0 0
  %926 = vmatpush1.bf16.msra.mxu0 0
  %927 = vmatprep.subr.bf16.mxu0 0
  %928 = vmatpush1.bf16.msra.mxu0 0
  %929 = vmatprep.subr.bf16.mxu0 0
  %930 = vmatpush1.bf16.msra.mxu0 0
  %931 = vmatprep.subr.bf16.mxu0 0
  %932 = vmatpush1.bf16.msra.mxu0 0
  %933 = vmatprep.subr.bf16.mxu0 0
  %934 = vmatpush1.bf16.msra.mxu0 0
  %935 = vmatprep.subr.bf16.mxu0 0
  %936 = vmatpush1.bf16.msra.mxu0 0
  %937 = vmatprep.subr.bf16.mxu0 0
  %938 = vmatpush1.bf16.msra.mxu0 0
  %939 = vmatprep.subr.bf16.mxu0 0
  %940 = vmatpush1.bf16.msra.mxu0 0
  %941 = vmatprep.mubr.bf16.mxu0 0
  %942 = vmatmul.mubr.bf16.gmra.mrb[0].mxu0 %v866
  %v943 = vpop.f32.mrb[0].mxu0
  %v944 = vadd.f32 %v77, %v943
  %v945 = vpop.f32.mrb[0].mxu0
  %v946 = vadd.f32 %v81, %v945
  %v947 = vpop.f32.mrb[0].mxu0
  %v948 = vpop.f32.mrb[0].mxu0
  %949 = vdwg.mxu0
  %950 = vst [vmem:[#allocation2 + $0x100] sm:$0xff] %v903
  %951 = vst [vmem:[#allocation2 + $0x108] sm:$0xff] %v905
  %952 = vst [vmem:[#allocation2 + $0x110] sm:$0xff] %v944
  %953 = vst [vmem:[#allocation2 + $0x118] sm:$0xff] %v946
  %s954 = scalar_lea.vmem %s0, 36
  %v955 = vld [vmem:[%s954] sm:$0xf]
  %v957 = vsel %vm123, %v955, 0
  %959 = vmatprep.subr.bf16.mxu0 %v112
  %960 = vmatpush1.bf16.msra.mxu0 %v111
  %961 = vmatprep.subr.bf16.mxu0 %v132
  %962 = vmatpush1.bf16.msra.mxu0 %v129
  %963 = vmatprep.subr.bf16.mxu0 0
  %964 = vmatpush1.bf16.msra.mxu0 0
  %965 = vmatprep.subr.bf16.mxu0 0
  %966 = vmatpush1.bf16.msra.mxu0 0
  %967 = vmatprep.subr.bf16.mxu0 0
  %968 = vmatpush1.bf16.msra.mxu0 0
  %969 = vmatprep.subr.bf16.mxu0 0
  %970 = vmatpush1.bf16.msra.mxu0 0
  %971 = vmatprep.subr.bf16.mxu0 0
  %972 = vmatpush1.bf16.msra.mxu0 0
  %973 = vmatprep.subr.bf16.mxu0 0
  %974 = vmatpush1.bf16.msra.mxu0 0
  %975 = vmatprep.subr.bf16.mxu0 0
  %976 = vmatpush1.bf16.msra.mxu0 0
  %977 = vmatprep.subr.bf16.mxu0 0
  %978 = vmatpush1.bf16.msra.mxu0 0
  %979 = vmatprep.subr.bf16.mxu0 0
  %980 = vmatpush1.bf16.msra.mxu0 0
  %981 = vmatprep.subr.bf16.mxu0 0
  %982 = vmatpush1.bf16.msra.mxu0 0
  %983 = vmatprep.subr.bf16.mxu0 0
  %984 = vmatpush1.bf16.msra.mxu0 0
  %985 = vmatprep.subr.bf16.mxu0 0
  %986 = vmatpush1.bf16.msra.mxu0 0
  %987 = vmatprep.subr.bf16.mxu0 0
  %988 = vmatpush1.bf16.msra.mxu0 0
  %989 = vmatprep.subr.bf16.mxu0 0
  %990 = vmatpush1.bf16.msra.mxu0 0
  %991 = vmatprep.mubr.bf16.mxu0 0
  %992 = vmatmul.mubr.bf16.gmra.mrb[0].mxu0 %v957
  %v993 = vpop.f32.mrb[0].mxu0
  %v994 = vadd.f32 %v69, %v993
  %v995 = vpop.f32.mrb[0].mxu0
  %v996 = vadd.f32 %v73, %v995
  %v997 = vpop.f32.mrb[0].mxu0
  %v998 = vpop.f32.mrb[0].mxu0
  %999 = vdwg.mxu0
  %1000 = vmatprep.subr.bf16.mxu0 %v114
  %1001 = vmatpush1.bf16.msra.mxu0 %v113
  %1002 = vmatprep.subr.bf16.mxu0 %v138
  %1003 = vmatpush1.bf16.msra.mxu0 %v135
  %1004 = vmatprep.subr.bf16.mxu0 0
  %1005 = vmatpush1.bf16.msra.mxu0 0
  %1006 = vmatprep.subr.bf16.mxu0 0
  %1007 = vmatpush1.bf16.msra.mxu0 0
  %1008 = vmatprep.subr.bf16.mxu0 0
  %1009 = vmatpush1.bf16.msra.mxu0 0
  %1010 = vmatprep.subr.bf16.mxu0 0
  %1011 = vmatpush1.bf16.msra.mxu0 0
  %1012 = vmatprep.subr.bf16.mxu0 0
  %1013 = vmatpush1.bf16.msra.mxu0 0
  %1014 = vmatprep.subr.bf16.mxu0 0
  %1015 = vmatpush1.bf16.msra.mxu0 0
  %1016 = vmatprep.subr.bf16.mxu0 0
  %1017 = vmatpush1.bf16.msra.mxu0 0
  %1018 = vmatprep.subr.bf16.mxu0 0
  %1019 = vmatpush1.bf16.msra.mxu0 0
  %1020 = vmatprep.subr.bf16.mxu0 0
  %1021 = vmatpush1.bf16.msra.mxu0 0
  %1022 = vmatprep.subr.bf16.mxu0 0
  %1023 = vmatpush1.bf16.msra.mxu0 0
  %1024 = vmatprep.subr.bf16.mxu0 0
  %1025 = vmatpush1.bf16.msra.mxu0 0
  %1026 = vmatprep.subr.bf16.mxu0 0
  %1027 = vmatpush1.bf16.msra.mxu0 0
  %1028 = vmatprep.subr.bf16.mxu0 0
  %1029 = vmatpush1.bf16.msra.mxu0 0
  %1030 = vmatprep.subr.bf16.mxu0 0
  %1031 = vmatpush1.bf16.msra.mxu0 0
  %1032 = vmatprep.mubr.bf16.mxu0 0
  %1033 = vmatmul.mubr.bf16.gmra.mrb[0].mxu0 %v957
  %v1034 = vpop.f32.mrb[0].mxu0
  %v1035 = vadd.f32 %v77, %v1034
  %v1036 = vpop.f32.mrb[0].mxu0
  %v1037 = vadd.f32 %v81, %v1036
  %v1038 = vpop.f32.mrb[0].mxu0
  %v1039 = vpop.f32.mrb[0].mxu0
  %1040 = vdwg.mxu0
  %1041 = vst [vmem:[#allocation2 + $0x120] sm:$0xff] %v994
  %1042 = vst [vmem:[#allocation2 + $0x128] sm:$0xff] %v996
  %1043 = vst [vmem:[#allocation2 + $0x130] sm:$0xff] %v1035
  %1044 = vst [vmem:[#allocation2 + $0x138] sm:$0xff] %v1037
  %s1045 = scalar_lea.vmem %s0, 40
  %v1046 = vld [vmem:[%s1045] sm:$0xf]
  %v1048 = vsel %vm123, %v1046, 0
  %1050 = vmatprep.subr.bf16.mxu0 %v112
  %1051 = vmatpush1.bf16.msra.mxu0 %v111
  %1052 = vmatprep.subr.bf16.mxu0 %v132
  %1053 = vmatpush1.bf16.msra.mxu0 %v129
  %1054 = vmatprep.subr.bf16.mxu0 0
  %1055 = vmatpush1.bf16.msra.mxu0 0
  %1056 = vmatprep.subr.bf16.mxu0 0
  %1057 = vmatpush1.bf16.msra.mxu0 0
  %1058 = vmatprep.subr.bf16.mxu0 0
  %1059 = vmatpush1.bf16.msra.mxu0 0
  %1060 = vmatprep.subr.bf16.mxu0 0
  %1061 = vmatpush1.bf16.msra.mxu0 0
  %1062 = vmatprep.subr.bf16.mxu0 0
  %1063 = vmatpush1.bf16.msra.mxu0 0
  %1064 = vmatprep.subr.bf16.mxu0 0
  %1065 = vmatpush1.bf16.msra.mxu0 0
  %1066 = vmatprep.subr.bf16.mxu0 0
  %1067 = vmatpush1.bf16.msra.mxu0 0
  %1068 = vmatprep.subr.bf16.mxu0 0
  %1069 = vmatpush1.bf16.msra.mxu0 0
  %1070 = vmatprep.subr.bf16.mxu0 0
  %1071 = vmatpush1.bf16.msra.mxu0 0
  %1072 = vmatprep.subr.bf16.mxu0 0
  %1073 = vmatpush1.bf16.msra.mxu0 0
  %1074 = vmatprep.subr.bf16.mxu0 0
  %1075 = vmatpush1.bf16.msra.mxu0 0
  %1076 = vmatprep.subr.bf16.mxu0 0
  %1077 = vmatpush1.bf16.msra.mxu0 0
  %1078 = vmatprep.subr.bf16.mxu0 0
  %1079 = vmatpush1.bf16.msra.mxu0 0
  %1080 = vmatprep.subr.bf16.mxu0 0
  %1081 = vmatpush1.bf16.msra.mxu0 0
  %1082 = vmatprep.mubr.bf16.mxu0 0
  %1083 = vmatmul.mubr.bf16.gmra.mrb[0].mxu0 %v1048
  %v1084 = vpop.f32.mrb[0].mxu0
  %v1085 = vadd.f32 %v69, %v1084
  %v1086 = vpop.f32.mrb[0].mxu0
  %v1087 = vadd.f32 %v73, %v1086
  %v1088 = vpop.f32.mrb[0].mxu0
  %v1089 = vpop.f32.mrb[0].mxu0
  %1090 = vdwg.mxu0
  %1091 = vmatprep.subr.bf16.mxu0 %v114
  %1092 = vmatpush1.bf16.msra.mxu0 %v113
  %1093 = vmatprep.subr.bf16.mxu0 %v138
  %1094 = vmatpush1.bf16.msra.mxu0 %v135
  %1095 = vmatprep.subr.bf16.mxu0 0
  %1096 = vmatpush1.bf16.msra.mxu0 0
  %1097 = vmatprep.subr.bf16.mxu0 0
  %1098 = vmatpush1.bf16.msra.mxu0 0
  %1099 = vmatprep.subr.bf16.mxu0 0
  %1100 = vmatpush1.bf16.msra.mxu0 0
  %1101 = vmatprep.subr.bf16.mxu0 0
  %1102 = vmatpush1.bf16.msra.mxu0 0
  %1103 = vmatprep.subr.bf16.mxu0 0
  %1104 = vmatpush1.bf16.msra.mxu0 0
  %1105 = vmatprep.subr.bf16.mxu0 0
  %1106 = vmatpush1.bf16.msra.mxu0 0
  %1107 = vmatprep.subr.bf16.mxu0 0
  %1108 = vmatpush1.bf16.msra.mxu0 0
  %1109 = vmatprep.subr.bf16.mxu0 0
  %1110 = vmatpush1.bf16.msra.mxu0 0
  %1111 = vmatprep.subr.bf16.mxu0 0
  %1112 = vmatpush1.bf16.msra.mxu0 0
  %1113 = vmatprep.subr.bf16.mxu0 0
  %1114 = vmatpush1.bf16.msra.mxu0 0
  %1115 = vmatprep.subr.bf16.mxu0 0
  %1116 = vmatpush1.bf16.msra.mxu0 0
  %1117 = vmatprep.subr.bf16.mxu0 0
  %1118 = vmatpush1.bf16.msra.mxu0 0
  %1119 = vmatprep.subr.bf16.mxu0 0
  %1120 = vmatpush1.bf16.msra.mxu0 0
  %1121 = vmatprep.subr.bf16.mxu0 0
  %1122 = vmatpush1.bf16.msra.mxu0 0
  %1123 = vmatprep.mubr.bf16.mxu0 0
  %1124 = vmatmul.mubr.bf16.gmra.mrb[0].mxu0 %v1048
  %v1125 = vpop.f32.mrb[0].mxu0
  %v1126 = vadd.f32 %v77, %v1125
  %v1127 = vpop.f32.mrb[0].mxu0
  %v1128 = vadd.f32 %v81, %v1127
  %v1129 = vpop.f32.mrb[0].mxu0
  %v1130 = vpop.f32.mrb[0].mxu0
  %1131 = vdwg.mxu0
  %1132 = vst [vmem:[#allocation2 + $0x140] sm:$0xff] %v1085
  %1133 = vst [vmem:[#allocation2 + $0x148] sm:$0xff] %v1087
  %1134 = vst [vmem:[#allocation2 + $0x150] sm:$0xff] %v1126
  %1135 = vst [vmem:[#allocation2 + $0x158] sm:$0xff] %v1128
  %s1136 = scalar_lea.vmem %s0, 44
  %v1137 = vld [vmem:[%s1136] sm:$0xf]
  %v1139 = vsel %vm123, %v1137, 0
  %1141 = vmatprep.subr.bf16.mxu0 %v112
  %1142 = vmatpush1.bf16.msra.mxu0 %v111
  %1143 = vmatprep.subr.bf16.mxu0 %v132
  %1144 = vmatpush1.bf16.msra.mxu0 %v129
  %1145 = vmatprep.subr.bf16.mxu0 0
  %1146 = vmatpush1.bf16.msra.mxu0 0
  %1147 = vmatprep.subr.bf16.mxu0 0
  %1148 = vmatpush1.bf16.msra.mxu0 0
  %1149 = vmatprep.subr.bf16.mxu0 0
  %1150 = vmatpush1.bf16.msra.mxu0 0
  %1151 = vmatprep.subr.bf16.mxu0 0
  %1152 = vmatpush1.bf16.msra.mxu0 0
  %1153 = vmatprep.subr.bf16.mxu0 0
  %1154 = vmatpush1.bf16.msra.mxu0 0
  %1155 = vmatprep.subr.bf16.mxu0 0
  %1156 = vmatpush1.bf16.msra.mxu0 0
  %1157 = vmatprep.subr.bf16.mxu0 0
  %1158 = vmatpush1.bf16.msra.mxu0 0
  %1159 = vmatprep.subr.bf16.mxu0 0
  %1160 = vmatpush1.bf16.msra.mxu0 0
  %1161 = vmatprep.subr.bf16.mxu0 0
  %1162 = vmatpush1.bf16.msra.mxu0 0
  %1163 = vmatprep.subr.bf16.mxu0 0
  %1164 = vmatpush1.bf16.msra.mxu0 0
  %1165 = vmatprep.subr.bf16.mxu0 0
  %1166 = vmatpush1.bf16.msra.mxu0 0
  %1167 = vmatprep.subr.bf16.mxu0 0
  %1168 = vmatpush1.bf16.msra.mxu0 0
  %1169 = vmatprep.subr.bf16.mxu0 0
  %1170 = vmatpush1.bf16.msra.mxu0 0
  %1171 = vmatprep.subr.bf16.mxu0 0
  %1172 = vmatpush1.bf16.msra.mxu0 0
  %1173 = vmatprep.mubr.bf16.mxu0 0
  %1174 = vmatmul.mubr.bf16.gmra.mrb[0].mxu0 %v1139
  %v1175 = vpop.f32.mrb[0].mxu0
  %v1176 = vadd.f32 %v69, %v1175
  %v1177 = vpop.f32.mrb[0].mxu0
  %v1178 = vadd.f32 %v73, %v1177
  %v1179 = vpop.f32.mrb[0].mxu0
  %v1180 = vpop.f32.mrb[0].mxu0
  %1181 = vdwg.mxu0
  %1182 = vmatprep.subr.bf16.mxu0 %v114
  %1183 = vmatpush1.bf16.msra.mxu0 %v113
  %1184 = vmatprep.subr.bf16.mxu0 %v138
  %1185 = vmatpush1.bf16.msra.mxu0 %v135
  %1186 = vmatprep.subr.bf16.mxu0 0
  %1187 = vmatpush1.bf16.msra.mxu0 0
  %1188 = vmatprep.subr.bf16.mxu0 0
  %1189 = vmatpush1.bf16.msra.mxu0 0
  %1190 = vmatprep.subr.bf16.mxu0 0
  %1191 = vmatpush1.bf16.msra.mxu0 0
  %1192 = vmatprep.subr.bf16.mxu0 0
  %1193 = vmatpush1.bf16.msra.mxu0 0
  %1194 = vmatprep.subr.bf16.mxu0 0
  %1195 = vmatpush1.bf16.msra.mxu0 0
  %1196 = vmatprep.subr.bf16.mxu0 0
  %1197 = vmatpush1.bf16.msra.mxu0 0
  %1198 = vmatprep.subr.bf16.mxu0 0
  %1199 = vmatpush1.bf16.msra.mxu0 0
  %1200 = vmatprep.subr.bf16.mxu0 0
  %1201 = vmatpush1.bf16.msra.mxu0 0
  %1202 = vmatprep.subr.bf16.mxu0 0
  %1203 = vmatpush1.bf16.msra.mxu0 0
  %1204 = vmatprep.subr.bf16.mxu0 0
  %1205 = vmatpush1.bf16.msra.mxu0 0
  %1206 = vmatprep.subr.bf16.mxu0 0
  %1207 = vmatpush1.bf16.msra.mxu0 0
  %1208 = vmatprep.subr.bf16.mxu0 0
  %1209 = vmatpush1.bf16.msra.mxu0 0
  %1210 = vmatprep.subr.bf16.mxu0 0
  %1211 = vmatpush1.bf16.msra.mxu0 0
  %1212 = vmatprep.subr.bf16.mxu0 0
  %1213 = vmatpush1.bf16.msra.mxu0 0
  %1214 = vmatprep.mubr.bf16.mxu0 0
  %1215 = vmatmul.mubr.bf16.gmra.mrb[0].mxu0 %v1139
  %v1216 = vpop.f32.mrb[0].mxu0
  %v1217 = vadd.f32 %v77, %v1216
  %v1218 = vpop.f32.mrb[0].mxu0
  %v1219 = vadd.f32 %v81, %v1218
  %v1220 = vpop.f32.mrb[0].mxu0
  %v1221 = vpop.f32.mrb[0].mxu0
  %1222 = vdwg.mxu0
  %1223 = vst [vmem:[#allocation2 + $0x160] sm:$0xff] %v1176
  %1224 = vst [vmem:[#allocation2 + $0x168] sm:$0xff] %v1178
  %1225 = vst [vmem:[#allocation2 + $0x170] sm:$0xff] %v1217
  %1226 = vst [vmem:[#allocation2 + $0x178] sm:$0xff] %v1219
  %s1227 = scalar_lea.vmem %s0, 48
  %v1228 = vld [vmem:[%s1227] sm:$0xf]
  %v1230 = vsel %vm123, %v1228, 0
  %1232 = vmatprep.subr.bf16.mxu0 %v112
  %1233 = vmatpush1.bf16.msra.mxu0 %v111
  %1234 = vmatprep.subr.bf16.mxu0 %v132
  %1235 = vmatpush1.bf16.msra.mxu0 %v129
  %1236 = vmatprep.subr.bf16.mxu0 0
  %1237 = vmatpush1.bf16.msra.mxu0 0
  %1238 = vmatprep.subr.bf16.mxu0 0
  %1239 = vmatpush1.bf16.msra.mxu0 0
  %1240 = vmatprep.subr.bf16.mxu0 0
  %1241 = vmatpush1.bf16.msra.mxu0 0
  %1242 = vmatprep.subr.bf16.mxu0 0
  %1243 = vmatpush1.bf16.msra.mxu0 0
  %1244 = vmatprep.subr.bf16.mxu0 0
  %1245 = vmatpush1.bf16.msra.mxu0 0
  %1246 = vmatprep.subr.bf16.mxu0 0
  %1247 = vmatpush1.bf16.msra.mxu0 0
  %1248 = vmatprep.subr.bf16.mxu0 0
  %1249 = vmatpush1.bf16.msra.mxu0 0
  %1250 = vmatprep.subr.bf16.mxu0 0
  %1251 = vmatpush1.bf16.msra.mxu0 0
  %1252 = vmatprep.subr.bf16.mxu0 0
  %1253 = vmatpush1.bf16.msra.mxu0 0
  %1254 = vmatprep.subr.bf16.mxu0 0
  %1255 = vmatpush1.bf16.msra.mxu0 0
  %1256 = vmatprep.subr.bf16.mxu0 0
  %1257 = vmatpush1.bf16.msra.mxu0 0
  %1258 = vmatprep.subr.bf16.mxu0 0
  %1259 = vmatpush1.bf16.msra.mxu0 0
  %1260 = vmatprep.subr.bf16.mxu0 0
  %1261 = vmatpush1.bf16.msra.mxu0 0
  %1262 = vmatprep.subr.bf16.mxu0 0
  %1263 = vmatpush1.bf16.msra.mxu0 0
  %1264 = vmatprep.mubr.bf16.mxu0 0
  %1265 = vmatmul.mubr.bf16.gmra.mrb[0].mxu0 %v1230
  %v1266 = vpop.f32.mrb[0].mxu0
  %v1267 = vadd.f32 %v69, %v1266
  %v1268 = vpop.f32.mrb[0].mxu0
  %v1269 = vadd.f32 %v73, %v1268
  %v1270 = vpop.f32.mrb[0].mxu0
  %v1271 = vpop.f32.mrb[0].mxu0
  %1272 = vdwg.mxu0
  %1273 = vmatprep.subr.bf16.mxu0 %v114
  %1274 = vmatpush1.bf16.msra.mxu0 %v113
  %1275 = vmatprep.subr.bf16.mxu0 %v138
  %1276 = vmatpush1.bf16.msra.mxu0 %v135
  %1277 = vmatprep.subr.bf16.mxu0 0
  %1278 = vmatpush1.bf16.msra.mxu0 0
  %1279 = vmatprep.subr.bf16.mxu0 0
  %1280 = vmatpush1.bf16.msra.mxu0 0
  %1281 = vmatprep.subr.bf16.mxu0 0
  %1282 = vmatpush1.bf16.msra.mxu0 0
  %1283 = vmatprep.subr.bf16.mxu0 0
  %1284 = vmatpush1.bf16.msra.mxu0 0
  %1285 = vmatprep.subr.bf16.mxu0 0
  %1286 = vmatpush1.bf16.msra.mxu0 0
  %1287 = vmatprep.subr.bf16.mxu0 0
  %1288 = vmatpush1.bf16.msra.mxu0 0
  %1289 = vmatprep.subr.bf16.mxu0 0
  %1290 = vmatpush1.bf16.msra.mxu0 0
  %1291 = vmatprep.subr.bf16.mxu0 0
  %1292 = vmatpush1.bf16.msra.mxu0 0
  %1293 = vmatprep.subr.bf16.mxu0 0
  %1294 = vmatpush1.bf16.msra.mxu0 0
  %1295 = vmatprep.subr.bf16.mxu0 0
  %1296 = vmatpush1.bf16.msra.mxu0 0
  %1297 = vmatprep.subr.bf16.mxu0 0
  %1298 = vmatpush1.bf16.msra.mxu0 0
  %1299 = vmatprep.subr.bf16.mxu0 0
  %1300 = vmatpush1.bf16.msra.mxu0 0
  %1301 = vmatprep.subr.bf16.mxu0 0
  %1302 = vmatpush1.bf16.msra.mxu0 0
  %1303 = vmatprep.subr.bf16.mxu0 0
  %1304 = vmatpush1.bf16.msra.mxu0 0
  %1305 = vmatprep.mubr.bf16.mxu0 0
  %1306 = vmatmul.mubr.bf16.gmra.mrb[0].mxu0 %v1230
  %v1307 = vpop.f32.mrb[0].mxu0
  %v1308 = vadd.f32 %v77, %v1307
  %v1309 = vpop.f32.mrb[0].mxu0
  %v1310 = vadd.f32 %v81, %v1309
  %v1311 = vpop.f32.mrb[0].mxu0
  %v1312 = vpop.f32.mrb[0].mxu0
  %1313 = vdwg.mxu0
  %1314 = vst [vmem:[#allocation2 + $0x180] sm:$0xff] %v1267
  %1315 = vst [vmem:[#allocation2 + $0x188] sm:$0xff] %v1269
  %1316 = vst [vmem:[#allocation2 + $0x190] sm:$0xff] %v1308
  %1317 = vst [vmem:[#allocation2 + $0x198] sm:$0xff] %v1310
  %s1318 = scalar_lea.vmem %s0, 52
  %v1319 = vld [vmem:[%s1318] sm:$0xf]
  %v1321 = vsel %vm123, %v1319, 0
  %1323 = vmatprep.subr.bf16.mxu0 %v112
  %1324 = vmatpush1.bf16.msra.mxu0 %v111
  %1325 = vmatprep.subr.bf16.mxu0 %v132
  %1326 = vmatpush1.bf16.msra.mxu0 %v129
  %1327 = vmatprep.subr.bf16.mxu0 0
  %1328 = vmatpush1.bf16.msra.mxu0 0
  %1329 = vmatprep.subr.bf16.mxu0 0
  %1330 = vmatpush1.bf16.msra.mxu0 0
  %1331 = vmatprep.subr.bf16.mxu0 0
  %1332 = vmatpush1.bf16.msra.mxu0 0
  %1333 = vmatprep.subr.bf16.mxu0 0
  %1334 = vmatpush1.bf16.msra.mxu0 0
  %1335 = vmatprep.subr.bf16.mxu0 0
  %1336 = vmatpush1.bf16.msra.mxu0 0
  %1337 = vmatprep.subr.bf16.mxu0 0
  %1338 = vmatpush1.bf16.msra.mxu0 0
  %1339 = vmatprep.subr.bf16.mxu0 0
  %1340 = vmatpush1.bf16.msra.mxu0 0
  %1341 = vmatprep.subr.bf16.mxu0 0
  %1342 = vmatpush1.bf16.msra.mxu0 0
  %1343 = vmatprep.subr.bf16.mxu0 0
  %1344 = vmatpush1.bf16.msra.mxu0 0
  %1345 = vmatprep.subr.bf16.mxu0 0
  %1346 = vmatpush1.bf16.msra.mxu0 0
  %1347 = vmatprep.subr.bf16.mxu0 0
  %1348 = vmatpush1.bf16.msra.mxu0 0
  %1349 = vmatprep.subr.bf16.mxu0 0
  %1350 = vmatpush1.bf16.msra.mxu0 0
  %1351 = vmatprep.subr.bf16.mxu0 0
  %1352 = vmatpush1.bf16.msra.mxu0 0
  %1353 = vmatprep.subr.bf16.mxu0 0
  %1354 = vmatpush1.bf16.msra.mxu0 0
  %1355 = vmatprep.mubr.bf16.mxu0 0
  %1356 = vmatmul.mubr.bf16.gmra.mrb[0].mxu0 %v1321
  %v1357 = vpop.f32.mrb[0].mxu0
  %v1358 = vadd.f32 %v69, %v1357
  %v1359 = vpop.f32.mrb[0].mxu0
  %v1360 = vadd.f32 %v73, %v1359
  %v1361 = vpop.f32.mrb[0].mxu0
  %v1362 = vpop.f32.mrb[0].mxu0
  %1363 = vdwg.mxu0
  %1364 = vmatprep.subr.bf16.mxu0 %v114
  %1365 = vmatpush1.bf16.msra.mxu0 %v113
  %1366 = vmatprep.subr.bf16.mxu0 %v138
  %1367 = vmatpush1.bf16.msra.mxu0 %v135
  %1368 = vmatprep.subr.bf16.mxu0 0
  %1369 = vmatpush1.bf16.msra.mxu0 0
  %1370 = vmatprep.subr.bf16.mxu0 0
  %1371 = vmatpush1.bf16.msra.mxu0 0
  %1372 = vmatprep.subr.bf16.mxu0 0
  %1373 = vmatpush1.bf16.msra.mxu0 0
  %1374 = vmatprep.subr.bf16.mxu0 0
  %1375 = vmatpush1.bf16.msra.mxu0 0
  %1376 = vmatprep.subr.bf16.mxu0 0
  %1377 = vmatpush1.bf16.msra.mxu0 0
  %1378 = vmatprep.subr.bf16.mxu0 0
  %1379 = vmatpush1.bf16.msra.mxu0 0
  %1380 = vmatprep.subr.bf16.mxu0 0
  %1381 = vmatpush1.bf16.msra.mxu0 0
  %1382 = vmatprep.subr.bf16.mxu0 0
  %1383 = vmatpush1.bf16.msra.mxu0 0
  %1384 = vmatprep.subr.bf16.mxu0 0
  %1385 = vmatpush1.bf16.msra.mxu0 0
  %1386 = vmatprep.subr.bf16.mxu0 0
  %1387 = vmatpush1.bf16.msra.mxu0 0
  %1388 = vmatprep.subr.bf16.mxu0 0
  %1389 = vmatpush1.bf16.msra.mxu0 0
  %1390 = vmatprep.subr.bf16.mxu0 0
  %1391 = vmatpush1.bf16.msra.mxu0 0
  %1392 = vmatprep.subr.bf16.mxu0 0
  %1393 = vmatpush1.bf16.msra.mxu0 0
  %1394 = vmatprep.subr.bf16.mxu0 0
  %1395 = vmatpush1.bf16.msra.mxu0 0
  %1396 = vmatprep.mubr.bf16.mxu0 0
  %1397 = vmatmul.mubr.bf16.gmra.mrb[0].mxu0 %v1321
  %v1398 = vpop.f32.mrb[0].mxu0
  %v1399 = vadd.f32 %v77, %v1398
  %v1400 = vpop.f32.mrb[0].mxu0
  %v1401 = vadd.f32 %v81, %v1400
  %v1402 = vpop.f32.mrb[0].mxu0
  %v1403 = vpop.f32.mrb[0].mxu0
  %1404 = vdwg.mxu0
  %1405 = vst [vmem:[#allocation2 + $0x1a0] sm:$0xff] %v1358
  %1406 = vst [vmem:[#allocation2 + $0x1a8] sm:$0xff] %v1360
  %1407 = vst [vmem:[#allocation2 + $0x1b0] sm:$0xff] %v1399
  %1408 = vst [vmem:[#allocation2 + $0x1b8] sm:$0xff] %v1401
  %s1409 = scalar_lea.vmem %s0, 56
  %v1410 = vld [vmem:[%s1409] sm:$0xf]
  %v1412 = vsel %vm123, %v1410, 0
  %1414 = vmatprep.subr.bf16.mxu0 %v112
  %1415 = vmatpush1.bf16.msra.mxu0 %v111
  %1416 = vmatprep.subr.bf16.mxu0 %v132
  %1417 = vmatpush1.bf16.msra.mxu0 %v129
  %1418 = vmatprep.subr.bf16.mxu0 0
  %1419 = vmatpush1.bf16.msra.mxu0 0
  %1420 = vmatprep.subr.bf16.mxu0 0
  %1421 = vmatpush1.bf16.msra.mxu0 0
  %1422 = vmatprep.subr.bf16.mxu0 0
  %1423 = vmatpush1.bf16.msra.mxu0 0
  %1424 = vmatprep.subr.bf16.mxu0 0
  %1425 = vmatpush1.bf16.msra.mxu0 0
  %1426 = vmatprep.subr.bf16.mxu0 0
  %1427 = vmatpush1.bf16.msra.mxu0 0
  %1428 = vmatprep.subr.bf16.mxu0 0
  %1429 = vmatpush1.bf16.msra.mxu0 0
  %1430 = vmatprep.subr.bf16.mxu0 0
  %1431 = vmatpush1.bf16.msra.mxu0 0
  %1432 = vmatprep.subr.bf16.mxu0 0
  %1433 = vmatpush1.bf16.msra.mxu0 0
  %1434 = vmatprep.subr.bf16.mxu0 0
  %1435 = vmatpush1.bf16.msra.mxu0 0
  %1436 = vmatprep.subr.bf16.mxu0 0
  %1437 = vmatpush1.bf16.msra.mxu0 0
  %1438 = vmatprep.subr.bf16.mxu0 0
  %1439 = vmatpush1.bf16.msra.mxu0 0
  %1440 = vmatprep.subr.bf16.mxu0 0
  %1441 = vmatpush1.bf16.msra.mxu0 0
  %1442 = vmatprep.subr.bf16.mxu0 0
  %1443 = vmatpush1.bf16.msra.mxu0 0
  %1444 = vmatprep.subr.bf16.mxu0 0
  %1445 = vmatpush1.bf16.msra.mxu0 0
  %1446 = vmatprep.mubr.bf16.mxu0 0
  %1447 = vmatmul.mubr.bf16.gmra.mrb[0].mxu0 %v1412
  %v1448 = vpop.f32.mrb[0].mxu0
  %v1449 = vadd.f32 %v69, %v1448
  %v1450 = vpop.f32.mrb[0].mxu0
  %v1451 = vadd.f32 %v73, %v1450
  %v1452 = vpop.f32.mrb[0].mxu0
  %v1453 = vpop.f32.mrb[0].mxu0
  %1454 = vdwg.mxu0
  %1455 = vmatprep.subr.bf16.mxu0 %v114
  %1456 = vmatpush1.bf16.msra.mxu0 %v113
  %1457 = vmatprep.subr.bf16.mxu0 %v138
  %1458 = vmatpush1.bf16.msra.mxu0 %v135
  %1459 = vmatprep.subr.bf16.mxu0 0
  %1460 = vmatpush1.bf16.msra.mxu0 0
  %1461 = vmatprep.subr.bf16.mxu0 0
  %1462 = vmatpush1.bf16.msra.mxu0 0
  %1463 = vmatprep.subr.bf16.mxu0 0
  %1464 = vmatpush1.bf16.msra.mxu0 0
  %1465 = vmatprep.subr.bf16.mxu0 0
  %1466 = vmatpush1.bf16.msra.mxu0 0
  %1467 = vmatprep.subr.bf16.mxu0 0
  %1468 = vmatpush1.bf16.msra.mxu0 0
  %1469 = vmatprep.subr.bf16.mxu0 0
  %1470 = vmatpush1.bf16.msra.mxu0 0
  %1471 = vmatprep.subr.bf16.mxu0 0
  %1472 = vmatpush1.bf16.msra.mxu0 0
  %1473 = vmatprep.subr.bf16.mxu0 0
  %1474 = vmatpush1.bf16.msra.mxu0 0
  %1475 = vmatprep.subr.bf16.mxu0 0
  %1476 = vmatpush1.bf16.msra.mxu0 0
  %1477 = vmatprep.subr.bf16.mxu0 0
  %1478 = vmatpush1.bf16.msra.mxu0 0
  %1479 = vmatprep.subr.bf16.mxu0 0
  %1480 = vmatpush1.bf16.msra.mxu0 0
  %1481 = vmatprep.subr.bf16.mxu0 0
  %1482 = vmatpush1.bf16.msra.mxu0 0
  %1483 = vmatprep.subr.bf16.mxu0 0
  %1484 = vmatpush1.bf16.msra.mxu0 0
  %1485 = vmatprep.subr.bf16.mxu0 0
  %1486 = vmatpush1.bf16.msra.mxu0 0
  %1487 = vmatprep.mubr.bf16.mxu0 0
  %1488 = vmatmul.mubr.bf16.gmra.mrb[0].mxu0 %v1412
  %v1489 = vpop.f32.mrb[0].mxu0
  %v1490 = vadd.f32 %v77, %v1489
  %v1491 = vpop.f32.mrb[0].mxu0
  %v1492 = vadd.f32 %v81, %v1491
  %v1493 = vpop.f32.mrb[0].mxu0
  %v1494 = vpop.f32.mrb[0].mxu0
  %1495 = vdwg.mxu0
  %1496 = vst [vmem:[#allocation2 + $0x1c0] sm:$0xff] %v1449
  %1497 = vst [vmem:[#allocation2 + $0x1c8] sm:$0xff] %v1451
  %1498 = vst [vmem:[#allocation2 + $0x1d0] sm:$0xff] %v1490
  %1499 = vst [vmem:[#allocation2 + $0x1d8] sm:$0xff] %v1492
  %s1500 = scalar_lea.vmem %s0, 60
  %v1501 = vld [vmem:[%s1500] sm:$0xf]
  %v1503 = vsel %vm123, %v1501, 0
  %1505 = vmatprep.subr.bf16.mxu0 %v112
  %1506 = vmatpush1.bf16.msra.mxu0 %v111
  %1507 = vmatprep.subr.bf16.mxu0 %v132
  %1508 = vmatpush1.bf16.msra.mxu0 %v129
  %1509 = vmatprep.subr.bf16.mxu0 0
  %1510 = vmatpush1.bf16.msra.mxu0 0
  %1511 = vmatprep.subr.bf16.mxu0 0
  %1512 = vmatpush1.bf16.msra.mxu0 0
  %1513 = vmatprep.subr.bf16.mxu0 0
  %1514 = vmatpush1.bf16.msra.mxu0 0
  %1515 = vmatprep.subr.bf16.mxu0 0
  %1516 = vmatpush1.bf16.msra.mxu0 0
  %1517 = vmatprep.subr.bf16.mxu0 0
  %1518 = vmatpush1.bf16.msra.mxu0 0
  %1519 = vmatprep.subr.bf16.mxu0 0
  %1520 = vmatpush1.bf16.msra.mxu0 0
  %1521 = vmatprep.subr.bf16.mxu0 0
  %1522 = vmatpush1.bf16.msra.mxu0 0
  %1523 = vmatprep.subr.bf16.mxu0 0
  %1524 = vmatpush1.bf16.msra.mxu0 0
  %1525 = vmatprep.subr.bf16.mxu0 0
  %1526 = vmatpush1.bf16.msra.mxu0 0
  %1527 = vmatprep.subr.bf16.mxu0 0
  %1528 = vmatpush1.bf16.msra.mxu0 0
  %1529 = vmatprep.subr.bf16.mxu0 0
  %1530 = vmatpush1.bf16.msra.mxu0 0
  %1531 = vmatprep.subr.bf16.mxu0 0
  %1532 = vmatpush1.bf16.msra.mxu0 0
  %1533 = vmatprep.subr.bf16.mxu0 0
  %1534 = vmatpush1.bf16.msra.mxu0 0
  %1535 = vmatprep.subr.bf16.mxu0 0
  %1536 = vmatpush1.bf16.msra.mxu0 0
  %1537 = vmatprep.mubr.bf16.mxu0 0
  %1538 = vmatmul.mubr.bf16.gmra.mrb[0].mxu0 %v1503
  %v1539 = vpop.f32.mrb[0].mxu0
  %v1540 = vadd.f32 %v69, %v1539
  %v1541 = vpop.f32.mrb[0].mxu0
  %v1542 = vadd.f32 %v73, %v1541
  %v1543 = vpop.f32.mrb[0].mxu0
  %v1544 = vpop.f32.mrb[0].mxu0
  %1545 = vdwg.mxu0
  %1546 = vmatprep.subr.bf16.mxu0 %v114
  %1547 = vmatpush1.bf16.msra.mxu0 %v113
  %1548 = vmatprep.subr.bf16.mxu0 %v138
  %1549 = vmatpush1.bf16.msra.mxu0 %v135
  %1550 = vmatprep.subr.bf16.mxu0 0
  %1551 = vmatpush1.bf16.msra.mxu0 0
  %1552 = vmatprep.subr.bf16.mxu0 0
  %1553 = vmatpush1.bf16.msra.mxu0 0
  %1554 = vmatprep.subr.bf16.mxu0 0
  %1555 = vmatpush1.bf16.msra.mxu0 0
  %1556 = vmatprep.subr.bf16.mxu0 0
  %1557 = vmatpush1.bf16.msra.mxu0 0
  %1558 = vmatprep.subr.bf16.mxu0 0
  %1559 = vmatpush1.bf16.msra.mxu0 0
  %1560 = vmatprep.subr.bf16.mxu0 0
  %1561 = vmatpush1.bf16.msra.mxu0 0
  %1562 = vmatprep.subr.bf16.mxu0 0
  %1563 = vmatpush1.bf16.msra.mxu0 0
  %1564 = vmatprep.subr.bf16.mxu0 0
  %1565 = vmatpush1.bf16.msra.mxu0 0
  %1566 = vmatprep.subr.bf16.mxu0 0
  %1567 = vmatpush1.bf16.msra.mxu0 0
  %1568 = vmatprep.subr.bf16.mxu0 0
  %1569 = vmatpush1.bf16.msra.mxu0 0
  %1570 = vmatprep.subr.bf16.mxu0 0
  %1571 = vmatpush1.bf16.msra.mxu0 0
  %1572 = vmatprep.subr.bf16.mxu0 0
  %1573 = vmatpush1.bf16.msra.mxu0 0
  %1574 = vmatprep.subr.bf16.mxu0 0
  %1575 = vmatpush1.bf16.msra.mxu0 0
  %1576 = vmatprep.subr.bf16.mxu0 0
  %1577 = vmatpush1.bf16.msra.mxu0 0
  %1578 = vmatprep.mubr.bf16.mxu0 0
  %1579 = vmatmul.mubr.bf16.gmra.mrb[0].mxu0 %v1503
  %v1580 = vpop.f32.mrb[0].mxu0
  %v1581 = vadd.f32 %v77, %v1580
  %v1582 = vpop.f32.mrb[0].mxu0
  %v1583 = vadd.f32 %v81, %v1582
  %v1584 = vpop.f32.mrb[0].mxu0
  %v1585 = vpop.f32.mrb[0].mxu0
  %1586 = vdwg.mxu0
  %1587 = vst [vmem:[#allocation2 + $0x1e0] sm:$0xff] %v1540
  %1588 = vst [vmem:[#allocation2 + $0x1e8] sm:$0xff] %v1542
  %1589 = vst [vmem:[#allocation2 + $0x1f0] sm:$0xff] %v1581
  %1590 = vst [vmem:[#allocation2 + $0x1f8] sm:$0xff] %v1583
  %s1591 = scalar_lea.vmem %s0, 64
  %v1592 = vld [vmem:[%s1591] sm:$0xf]
  %v1594 = vsel %vm123, %v1592, 0
  %1596 = vmatprep.subr.bf16.mxu0 %v112
  %1597 = vmatpush1.bf16.msra.mxu0 %v111
  %1598 = vmatprep.subr.bf16.mxu0 %v132
  %1599 = vmatpush1.bf16.msra.mxu0 %v129
  %1600 = vmatprep.subr.bf16.mxu0 0
  %1601 = vmatpush1.bf16.msra.mxu0 0
  %1602 = vmatprep.subr.bf16.mxu0 0
  %1603 = vmatpush1.bf16.msra.mxu0 0
  %1604 = vmatprep.subr.bf16.mxu0 0
  %1605 = vmatpush1.bf16.msra.mxu0 0
  %1606 = vmatprep.subr.bf16.mxu0 0
  %1607 = vmatpush1.bf16.msra.mxu0 0
  %1608 = vmatprep.subr.bf16.mxu0 0
  %1609 = vmatpush1.bf16.msra.mxu0 0
  %1610 = vmatprep.subr.bf16.mxu0 0
  %1611 = vmatpush1.bf16.msra.mxu0 0
  %1612 = vmatprep.subr.bf16.mxu0 0
  %1613 = vmatpush1.bf16.msra.mxu0 0
  %1614 = vmatprep.subr.bf16.mxu0 0
  %1615 = vmatpush1.bf16.msra.mxu0 0
  %1616 = vmatprep.subr.bf16.mxu0 0
  %1617 = vmatpush1.bf16.msra.mxu0 0
  %1618 = vmatprep.subr.bf16.mxu0 0
  %1619 = vmatpush1.bf16.msra.mxu0 0
  %1620 = vmatprep.subr.bf16.mxu0 0
  %1621 = vmatpush1.bf16.msra.mxu0 0
  %1622 = vmatprep.subr.bf16.mxu0 0
  %1623 = vmatpush1.bf16.msra.mxu0 0
  %1624 = vmatprep.subr.bf16.mxu0 0
  %1625 = vmatpush1.bf16.msra.mxu0 0
  %1626 = vmatprep.subr.bf16.mxu0 0
  %1627 = vmatpush1.bf16.msra.mxu0 0
  %1628 = vmatprep.mubr.bf16.mxu0 0
  %1629 = vmatmul.mubr.bf16.gmra.mrb[0].mxu0 %v1594
  %v1630 = vpop.f32.mrb[0].mxu0
  %v1631 = vadd.f32 %v69, %v1630
  %v1632 = vpop.f32.mrb[0].mxu0
  %v1633 = vadd.f32 %v73, %v1632
  %v1634 = vpop.f32.mrb[0].mxu0
  %v1635 = vpop.f32.mrb[0].mxu0
  %1636 = vdwg.mxu0
  %1637 = vmatprep.subr.bf16.mxu0 %v114
  %1638 = vmatpush1.bf16.msra.mxu0 %v113
  %1639 = vmatprep.subr.bf16.mxu0 %v138
  %1640 = vmatpush1.bf16.msra.mxu0 %v135
  %1641 = vmatprep.subr.bf16.mxu0 0
  %1642 = vmatpush1.bf16.msra.mxu0 0
  %1643 = vmatprep.subr.bf16.mxu0 0
  %1644 = vmatpush1.bf16.msra.mxu0 0
  %1645 = vmatprep.subr.bf16.mxu0 0
  %1646 = vmatpush1.bf16.msra.mxu0 0
  %1647 = vmatprep.subr.bf16.mxu0 0
  %1648 = vmatpush1.bf16.msra.mxu0 0
  %1649 = vmatprep.subr.bf16.mxu0 0
  %1650 = vmatpush1.bf16.msra.mxu0 0
  %1651 = vmatprep.subr.bf16.mxu0 0
  %1652 = vmatpush1.bf16.msra.mxu0 0
  %1653 = vmatprep.subr.bf16.mxu0 0
  %1654 = vmatpush1.bf16.msra.mxu0 0
  %1655 = vmatprep.subr.bf16.mxu0 0
  %1656 = vmatpush1.bf16.msra.mxu0 0
  %1657 = vmatprep.subr.bf16.mxu0 0
  %1658 = vmatpush1.bf16.msra.mxu0 0
  %1659 = vmatprep.subr.bf16.mxu0 0
  %1660 = vmatpush1.bf16.msra.mxu0 0
  %1661 = vmatprep.subr.bf16.mxu0 0
  %1662 = vmatpush1.bf16.msra.mxu0 0
  %1663 = vmatprep.subr.bf16.mxu0 0
  %1664 = vmatpush1.bf16.msra.mxu0 0
  %1665 = vmatprep.subr.bf16.mxu0 0
  %1666 = vmatpush1.bf16.msra.mxu0 0
  %1667 = vmatprep.subr.bf16.mxu0 0
  %1668 = vmatpush1.bf16.msra.mxu0 0
  %1669 = vmatprep.mubr.bf16.mxu0 0
  %1670 = vmatmul.mubr.bf16.gmra.mrb[0].mxu0 %v1594
  %v1671 = vpop.f32.mrb[0].mxu0
  %v1672 = vadd.f32 %v77, %v1671
  %v1673 = vpop.f32.mrb[0].mxu0
  %v1674 = vadd.f32 %v81, %v1673
  %v1675 = vpop.f32.mrb[0].mxu0
  %v1676 = vpop.f32.mrb[0].mxu0
  %1677 = vdwg.mxu0
  %1678 = vst [vmem:[#allocation2 + $0x200] sm:$0xff] %v1631
  %1679 = vst [vmem:[#allocation2 + $0x208] sm:$0xff] %v1633
  %1680 = vst [vmem:[#allocation2 + $0x210] sm:$0xff] %v1672
  %1681 = vst [vmem:[#allocation2 + $0x218] sm:$0xff] %v1674
  %s1682 = scalar_lea.vmem %s0, 68
  %v1683 = vld [vmem:[%s1682] sm:$0xf]
  %v1685 = vsel %vm123, %v1683, 0
  %1687 = vmatprep.subr.bf16.mxu0 %v112
  %1688 = vmatpush1.bf16.msra.mxu0 %v111
  %1689 = vmatprep.subr.bf16.mxu0 %v132
  %1690 = vmatpush1.bf16.msra.mxu0 %v129
  %1691 = vmatprep.subr.bf16.mxu0 0
  %1692 = vmatpush1.bf16.msra.mxu0 0
  %1693 = vmatprep.subr.bf16.mxu0 0
  %1694 = vmatpush1.bf16.msra.mxu0 0
  %1695 = vmatprep.subr.bf16.mxu0 0
  %1696 = vmatpush1.bf16.msra.mxu0 0
  %1697 = vmatprep.subr.bf16.mxu0 0
  %1698 = vmatpush1.bf16.msra.mxu0 0
  %1699 = vmatprep.subr.bf16.mxu0 0
  %1700 = vmatpush1.bf16.msra.mxu0 0
  %1701 = vmatprep.subr.bf16.mxu0 0
  %1702 = vmatpush1.bf16.msra.mxu0 0
  %1703 = vmatprep.subr.bf16.mxu0 0
  %1704 = vmatpush1.bf16.msra.mxu0 0
  %1705 = vmatprep.subr.bf16.mxu0 0
  %1706 = vmatpush1.bf16.msra.mxu0 0
  %1707 = vmatprep.subr.bf16.mxu0 0
  %1708 = vmatpush1.bf16.msra.mxu0 0
  %1709 = vmatprep.subr.bf16.mxu0 0
  %1710 = vmatpush1.bf16.msra.mxu0 0
  %1711 = vmatprep.subr.bf16.mxu0 0
  %1712 = vmatpush1.bf16.msra.mxu0 0
  %1713 = vmatprep.subr.bf16.mxu0 0
  %1714 = vmatpush1.bf16.msra.mxu0 0
  %1715 = vmatprep.subr.bf16.mxu0 0
  %1716 = vmatpush1.bf16.msra.mxu0 0
  %1717 = vmatprep.subr.bf16.mxu0 0
  %1718 = vmatpush1.bf16.msra.mxu0 0
  %1719 = vmatprep.mubr.bf16.mxu0 0
  %1720 = vmatmul.mubr.bf16.gmra.mrb[0].mxu0 %v1685
  %v1721 = vpop.f32.mrb[0].mxu0
  %v1722 = vadd.f32 %v69, %v1721
  %v1723 = vpop.f32.mrb[0].mxu0
  %v1724 = vadd.f32 %v73, %v1723
  %v1725 = vpop.f32.mrb[0].mxu0
  %v1726 = vpop.f32.mrb[0].mxu0
  %1727 = vdwg.mxu0
  %1728 = vmatprep.subr.bf16.mxu0 %v114
  %1729 = vmatpush1.bf16.msra.mxu0 %v113
  %1730 = vmatprep.subr.bf16.mxu0 %v138
  %1731 = vmatpush1.bf16.msra.mxu0 %v135
  %1732 = vmatprep.subr.bf16.mxu0 0
  %1733 = vmatpush1.bf16.msra.mxu0 0
  %1734 = vmatprep.subr.bf16.mxu0 0
  %1735 = vmatpush1.bf16.msra.mxu0 0
  %1736 = vmatprep.subr.bf16.mxu0 0
  %1737 = vmatpush1.bf16.msra.mxu0 0
  %1738 = vmatprep.subr.bf16.mxu0 0
  %1739 = vmatpush1.bf16.msra.mxu0 0
  %1740 = vmatprep.subr.bf16.mxu0 0
  %1741 = vmatpush1.bf16.msra.mxu0 0
  %1742 = vmatprep.subr.bf16.mxu0 0
  %1743 = vmatpush1.bf16.msra.mxu0 0
  %1744 = vmatprep.subr.bf16.mxu0 0
  %1745 = vmatpush1.bf16.msra.mxu0 0
  %1746 = vmatprep.subr.bf16.mxu0 0
  %1747 = vmatpush1.bf16.msra.mxu0 0
  %1748 = vmatprep.subr.bf16.mxu0 0
  %1749 = vmatpush1.bf16.msra.mxu0 0
  %1750 = vmatprep.subr.bf16.mxu0 0
  %1751 = vmatpush1.bf16.msra.mxu0 0
  %1752 = vmatprep.subr.bf16.mxu0 0
  %1753 = vmatpush1.bf16.msra.mxu0 0
  %1754 = vmatprep.subr.bf16.mxu0 0
  %1755 = vmatpush1.bf16.msra.mxu0 0
  %1756 = vmatprep.subr.bf16.mxu0 0
  %1757 = vmatpush1.bf16.msra.mxu0 0
  %1758 = vmatprep.subr.bf16.mxu0 0
  %1759 = vmatpush1.bf16.msra.mxu0 0
  %1760 = vmatprep.mubr.bf16.mxu0 0
  %1761 = vmatmul.mubr.bf16.gmra.mrb[0].mxu0 %v1685
  %v1762 = vpop.f32.mrb[0].mxu0
  %v1763 = vadd.f32 %v77, %v1762
  %v1764 = vpop.f32.mrb[0].mxu0
  %v1765 = vadd.f32 %v81, %v1764
  %v1766 = vpop.f32.mrb[0].mxu0
  %v1767 = vpop.f32.mrb[0].mxu0
  %1768 = vdwg.mxu0
  %1769 = vst [vmem:[#allocation2 + $0x220] sm:$0xff] %v1722
  %1770 = vst [vmem:[#allocation2 + $0x228] sm:$0xff] %v1724
  %1771 = vst [vmem:[#allocation2 + $0x230] sm:$0xff] %v1763
  %1772 = vst [vmem:[#allocation2 + $0x238] sm:$0xff] %v1765
  %s1773 = scalar_lea.vmem %s0, 72
  %v1774 = vld [vmem:[%s1773] sm:$0xf]
  %v1776 = vsel %vm123, %v1774, 0
  %1778 = vmatprep.subr.bf16.mxu0 %v112
  %1779 = vmatpush1.bf16.msra.mxu0 %v111
  %1780 = vmatprep.subr.bf16.mxu0 %v132
  %1781 = vmatpush1.bf16.msra.mxu0 %v129
  %1782 = vmatprep.subr.bf16.mxu0 0
  %1783 = vmatpush1.bf16.msra.mxu0 0
  %1784 = vmatprep.subr.bf16.mxu0 0
  %1785 = vmatpush1.bf16.msra.mxu0 0
  %1786 = vmatprep.subr.bf16.mxu0 0
  %1787 = vmatpush1.bf16.msra.mxu0 0
  %1788 = vmatprep.subr.bf16.mxu0 0
  %1789 = vmatpush1.bf16.msra.mxu0 0
  %1790 = vmatprep.subr.bf16.mxu0 0
  %1791 = vmatpush1.bf16.msra.mxu0 0
  %1792 = vmatprep.subr.bf16.mxu0 0
  %1793 = vmatpush1.bf16.msra.mxu0 0
  %1794 = vmatprep.subr.bf16.mxu0 0
  %1795 = vmatpush1.bf16.msra.mxu0 0
  %1796 = vmatprep.subr.bf16.mxu0 0
  %1797 = vmatpush1.bf16.msra.mxu0 0
  %1798 = vmatprep.subr.bf16.mxu0 0
  %1799 = vmatpush1.bf16.msra.mxu0 0
  %1800 = vmatprep.subr.bf16.mxu0 0
  %1801 = vmatpush1.bf16.msra.mxu0 0
  %1802 = vmatprep.subr.bf16.mxu0 0
  %1803 = vmatpush1.bf16.msra.mxu0 0
  %1804 = vmatprep.subr.bf16.mxu0 0
  %1805 = vmatpush1.bf16.msra.mxu0 0
  %1806 = vmatprep.subr.bf16.mxu0 0
  %1807 = vmatpush1.bf16.msra.mxu0 0
  %1808 = vmatprep.subr.bf16.mxu0 0
  %1809 = vmatpush1.bf16.msra.mxu0 0
  %1810 = vmatprep.mubr.bf16.mxu0 0
  %1811 = vmatmul.mubr.bf16.gmra.mrb[0].mxu0 %v1776
  %v1812 = vpop.f32.mrb[0].mxu0
  %v1813 = vadd.f32 %v69, %v1812
  %v1814 = vpop.f32.mrb[0].mxu0
  %v1815 = vadd.f32 %v73, %v1814
  %v1816 = vpop.f32.mrb[0].mxu0
  %v1817 = vpop.f32.mrb[0].mxu0
  %1818 = vdwg.mxu0
  %1819 = vmatprep.subr.bf16.mxu0 %v114
  %1820 = vmatpush1.bf16.msra.mxu0 %v113
  %1821 = vmatprep.subr.bf16.mxu0 %v138
  %1822 = vmatpush1.bf16.msra.mxu0 %v135
  %1823 = vmatprep.subr.bf16.mxu0 0
  %1824 = vmatpush1.bf16.msra.mxu0 0
  %1825 = vmatprep.subr.bf16.mxu0 0
  %1826 = vmatpush1.bf16.msra.mxu0 0
  %1827 = vmatprep.subr.bf16.mxu0 0
  %1828 = vmatpush1.bf16.msra.mxu0 0
  %1829 = vmatprep.subr.bf16.mxu0 0
  %1830 = vmatpush1.bf16.msra.mxu0 0
  %1831 = vmatprep.subr.bf16.mxu0 0
  %1832 = vmatpush1.bf16.msra.mxu0 0
  %1833 = vmatprep.subr.bf16.mxu0 0
  %1834 = vmatpush1.bf16.msra.mxu0 0
  %1835 = vmatprep.subr.bf16.mxu0 0
  %1836 = vmatpush1.bf16.msra.mxu0 0
  %1837 = vmatprep.subr.bf16.mxu0 0
  %1838 = vmatpush1.bf16.msra.mxu0 0
  %1839 = vmatprep.subr.bf16.mxu0 0
  %1840 = vmatpush1.bf16.msra.mxu0 0
  %1841 = vmatprep.subr.bf16.mxu0 0
  %1842 = vmatpush1.bf16.msra.mxu0 0
  %1843 = vmatprep.subr.bf16.mxu0 0
  %1844 = vmatpush1.bf16.msra.mxu0 0
  %1845 = vmatprep.subr.bf16.mxu0 0
  %1846 = vmatpush1.bf16.msra.mxu0 0
  %1847 = vmatprep.subr.bf16.mxu0 0
  %1848 = vmatpush1.bf16.msra.mxu0 0
  %1849 = vmatprep.subr.bf16.mxu0 0
  %1850 = vmatpush1.bf16.msra.mxu0 0
  %1851 = vmatprep.mubr.bf16.mxu0 0
  %1852 = vmatmul.mubr.bf16.gmra.mrb[0].mxu0 %v1776
  %v1853 = vpop.f32.mrb[0].mxu0
  %v1854 = vadd.f32 %v77, %v1853
  %v1855 = vpop.f32.mrb[0].mxu0
  %v1856 = vadd.f32 %v81, %v1855
  %v1857 = vpop.f32.mrb[0].mxu0
  %v1858 = vpop.f32.mrb[0].mxu0
  %1859 = vdwg.mxu0
  %1860 = vst [vmem:[#allocation2 + $0x240] sm:$0xff] %v1813
  %1861 = vst [vmem:[#allocation2 + $0x248] sm:$0xff] %v1815
  %1862 = vst [vmem:[#allocation2 + $0x250] sm:$0xff] %v1854
  %1863 = vst [vmem:[#allocation2 + $0x258] sm:$0xff] %v1856
  %s1864 = scalar_lea.vmem %s0, 76
  %v1865 = vld [vmem:[%s1864] sm:$0xf]
  %v1867 = vsel %vm123, %v1865, 0
  %1869 = vmatprep.subr.bf16.mxu0 %v112
  %1870 = vmatpush1.bf16.msra.mxu0 %v111
  %1871 = vmatprep.subr.bf16.mxu0 %v132
  %1872 = vmatpush1.bf16.msra.mxu0 %v129
  %1873 = vmatprep.subr.bf16.mxu0 0
  %1874 = vmatpush1.bf16.msra.mxu0 0
  %1875 = vmatprep.subr.bf16.mxu0 0
  %1876 = vmatpush1.bf16.msra.mxu0 0
  %1877 = vmatprep.subr.bf16.mxu0 0
  %1878 = vmatpush1.bf16.msra.mxu0 0
  %1879 = vmatprep.subr.bf16.mxu0 0
  %1880 = vmatpush1.bf16.msra.mxu0 0
  %1881 = vmatprep.subr.bf16.mxu0 0
  %1882 = vmatpush1.bf16.msra.mxu0 0
  %1883 = vmatprep.subr.bf16.mxu0 0
  %1884 = vmatpush1.bf16.msra.mxu0 0
  %1885 = vmatprep.subr.bf16.mxu0 0
  %1886 = vmatpush1.bf16.msra.mxu0 0
  %1887 = vmatprep.subr.bf16.mxu0 0
  %1888 = vmatpush1.bf16.msra.mxu0 0
  %1889 = vmatprep.subr.bf16.mxu0 0
  %1890 = vmatpush1.bf16.msra.mxu0 0
  %1891 = vmatprep.subr.bf16.mxu0 0
  %1892 = vmatpush1.bf16.msra.mxu0 0
  %1893 = vmatprep.subr.bf16.mxu0 0
  %1894 = vmatpush1.bf16.msra.mxu0 0
  %1895 = vmatprep.subr.bf16.mxu0 0
  %1896 = vmatpush1.bf16.msra.mxu0 0
  %1897 = vmatprep.subr.bf16.mxu0 0
  %1898 = vmatpush1.bf16.msra.mxu0 0
  %1899 = vmatprep.subr.bf16.mxu0 0
  %1900 = vmatpush1.bf16.msra.mxu0 0
  %1901 = vmatprep.mubr.bf16.mxu0 0
  %1902 = vmatmul.mubr.bf16.gmra.mrb[0].mxu0 %v1867
  %v1903 = vpop.f32.mrb[0].mxu0
  %v1904 = vadd.f32 %v69, %v1903
  %v1905 = vpop.f32.mrb[0].mxu0
  %v1906 = vadd.f32 %v73, %v1905
  %v1907 = vpop.f32.mrb[0].mxu0
  %v1908 = vpop.f32.mrb[0].mxu0
  %1909 = vdwg.mxu0
  %1910 = vmatprep.subr.bf16.mxu0 %v114
  %1911 = vmatpush1.bf16.msra.mxu0 %v113
  %1912 = vmatprep.subr.bf16.mxu0 %v138
  %1913 = vmatpush1.bf16.msra.mxu0 %v135
  %1914 = vmatprep.subr.bf16.mxu0 0
  %1915 = vmatpush1.bf16.msra.mxu0 0
  %1916 = vmatprep.subr.bf16.mxu0 0
  %1917 = vmatpush1.bf16.msra.mxu0 0
  %1918 = vmatprep.subr.bf16.mxu0 0
  %1919 = vmatpush1.bf16.msra.mxu0 0
  %1920 = vmatprep.subr.bf16.mxu0 0
  %1921 = vmatpush1.bf16.msra.mxu0 0
  %1922 = vmatprep.subr.bf16.mxu0 0
  %1923 = vmatpush1.bf16.msra.mxu0 0
  %1924 = vmatprep.subr.bf16.mxu0 0
  %1925 = vmatpush1.bf16.msra.mxu0 0
  %1926 = vmatprep.subr.bf16.mxu0 0
  %1927 = vmatpush1.bf16.msra.mxu0 0
  %1928 = vmatprep.subr.bf16.mxu0 0
  %1929 = vmatpush1.bf16.msra.mxu0 0
  %1930 = vmatprep.subr.bf16.mxu0 0
  %1931 = vmatpush1.bf16.msra.mxu0 0
  %1932 = vmatprep.subr.bf16.mxu0 0
  %1933 = vmatpush1.bf16.msra.mxu0 0
  %1934 = vmatprep.subr.bf16.mxu0 0
  %1935 = vmatpush1.bf16.msra.mxu0 0
  %1936 = vmatprep.subr.bf16.mxu0 0
  %1937 = vmatpush1.bf16.msra.mxu0 0
  %1938 = vmatprep.subr.bf16.mxu0 0
  %1939 = vmatpush1.bf16.msra.mxu0 0
  %1940 = vmatprep.subr.bf16.mxu0 0
  %1941 = vmatpush1.bf16.msra.mxu0 0
  %1942 = vmatprep.mubr.bf16.mxu0 0
  %1943 = vmatmul.mubr.bf16.gmra.mrb[0].mxu0 %v1867
  %v1944 = vpop.f32.mrb[0].mxu0
  %v1945 = vadd.f32 %v77, %v1944
  %v1946 = vpop.f32.mrb[0].mxu0
  %v1947 = vadd.f32 %v81, %v1946
  %v1948 = vpop.f32.mrb[0].mxu0
  %v1949 = vpop.f32.mrb[0].mxu0
  %1950 = vdwg.mxu0
  %1951 = vst [vmem:[#allocation2 + $0x260] sm:$0xff] %v1904
  %1952 = vst [vmem:[#allocation2 + $0x268] sm:$0xff] %v1906
  %1953 = vst [vmem:[#allocation2 + $0x270] sm:$0xff] %v1945
  %1954 = vst [vmem:[#allocation2 + $0x278] sm:$0xff] %v1947
  %s1955 = scalar_lea.vmem %s0, 80
  %v1956 = vld [vmem:[%s1955] sm:$0xf]
  %v1958 = vsel %vm123, %v1956, 0
  %1960 = vmatprep.subr.bf16.mxu0 %v112
  %1961 = vmatpush1.bf16.msra.mxu0 %v111
  %1962 = vmatprep.subr.bf16.mxu0 %v132
  %1963 = vmatpush1.bf16.msra.mxu0 %v129
  %1964 = vmatprep.subr.bf16.mxu0 0
  %1965 = vmatpush1.bf16.msra.mxu0 0
  %1966 = vmatprep.subr.bf16.mxu0 0
  %1967 = vmatpush1.bf16.msra.mxu0 0
  %1968 = vmatprep.subr.bf16.mxu0 0
  %1969 = vmatpush1.bf16.msra.mxu0 0
  %1970 = vmatprep.subr.bf16.mxu0 0
  %1971 = vmatpush1.bf16.msra.mxu0 0
  %1972 = vmatprep.subr.bf16.mxu0 0
  %1973 = vmatpush1.bf16.msra.mxu0 0
  %1974 = vmatprep.subr.bf16.mxu0 0
  %1975 = vmatpush1.bf16.msra.mxu0 0
  %1976 = vmatprep.subr.bf16.mxu0 0
  %1977 = vmatpush1.bf16.msra.mxu0 0
  %1978 = vmatprep.subr.bf16.mxu0 0
  %1979 = vmatpush1.bf16.msra.mxu0 0
  %1980 = vmatprep.subr.bf16.mxu0 0
  %1981 = vmatpush1.bf16.msra.mxu0 0
  %1982 = vmatprep.subr.bf16.mxu0 0
  %1983 = vmatpush1.bf16.msra.mxu0 0
  %1984 = vmatprep.subr.bf16.mxu0 0
  %1985 = vmatpush1.bf16.msra.mxu0 0
  %1986 = vmatprep.subr.bf16.mxu0 0
  %1987 = vmatpush1.bf16.msra.mxu0 0
  %1988 = vmatprep.subr.bf16.mxu0 0
  %1989 = vmatpush1.bf16.msra.mxu0 0
  %1990 = vmatprep.subr.bf16.mxu0 0
  %1991 = vmatpush1.bf16.msra.mxu0 0
  %1992 = vmatprep.mubr.bf16.mxu0 0
  %1993 = vmatmul.mubr.bf16.gmra.mrb[0].mxu0 %v1958
  %v1994 = vpop.f32.mrb[0].mxu0
  %v1995 = vadd.f32 %v69, %v1994
  %v1996 = vpop.f32.mrb[0].mxu0
  %v1997 = vadd.f32 %v73, %v1996
  %v1998 = vpop.f32.mrb[0].mxu0
  %v1999 = vpop.f32.mrb[0].mxu0
  %2000 = vdwg.mxu0
  %2001 = vmatprep.subr.bf16.mxu0 %v114
  %2002 = vmatpush1.bf16.msra.mxu0 %v113
  %2003 = vmatprep.subr.bf16.mxu0 %v138
  %2004 = vmatpush1.bf16.msra.mxu0 %v135
  %2005 = vmatprep.subr.bf16.mxu0 0
  %2006 = vmatpush1.bf16.msra.mxu0 0
  %2007 = vmatprep.subr.bf16.mxu0 0
  %2008 = vmatpush1.bf16.msra.mxu0 0
  %2009 = vmatprep.subr.bf16.mxu0 0
  %2010 = vmatpush1.bf16.msra.mxu0 0
  %2011 = vmatprep.subr.bf16.mxu0 0
  %2012 = vmatpush1.bf16.msra.mxu0 0
  %2013 = vmatprep.subr.bf16.mxu0 0
  %2014 = vmatpush1.bf16.msra.mxu0 0
  %2015 = vmatprep.subr.bf16.mxu0 0
  %2016 = vmatpush1.bf16.msra.mxu0 0
  %2017 = vmatprep.subr.bf16.mxu0 0
  %2018 = vmatpush1.bf16.msra.mxu0 0
  %2019 = vmatprep.subr.bf16.mxu0 0
  %2020 = vmatpush1.bf16.msra.mxu0 0
  %2021 = vmatprep.subr.bf16.mxu0 0
  %2022 = vmatpush1.bf16.msra.mxu0 0
  %2023 = vmatprep.subr.bf16.mxu0 0
  %2024 = vmatpush1.bf16.msra.mxu0 0
  %2025 = vmatprep.subr.bf16.mxu0 0
  %2026 = vmatpush1.bf16.msra.mxu0 0
  %2027 = vmatprep.subr.bf16.mxu0 0
  %2028 = vmatpush1.bf16.msra.mxu0 0
  %2029 = vmatprep.subr.bf16.mxu0 0
  %2030 = vmatpush1.bf16.msra.mxu0 0
  %2031 = vmatprep.subr.bf16.mxu0 0
  %2032 = vmatpush1.bf16.msra.mxu0 0
  %2033 = vmatprep.mubr.bf16.mxu0 0
  %2034 = vmatmul.mubr.bf16.gmra.mrb[0].mxu0 %v1958
  %v2035 = vpop.f32.mrb[0].mxu0
  %v2036 = vadd.f32 %v77, %v2035
  %v2037 = vpop.f32.mrb[0].mxu0
  %v2038 = vadd.f32 %v81, %v2037
  %v2039 = vpop.f32.mrb[0].mxu0
  %v2040 = vpop.f32.mrb[0].mxu0
  %2041 = vdwg.mxu0
  %2042 = vst [vmem:[#allocation2 + $0x280] sm:$0xff] %v1995
  %2043 = vst [vmem:[#allocation2 + $0x288] sm:$0xff] %v1997
  %2044 = vst [vmem:[#allocation2 + $0x290] sm:$0xff] %v2036
  %2045 = vst [vmem:[#allocation2 + $0x298] sm:$0xff] %v2038
  %s2046 = scalar_lea.vmem %s0, 84
  %v2047 = vld [vmem:[%s2046] sm:$0xf]
  %v2049 = vsel %vm123, %v2047, 0
  %2051 = vmatprep.subr.bf16.mxu0 %v112
  %2052 = vmatpush1.bf16.msra.mxu0 %v111
  %2053 = vmatprep.subr.bf16.mxu0 %v132
  %2054 = vmatpush1.bf16.msra.mxu0 %v129
  %2055 = vmatprep.subr.bf16.mxu0 0
  %2056 = vmatpush1.bf16.msra.mxu0 0
  %2057 = vmatprep.subr.bf16.mxu0 0
  %2058 = vmatpush1.bf16.msra.mxu0 0
  %2059 = vmatprep.subr.bf16.mxu0 0
  %2060 = vmatpush1.bf16.msra.mxu0 0
  %2061 = vmatprep.subr.bf16.mxu0 0
  %2062 = vmatpush1.bf16.msra.mxu0 0
  %2063 = vmatprep.subr.bf16.mxu0 0
  %2064 = vmatpush1.bf16.msra.mxu0 0
  %2065 = vmatprep.subr.bf16.mxu0 0
  %2066 = vmatpush1.bf16.msra.mxu0 0
  %2067 = vmatprep.subr.bf16.mxu0 0
  %2068 = vmatpush1.bf16.msra.mxu0 0
  %2069 = vmatprep.subr.bf16.mxu0 0
  %2070 = vmatpush1.bf16.msra.mxu0 0
  %2071 = vmatprep.subr.bf16.mxu0 0
  %2072 = vmatpush1.bf16.msra.mxu0 0
  %2073 = vmatprep.subr.bf16.mxu0 0
  %2074 = vmatpush1.bf16.msra.mxu0 0
  %2075 = vmatprep.subr.bf16.mxu0 0
  %2076 = vmatpush1.bf16.msra.mxu0 0
  %2077 = vmatprep.subr.bf16.mxu0 0
  %2078 = vmatpush1.bf16.msra.mxu0 0
  %2079 = vmatprep.subr.bf16.mxu0 0
  %2080 = vmatpush1.bf16.msra.mxu0 0
  %2081 = vmatprep.subr.bf16.mxu0 0
  %2082 = vmatpush1.bf16.msra.mxu0 0
  %2083 = vmatprep.mubr.bf16.mxu0 0
  %2084 = vmatmul.mubr.bf16.gmra.mrb[0].mxu0 %v2049
  %v2085 = vpop.f32.mrb[0].mxu0
  %v2086 = vadd.f32 %v69, %v2085
  %v2087 = vpop.f32.mrb[0].mxu0
  %v2088 = vadd.f32 %v73, %v2087
  %v2089 = vpop.f32.mrb[0].mxu0
  %v2090 = vpop.f32.mrb[0].mxu0
  %2091 = vdwg.mxu0
  %2092 = vmatprep.subr.bf16.mxu0 %v114
  %2093 = vmatpush1.bf16.msra.mxu0 %v113
  %2094 = vmatprep.subr.bf16.mxu0 %v138
  %2095 = vmatpush1.bf16.msra.mxu0 %v135
  %2096 = vmatprep.subr.bf16.mxu0 0
  %2097 = vmatpush1.bf16.msra.mxu0 0
  %2098 = vmatprep.subr.bf16.mxu0 0
  %2099 = vmatpush1.bf16.msra.mxu0 0
  %2100 = vmatprep.subr.bf16.mxu0 0
  %2101 = vmatpush1.bf16.msra.mxu0 0
  %2102 = vmatprep.subr.bf16.mxu0 0
  %2103 = vmatpush1.bf16.msra.mxu0 0
  %2104 = vmatprep.subr.bf16.mxu0 0
  %2105 = vmatpush1.bf16.msra.mxu0 0
  %2106 = vmatprep.subr.bf16.mxu0 0
  %2107 = vmatpush1.bf16.msra.mxu0 0
  %2108 = vmatprep.subr.bf16.mxu0 0
  %2109 = vmatpush1.bf16.msra.mxu0 0
  %2110 = vmatprep.subr.bf16.mxu0 0
  %2111 = vmatpush1.bf16.msra.mxu0 0
  %2112 = vmatprep.subr.bf16.mxu0 0
  %2113 = vmatpush1.bf16.msra.mxu0 0
  %2114 = vmatprep.subr.bf16.mxu0 0
  %2115 = vmatpush1.bf16.msra.mxu0 0
  %2116 = vmatprep.subr.bf16.mxu0 0
  %2117 = vmatpush1.bf16.msra.mxu0 0
  %2118 = vmatprep.subr.bf16.mxu0 0
  %2119 = vmatpush1.bf16.msra.mxu0 0
  %2120 = vmatprep.subr.bf16.mxu0 0
  %2121 = vmatpush1.bf16.msra.mxu0 0
  %2122 = vmatprep.subr.bf16.mxu0 0
  %2123 = vmatpush1.bf16.msra.mxu0 0
  %2124 = vmatprep.mubr.bf16.mxu0 0
  %2125 = vmatmul.mubr.bf16.gmra.mrb[0].mxu0 %v2049
  %v2126 = vpop.f32.mrb[0].mxu0
  %v2127 = vadd.f32 %v77, %v2126
  %v2128 = vpop.f32.mrb[0].mxu0
  %v2129 = vadd.f32 %v81, %v2128
  %v2130 = vpop.f32.mrb[0].mxu0
  %v2131 = vpop.f32.mrb[0].mxu0
  %2132 = vdwg.mxu0
  %2133 = vst [vmem:[#allocation2 + $0x2a0] sm:$0xff] %v2086
  %2134 = vst [vmem:[#allocation2 + $0x2a8] sm:$0xff] %v2088
  %2135 = vst [vmem:[#allocation2 + $0x2b0] sm:$0xff] %v2127
  %2136 = vst [vmem:[#allocation2 + $0x2b8] sm:$0xff] %v2129
  %s2137 = scalar_lea.vmem %s0, 88
  %v2138 = vld [vmem:[%s2137] sm:$0xf]
  %v2140 = vsel %vm123, %v2138, 0
  %2142 = vmatprep.subr.bf16.mxu0 %v112
  %2143 = vmatpush1.bf16.msra.mxu0 %v111
  %2144 = vmatprep.subr.bf16.mxu0 %v132
  %2145 = vmatpush1.bf16.msra.mxu0 %v129
  %2146 = vmatprep.subr.bf16.mxu0 0
  %2147 = vmatpush1.bf16.msra.mxu0 0
  %2148 = vmatprep.subr.bf16.mxu0 0
  %2149 = vmatpush1.bf16.msra.mxu0 0
  %2150 = vmatprep.subr.bf16.mxu0 0
  %2151 = vmatpush1.bf16.msra.mxu0 0
  %2152 = vmatprep.subr.bf16.mxu0 0
  %2153 = vmatpush1.bf16.msra.mxu0 0
  %2154 = vmatprep.subr.bf16.mxu0 0
  %2155 = vmatpush1.bf16.msra.mxu0 0
  %2156 = vmatprep.subr.bf16.mxu0 0
  %2157 = vmatpush1.bf16.msra.mxu0 0
  %2158 = vmatprep.subr.bf16.mxu0 0
  %2159 = vmatpush1.bf16.msra.mxu0 0
  %2160 = vmatprep.subr.bf16.mxu0 0
  %2161 = vmatpush1.bf16.msra.mxu0 0
  %2162 = vmatprep.subr.bf16.mxu0 0
  %2163 = vmatpush1.bf16.msra.mxu0 0
  %2164 = vmatprep.subr.bf16.mxu0 0
  %2165 = vmatpush1.bf16.msra.mxu0 0
  %2166 = vmatprep.subr.bf16.mxu0 0
  %2167 = vmatpush1.bf16.msra.mxu0 0
  %2168 = vmatprep.subr.bf16.mxu0 0
  %2169 = vmatpush1.bf16.msra.mxu0 0
  %2170 = vmatprep.subr.bf16.mxu0 0
  %2171 = vmatpush1.bf16.msra.mxu0 0
  %2172 = vmatprep.subr.bf16.mxu0 0
  %2173 = vmatpush1.bf16.msra.mxu0 0
  %2174 = vmatprep.mubr.bf16.mxu0 0
  %2175 = vmatmul.mubr.bf16.gmra.mrb[0].mxu0 %v2140
  %v2176 = vpop.f32.mrb[0].mxu0
  %v2177 = vadd.f32 %v69, %v2176
  %v2178 = vpop.f32.mrb[0].mxu0
  %v2179 = vadd.f32 %v73, %v2178
  %v2180 = vpop.f32.mrb[0].mxu0
  %v2181 = vpop.f32.mrb[0].mxu0
  %2182 = vdwg.mxu0
  %2183 = vmatprep.subr.bf16.mxu0 %v114
  %2184 = vmatpush1.bf16.msra.mxu0 %v113
  %2185 = vmatprep.subr.bf16.mxu0 %v138
  %2186 = vmatpush1.bf16.msra.mxu0 %v135
  %2187 = vmatprep.subr.bf16.mxu0 0
  %2188 = vmatpush1.bf16.msra.mxu0 0
  %2189 = vmatprep.subr.bf16.mxu0 0
  %2190 = vmatpush1.bf16.msra.mxu0 0
  %2191 = vmatprep.subr.bf16.mxu0 0
  %2192 = vmatpush1.bf16.msra.mxu0 0
  %2193 = vmatprep.subr.bf16.mxu0 0
  %2194 = vmatpush1.bf16.msra.mxu0 0
  %2195 = vmatprep.subr.bf16.mxu0 0
  %2196 = vmatpush1.bf16.msra.mxu0 0
  %2197 = vmatprep.subr.bf16.mxu0 0
  %2198 = vmatpush1.bf16.msra.mxu0 0
  %2199 = vmatprep.subr.bf16.mxu0 0
  %2200 = vmatpush1.bf16.msra.mxu0 0
  %2201 = vmatprep.subr.bf16.mxu0 0
  %2202 = vmatpush1.bf16.msra.mxu0 0
  %2203 = vmatprep.subr.bf16.mxu0 0
  %2204 = vmatpush1.bf16.msra.mxu0 0
  %2205 = vmatprep.subr.bf16.mxu0 0
  %2206 = vmatpush1.bf16.msra.mxu0 0
  %2207 = vmatprep.subr.bf16.mxu0 0
  %2208 = vmatpush1.bf16.msra.mxu0 0
  %2209 = vmatprep.subr.bf16.mxu0 0
  %2210 = vmatpush1.bf16.msra.mxu0 0
  %2211 = vmatprep.subr.bf16.mxu0 0
  %2212 = vmatpush1.bf16.msra.mxu0 0
  %2213 = vmatprep.subr.bf16.mxu0 0
  %2214 = vmatpush1.bf16.msra.mxu0 0
  %2215 = vmatprep.mubr.bf16.mxu0 0
  %2216 = vmatmul.mubr.bf16.gmra.mrb[0].mxu0 %v2140
  %v2217 = vpop.f32.mrb[0].mxu0
  %v2218 = vadd.f32 %v77, %v2217
  %v2219 = vpop.f32.mrb[0].mxu0
  %v2220 = vadd.f32 %v81, %v2219
  %v2221 = vpop.f32.mrb[0].mxu0
  %v2222 = vpop.f32.mrb[0].mxu0
  %2223 = vdwg.mxu0
  %2224 = vst [vmem:[#allocation2 + $0x2c0] sm:$0xff] %v2177
  %2225 = vst [vmem:[#allocation2 + $0x2c8] sm:$0xff] %v2179
  %2226 = vst [vmem:[#allocation2 + $0x2d0] sm:$0xff] %v2218
  %2227 = vst [vmem:[#allocation2 + $0x2d8] sm:$0xff] %v2220
  %s2228 = scalar_lea.vmem %s0, 92
  %v2229 = vld [vmem:[%s2228] sm:$0xf]
  %v2231 = vsel %vm123, %v2229, 0
  %2233 = vmatprep.subr.bf16.mxu0 %v112
  %2234 = vmatpush1.bf16.msra.mxu0 %v111
  %2235 = vmatprep.subr.bf16.mxu0 %v132
  %2236 = vmatpush1.bf16.msra.mxu0 %v129
  %2237 = vmatprep.subr.bf16.mxu0 0
  %2238 = vmatpush1.bf16.msra.mxu0 0
  %2239 = vmatprep.subr.bf16.mxu0 0
  %2240 = vmatpush1.bf16.msra.mxu0 0
  %2241 = vmatprep.subr.bf16.mxu0 0
  %2242 = vmatpush1.bf16.msra.mxu0 0
  %2243 = vmatprep.subr.bf16.mxu0 0
  %2244 = vmatpush1.bf16.msra.mxu0 0
  %2245 = vmatprep.subr.bf16.mxu0 0
  %2246 = vmatpush1.bf16.msra.mxu0 0
  %2247 = vmatprep.subr.bf16.mxu0 0
  %2248 = vmatpush1.bf16.msra.mxu0 0
  %2249 = vmatprep.subr.bf16.mxu0 0
  %2250 = vmatpush1.bf16.msra.mxu0 0
  %2251 = vmatprep.subr.bf16.mxu0 0
  %2252 = vmatpush1.bf16.msra.mxu0 0
  %2253 = vmatprep.subr.bf16.mxu0 0
  %2254 = vmatpush1.bf16.msra.mxu0 0
  %2255 = vmatprep.subr.bf16.mxu0 0
  %2256 = vmatpush1.bf16.msra.mxu0 0
  %2257 = vmatprep.subr.bf16.mxu0 0
  %2258 = vmatpush1.bf16.msra.mxu0 0
  %2259 = vmatprep.subr.bf16.mxu0 0
  %2260 = vmatpush1.bf16.msra.mxu0 0
  %2261 = vmatprep.subr.bf16.mxu0 0
  %2262 = vmatpush1.bf16.msra.mxu0 0
  %2263 = vmatprep.subr.bf16.mxu0 0
  %2264 = vmatpush1.bf16.msra.mxu0 0
  %2265 = vmatprep.mubr.bf16.mxu0 0
  %2266 = vmatmul.mubr.bf16.gmra.mrb[0].mxu0 %v2231
  %v2267 = vpop.f32.mrb[0].mxu0
  %v2268 = vadd.f32 %v69, %v2267
  %v2269 = vpop.f32.mrb[0].mxu0
  %v2270 = vadd.f32 %v73, %v2269
  %v2271 = vpop.f32.mrb[0].mxu0
  %v2272 = vpop.f32.mrb[0].mxu0
  %2273 = vdwg.mxu0
  %2274 = vmatprep.subr.bf16.mxu0 %v114
  %2275 = vmatpush1.bf16.msra.mxu0 %v113
  %2276 = vmatprep.subr.bf16.mxu0 %v138
  %2277 = vmatpush1.bf16.msra.mxu0 %v135
  %2278 = vmatprep.subr.bf16.mxu0 0
  %2279 = vmatpush1.bf16.msra.mxu0 0
  %2280 = vmatprep.subr.bf16.mxu0 0
  %2281 = vmatpush1.bf16.msra.mxu0 0
  %2282 = vmatprep.subr.bf16.mxu0 0
  %2283 = vmatpush1.bf16.msra.mxu0 0
  %2284 = vmatprep.subr.bf16.mxu0 0
  %2285 = vmatpush1.bf16.msra.mxu0 0
  %2286 = vmatprep.subr.bf16.mxu0 0
  %2287 = vmatpush1.bf16.msra.mxu0 0
  %2288 = vmatprep.subr.bf16.mxu0 0
  %2289 = vmatpush1.bf16.msra.mxu0 0
  %2290 = vmatprep.subr.bf16.mxu0 0
  %2291 = vmatpush1.bf16.msra.mxu0 0
  %2292 = vmatprep.subr.bf16.mxu0 0
  %2293 = vmatpush1.bf16.msra.mxu0 0
  %2294 = vmatprep.subr.bf16.mxu0 0
  %2295 = vmatpush1.bf16.msra.mxu0 0
  %2296 = vmatprep.subr.bf16.mxu0 0
  %2297 = vmatpush1.bf16.msra.mxu0 0
  %2298 = vmatprep.subr.bf16.mxu0 0
  %2299 = vmatpush1.bf16.msra.mxu0 0
  %2300 = vmatprep.subr.bf16.mxu0 0
  %2301 = vmatpush1.bf16.msra.mxu0 0
  %2302 = vmatprep.subr.bf16.mxu0 0
  %2303 = vmatpush1.bf16.msra.mxu0 0
  %2304 = vmatprep.subr.bf16.mxu0 0
  %2305 = vmatpush1.bf16.msra.mxu0 0
  %2306 = vmatprep.mubr.bf16.mxu0 0
  %2307 = vmatmul.mubr.bf16.gmra.mrb[0].mxu0 %v2231
  %v2308 = vpop.f32.mrb[0].mxu0
  %v2309 = vadd.f32 %v77, %v2308
  %v2310 = vpop.f32.mrb[0].mxu0
  %v2311 = vadd.f32 %v81, %v2310
  %v2312 = vpop.f32.mrb[0].mxu0
  %v2313 = vpop.f32.mrb[0].mxu0
  %2314 = vdwg.mxu0
  %2315 = vst [vmem:[#allocation2 + $0x2e0] sm:$0xff] %v2268
  %2316 = vst [vmem:[#allocation2 + $0x2e8] sm:$0xff] %v2270
  %2317 = vst [vmem:[#allocation2 + $0x2f0] sm:$0xff] %v2309
  %2318 = vst [vmem:[#allocation2 + $0x2f8] sm:$0xff] %v2311
  %s2319 = scalar_lea.vmem %s0, 96
  %v2320 = vld [vmem:[%s2319] sm:$0xf]
  %v2322 = vsel %vm123, %v2320, 0
  %2324 = vmatprep.subr.bf16.mxu0 %v112
  %2325 = vmatpush1.bf16.msra.mxu0 %v111
  %2326 = vmatprep.subr.bf16.mxu0 %v132
  %2327 = vmatpush1.bf16.msra.mxu0 %v129
  %2328 = vmatprep.subr.bf16.mxu0 0
  %2329 = vmatpush1.bf16.msra.mxu0 0
  %2330 = vmatprep.subr.bf16.mxu0 0
  %2331 = vmatpush1.bf16.msra.mxu0 0
  %2332 = vmatprep.subr.bf16.mxu0 0
  %2333 = vmatpush1.bf16.msra.mxu0 0
  %2334 = vmatprep.subr.bf16.mxu0 0
  %2335 = vmatpush1.bf16.msra.mxu0 0
  %2336 = vmatprep.subr.bf16.mxu0 0
  %2337 = vmatpush1.bf16.msra.mxu0 0
  %2338 = vmatprep.subr.bf16.mxu0 0
  %2339 = vmatpush1.bf16.msra.mxu0 0
  %2340 = vmatprep.subr.bf16.mxu0 0
  %2341 = vmatpush1.bf16.msra.mxu0 0
  %2342 = vmatprep.subr.bf16.mxu0 0
  %2343 = vmatpush1.bf16.msra.mxu0 0
  %2344 = vmatprep.subr.bf16.mxu0 0
  %2345 = vmatpush1.bf16.msra.mxu0 0
  %2346 = vmatprep.subr.bf16.mxu0 0
  %2347 = vmatpush1.bf16.msra.mxu0 0
  %2348 = vmatprep.subr.bf16.mxu0 0
  %2349 = vmatpush1.bf16.msra.mxu0 0
  %2350 = vmatprep.subr.bf16.mxu0 0
  %2351 = vmatpush1.bf16.msra.mxu0 0
  %2352 = vmatprep.subr.bf16.mxu0 0
  %2353 = vmatpush1.bf16.msra.mxu0 0
  %2354 = vmatprep.subr.bf16.mxu0 0
  %2355 = vmatpush1.bf16.msra.mxu0 0
  %2356 = vmatprep.mubr.bf16.mxu0 0
  %2357 = vmatmul.mubr.bf16.gmra.mrb[0].mxu0 %v2322
  %v2358 = vpop.f32.mrb[0].mxu0
  %v2359 = vadd.f32 %v69, %v2358
  %v2360 = vpop.f32.mrb[0].mxu0
  %v2361 = vadd.f32 %v73, %v2360
  %v2362 = vpop.f32.mrb[0].mxu0
  %v2363 = vpop.f32.mrb[0].mxu0
  %2364 = vdwg.mxu0
  %2365 = vmatprep.subr.bf16.mxu0 %v114
  %2366 = vmatpush1.bf16.msra.mxu0 %v113
  %2367 = vmatprep.subr.bf16.mxu0 %v138
  %2368 = vmatpush1.bf16.msra.mxu0 %v135
  %2369 = vmatprep.subr.bf16.mxu0 0
  %2370 = vmatpush1.bf16.msra.mxu0 0
  %2371 = vmatprep.subr.bf16.mxu0 0
  %2372 = vmatpush1.bf16.msra.mxu0 0
  %2373 = vmatprep.subr.bf16.mxu0 0
  %2374 = vmatpush1.bf16.msra.mxu0 0
  %2375 = vmatprep.subr.bf16.mxu0 0
  %2376 = vmatpush1.bf16.msra.mxu0 0
  %2377 = vmatprep.subr.bf16.mxu0 0
  %2378 = vmatpush1.bf16.msra.mxu0 0
  %2379 = vmatprep.subr.bf16.mxu0 0
  %2380 = vmatpush1.bf16.msra.mxu0 0
  %2381 = vmatprep.subr.bf16.mxu0 0
  %2382 = vmatpush1.bf16.msra.mxu0 0
  %2383 = vmatprep.subr.bf16.mxu0 0
  %2384 = vmatpush1.bf16.msra.mxu0 0
  %2385 = vmatprep.subr.bf16.mxu0 0
  %2386 = vmatpush1.bf16.msra.mxu0 0
  %2387 = vmatprep.subr.bf16.mxu0 0
  %2388 = vmatpush1.bf16.msra.mxu0 0
  %2389 = vmatprep.subr.bf16.mxu0 0
  %2390 = vmatpush1.bf16.msra.mxu0 0
  %2391 = vmatprep.subr.bf16.mxu0 0
  %2392 = vmatpush1.bf16.msra.mxu0 0
  %2393 = vmatprep.subr.bf16.mxu0 0
  %2394 = vmatpush1.bf16.msra.mxu0 0
  %2395 = vmatprep.subr.bf16.mxu0 0
  %2396 = vmatpush1.bf16.msra.mxu0 0
  %2397 = vmatprep.mubr.bf16.mxu0 0
  %2398 = vmatmul.mubr.bf16.gmra.mrb[0].mxu0 %v2322
  %v2399 = vpop.f32.mrb[0].mxu0
  %v2400 = vadd.f32 %v77, %v2399
  %v2401 = vpop.f32.mrb[0].mxu0
  %v2402 = vadd.f32 %v81, %v2401
  %v2403 = vpop.f32.mrb[0].mxu0
  %v2404 = vpop.f32.mrb[0].mxu0
  %2405 = vdwg.mxu0
  %2406 = vst [vmem:[#allocation2 + $0x300] sm:$0xff] %v2359
  %2407 = vst [vmem:[#allocation2 + $0x308] sm:$0xff] %v2361
  %2408 = vst [vmem:[#allocation2 + $0x310] sm:$0xff] %v2400
  %2409 = vst [vmem:[#allocation2 + $0x318] sm:$0xff] %v2402
  %s2410 = scalar_lea.vmem %s0, 100
  %v2411 = vld [vmem:[%s2410] sm:$0xf]
  %v2413 = vsel %vm123, %v2411, 0
  %2415 = vmatprep.subr.bf16.mxu0 %v112
  %2416 = vmatpush1.bf16.msra.mxu0 %v111
  %2417 = vmatprep.subr.bf16.mxu0 %v132
  %2418 = vmatpush1.bf16.msra.mxu0 %v129
  %2419 = vmatprep.subr.bf16.mxu0 0
  %2420 = vmatpush1.bf16.msra.mxu0 0
  %2421 = vmatprep.subr.bf16.mxu0 0
  %2422 = vmatpush1.bf16.msra.mxu0 0
  %2423 = vmatprep.subr.bf16.mxu0 0
  %2424 = vmatpush1.bf16.msra.mxu0 0
  %2425 = vmatprep.subr.bf16.mxu0 0
  %2426 = vmatpush1.bf16.msra.mxu0 0
  %2427 = vmatprep.subr.bf16.mxu0 0
  %2428 = vmatpush1.bf16.msra.mxu0 0
  %2429 = vmatprep.subr.bf16.mxu0 0
  %2430 = vmatpush1.bf16.msra.mxu0 0
  %2431 = vmatprep.subr.bf16.mxu0 0
  %2432 = vmatpush1.bf16.msra.mxu0 0
  %2433 = vmatprep.subr.bf16.mxu0 0
  %2434 = vmatpush1.bf16.msra.mxu0 0
  %2435 = vmatprep.subr.bf16.mxu0 0
  %2436 = vmatpush1.bf16.msra.mxu0 0
  %2437 = vmatprep.subr.bf16.mxu0 0
  %2438 = vmatpush1.bf16.msra.mxu0 0
  %2439 = vmatprep.subr.bf16.mxu0 0
  %2440 = vmatpush1.bf16.msra.mxu0 0
  %2441 = vmatprep.subr.bf16.mxu0 0
  %2442 = vmatpush1.bf16.msra.mxu0 0
  %2443 = vmatprep.subr.bf16.mxu0 0
  %2444 = vmatpush1.bf16.msra.mxu0 0
  %2445 = vmatprep.subr.bf16.mxu0 0
  %2446 = vmatpush1.bf16.msra.mxu0 0
  %2447 = vmatprep.mubr.bf16.mxu0 0
  %2448 = vmatmul.mubr.bf16.gmra.mrb[0].mxu0 %v2413
  %v2449 = vpop.f32.mrb[0].mxu0
  %v2450 = vadd.f32 %v69, %v2449
  %v2451 = vpop.f32.mrb[0].mxu0
  %v2452 = vadd.f32 %v73, %v2451
  %v2453 = vpop.f32.mrb[0].mxu0
  %v2454 = vpop.f32.mrb[0].mxu0
  %2455 = vdwg.mxu0
  %2456 = vmatprep.subr.bf16.mxu0 %v114
  %2457 = vmatpush1.bf16.msra.mxu0 %v113
  %2458 = vmatprep.subr.bf16.mxu0 %v138
  %2459 = vmatpush1.bf16.msra.mxu0 %v135
  %2460 = vmatprep.subr.bf16.mxu0 0
  %2461 = vmatpush1.bf16.msra.mxu0 0
  %2462 = vmatprep.subr.bf16.mxu0 0
  %2463 = vmatpush1.bf16.msra.mxu0 0
  %2464 = vmatprep.subr.bf16.mxu0 0
  %2465 = vmatpush1.bf16.msra.mxu0 0
  %2466 = vmatprep.subr.bf16.mxu0 0
  %2467 = vmatpush1.bf16.msra.mxu0 0
  %2468 = vmatprep.subr.bf16.mxu0 0
  %2469 = vmatpush1.bf16.msra.mxu0 0
  %2470 = vmatprep.subr.bf16.mxu0 0
  %2471 = vmatpush1.bf16.msra.mxu0 0
  %2472 = vmatprep.subr.bf16.mxu0 0
  %2473 = vmatpush1.bf16.msra.mxu0 0
  %2474 = vmatprep.subr.bf16.mxu0 0
  %2475 = vmatpush1.bf16.msra.mxu0 0
  %2476 = vmatprep.subr.bf16.mxu0 0
  %2477 = vmatpush1.bf16.msra.mxu0 0
  %2478 = vmatprep.subr.bf16.mxu0 0
  %2479 = vmatpush1.bf16.msra.mxu0 0
  %2480 = vmatprep.subr.bf16.mxu0 0
  %2481 = vmatpush1.bf16.msra.mxu0 0
  %2482 = vmatprep.subr.bf16.mxu0 0
  %2483 = vmatpush1.bf16.msra.mxu0 0
  %2484 = vmatprep.subr.bf16.mxu0 0
  %2485 = vmatpush1.bf16.msra.mxu0 0
  %2486 = vmatprep.subr.bf16.mxu0 0
  %2487 = vmatpush1.bf16.msra.mxu0 0
  %2488 = vmatprep.mubr.bf16.mxu0 0
  %2489 = vmatmul.mubr.bf16.gmra.mrb[0].mxu0 %v2413
  %v2490 = vpop.f32.mrb[0].mxu0
  %v2491 = vadd.f32 %v77, %v2490
  %v2492 = vpop.f32.mrb[0].mxu0
  %v2493 = vadd.f32 %v81, %v2492
  %v2494 = vpop.f32.mrb[0].mxu0
  %v2495 = vpop.f32.mrb[0].mxu0
  %2496 = vdwg.mxu0
  %2497 = vst [vmem:[#allocation2 + $0x320] sm:$0xff] %v2450
  %2498 = vst [vmem:[#allocation2 + $0x328] sm:$0xff] %v2452
  %2499 = vst [vmem:[#allocation2 + $0x330] sm:$0xff] %v2491
  %2500 = vst [vmem:[#allocation2 + $0x338] sm:$0xff] %v2493
  %s2501 = scalar_lea.vmem %s0, 104
  %v2502 = vld [vmem:[%s2501] sm:$0xf]
  %v2504 = vsel %vm123, %v2502, 0
  %2506 = vmatprep.subr.bf16.mxu0 %v112
  %2507 = vmatpush1.bf16.msra.mxu0 %v111
  %2508 = vmatprep.subr.bf16.mxu0 %v132
  %2509 = vmatpush1.bf16.msra.mxu0 %v129
  %2510 = vmatprep.subr.bf16.mxu0 0
  %2511 = vmatpush1.bf16.msra.mxu0 0
  %2512 = vmatprep.subr.bf16.mxu0 0
  %2513 = vmatpush1.bf16.msra.mxu0 0
  %2514 = vmatprep.subr.bf16.mxu0 0
  %2515 = vmatpush1.bf16.msra.mxu0 0
  %2516 = vmatprep.subr.bf16.mxu0 0
  %2517 = vmatpush1.bf16.msra.mxu0 0
  %2518 = vmatprep.subr.bf16.mxu0 0
  %2519 = vmatpush1.bf16.msra.mxu0 0
  %2520 = vmatprep.subr.bf16.mxu0 0
  %2521 = vmatpush1.bf16.msra.mxu0 0
  %2522 = vmatprep.subr.bf16.mxu0 0
  %2523 = vmatpush1.bf16.msra.mxu0 0
  %2524 = vmatprep.subr.bf16.mxu0 0
  %2525 = vmatpush1.bf16.msra.mxu0 0
  %2526 = vmatprep.subr.bf16.mxu0 0
  %2527 = vmatpush1.bf16.msra.mxu0 0
  %2528 = vmatprep.subr.bf16.mxu0 0
  %2529 = vmatpush1.bf16.msra.mxu0 0
  %2530 = vmatprep.subr.bf16.mxu0 0
  %2531 = vmatpush1.bf16.msra.mxu0 0
  %2532 = vmatprep.subr.bf16.mxu0 0
  %2533 = vmatpush1.bf16.msra.mxu0 0
  %2534 = vmatprep.subr.bf16.mxu0 0
  %2535 = vmatpush1.bf16.msra.mxu0 0
  %2536 = vmatprep.subr.bf16.mxu0 0
  %2537 = vmatpush1.bf16.msra.mxu0 0
  %2538 = vmatprep.mubr.bf16.mxu0 0
  %2539 = vmatmul.mubr.bf16.gmra.mrb[0].mxu0 %v2504
  %v2540 = vpop.f32.mrb[0].mxu0
  %v2541 = vadd.f32 %v69, %v2540
  %v2542 = vpop.f32.mrb[0].mxu0
  %v2543 = vadd.f32 %v73, %v2542
  %v2544 = vpop.f32.mrb[0].mxu0
  %v2545 = vpop.f32.mrb[0].mxu0
  %2546 = vdwg.mxu0
  %2547 = vmatprep.subr.bf16.mxu0 %v114
  %2548 = vmatpush1.bf16.msra.mxu0 %v113
  %2549 = vmatprep.subr.bf16.mxu0 %v138
  %2550 = vmatpush1.bf16.msra.mxu0 %v135
  %2551 = vmatprep.subr.bf16.mxu0 0
  %2552 = vmatpush1.bf16.msra.mxu0 0
  %2553 = vmatprep.subr.bf16.mxu0 0
  %2554 = vmatpush1.bf16.msra.mxu0 0
  %2555 = vmatprep.subr.bf16.mxu0 0
  %2556 = vmatpush1.bf16.msra.mxu0 0
  %2557 = vmatprep.subr.bf16.mxu0 0
  %2558 = vmatpush1.bf16.msra.mxu0 0
  %2559 = vmatprep.subr.bf16.mxu0 0
  %2560 = vmatpush1.bf16.msra.mxu0 0
  %2561 = vmatprep.subr.bf16.mxu0 0
  %2562 = vmatpush1.bf16.msra.mxu0 0
  %2563 = vmatprep.subr.bf16.mxu0 0
  %2564 = vmatpush1.bf16.msra.mxu0 0
  %2565 = vmatprep.subr.bf16.mxu0 0
  %2566 = vmatpush1.bf16.msra.mxu0 0
  %2567 = vmatprep.subr.bf16.mxu0 0
  %2568 = vmatpush1.bf16.msra.mxu0 0
  %2569 = vmatprep.subr.bf16.mxu0 0
  %2570 = vmatpush1.bf16.msra.mxu0 0
  %2571 = vmatprep.subr.bf16.mxu0 0
  %2572 = vmatpush1.bf16.msra.mxu0 0
  %2573 = vmatprep.subr.bf16.mxu0 0
  %2574 = vmatpush1.bf16.msra.mxu0 0
  %2575 = vmatprep.subr.bf16.mxu0 0
  %2576 = vmatpush1.bf16.msra.mxu0 0
  %2577 = vmatprep.subr.bf16.mxu0 0
  %2578 = vmatpush1.bf16.msra.mxu0 0
  %2579 = vmatprep.mubr.bf16.mxu0 0
  %2580 = vmatmul.mubr.bf16.gmra.mrb[0].mxu0 %v2504
  %v2581 = vpop.f32.mrb[0].mxu0
  %v2582 = vadd.f32 %v77, %v2581
  %v2583 = vpop.f32.mrb[0].mxu0
  %v2584 = vadd.f32 %v81, %v2583
  %v2585 = vpop.f32.mrb[0].mxu0
  %v2586 = vpop.f32.mrb[0].mxu0
  %2587 = vdwg.mxu0
  %2588 = vst [vmem:[#allocation2 + $0x340] sm:$0xff] %v2541
  %2589 = vst [vmem:[#allocation2 + $0x348] sm:$0xff] %v2543
  %2590 = vst [vmem:[#allocation2 + $0x350] sm:$0xff] %v2582
  %2591 = vst [vmem:[#allocation2 + $0x358] sm:$0xff] %v2584
  %s2592 = scalar_lea.vmem %s0, 108
  %v2593 = vld [vmem:[%s2592] sm:$0xf]
  %v2595 = vsel %vm123, %v2593, 0
  %2597 = vmatprep.subr.bf16.mxu0 %v112
  %2598 = vmatpush1.bf16.msra.mxu0 %v111
  %2599 = vmatprep.subr.bf16.mxu0 %v132
  %2600 = vmatpush1.bf16.msra.mxu0 %v129
  %2601 = vmatprep.subr.bf16.mxu0 0
  %2602 = vmatpush1.bf16.msra.mxu0 0
  %2603 = vmatprep.subr.bf16.mxu0 0
  %2604 = vmatpush1.bf16.msra.mxu0 0
  %2605 = vmatprep.subr.bf16.mxu0 0
  %2606 = vmatpush1.bf16.msra.mxu0 0
  %2607 = vmatprep.subr.bf16.mxu0 0
  %2608 = vmatpush1.bf16.msra.mxu0 0
  %2609 = vmatprep.subr.bf16.mxu0 0
  %2610 = vmatpush1.bf16.msra.mxu0 0
  %2611 = vmatprep.subr.bf16.mxu0 0
  %2612 = vmatpush1.bf16.msra.mxu0 0
  %2613 = vmatprep.subr.bf16.mxu0 0
  %2614 = vmatpush1.bf16.msra.mxu0 0
  %2615 = vmatprep.subr.bf16.mxu0 0
  %2616 = vmatpush1.bf16.msra.mxu0 0
  %2617 = vmatprep.subr.bf16.mxu0 0
  %2618 = vmatpush1.bf16.msra.mxu0 0
  %2619 = vmatprep.subr.bf16.mxu0 0
  %2620 = vmatpush1.bf16.msra.mxu0 0
  %2621 = vmatprep.subr.bf16.mxu0 0
  %2622 = vmatpush1.bf16.msra.mxu0 0
  %2623 = vmatprep.subr.bf16.mxu0 0
  %2624 = vmatpush1.bf16.msra.mxu0 0
  %2625 = vmatprep.subr.bf16.mxu0 0
  %2626 = vmatpush1.bf16.msra.mxu0 0
  %2627 = vmatprep.subr.bf16.mxu0 0
  %2628 = vmatpush1.bf16.msra.mxu0 0
  %2629 = vmatprep.mubr.bf16.mxu0 0
  %2630 = vmatmul.mubr.bf16.gmra.mrb[0].mxu0 %v2595
  %v2631 = vpop.f32.mrb[0].mxu0
  %v2632 = vadd.f32 %v69, %v2631
  %v2633 = vpop.f32.mrb[0].mxu0
  %v2634 = vadd.f32 %v73, %v2633
  %v2635 = vpop.f32.mrb[0].mxu0
  %v2636 = vpop.f32.mrb[0].mxu0
  %2637 = vdwg.mxu0
  %2638 = vmatprep.subr.bf16.mxu0 %v114
  %2639 = vmatpush1.bf16.msra.mxu0 %v113
  %2640 = vmatprep.subr.bf16.mxu0 %v138
  %2641 = vmatpush1.bf16.msra.mxu0 %v135
  %2642 = vmatprep.subr.bf16.mxu0 0
  %2643 = vmatpush1.bf16.msra.mxu0 0
  %2644 = vmatprep.subr.bf16.mxu0 0
  %2645 = vmatpush1.bf16.msra.mxu0 0
  %2646 = vmatprep.subr.bf16.mxu0 0
  %2647 = vmatpush1.bf16.msra.mxu0 0
  %2648 = vmatprep.subr.bf16.mxu0 0
  %2649 = vmatpush1.bf16.msra.mxu0 0
  %2650 = vmatprep.subr.bf16.mxu0 0
  %2651 = vmatpush1.bf16.msra.mxu0 0
  %2652 = vmatprep.subr.bf16.mxu0 0
  %2653 = vmatpush1.bf16.msra.mxu0 0
  %2654 = vmatprep.subr.bf16.mxu0 0
  %2655 = vmatpush1.bf16.msra.mxu0 0
  %2656 = vmatprep.subr.bf16.mxu0 0
  %2657 = vmatpush1.bf16.msra.mxu0 0
  %2658 = vmatprep.subr.bf16.mxu0 0
  %2659 = vmatpush1.bf16.msra.mxu0 0
  %2660 = vmatprep.subr.bf16.mxu0 0
  %2661 = vmatpush1.bf16.msra.mxu0 0
  %2662 = vmatprep.subr.bf16.mxu0 0
  %2663 = vmatpush1.bf16.msra.mxu0 0
  %2664 = vmatprep.subr.bf16.mxu0 0
  %2665 = vmatpush1.bf16.msra.mxu0 0
  %2666 = vmatprep.subr.bf16.mxu0 0
  %2667 = vmatpush1.bf16.msra.mxu0 0
  %2668 = vmatprep.subr.bf16.mxu0 0
  %2669 = vmatpush1.bf16.msra.mxu0 0
  %2670 = vmatprep.mubr.bf16.mxu0 0
  %2671 = vmatmul.mubr.bf16.gmra.mrb[0].mxu0 %v2595
  %v2672 = vpop.f32.mrb[0].mxu0
  %v2673 = vadd.f32 %v77, %v2672
  %v2674 = vpop.f32.mrb[0].mxu0
  %v2675 = vadd.f32 %v81, %v2674
  %v2676 = vpop.f32.mrb[0].mxu0
  %v2677 = vpop.f32.mrb[0].mxu0
  %2678 = vdwg.mxu0
  %2679 = vst [vmem:[#allocation2 + $0x360] sm:$0xff] %v2632
  %2680 = vst [vmem:[#allocation2 + $0x368] sm:$0xff] %v2634
  %2681 = vst [vmem:[#allocation2 + $0x370] sm:$0xff] %v2673
  %2682 = vst [vmem:[#allocation2 + $0x378] sm:$0xff] %v2675
  %2683 = vst [vmem:[#allocation3] sm:$0xff] 0.0
  %2684 = vst [vmem:[#allocation4] sm:$0xff] 0.0
  %v2685 = vld [vmem:[#allocation2] sm:$0xff]
  %v2686 = vld [vmem:[#allocation2 + $0x8] sm:$0xff]
  %v2687 = vld [vmem:[#allocation2 + $0x10] sm:$0xff]
  %v2688 = vld [vmem:[#allocation2 + $0x18] sm:$0xff]
  %v2689 = vld [vmem:[#allocation3] sm:$0xff]
  %v2690 = vpack.c.bf16 %v2689, %v2689
  %v2723 = vunpack.c.l.b16 %v32
  %v2724 = vunpack.c.h.b16 %v32
  %v2725 = vunpack.c.l.b16 %v33
  %v2726 = vunpack.c.h.b16 %v33
  %v2727 = vunpack.c.l.b16 %v34
  %v2728 = vunpack.c.h.b16 %v34
  %v2729 = vunpack.c.l.b16 %v35
  %v2730 = vunpack.c.h.b16 %v35
  %v2731 = vunpack.c.l.b16 %v36
  %v2732 = vunpack.c.h.b16 %v36
  %v2733 = vunpack.c.l.b16 %v37
  %v2734 = vunpack.c.h.b16 %v37
  %v2735 = vunpack.c.l.b16 %v38
  %v2736 = vunpack.c.h.b16 %v38
  %v2737 = vunpack.c.l.b16 %v39
  %v2738 = vunpack.c.h.b16 %v39
  %v2739 = vunpack.c.l.b16 %v40
  %v2740 = vunpack.c.h.b16 %v40
  %v2741 = vunpack.c.l.b16 %v41
  %v2742 = vunpack.c.h.b16 %v41
  %v2743 = vunpack.c.l.b16 %v42
  %v2744 = vunpack.c.h.b16 %v42
  %v2745 = vunpack.c.l.b16 %v43
  %v2746 = vunpack.c.h.b16 %v43
  %v2747 = vunpack.c.l.b16 %v44
  %v2748 = vunpack.c.h.b16 %v44
  %v2749 = vunpack.c.l.b16 %v45
  %v2750 = vunpack.c.h.b16 %v45
  %v2751 = vunpack.c.l.b16 %v46
  %v2752 = vunpack.c.h.b16 %v46
  %v2753 = vunpack.c.l.b16 %v47
  %v2754 = vunpack.c.h.b16 %v47
  %v2755 = vunpack.c.l.b16 %v48
  %v2756 = vunpack.c.h.b16 %v48
  %v2757 = vunpack.c.l.b16 %v49
  %v2758 = vunpack.c.h.b16 %v49
  %v2759 = vunpack.c.l.b16 %v50
  %v2760 = vunpack.c.h.b16 %v50
  %v2761 = vunpack.c.l.b16 %v51
  %v2762 = vunpack.c.h.b16 %v51
  %v2763 = vunpack.c.l.b16 %v52
  %v2764 = vunpack.c.h.b16 %v52
  %v2765 = vunpack.c.l.b16 %v53
  %v2766 = vunpack.c.h.b16 %v53
  %v2767 = vunpack.c.l.b16 %v54
  %v2768 = vunpack.c.h.b16 %v54
  %v2769 = vunpack.c.l.b16 %v55
  %v2770 = vunpack.c.h.b16 %v55
  %v2771 = vunpack.c.l.b16 %v56
  %v2772 = vunpack.c.h.b16 %v56
  %v2773 = vunpack.c.l.b16 %v57
  %v2774 = vunpack.c.h.b16 %v57
  %v2775 = vunpack.c.l.b16 %v58
  %v2776 = vunpack.c.h.b16 %v58
  %v2777 = vunpack.c.l.b16 %v59
  %v2778 = vunpack.c.h.b16 %v59
  %v2779 = vunpack.c.l.b16 %v60
  %v2780 = vunpack.c.h.b16 %v60
  %v2781 = vunpack.c.l.b16 %v61
  %v2782 = vunpack.c.h.b16 %v61
  %v2783 = vunpack.c.l.b16 %v62
  %v2784 = vunpack.c.h.b16 %v62
  %v2785 = vunpack.c.l.b16 %v63
  %v2786 = vunpack.c.h.b16 %v63
  %v2787 = vpack.c.b16 %v2727, %v2723
  %v2788 = vpack.c.b16 %v2728, %v2724
  %v2789 = vpack.c.b16 %v2729, %v2725
  %v2790 = vpack.c.b16 %v2730, %v2726
  %v2791 = vpack.c.b16 %v2735, %v2731
  %v2792 = vpack.c.b16 %v2736, %v2732
  %v2793 = vpack.c.b16 %v2737, %v2733
  %v2794 = vpack.c.b16 %v2738, %v2734
  %v2795 = vpack.c.b16 %v2743, %v2739
  %v2796 = vpack.c.b16 %v2744, %v2740
  %v2797 = vpack.c.b16 %v2745, %v2741
  %v2798 = vpack.c.b16 %v2746, %v2742
  %v2799 = vpack.c.b16 %v2751, %v2747
  %v2800 = vpack.c.b16 %v2752, %v2748
  %v2801 = vpack.c.b16 %v2753, %v2749
  %v2802 = vpack.c.b16 %v2754, %v2750
  %v2803 = vpack.c.b16 %v2759, %v2755
  %v2804 = vpack.c.b16 %v2760, %v2756
  %v2805 = vpack.c.b16 %v2761, %v2757
  %v2806 = vpack.c.b16 %v2762, %v2758
  %v2807 = vpack.c.b16 %v2767, %v2763
  %v2808 = vpack.c.b16 %v2768, %v2764
  %v2809 = vpack.c.b16 %v2769, %v2765
  %v2810 = vpack.c.b16 %v2770, %v2766
  %v2811 = vpack.c.b16 %v2775, %v2771
  %v2812 = vpack.c.b16 %v2776, %v2772
  %v2813 = vpack.c.b16 %v2777, %v2773
  %v2814 = vpack.c.b16 %v2778, %v2774
  %v2815 = vpack.c.b16 %v2783, %v2779
  %v2816 = vpack.c.b16 %v2784, %v2780
  %v2817 = vpack.c.b16 %v2785, %v2781
  %v2818 = vpack.c.b16 %v2786, %v2782
  %2851 = vmatprep.subr.bf16.mxu0 %v2788
  %2852 = vmatpush1.bf16.msra.mxu0 %v2787
  %2853 = vmatprep.subr.bf16.mxu0 %v2792
  %2854 = vmatpush1.bf16.msra.mxu0 %v2791
  %2855 = vmatprep.subr.bf16.mxu0 %v2796
  %2856 = vmatpush1.bf16.msra.mxu0 %v2795
  %2857 = vmatprep.subr.bf16.mxu0 %v2800
  %2858 = vmatpush1.bf16.msra.mxu0 %v2799
  %2859 = vmatprep.subr.bf16.mxu0 %v2804
  %2860 = vmatpush1.bf16.msra.mxu0 %v2803
  %2861 = vmatprep.subr.bf16.mxu0 %v2808
  %2862 = vmatpush1.bf16.msra.mxu0 %v2807
  %2863 = vmatprep.subr.bf16.mxu0 %v2812
  %2864 = vmatpush1.bf16.msra.mxu0 %v2811
  %2865 = vmatprep.subr.bf16.mxu0 %v2816
  %2866 = vmatpush1.bf16.msra.mxu0 %v2815
  %2867 = vmatprep.subr.bf16.mxu0 0
  %2868 = vmatpush1.bf16.msra.mxu0 0
  %2869 = vmatprep.subr.bf16.mxu0 0
  %2870 = vmatpush1.bf16.msra.mxu0 0
  %2871 = vmatprep.subr.bf16.mxu0 0
  %2872 = vmatpush1.bf16.msra.mxu0 0
  %2873 = vmatprep.subr.bf16.mxu0 0
  %2874 = vmatpush1.bf16.msra.mxu0 0
  %2875 = vmatprep.subr.bf16.mxu0 0
  %2876 = vmatpush1.bf16.msra.mxu0 0
  %2877 = vmatprep.subr.bf16.mxu0 0
  %2878 = vmatpush1.bf16.msra.mxu0 0
  %2879 = vmatprep.subr.bf16.mxu0 0
  %2880 = vmatpush1.bf16.msra.mxu0 0
  %2881 = vmatprep.subr.bf16.mxu0 0
  %2882 = vmatpush1.bf16.msra.mxu0 0
  %2883 = vmatprep.mubr.bf16.mxu0 0
  %2884 = vmatmul.mubr.bf16.gmra.mrb[0].mxu0 %v2690
  %v2885 = vpop.f32.mrb[0].mxu0
  %v2886 = vadd.f32 0.0, %v2885
  %v2887 = vpop.f32.mrb[0].mxu0
  %v2888 = vadd.f32 0.0, %v2887
  %v2889 = vpop.f32.mrb[0].mxu0
  %v2890 = vpop.f32.mrb[0].mxu0
  %2891 = vdwg.mxu0
  %2892 = vmatprep.subr.bf16.mxu0 %v2790
  %2893 = vmatpush1.bf16.msra.mxu0 %v2789
  %2894 = vmatprep.subr.bf16.mxu0 %v2794
  %2895 = vmatpush1.bf16.msra.mxu0 %v2793
  %2896 = vmatprep.subr.bf16.mxu0 %v2798
  %2897 = vmatpush1.bf16.msra.mxu0 %v2797
  %2898 = vmatprep.subr.bf16.mxu0 %v2802
  %2899 = vmatpush1.bf16.msra.mxu0 %v2801
  %2900 = vmatprep.subr.bf16.mxu0 %v2806
  %2901 = vmatpush1.bf16.msra.mxu0 %v2805
  %2902 = vmatprep.subr.bf16.mxu0 %v2810
  %2903 = vmatpush1.bf16.msra.mxu0 %v2809
  %2904 = vmatprep.subr.bf16.mxu0 %v2814
  %2905 = vmatpush1.bf16.msra.mxu0 %v2813
  %2906 = vmatprep.subr.bf16.mxu0 %v2818
  %2907 = vmatpush1.bf16.msra.mxu0 %v2817
  %2908 = vmatprep.subr.bf16.mxu0 0
  %2909 = vmatpush1.bf16.msra.mxu0 0
  %2910 = vmatprep.subr.bf16.mxu0 0
  %2911 = vmatpush1.bf16.msra.mxu0 0
  %2912 = vmatprep.subr.bf16.mxu0 0
  %2913 = vmatpush1.bf16.msra.mxu0 0
  %2914 = vmatprep.subr.bf16.mxu0 0
  %2915 = vmatpush1.bf16.msra.mxu0 0
  %2916 = vmatprep.subr.bf16.mxu0 0
  %2917 = vmatpush1.bf16.msra.mxu0 0
  %2918 = vmatprep.subr.bf16.mxu0 0
  %2919 = vmatpush1.bf16.msra.mxu0 0
  %2920 = vmatprep.subr.bf16.mxu0 0
  %2921 = vmatpush1.bf16.msra.mxu0 0
  %2922 = vmatprep.subr.bf16.mxu0 0
  %2923 = vmatpush1.bf16.msra.mxu0 0
  %2924 = vmatprep.mubr.bf16.mxu0 0
  %2925 = vmatmul.mubr.bf16.gmra.mrb[0].mxu0 %v2690
  %v2926 = vpop.f32.mrb[0].mxu0
  %v2927 = vadd.f32 0.0, %v2926
  %v2928 = vpop.f32.mrb[0].mxu0
  %v2929 = vadd.f32 0.0, %v2928
  %v2930 = vpop.f32.mrb[0].mxu0
  %v2931 = vpop.f32.mrb[0].mxu0
  %2932 = vdwg.mxu0
  %v2933 = vadd.f32 %v2685, %v2886
  %v2934 = vadd.f32 %v2686, %v2888
  %v2935 = vadd.f32 %v2687, %v2927
  %v2936 = vadd.f32 %v2688, %v2929
  %v2937 = vxor.u32 %v2933, 2147483648
  %v2938 = vmul.f32 %v2937, 1.442695
  %v2939 = vpow.pop %v2938
  %v2940 = vadd.f32 %v2939, 1.0
  %v2941 = vrcp.pop %v2940
  %v2942 = vmul.f32 1.0, %v2941
  %v2943 = vxor.u32 %v2934, 2147483648
  %v2944 = vmul.f32 %v2943, 1.442695
  %v2945 = vpow.pop %v2944
  %v2946 = vadd.f32 %v2945, 1.0
  %v2947 = vrcp.pop %v2946
  %v2948 = vmul.f32 1.0, %v2947
  %v2949 = vtanh.pop %v2935
  %v2950 = vxor.u32 %v2936, 2147483648
  %v2951 = vmul.f32 %v2950, 1.442695
  %v2952 = vpow.pop %v2951
  %v2953 = vadd.f32 %v2952, 1.0
  %v2954 = vrcp.pop %v2953
  %v2955 = vmul.f32 1.0, %v2954
  %v2956 = vld [vmem:[#allocation4] sm:$0xff]
  %v2957 = vmul.f32 %v2948, %v2956
  %v2958 = vmul.f32 %v2942, %v2949
  %v2959 = vadd.f32 %v2957, %v2958
  %2960 = vst [vmem:[#allocation4] sm:$0xff] %v2959
  %v2961 = vtanh.pop %v2959
  %v2962 = vmul.f32 %v2955, %v2961
  %2963 = vst [vmem:[#allocation3] sm:$0xff] %v2962
  %v2964 = vld [vmem:[#allocation2 + $0x20] sm:$0xff]
  %v2965 = vld [vmem:[#allocation2 + $0x28] sm:$0xff]
  %v2966 = vld [vmem:[#allocation2 + $0x30] sm:$0xff]
  %v2967 = vld [vmem:[#allocation2 + $0x38] sm:$0xff]
  %v2968 = vld [vmem:[#allocation3] sm:$0xff]
  %v2969 = vpack.c.bf16 %v2968, %v2968
  %2970 = vmatprep.subr.bf16.mxu0 %v2788
  %2971 = vmatpush1.bf16.msra.mxu0 %v2787
  %2972 = vmatprep.subr.bf16.mxu0 %v2792
  %2973 = vmatpush1.bf16.msra.mxu0 %v2791
  %2974 = vmatprep.subr.bf16.mxu0 %v2796
  %2975 = vmatpush1.bf16.msra.mxu0 %v2795
  %2976 = vmatprep.subr.bf16.mxu0 %v2800
  %2977 = vmatpush1.bf16.msra.mxu0 %v2799
  %2978 = vmatprep.subr.bf16.mxu0 %v2804
  %2979 = vmatpush1.bf16.msra.mxu0 %v2803
  %2980 = vmatprep.subr.bf16.mxu0 %v2808
  %2981 = vmatpush1.bf16.msra.mxu0 %v2807
  %2982 = vmatprep.subr.bf16.mxu0 %v2812
  %2983 = vmatpush1.bf16.msra.mxu0 %v2811
  %2984 = vmatprep.subr.bf16.mxu0 %v2816
  %2985 = vmatpush1.bf16.msra.mxu0 %v2815
  %2986 = vmatprep.subr.bf16.mxu0 0
  %2987 = vmatpush1.bf16.msra.mxu0 0
  %2988 = vmatprep.subr.bf16.mxu0 0
  %2989 = vmatpush1.bf16.msra.mxu0 0
  %2990 = vmatprep.subr.bf16.mxu0 0
  %2991 = vmatpush1.bf16.msra.mxu0 0
  %2992 = vmatprep.subr.bf16.mxu0 0
  %2993 = vmatpush1.bf16.msra.mxu0 0
  %2994 = vmatprep.subr.bf16.mxu0 0
  %2995 = vmatpush1.bf16.msra.mxu0 0
  %2996 = vmatprep.subr.bf16.mxu0 0
  %2997 = vmatpush1.bf16.msra.mxu0 0
  %2998 = vmatprep.subr.bf16.mxu0 0
  %2999 = vmatpush1.bf16.msra.mxu0 0
  %3000 = vmatprep.subr.bf16.mxu0 0
  %3001 = vmatpush1.bf16.msra.mxu0 0
  %3002 = vmatprep.mubr.bf16.mxu0 0
  %3003 = vmatmul.mubr.bf16.gmra.mrb[0].mxu0 %v2969
  %v3004 = vpop.f32.mrb[0].mxu0
  %v3005 = vadd.f32 0.0, %v3004
  %v3006 = vpop.f32.mrb[0].mxu0
  %v3007 = vadd.f32 0.0, %v3006
  %v3008 = vpop.f32.mrb[0].mxu0
  %v3009 = vpop.f32.mrb[0].mxu0
  %3010 = vdwg.mxu0
  %3011 = vmatprep.subr.bf16.mxu0 %v2790
  %3012 = vmatpush1.bf16.msra.mxu0 %v2789
  %3013 = vmatprep.subr.bf16.mxu0 %v2794
  %3014 = vmatpush1.bf16.msra.mxu0 %v2793
  %3015 = vmatprep.subr.bf16.mxu0 %v2798
  %3016 = vmatpush1.bf16.msra.mxu0 %v2797
  %3017 = vmatprep.subr.bf16.mxu0 %v2802
  %3018 = vmatpush1.bf16.msra.mxu0 %v2801
  %3019 = vmatprep.subr.bf16.mxu0 %v2806
  %3020 = vmatpush1.bf16.msra.mxu0 %v2805
  %3021 = vmatprep.subr.bf16.mxu0 %v2810
  %3022 = vmatpush1.bf16.msra.mxu0 %v2809
  %3023 = vmatprep.subr.bf16.mxu0 %v2814
  %3024 = vmatpush1.bf16.msra.mxu0 %v2813
  %3025 = vmatprep.subr.bf16.mxu0 %v2818
  %3026 = vmatpush1.bf16.msra.mxu0 %v2817
  %3027 = vmatprep.subr.bf16.mxu0 0
  %3028 = vmatpush1.bf16.msra.mxu0 0
  %3029 = vmatprep.subr.bf16.mxu0 0
  %3030 = vmatpush1.bf16.msra.mxu0 0
  %3031 = vmatprep.subr.bf16.mxu0 0
  %3032 = vmatpush1.bf16.msra.mxu0 0
  %3033 = vmatprep.subr.bf16.mxu0 0
  %3034 = vmatpush1.bf16.msra.mxu0 0
  %3035 = vmatprep.subr.bf16.mxu0 0
  %3036 = vmatpush1.bf16.msra.mxu0 0
  %3037 = vmatprep.subr.bf16.mxu0 0
  %3038 = vmatpush1.bf16.msra.mxu0 0
  %3039 = vmatprep.subr.bf16.mxu0 0
  %3040 = vmatpush1.bf16.msra.mxu0 0
  %3041 = vmatprep.subr.bf16.mxu0 0
  %3042 = vmatpush1.bf16.msra.mxu0 0
  %3043 = vmatprep.mubr.bf16.mxu0 0
  %3044 = vmatmul.mubr.bf16.gmra.mrb[0].mxu0 %v2969
  %v3045 = vpop.f32.mrb[0].mxu0
  %v3046 = vadd.f32 0.0, %v3045
  %v3047 = vpop.f32.mrb[0].mxu0
  %v3048 = vadd.f32 0.0, %v3047
  %v3049 = vpop.f32.mrb[0].mxu0
  %v3050 = vpop.f32.mrb[0].mxu0
  %3051 = vdwg.mxu0
  %v3052 = vadd.f32 %v2964, %v3005
  %v3053 = vadd.f32 %v2965, %v3007
  %v3054 = vadd.f32 %v2966, %v3046
  %v3055 = vadd.f32 %v2967, %v3048
  %v3056 = vxor.u32 %v3052, 2147483648
  %v3057 = vmul.f32 %v3056, 1.442695
  %v3058 = vpow.pop %v3057
  %v3059 = vadd.f32 %v3058, 1.0
  %v3060 = vrcp.pop %v3059
  %v3061 = vmul.f32 1.0, %v3060
  %v3062 = vxor.u32 %v3053, 2147483648
  %v3063 = vmul.f32 %v3062, 1.442695
  %v3064 = vpow.pop %v3063
  %v3065 = vadd.f32 %v3064, 1.0
  %v3066 = vrcp.pop %v3065
  %v3067 = vmul.f32 1.0, %v3066
  %v3068 = vtanh.pop %v3054
  %v3069 = vxor.u32 %v3055, 2147483648
  %v3070 = vmul.f32 %v3069, 1.442695
  %v3071 = vpow.pop %v3070
  %v3072 = vadd.f32 %v3071, 1.0
  %v3073 = vrcp.pop %v3072
  %v3074 = vmul.f32 1.0, %v3073
  %v3075 = vld [vmem:[#allocation4] sm:$0xff]
  %v3076 = vmul.f32 %v3067, %v3075
  %v3077 = vmul.f32 %v3061, %v3068
  %v3078 = vadd.f32 %v3076, %v3077
  %3079 = vst [vmem:[#allocation4] sm:$0xff] %v3078
  %v3080 = vtanh.pop %v3078
  %v3081 = vmul.f32 %v3074, %v3080
  %3082 = vst [vmem:[#allocation3] sm:$0xff] %v3081
  %v3083 = vld [vmem:[#allocation2 + $0x40] sm:$0xff]
  %v3084 = vld [vmem:[#allocation2 + $0x48] sm:$0xff]
  %v3085 = vld [vmem:[#allocation2 + $0x50] sm:$0xff]
  %v3086 = vld [vmem:[#allocation2 + $0x58] sm:$0xff]
  %v3087 = vld [vmem:[#allocation3] sm:$0xff]
  %v3088 = vpack.c.bf16 %v3087, %v3087
  %3089 = vmatprep.subr.bf16.mxu0 %v2788
  %3090 = vmatpush1.bf16.msra.mxu0 %v2787
  %3091 = vmatprep.subr.bf16.mxu0 %v2792
  %3092 = vmatpush1.bf16.msra.mxu0 %v2791
  %3093 = vmatprep.subr.bf16.mxu0 %v2796
  %3094 = vmatpush1.bf16.msra.mxu0 %v2795
  %3095 = vmatprep.subr.bf16.mxu0 %v2800
  %3096 = vmatpush1.bf16.msra.mxu0 %v2799
  %3097 = vmatprep.subr.bf16.mxu0 %v2804
  %3098 = vmatpush1.bf16.msra.mxu0 %v2803
  %3099 = vmatprep.subr.bf16.mxu0 %v2808
  %3100 = vmatpush1.bf16.msra.mxu0 %v2807
  %3101 = vmatprep.subr.bf16.mxu0 %v2812
  %3102 = vmatpush1.bf16.msra.mxu0 %v2811
  %3103 = vmatprep.subr.bf16.mxu0 %v2816
  %3104 = vmatpush1.bf16.msra.mxu0 %v2815
  %3105 = vmatprep.subr.bf16.mxu0 0
  %3106 = vmatpush1.bf16.msra.mxu0 0
  %3107 = vmatprep.subr.bf16.mxu0 0
  %3108 = vmatpush1.bf16.msra.mxu0 0
  %3109 = vmatprep.subr.bf16.mxu0 0
  %3110 = vmatpush1.bf16.msra.mxu0 0
  %3111 = vmatprep.subr.bf16.mxu0 0
  %3112 = vmatpush1.bf16.msra.mxu0 0
  %3113 = vmatprep.subr.bf16.mxu0 0
  %3114 = vmatpush1.bf16.msra.mxu0 0
  %3115 = vmatprep.subr.bf16.mxu0 0
  %3116 = vmatpush1.bf16.msra.mxu0 0
  %3117 = vmatprep.subr.bf16.mxu0 0
  %3118 = vmatpush1.bf16.msra.mxu0 0
  %3119 = vmatprep.subr.bf16.mxu0 0
  %3120 = vmatpush1.bf16.msra.mxu0 0
  %3121 = vmatprep.mubr.bf16.mxu0 0
  %3122 = vmatmul.mubr.bf16.gmra.mrb[0].mxu0 %v3088
  %v3123 = vpop.f32.mrb[0].mxu0
  %v3124 = vadd.f32 0.0, %v3123
  %v3125 = vpop.f32.mrb[0].mxu0
  %v3126 = vadd.f32 0.0, %v3125
  %v3127 = vpop.f32.mrb[0].mxu0
  %v3128 = vpop.f32.mrb[0].mxu0
  %3129 = vdwg.mxu0
  %3130 = vmatprep.subr.bf16.mxu0 %v2790
  %3131 = vmatpush1.bf16.msra.mxu0 %v2789
  %3132 = vmatprep.subr.bf16.mxu0 %v2794
  %3133 = vmatpush1.bf16.msra.mxu0 %v2793
  %3134 = vmatprep.subr.bf16.mxu0 %v2798
  %3135 = vmatpush1.bf16.msra.mxu0 %v2797
  %3136 = vmatprep.subr.bf16.mxu0 %v2802
  %3137 = vmatpush1.bf16.msra.mxu0 %v2801
  %3138 = vmatprep.subr.bf16.mxu0 %v2806
  %3139 = vmatpush1.bf16.msra.mxu0 %v2805
  %3140 = vmatprep.subr.bf16.mxu0 %v2810
  %3141 = vmatpush1.bf16.msra.mxu0 %v2809
  %3142 = vmatprep.subr.bf16.mxu0 %v2814
  %3143 = vmatpush1.bf16.msra.mxu0 %v2813
  %3144 = vmatprep.subr.bf16.mxu0 %v2818
  %3145 = vmatpush1.bf16.msra.mxu0 %v2817
  %3146 = vmatprep.subr.bf16.mxu0 0
  %3147 = vmatpush1.bf16.msra.mxu0 0
  %3148 = vmatprep.subr.bf16.mxu0 0
  %3149 = vmatpush1.bf16.msra.mxu0 0
  %3150 = vmatprep.subr.bf16.mxu0 0
  %3151 = vmatpush1.bf16.msra.mxu0 0
  %3152 = vmatprep.subr.bf16.mxu0 0
  %3153 = vmatpush1.bf16.msra.mxu0 0
  %3154 = vmatprep.subr.bf16.mxu0 0
  %3155 = vmatpush1.bf16.msra.mxu0 0
  %3156 = vmatprep.subr.bf16.mxu0 0
  %3157 = vmatpush1.bf16.msra.mxu0 0
  %3158 = vmatprep.subr.bf16.mxu0 0
  %3159 = vmatpush1.bf16.msra.mxu0 0
  %3160 = vmatprep.subr.bf16.mxu0 0
  %3161 = vmatpush1.bf16.msra.mxu0 0
  %3162 = vmatprep.mubr.bf16.mxu0 0
  %3163 = vmatmul.mubr.bf16.gmra.mrb[0].mxu0 %v3088
  %v3164 = vpop.f32.mrb[0].mxu0
  %v3165 = vadd.f32 0.0, %v3164
  %v3166 = vpop.f32.mrb[0].mxu0
  %v3167 = vadd.f32 0.0, %v3166
  %v3168 = vpop.f32.mrb[0].mxu0
  %v3169 = vpop.f32.mrb[0].mxu0
  %3170 = vdwg.mxu0
  %v3171 = vadd.f32 %v3083, %v3124
  %v3172 = vadd.f32 %v3084, %v3126
  %v3173 = vadd.f32 %v3085, %v3165
  %v3174 = vadd.f32 %v3086, %v3167
  %v3175 = vxor.u32 %v3171, 2147483648
  %v3176 = vmul.f32 %v3175, 1.442695
  %v3177 = vpow.pop %v3176
  %v3178 = vadd.f32 %v3177, 1.0
  %v3179 = vrcp.pop %v3178
  %v3180 = vmul.f32 1.0, %v3179
  %v3181 = vxor.u32 %v3172, 2147483648
  %v3182 = vmul.f32 %v3181, 1.442695
  %v3183 = vpow.pop %v3182
  %v3184 = vadd.f32 %v3183, 1.0
  %v3185 = vrcp.pop %v3184
  %v3186 = vmul.f32 1.0, %v3185
  %v3187 = vtanh.pop %v3173
  %v3188 = vxor.u32 %v3174, 2147483648
  %v3189 = vmul.f32 %v3188, 1.442695
  %v3190 = vpow.pop %v3189
  %v3191 = vadd.f32 %v3190, 1.0
  %v3192 = vrcp.pop %v3191
  %v3193 = vmul.f32 1.0, %v3192
  %v3194 = vld [vmem:[#allocation4] sm:$0xff]
  %v3195 = vmul.f32 %v3186, %v3194
  %v3196 = vmul.f32 %v3180, %v3187
  %v3197 = vadd.f32 %v3195, %v3196
  %3198 = vst [vmem:[#allocation4] sm:$0xff] %v3197
  %v3199 = vtanh.pop %v3197
  %v3200 = vmul.f32 %v3193, %v3199
  %3201 = vst [vmem:[#allocation3] sm:$0xff] %v3200
  %v3202 = vld [vmem:[#allocation2 + $0x60] sm:$0xff]
  %v3203 = vld [vmem:[#allocation2 + $0x68] sm:$0xff]
  %v3204 = vld [vmem:[#allocation2 + $0x70] sm:$0xff]
  %v3205 = vld [vmem:[#allocation2 + $0x78] sm:$0xff]
  %v3206 = vld [vmem:[#allocation3] sm:$0xff]
  %v3207 = vpack.c.bf16 %v3206, %v3206
  %3208 = vmatprep.subr.bf16.mxu0 %v2788
  %3209 = vmatpush1.bf16.msra.mxu0 %v2787
  %3210 = vmatprep.subr.bf16.mxu0 %v2792
  %3211 = vmatpush1.bf16.msra.mxu0 %v2791
  %3212 = vmatprep.subr.bf16.mxu0 %v2796
  %3213 = vmatpush1.bf16.msra.mxu0 %v2795
  %3214 = vmatprep.subr.bf16.mxu0 %v2800
  %3215 = vmatpush1.bf16.msra.mxu0 %v2799
  %3216 = vmatprep.subr.bf16.mxu0 %v2804
  %3217 = vmatpush1.bf16.msra.mxu0 %v2803
  %3218 = vmatprep.subr.bf16.mxu0 %v2808
  %3219 = vmatpush1.bf16.msra.mxu0 %v2807
  %3220 = vmatprep.subr.bf16.mxu0 %v2812
  %3221 = vmatpush1.bf16.msra.mxu0 %v2811
  %3222 = vmatprep.subr.bf16.mxu0 %v2816
  %3223 = vmatpush1.bf16.msra.mxu0 %v2815
  %3224 = vmatprep.subr.bf16.mxu0 0
  %3225 = vmatpush1.bf16.msra.mxu0 0
  %3226 = vmatprep.subr.bf16.mxu0 0
  %3227 = vmatpush1.bf16.msra.mxu0 0
  %3228 = vmatprep.subr.bf16.mxu0 0
  %3229 = vmatpush1.bf16.msra.mxu0 0
  %3230 = vmatprep.subr.bf16.mxu0 0
  %3231 = vmatpush1.bf16.msra.mxu0 0
  %3232 = vmatprep.subr.bf16.mxu0 0
  %3233 = vmatpush1.bf16.msra.mxu0 0
  %3234 = vmatprep.subr.bf16.mxu0 0
  %3235 = vmatpush1.bf16.msra.mxu0 0
  %3236 = vmatprep.subr.bf16.mxu0 0
  %3237 = vmatpush1.bf16.msra.mxu0 0
  %3238 = vmatprep.subr.bf16.mxu0 0
  %3239 = vmatpush1.bf16.msra.mxu0 0
  %3240 = vmatprep.mubr.bf16.mxu0 0
  %3241 = vmatmul.mubr.bf16.gmra.mrb[0].mxu0 %v3207
  %v3242 = vpop.f32.mrb[0].mxu0
  %v3243 = vadd.f32 0.0, %v3242
  %v3244 = vpop.f32.mrb[0].mxu0
  %v3245 = vadd.f32 0.0, %v3244
  %v3246 = vpop.f32.mrb[0].mxu0
  %v3247 = vpop.f32.mrb[0].mxu0
  %3248 = vdwg.mxu0
  %3249 = vmatprep.subr.bf16.mxu0 %v2790
  %3250 = vmatpush1.bf16.msra.mxu0 %v2789
  %3251 = vmatprep.subr.bf16.mxu0 %v2794
  %3252 = vmatpush1.bf16.msra.mxu0 %v2793
  %3253 = vmatprep.subr.bf16.mxu0 %v2798
  %3254 = vmatpush1.bf16.msra.mxu0 %v2797
  %3255 = vmatprep.subr.bf16.mxu0 %v2802
  %3256 = vmatpush1.bf16.msra.mxu0 %v2801
  %3257 = vmatprep.subr.bf16.mxu0 %v2806
  %3258 = vmatpush1.bf16.msra.mxu0 %v2805
  %3259 = vmatprep.subr.bf16.mxu0 %v2810
  %3260 = vmatpush1.bf16.msra.mxu0 %v2809
  %3261 = vmatprep.subr.bf16.mxu0 %v2814
  %3262 = vmatpush1.bf16.msra.mxu0 %v2813
  %3263 = vmatprep.subr.bf16.mxu0 %v2818
  %3264 = vmatpush1.bf16.msra.mxu0 %v2817
  %3265 = vmatprep.subr.bf16.mxu0 0
  %3266 = vmatpush1.bf16.msra.mxu0 0
  %3267 = vmatprep.subr.bf16.mxu0 0
  %3268 = vmatpush1.bf16.msra.mxu0 0
  %3269 = vmatprep.subr.bf16.mxu0 0
  %3270 = vmatpush1.bf16.msra.mxu0 0
  %3271 = vmatprep.subr.bf16.mxu0 0
  %3272 = vmatpush1.bf16.msra.mxu0 0
  %3273 = vmatprep.subr.bf16.mxu0 0
  %3274 = vmatpush1.bf16.msra.mxu0 0
  %3275 = vmatprep.subr.bf16.mxu0 0
  %3276 = vmatpush1.bf16.msra.mxu0 0
  %3277 = vmatprep.subr.bf16.mxu0 0
  %3278 = vmatpush1.bf16.msra.mxu0 0
  %3279 = vmatprep.subr.bf16.mxu0 0
  %3280 = vmatpush1.bf16.msra.mxu0 0
  %3281 = vmatprep.mubr.bf16.mxu0 0
  %3282 = vmatmul.mubr.bf16.gmra.mrb[0].mxu0 %v3207
  %v3283 = vpop.f32.mrb[0].mxu0
  %v3284 = vadd.f32 0.0, %v3283
  %v3285 = vpop.f32.mrb[0].mxu0
  %v3286 = vadd.f32 0.0, %v3285
  %v3287 = vpop.f32.mrb[0].mxu0
  %v3288 = vpop.f32.mrb[0].mxu0
  %3289 = vdwg.mxu0
  %v3290 = vadd.f32 %v3202, %v3243
  %v3291 = vadd.f32 %v3203, %v3245
  %v3292 = vadd.f32 %v3204, %v3284
  %v3293 = vadd.f32 %v3205, %v3286
  %v3294 = vxor.u32 %v3290, 2147483648
  %v3295 = vmul.f32 %v3294, 1.442695
  %v3296 = vpow.pop %v3295
  %v3297 = vadd.f32 %v3296, 1.0
  %v3298 = vrcp.pop %v3297
  %v3299 = vmul.f32 1.0, %v3298
  %v3300 = vxor.u32 %v3291, 2147483648
  %v3301 = vmul.f32 %v3300, 1.442695
  %v3302 = vpow.pop %v3301
  %v3303 = vadd.f32 %v3302, 1.0
  %v3304 = vrcp.pop %v3303
  %v3305 = vmul.f32 1.0, %v3304
  %v3306 = vtanh.pop %v3292
  %v3307 = vxor.u32 %v3293, 2147483648
  %v3308 = vmul.f32 %v3307, 1.442695
  %v3309 = vpow.pop %v3308
  %v3310 = vadd.f32 %v3309, 1.0
  %v3311 = vrcp.pop %v3310
  %v3312 = vmul.f32 1.0, %v3311
  %v3313 = vld [vmem:[#allocation4] sm:$0xff]
  %v3314 = vmul.f32 %v3305, %v3313
  %v3315 = vmul.f32 %v3299, %v3306
  %v3316 = vadd.f32 %v3314, %v3315
  %3317 = vst [vmem:[#allocation4] sm:$0xff] %v3316
  %v3318 = vtanh.pop %v3316
  %v3319 = vmul.f32 %v3312, %v3318
  %3320 = vst [vmem:[#allocation3] sm:$0xff] %v3319
  %v3321 = vld [vmem:[#allocation2 + $0x80] sm:$0xff]
  %v3322 = vld [vmem:[#allocation2 + $0x88] sm:$0xff]
  %v3323 = vld [vmem:[#allocation2 + $0x90] sm:$0xff]
  %v3324 = vld [vmem:[#allocation2 + $0x98] sm:$0xff]
  %v3325 = vld [vmem:[#allocation3] sm:$0xff]
  %v3326 = vpack.c.bf16 %v3325, %v3325
  %3327 = vmatprep.subr.bf16.mxu0 %v2788
  %3328 = vmatpush1.bf16.msra.mxu0 %v2787
  %3329 = vmatprep.subr.bf16.mxu0 %v2792
  %3330 = vmatpush1.bf16.msra.mxu0 %v2791
  %3331 = vmatprep.subr.bf16.mxu0 %v2796
  %3332 = vmatpush1.bf16.msra.mxu0 %v2795
  %3333 = vmatprep.subr.bf16.mxu0 %v2800
  %3334 = vmatpush1.bf16.msra.mxu0 %v2799
  %3335 = vmatprep.subr.bf16.mxu0 %v2804
  %3336 = vmatpush1.bf16.msra.mxu0 %v2803
  %3337 = vmatprep.subr.bf16.mxu0 %v2808
  %3338 = vmatpush1.bf16.msra.mxu0 %v2807
  %3339 = vmatprep.subr.bf16.mxu0 %v2812
  %3340 = vmatpush1.bf16.msra.mxu0 %v2811
  %3341 = vmatprep.subr.bf16.mxu0 %v2816
  %3342 = vmatpush1.bf16.msra.mxu0 %v2815
  %3343 = vmatprep.subr.bf16.mxu0 0
  %3344 = vmatpush1.bf16.msra.mxu0 0
  %3345 = vmatprep.subr.bf16.mxu0 0
  %3346 = vmatpush1.bf16.msra.mxu0 0
  %3347 = vmatprep.subr.bf16.mxu0 0
  %3348 = vmatpush1.bf16.msra.mxu0 0
  %3349 = vmatprep.subr.bf16.mxu0 0
  %3350 = vmatpush1.bf16.msra.mxu0 0
  %3351 = vmatprep.subr.bf16.mxu0 0
  %3352 = vmatpush1.bf16.msra.mxu0 0
  %3353 = vmatprep.subr.bf16.mxu0 0
  %3354 = vmatpush1.bf16.msra.mxu0 0
  %3355 = vmatprep.subr.bf16.mxu0 0
  %3356 = vmatpush1.bf16.msra.mxu0 0
  %3357 = vmatprep.subr.bf16.mxu0 0
  %3358 = vmatpush1.bf16.msra.mxu0 0
  %3359 = vmatprep.mubr.bf16.mxu0 0
  %3360 = vmatmul.mubr.bf16.gmra.mrb[0].mxu0 %v3326
  %v3361 = vpop.f32.mrb[0].mxu0
  %v3362 = vadd.f32 0.0, %v3361
  %v3363 = vpop.f32.mrb[0].mxu0
  %v3364 = vadd.f32 0.0, %v3363
  %v3365 = vpop.f32.mrb[0].mxu0
  %v3366 = vpop.f32.mrb[0].mxu0
  %3367 = vdwg.mxu0
  %3368 = vmatprep.subr.bf16.mxu0 %v2790
  %3369 = vmatpush1.bf16.msra.mxu0 %v2789
  %3370 = vmatprep.subr.bf16.mxu0 %v2794
  %3371 = vmatpush1.bf16.msra.mxu0 %v2793
  %3372 = vmatprep.subr.bf16.mxu0 %v2798
  %3373 = vmatpush1.bf16.msra.mxu0 %v2797
  %3374 = vmatprep.subr.bf16.mxu0 %v2802
  %3375 = vmatpush1.bf16.msra.mxu0 %v2801
  %3376 = vmatprep.subr.bf16.mxu0 %v2806
  %3377 = vmatpush1.bf16.msra.mxu0 %v2805
  %3378 = vmatprep.subr.bf16.mxu0 %v2810
  %3379 = vmatpush1.bf16.msra.mxu0 %v2809
  %3380 = vmatprep.subr.bf16.mxu0 %v2814
  %3381 = vmatpush1.bf16.msra.mxu0 %v2813
  %3382 = vmatprep.subr.bf16.mxu0 %v2818
  %3383 = vmatpush1.bf16.msra.mxu0 %v2817
  %3384 = vmatprep.subr.bf16.mxu0 0
  %3385 = vmatpush1.bf16.msra.mxu0 0
  %3386 = vmatprep.subr.bf16.mxu0 0
  %3387 = vmatpush1.bf16.msra.mxu0 0
  %3388 = vmatprep.subr.bf16.mxu0 0
  %3389 = vmatpush1.bf16.msra.mxu0 0
  %3390 = vmatprep.subr.bf16.mxu0 0
  %3391 = vmatpush1.bf16.msra.mxu0 0
  %3392 = vmatprep.subr.bf16.mxu0 0
  %3393 = vmatpush1.bf16.msra.mxu0 0
  %3394 = vmatprep.subr.bf16.mxu0 0
  %3395 = vmatpush1.bf16.msra.mxu0 0
  %3396 = vmatprep.subr.bf16.mxu0 0
  %3397 = vmatpush1.bf16.msra.mxu0 0
  %3398 = vmatprep.subr.bf16.mxu0 0
  %3399 = vmatpush1.bf16.msra.mxu0 0
  %3400 = vmatprep.mubr.bf16.mxu0 0
  %3401 = vmatmul.mubr.bf16.gmra.mrb[0].mxu0 %v3326
  %v3402 = vpop.f32.mrb[0].mxu0
  %v3403 = vadd.f32 0.0, %v3402
  %v3404 = vpop.f32.mrb[0].mxu0
  %v3405 = vadd.f32 0.0, %v3404
  %v3406 = vpop.f32.mrb[0].mxu0
  %v3407 = vpop.f32.mrb[0].mxu0
  %3408 = vdwg.mxu0
  %v3409 = vadd.f32 %v3321, %v3362
  %v3410 = vadd.f32 %v3322, %v3364
  %v3411 = vadd.f32 %v3323, %v3403
  %v3412 = vadd.f32 %v3324, %v3405
  %v3413 = vxor.u32 %v3409, 2147483648
  %v3414 = vmul.f32 %v3413, 1.442695
  %v3415 = vpow.pop %v3414
  %v3416 = vadd.f32 %v3415, 1.0
  %v3417 = vrcp.pop %v3416
  %v3418 = vmul.f32 1.0, %v3417
  %v3419 = vxor.u32 %v3410, 2147483648
  %v3420 = vmul.f32 %v3419, 1.442695
  %v3421 = vpow.pop %v3420
  %v3422 = vadd.f32 %v3421, 1.0
  %v3423 = vrcp.pop %v3422
  %v3424 = vmul.f32 1.0, %v3423
  %v3425 = vtanh.pop %v3411
  %v3426 = vxor.u32 %v3412, 2147483648
  %v3427 = vmul.f32 %v3426, 1.442695
  %v3428 = vpow.pop %v3427
  %v3429 = vadd.f32 %v3428, 1.0
  %v3430 = vrcp.pop %v3429
  %v3431 = vmul.f32 1.0, %v3430
  %v3432 = vld [vmem:[#allocation4] sm:$0xff]
  %v3433 = vmul.f32 %v3424, %v3432
  %v3434 = vmul.f32 %v3418, %v3425
  %v3435 = vadd.f32 %v3433, %v3434
  %3436 = vst [vmem:[#allocation4] sm:$0xff] %v3435
  %v3437 = vtanh.pop %v3435
  %v3438 = vmul.f32 %v3431, %v3437
  %3439 = vst [vmem:[#allocation3] sm:$0xff] %v3438
  %v3440 = vld [vmem:[#allocation2 + $0xa0] sm:$0xff]
  %v3441 = vld [vmem:[#allocation2 + $0xa8] sm:$0xff]
  %v3442 = vld [vmem:[#allocation2 + $0xb0] sm:$0xff]
  %v3443 = vld [vmem:[#allocation2 + $0xb8] sm:$0xff]
  %v3444 = vld [vmem:[#allocation3] sm:$0xff]
  %v3445 = vpack.c.bf16 %v3444, %v3444
  %3446 = vmatprep.subr.bf16.mxu0 %v2788
  %3447 = vmatpush1.bf16.msra.mxu0 %v2787
  %3448 = vmatprep.subr.bf16.mxu0 %v2792
  %3449 = vmatpush1.bf16.msra.mxu0 %v2791
  %3450 = vmatprep.subr.bf16.mxu0 %v2796
  %3451 = vmatpush1.bf16.msra.mxu0 %v2795
  %3452 = vmatprep.subr.bf16.mxu0 %v2800
  %3453 = vmatpush1.bf16.msra.mxu0 %v2799
  %3454 = vmatprep.subr.bf16.mxu0 %v2804
  %3455 = vmatpush1.bf16.msra.mxu0 %v2803
  %3456 = vmatprep.subr.bf16.mxu0 %v2808
  %3457 = vmatpush1.bf16.msra.mxu0 %v2807
  %3458 = vmatprep.subr.bf16.mxu0 %v2812
  %3459 = vmatpush1.bf16.msra.mxu0 %v2811
  %3460 = vmatprep.subr.bf16.mxu0 %v2816
  %3461 = vmatpush1.bf16.msra.mxu0 %v2815
  %3462 = vmatprep.subr.bf16.mxu0 0
  %3463 = vmatpush1.bf16.msra.mxu0 0
  %3464 = vmatprep.subr.bf16.mxu0 0
  %3465 = vmatpush1.bf16.msra.mxu0 0
  %3466 = vmatprep.subr.bf16.mxu0 0
  %3467 = vmatpush1.bf16.msra.mxu0 0
  %3468 = vmatprep.subr.bf16.mxu0 0
  %3469 = vmatpush1.bf16.msra.mxu0 0
  %3470 = vmatprep.subr.bf16.mxu0 0
  %3471 = vmatpush1.bf16.msra.mxu0 0
  %3472 = vmatprep.subr.bf16.mxu0 0
  %3473 = vmatpush1.bf16.msra.mxu0 0
  %3474 = vmatprep.subr.bf16.mxu0 0
  %3475 = vmatpush1.bf16.msra.mxu0 0
  %3476 = vmatprep.subr.bf16.mxu0 0
  %3477 = vmatpush1.bf16.msra.mxu0 0
  %3478 = vmatprep.mubr.bf16.mxu0 0
  %3479 = vmatmul.mubr.bf16.gmra.mrb[0].mxu0 %v3445
  %v3480 = vpop.f32.mrb[0].mxu0
  %v3481 = vadd.f32 0.0, %v3480
  %v3482 = vpop.f32.mrb[0].mxu0
  %v3483 = vadd.f32 0.0, %v3482
  %v3484 = vpop.f32.mrb[0].mxu0
  %v3485 = vpop.f32.mrb[0].mxu0
  %3486 = vdwg.mxu0
  %3487 = vmatprep.subr.bf16.mxu0 %v2790
  %3488 = vmatpush1.bf16.msra.mxu0 %v2789
  %3489 = vmatprep.subr.bf16.mxu0 %v2794
  %3490 = vmatpush1.bf16.msra.mxu0 %v2793
  %3491 = vmatprep.subr.bf16.mxu0 %v2798
  %3492 = vmatpush1.bf16.msra.mxu0 %v2797
  %3493 = vmatprep.subr.bf16.mxu0 %v2802
  %3494 = vmatpush1.bf16.msra.mxu0 %v2801
  %3495 = vmatprep.subr.bf16.mxu0 %v2806
  %3496 = vmatpush1.bf16.msra.mxu0 %v2805
  %3497 = vmatprep.subr.bf16.mxu0 %v2810
  %3498 = vmatpush1.bf16.msra.mxu0 %v2809
  %3499 = vmatprep.subr.bf16.mxu0 %v2814
  %3500 = vmatpush1.bf16.msra.mxu0 %v2813
  %3501 = vmatprep.subr.bf16.mxu0 %v2818
  %3502 = vmatpush1.bf16.msra.mxu0 %v2817
  %3503 = vmatprep.subr.bf16.mxu0 0
  %3504 = vmatpush1.bf16.msra.mxu0 0
  %3505 = vmatprep.subr.bf16.mxu0 0
  %3506 = vmatpush1.bf16.msra.mxu0 0
  %3507 = vmatprep.subr.bf16.mxu0 0
  %3508 = vmatpush1.bf16.msra.mxu0 0
  %3509 = vmatprep.subr.bf16.mxu0 0
  %3510 = vmatpush1.bf16.msra.mxu0 0
  %3511 = vmatprep.subr.bf16.mxu0 0
  %3512 = vmatpush1.bf16.msra.mxu0 0
  %3513 = vmatprep.subr.bf16.mxu0 0
  %3514 = vmatpush1.bf16.msra.mxu0 0
  %3515 = vmatprep.subr.bf16.mxu0 0
  %3516 = vmatpush1.bf16.msra.mxu0 0
  %3517 = vmatprep.subr.bf16.mxu0 0
  %3518 = vmatpush1.bf16.msra.mxu0 0
  %3519 = vmatprep.mubr.bf16.mxu0 0
  %3520 = vmatmul.mubr.bf16.gmra.mrb[0].mxu0 %v3445
  %v3521 = vpop.f32.mrb[0].mxu0
  %v3522 = vadd.f32 0.0, %v3521
  %v3523 = vpop.f32.mrb[0].mxu0
  %v3524 = vadd.f32 0.0, %v3523
  %v3525 = vpop.f32.mrb[0].mxu0
  %v3526 = vpop.f32.mrb[0].mxu0
  %3527 = vdwg.mxu0
  %v3528 = vadd.f32 %v3440, %v3481
  %v3529 = vadd.f32 %v3441, %v3483
  %v3530 = vadd.f32 %v3442, %v3522
  %v3531 = vadd.f32 %v3443, %v3524
  %v3532 = vxor.u32 %v3528, 2147483648
  %v3533 = vmul.f32 %v3532, 1.442695
  %v3534 = vpow.pop %v3533
  %v3535 = vadd.f32 %v3534, 1.0
  %v3536 = vrcp.pop %v3535
  %v3537 = vmul.f32 1.0, %v3536
  %v3538 = vxor.u32 %v3529, 2147483648
  %v3539 = vmul.f32 %v3538, 1.442695
  %v3540 = vpow.pop %v3539
  %v3541 = vadd.f32 %v3540, 1.0
  %v3542 = vrcp.pop %v3541
  %v3543 = vmul.f32 1.0, %v3542
  %v3544 = vtanh.pop %v3530
  %v3545 = vxor.u32 %v3531, 2147483648
  %v3546 = vmul.f32 %v3545, 1.442695
  %v3547 = vpow.pop %v3546
  %v3548 = vadd.f32 %v3547, 1.0
  %v3549 = vrcp.pop %v3548
  %v3550 = vmul.f32 1.0, %v3549
  %v3551 = vld [vmem:[#allocation4] sm:$0xff]
  %v3552 = vmul.f32 %v3543, %v3551
  %v3553 = vmul.f32 %v3537, %v3544
  %v3554 = vadd.f32 %v3552, %v3553
  %3555 = vst [vmem:[#allocation4] sm:$0xff] %v3554
  %v3556 = vtanh.pop %v3554
  %v3557 = vmul.f32 %v3550, %v3556
  %3558 = vst [vmem:[#allocation3] sm:$0xff] %v3557
  %v3559 = vld [vmem:[#allocation2 + $0xc0] sm:$0xff]
  %v3560 = vld [vmem:[#allocation2 + $0xc8] sm:$0xff]
  %v3561 = vld [vmem:[#allocation2 + $0xd0] sm:$0xff]
  %v3562 = vld [vmem:[#allocation2 + $0xd8] sm:$0xff]
  %v3563 = vld [vmem:[#allocation3] sm:$0xff]
  %v3564 = vpack.c.bf16 %v3563, %v3563
  %3565 = vmatprep.subr.bf16.mxu0 %v2788
  %3566 = vmatpush1.bf16.msra.mxu0 %v2787
  %3567 = vmatprep.subr.bf16.mxu0 %v2792
  %3568 = vmatpush1.bf16.msra.mxu0 %v2791
  %3569 = vmatprep.subr.bf16.mxu0 %v2796
  %3570 = vmatpush1.bf16.msra.mxu0 %v2795
  %3571 = vmatprep.subr.bf16.mxu0 %v2800
  %3572 = vmatpush1.bf16.msra.mxu0 %v2799
  %3573 = vmatprep.subr.bf16.mxu0 %v2804
  %3574 = vmatpush1.bf16.msra.mxu0 %v2803
  %3575 = vmatprep.subr.bf16.mxu0 %v2808
  %3576 = vmatpush1.bf16.msra.mxu0 %v2807
  %3577 = vmatprep.subr.bf16.mxu0 %v2812
  %3578 = vmatpush1.bf16.msra.mxu0 %v2811
  %3579 = vmatprep.subr.bf16.mxu0 %v2816
  %3580 = vmatpush1.bf16.msra.mxu0 %v2815
  %3581 = vmatprep.subr.bf16.mxu0 0
  %3582 = vmatpush1.bf16.msra.mxu0 0
  %3583 = vmatprep.subr.bf16.mxu0 0
  %3584 = vmatpush1.bf16.msra.mxu0 0
  %3585 = vmatprep.subr.bf16.mxu0 0
  %3586 = vmatpush1.bf16.msra.mxu0 0
  %3587 = vmatprep.subr.bf16.mxu0 0
  %3588 = vmatpush1.bf16.msra.mxu0 0
  %3589 = vmatprep.subr.bf16.mxu0 0
  %3590 = vmatpush1.bf16.msra.mxu0 0
  %3591 = vmatprep.subr.bf16.mxu0 0
  %3592 = vmatpush1.bf16.msra.mxu0 0
  %3593 = vmatprep.subr.bf16.mxu0 0
  %3594 = vmatpush1.bf16.msra.mxu0 0
  %3595 = vmatprep.subr.bf16.mxu0 0
  %3596 = vmatpush1.bf16.msra.mxu0 0
  %3597 = vmatprep.mubr.bf16.mxu0 0
  %3598 = vmatmul.mubr.bf16.gmra.mrb[0].mxu0 %v3564
  %v3599 = vpop.f32.mrb[0].mxu0
  %v3600 = vadd.f32 0.0, %v3599
  %v3601 = vpop.f32.mrb[0].mxu0
  %v3602 = vadd.f32 0.0, %v3601
  %v3603 = vpop.f32.mrb[0].mxu0
  %v3604 = vpop.f32.mrb[0].mxu0
  %3605 = vdwg.mxu0
  %3606 = vmatprep.subr.bf16.mxu0 %v2790
  %3607 = vmatpush1.bf16.msra.mxu0 %v2789
  %3608 = vmatprep.subr.bf16.mxu0 %v2794
  %3609 = vmatpush1.bf16.msra.mxu0 %v2793
  %3610 = vmatprep.subr.bf16.mxu0 %v2798
  %3611 = vmatpush1.bf16.msra.mxu0 %v2797
  %3612 = vmatprep.subr.bf16.mxu0 %v2802
  %3613 = vmatpush1.bf16.msra.mxu0 %v2801
  %3614 = vmatprep.subr.bf16.mxu0 %v2806
  %3615 = vmatpush1.bf16.msra.mxu0 %v2805
  %3616 = vmatprep.subr.bf16.mxu0 %v2810
  %3617 = vmatpush1.bf16.msra.mxu0 %v2809
  %3618 = vmatprep.subr.bf16.mxu0 %v2814
  %3619 = vmatpush1.bf16.msra.mxu0 %v2813
  %3620 = vmatprep.subr.bf16.mxu0 %v2818
  %3621 = vmatpush1.bf16.msra.mxu0 %v2817
  %3622 = vmatprep.subr.bf16.mxu0 0
  %3623 = vmatpush1.bf16.msra.mxu0 0
  %3624 = vmatprep.subr.bf16.mxu0 0
  %3625 = vmatpush1.bf16.msra.mxu0 0
  %3626 = vmatprep.subr.bf16.mxu0 0
  %3627 = vmatpush1.bf16.msra.mxu0 0
  %3628 = vmatprep.subr.bf16.mxu0 0
  %3629 = vmatpush1.bf16.msra.mxu0 0
  %3630 = vmatprep.subr.bf16.mxu0 0
  %3631 = vmatpush1.bf16.msra.mxu0 0
  %3632 = vmatprep.subr.bf16.mxu0 0
  %3633 = vmatpush1.bf16.msra.mxu0 0
  %3634 = vmatprep.subr.bf16.mxu0 0
  %3635 = vmatpush1.bf16.msra.mxu0 0
  %3636 = vmatprep.subr.bf16.mxu0 0
  %3637 = vmatpush1.bf16.msra.mxu0 0
  %3638 = vmatprep.mubr.bf16.mxu0 0
  %3639 = vmatmul.mubr.bf16.gmra.mrb[0].mxu0 %v3564
  %v3640 = vpop.f32.mrb[0].mxu0
  %v3641 = vadd.f32 0.0, %v3640
  %v3642 = vpop.f32.mrb[0].mxu0
  %v3643 = vadd.f32 0.0, %v3642
  %v3644 = vpop.f32.mrb[0].mxu0
  %v3645 = vpop.f32.mrb[0].mxu0
  %3646 = vdwg.mxu0
  %v3647 = vadd.f32 %v3559, %v3600
  %v3648 = vadd.f32 %v3560, %v3602
  %v3649 = vadd.f32 %v3561, %v3641
  %v3650 = vadd.f32 %v3562, %v3643
  %v3651 = vxor.u32 %v3647, 2147483648
  %v3652 = vmul.f32 %v3651, 1.442695
  %v3653 = vpow.pop %v3652
  %v3654 = vadd.f32 %v3653, 1.0
  %v3655 = vrcp.pop %v3654
  %v3656 = vmul.f32 1.0, %v3655
  %v3657 = vxor.u32 %v3648, 2147483648
  %v3658 = vmul.f32 %v3657, 1.442695
  %v3659 = vpow.pop %v3658
  %v3660 = vadd.f32 %v3659, 1.0
  %v3661 = vrcp.pop %v3660
  %v3662 = vmul.f32 1.0, %v3661
  %v3663 = vtanh.pop %v3649
  %v3664 = vxor.u32 %v3650, 2147483648
  %v3665 = vmul.f32 %v3664, 1.442695
  %v3666 = vpow.pop %v3665
  %v3667 = vadd.f32 %v3666, 1.0
  %v3668 = vrcp.pop %v3667
  %v3669 = vmul.f32 1.0, %v3668
  %v3670 = vld [vmem:[#allocation4] sm:$0xff]
  %v3671 = vmul.f32 %v3662, %v3670
  %v3672 = vmul.f32 %v3656, %v3663
  %v3673 = vadd.f32 %v3671, %v3672
  %3674 = vst [vmem:[#allocation4] sm:$0xff] %v3673
  %v3675 = vtanh.pop %v3673
  %v3676 = vmul.f32 %v3669, %v3675
  %3677 = vst [vmem:[#allocation3] sm:$0xff] %v3676
  %v3678 = vld [vmem:[#allocation2 + $0xe0] sm:$0xff]
  %v3679 = vld [vmem:[#allocation2 + $0xe8] sm:$0xff]
  %v3680 = vld [vmem:[#allocation2 + $0xf0] sm:$0xff]
  %v3681 = vld [vmem:[#allocation2 + $0xf8] sm:$0xff]
  %v3682 = vld [vmem:[#allocation3] sm:$0xff]
  %v3683 = vpack.c.bf16 %v3682, %v3682
  %3684 = vmatprep.subr.bf16.mxu0 %v2788
  %3685 = vmatpush1.bf16.msra.mxu0 %v2787
  %3686 = vmatprep.subr.bf16.mxu0 %v2792
  %3687 = vmatpush1.bf16.msra.mxu0 %v2791
  %3688 = vmatprep.subr.bf16.mxu0 %v2796
  %3689 = vmatpush1.bf16.msra.mxu0 %v2795
  %3690 = vmatprep.subr.bf16.mxu0 %v2800
  %3691 = vmatpush1.bf16.msra.mxu0 %v2799
  %3692 = vmatprep.subr.bf16.mxu0 %v2804
  %3693 = vmatpush1.bf16.msra.mxu0 %v2803
  %3694 = vmatprep.subr.bf16.mxu0 %v2808
  %3695 = vmatpush1.bf16.msra.mxu0 %v2807
  %3696 = vmatprep.subr.bf16.mxu0 %v2812
  %3697 = vmatpush1.bf16.msra.mxu0 %v2811
  %3698 = vmatprep.subr.bf16.mxu0 %v2816
  %3699 = vmatpush1.bf16.msra.mxu0 %v2815
  %3700 = vmatprep.subr.bf16.mxu0 0
  %3701 = vmatpush1.bf16.msra.mxu0 0
  %3702 = vmatprep.subr.bf16.mxu0 0
  %3703 = vmatpush1.bf16.msra.mxu0 0
  %3704 = vmatprep.subr.bf16.mxu0 0
  %3705 = vmatpush1.bf16.msra.mxu0 0
  %3706 = vmatprep.subr.bf16.mxu0 0
  %3707 = vmatpush1.bf16.msra.mxu0 0
  %3708 = vmatprep.subr.bf16.mxu0 0
  %3709 = vmatpush1.bf16.msra.mxu0 0
  %3710 = vmatprep.subr.bf16.mxu0 0
  %3711 = vmatpush1.bf16.msra.mxu0 0
  %3712 = vmatprep.subr.bf16.mxu0 0
  %3713 = vmatpush1.bf16.msra.mxu0 0
  %3714 = vmatprep.subr.bf16.mxu0 0
  %3715 = vmatpush1.bf16.msra.mxu0 0
  %3716 = vmatprep.mubr.bf16.mxu0 0
  %3717 = vmatmul.mubr.bf16.gmra.mrb[0].mxu0 %v3683
  %v3718 = vpop.f32.mrb[0].mxu0
  %v3719 = vadd.f32 0.0, %v3718
  %v3720 = vpop.f32.mrb[0].mxu0
  %v3721 = vadd.f32 0.0, %v3720
  %v3722 = vpop.f32.mrb[0].mxu0
  %v3723 = vpop.f32.mrb[0].mxu0
  %3724 = vdwg.mxu0
  %3725 = vmatprep.subr.bf16.mxu0 %v2790
  %3726 = vmatpush1.bf16.msra.mxu0 %v2789
  %3727 = vmatprep.subr.bf16.mxu0 %v2794
  %3728 = vmatpush1.bf16.msra.mxu0 %v2793
  %3729 = vmatprep.subr.bf16.mxu0 %v2798
  %3730 = vmatpush1.bf16.msra.mxu0 %v2797
  %3731 = vmatprep.subr.bf16.mxu0 %v2802
  %3732 = vmatpush1.bf16.msra.mxu0 %v2801
  %3733 = vmatprep.subr.bf16.mxu0 %v2806
  %3734 = vmatpush1.bf16.msra.mxu0 %v2805
  %3735 = vmatprep.subr.bf16.mxu0 %v2810
  %3736 = vmatpush1.bf16.msra.mxu0 %v2809
  %3737 = vmatprep.subr.bf16.mxu0 %v2814
  %3738 = vmatpush1.bf16.msra.mxu0 %v2813
  %3739 = vmatprep.subr.bf16.mxu0 %v2818
  %3740 = vmatpush1.bf16.msra.mxu0 %v2817
  %3741 = vmatprep.subr.bf16.mxu0 0
  %3742 = vmatpush1.bf16.msra.mxu0 0
  %3743 = vmatprep.subr.bf16.mxu0 0
  %3744 = vmatpush1.bf16.msra.mxu0 0
  %3745 = vmatprep.subr.bf16.mxu0 0
  %3746 = vmatpush1.bf16.msra.mxu0 0
  %3747 = vmatprep.subr.bf16.mxu0 0
  %3748 = vmatpush1.bf16.msra.mxu0 0
  %3749 = vmatprep.subr.bf16.mxu0 0
  %3750 = vmatpush1.bf16.msra.mxu0 0
  %3751 = vmatprep.subr.bf16.mxu0 0
  %3752 = vmatpush1.bf16.msra.mxu0 0
  %3753 = vmatprep.subr.bf16.mxu0 0
  %3754 = vmatpush1.bf16.msra.mxu0 0
  %3755 = vmatprep.subr.bf16.mxu0 0
  %3756 = vmatpush1.bf16.msra.mxu0 0
  %3757 = vmatprep.mubr.bf16.mxu0 0
  %3758 = vmatmul.mubr.bf16.gmra.mrb[0].mxu0 %v3683
  %v3759 = vpop.f32.mrb[0].mxu0
  %v3760 = vadd.f32 0.0, %v3759
  %v3761 = vpop.f32.mrb[0].mxu0
  %v3762 = vadd.f32 0.0, %v3761
  %v3763 = vpop.f32.mrb[0].mxu0
  %v3764 = vpop.f32.mrb[0].mxu0
  %3765 = vdwg.mxu0
  %v3766 = vadd.f32 %v3678, %v3719
  %v3767 = vadd.f32 %v3679, %v3721
  %v3768 = vadd.f32 %v3680, %v3760
  %v3769 = vadd.f32 %v3681, %v3762
  %v3770 = vxor.u32 %v3766, 2147483648
  %v3771 = vmul.f32 %v3770, 1.442695
  %v3772 = vpow.pop %v3771
  %v3773 = vadd.f32 %v3772, 1.0
  %v3774 = vrcp.pop %v3773
  %v3775 = vmul.f32 1.0, %v3774
  %v3776 = vxor.u32 %v3767, 2147483648
  %v3777 = vmul.f32 %v3776, 1.442695
  %v3778 = vpow.pop %v3777
  %v3779 = vadd.f32 %v3778, 1.0
  %v3780 = vrcp.pop %v3779
  %v3781 = vmul.f32 1.0, %v3780
  %v3782 = vtanh.pop %v3768
  %v3783 = vxor.u32 %v3769, 2147483648
  %v3784 = vmul.f32 %v3783, 1.442695
  %v3785 = vpow.pop %v3784
  %v3786 = vadd.f32 %v3785, 1.0
  %v3787 = vrcp.pop %v3786
  %v3788 = vmul.f32 1.0, %v3787
  %v3789 = vld [vmem:[#allocation4] sm:$0xff]
  %v3790 = vmul.f32 %v3781, %v3789
  %v3791 = vmul.f32 %v3775, %v3782
  %v3792 = vadd.f32 %v3790, %v3791
  %3793 = vst [vmem:[#allocation4] sm:$0xff] %v3792
  %v3794 = vtanh.pop %v3792
  %v3795 = vmul.f32 %v3788, %v3794
  %3796 = vst [vmem:[#allocation3] sm:$0xff] %v3795
  %v3797 = vld [vmem:[#allocation2 + $0x100] sm:$0xff]
  %v3798 = vld [vmem:[#allocation2 + $0x108] sm:$0xff]
  %v3799 = vld [vmem:[#allocation2 + $0x110] sm:$0xff]
  %v3800 = vld [vmem:[#allocation2 + $0x118] sm:$0xff]
  %v3801 = vld [vmem:[#allocation3] sm:$0xff]
  %v3802 = vpack.c.bf16 %v3801, %v3801
  %3803 = vmatprep.subr.bf16.mxu0 %v2788
  %3804 = vmatpush1.bf16.msra.mxu0 %v2787
  %3805 = vmatprep.subr.bf16.mxu0 %v2792
  %3806 = vmatpush1.bf16.msra.mxu0 %v2791
  %3807 = vmatprep.subr.bf16.mxu0 %v2796
  %3808 = vmatpush1.bf16.msra.mxu0 %v2795
  %3809 = vmatprep.subr.bf16.mxu0 %v2800
  %3810 = vmatpush1.bf16.msra.mxu0 %v2799
  %3811 = vmatprep.subr.bf16.mxu0 %v2804
  %3812 = vmatpush1.bf16.msra.mxu0 %v2803
  %3813 = vmatprep.subr.bf16.mxu0 %v2808
  %3814 = vmatpush1.bf16.msra.mxu0 %v2807
  %3815 = vmatprep.subr.bf16.mxu0 %v2812
  %3816 = vmatpush1.bf16.msra.mxu0 %v2811
  %3817 = vmatprep.subr.bf16.mxu0 %v2816
  %3818 = vmatpush1.bf16.msra.mxu0 %v2815
  %3819 = vmatprep.subr.bf16.mxu0 0
  %3820 = vmatpush1.bf16.msra.mxu0 0
  %3821 = vmatprep.subr.bf16.mxu0 0
  %3822 = vmatpush1.bf16.msra.mxu0 0
  %3823 = vmatprep.subr.bf16.mxu0 0
  %3824 = vmatpush1.bf16.msra.mxu0 0
  %3825 = vmatprep.subr.bf16.mxu0 0
  %3826 = vmatpush1.bf16.msra.mxu0 0
  %3827 = vmatprep.subr.bf16.mxu0 0
  %3828 = vmatpush1.bf16.msra.mxu0 0
  %3829 = vmatprep.subr.bf16.mxu0 0
  %3830 = vmatpush1.bf16.msra.mxu0 0
  %3831 = vmatprep.subr.bf16.mxu0 0
  %3832 = vmatpush1.bf16.msra.mxu0 0
  %3833 = vmatprep.subr.bf16.mxu0 0
  %3834 = vmatpush1.bf16.msra.mxu0 0
  %3835 = vmatprep.mubr.bf16.mxu0 0
  %3836 = vmatmul.mubr.bf16.gmra.mrb[0].mxu0 %v3802
  %v3837 = vpop.f32.mrb[0].mxu0
  %v3838 = vadd.f32 0.0, %v3837
  %v3839 = vpop.f32.mrb[0].mxu0
  %v3840 = vadd.f32 0.0, %v3839
  %v3841 = vpop.f32.mrb[0].mxu0
  %v3842 = vpop.f32.mrb[0].mxu0
  %3843 = vdwg.mxu0
  %3844 = vmatprep.subr.bf16.mxu0 %v2790
  %3845 = vmatpush1.bf16.msra.mxu0 %v2789
  %3846 = vmatprep.subr.bf16.mxu0 %v2794
  %3847 = vmatpush1.bf16.msra.mxu0 %v2793
  %3848 = vmatprep.subr.bf16.mxu0 %v2798
  %3849 = vmatpush1.bf16.msra.mxu0 %v2797
  %3850 = vmatprep.subr.bf16.mxu0 %v2802
  %3851 = vmatpush1.bf16.msra.mxu0 %v2801
  %3852 = vmatprep.subr.bf16.mxu0 %v2806
  %3853 = vmatpush1.bf16.msra.mxu0 %v2805
  %3854 = vmatprep.subr.bf16.mxu0 %v2810
  %3855 = vmatpush1.bf16.msra.mxu0 %v2809
  %3856 = vmatprep.subr.bf16.mxu0 %v2814
  %3857 = vmatpush1.bf16.msra.mxu0 %v2813
  %3858 = vmatprep.subr.bf16.mxu0 %v2818
  %3859 = vmatpush1.bf16.msra.mxu0 %v2817
  %3860 = vmatprep.subr.bf16.mxu0 0
  %3861 = vmatpush1.bf16.msra.mxu0 0
  %3862 = vmatprep.subr.bf16.mxu0 0
  %3863 = vmatpush1.bf16.msra.mxu0 0
  %3864 = vmatprep.subr.bf16.mxu0 0
  %3865 = vmatpush1.bf16.msra.mxu0 0
  %3866 = vmatprep.subr.bf16.mxu0 0
  %3867 = vmatpush1.bf16.msra.mxu0 0
  %3868 = vmatprep.subr.bf16.mxu0 0
  %3869 = vmatpush1.bf16.msra.mxu0 0
  %3870 = vmatprep.subr.bf16.mxu0 0
  %3871 = vmatpush1.bf16.msra.mxu0 0
  %3872 = vmatprep.subr.bf16.mxu0 0
  %3873 = vmatpush1.bf16.msra.mxu0 0
  %3874 = vmatprep.subr.bf16.mxu0 0
  %3875 = vmatpush1.bf16.msra.mxu0 0
  %3876 = vmatprep.mubr.bf16.mxu0 0
  %3877 = vmatmul.mubr.bf16.gmra.mrb[0].mxu0 %v3802
  %v3878 = vpop.f32.mrb[0].mxu0
  %v3879 = vadd.f32 0.0, %v3878
  %v3880 = vpop.f32.mrb[0].mxu0
  %v3881 = vadd.f32 0.0, %v3880
  %v3882 = vpop.f32.mrb[0].mxu0
  %v3883 = vpop.f32.mrb[0].mxu0
  %3884 = vdwg.mxu0
  %v3885 = vadd.f32 %v3797, %v3838
  %v3886 = vadd.f32 %v3798, %v3840
  %v3887 = vadd.f32 %v3799, %v3879
  %v3888 = vadd.f32 %v3800, %v3881
  %v3889 = vxor.u32 %v3885, 2147483648
  %v3890 = vmul.f32 %v3889, 1.442695
  %v3891 = vpow.pop %v3890
  %v3892 = vadd.f32 %v3891, 1.0
  %v3893 = vrcp.pop %v3892
  %v3894 = vmul.f32 1.0, %v3893
  %v3895 = vxor.u32 %v3886, 2147483648
  %v3896 = vmul.f32 %v3895, 1.442695
  %v3897 = vpow.pop %v3896
  %v3898 = vadd.f32 %v3897, 1.0
  %v3899 = vrcp.pop %v3898
  %v3900 = vmul.f32 1.0, %v3899
  %v3901 = vtanh.pop %v3887
  %v3902 = vxor.u32 %v3888, 2147483648
  %v3903 = vmul.f32 %v3902, 1.442695
  %v3904 = vpow.pop %v3903
  %v3905 = vadd.f32 %v3904, 1.0
  %v3906 = vrcp.pop %v3905
  %v3907 = vmul.f32 1.0, %v3906
  %v3908 = vld [vmem:[#allocation4] sm:$0xff]
  %v3909 = vmul.f32 %v3900, %v3908
  %v3910 = vmul.f32 %v3894, %v3901
  %v3911 = vadd.f32 %v3909, %v3910
  %3912 = vst [vmem:[#allocation4] sm:$0xff] %v3911
  %v3913 = vtanh.pop %v3911
  %v3914 = vmul.f32 %v3907, %v3913
  %3915 = vst [vmem:[#allocation3] sm:$0xff] %v3914
  %v3916 = vld [vmem:[#allocation2 + $0x120] sm:$0xff]
  %v3917 = vld [vmem:[#allocation2 + $0x128] sm:$0xff]
  %v3918 = vld [vmem:[#allocation2 + $0x130] sm:$0xff]
  %v3919 = vld [vmem:[#allocation2 + $0x138] sm:$0xff]
  %v3920 = vld [vmem:[#allocation3] sm:$0xff]
  %v3921 = vpack.c.bf16 %v3920, %v3920
  %3922 = vmatprep.subr.bf16.mxu0 %v2788
  %3923 = vmatpush1.bf16.msra.mxu0 %v2787
  %3924 = vmatprep.subr.bf16.mxu0 %v2792
  %3925 = vmatpush1.bf16.msra.mxu0 %v2791
  %3926 = vmatprep.subr.bf16.mxu0 %v2796
  %3927 = vmatpush1.bf16.msra.mxu0 %v2795
  %3928 = vmatprep.subr.bf16.mxu0 %v2800
  %3929 = vmatpush1.bf16.msra.mxu0 %v2799
  %3930 = vmatprep.subr.bf16.mxu0 %v2804
  %3931 = vmatpush1.bf16.msra.mxu0 %v2803
  %3932 = vmatprep.subr.bf16.mxu0 %v2808
  %3933 = vmatpush1.bf16.msra.mxu0 %v2807
  %3934 = vmatprep.subr.bf16.mxu0 %v2812
  %3935 = vmatpush1.bf16.msra.mxu0 %v2811
  %3936 = vmatprep.subr.bf16.mxu0 %v2816
  %3937 = vmatpush1.bf16.msra.mxu0 %v2815
  %3938 = vmatprep.subr.bf16.mxu0 0
  %3939 = vmatpush1.bf16.msra.mxu0 0
  %3940 = vmatprep.subr.bf16.mxu0 0
  %3941 = vmatpush1.bf16.msra.mxu0 0
  %3942 = vmatprep.subr.bf16.mxu0 0
  %3943 = vmatpush1.bf16.msra.mxu0 0
  %3944 = vmatprep.subr.bf16.mxu0 0
  %3945 = vmatpush1.bf16.msra.mxu0 0
  %3946 = vmatprep.subr.bf16.mxu0 0
  %3947 = vmatpush1.bf16.msra.mxu0 0
  %3948 = vmatprep.subr.bf16.mxu0 0
  %3949 = vmatpush1.bf16.msra.mxu0 0
  %3950 = vmatprep.subr.bf16.mxu0 0
  %3951 = vmatpush1.bf16.msra.mxu0 0
  %3952 = vmatprep.subr.bf16.mxu0 0
  %3953 = vmatpush1.bf16.msra.mxu0 0
  %3954 = vmatprep.mubr.bf16.mxu0 0
  %3955 = vmatmul.mubr.bf16.gmra.mrb[0].mxu0 %v3921
  %v3956 = vpop.f32.mrb[0].mxu0
  %v3957 = vadd.f32 0.0, %v3956
  %v3958 = vpop.f32.mrb[0].mxu0
  %v3959 = vadd.f32 0.0, %v3958
  %v3960 = vpop.f32.mrb[0].mxu0
  %v3961 = vpop.f32.mrb[0].mxu0
  %3962 = vdwg.mxu0
  %3963 = vmatprep.subr.bf16.mxu0 %v2790
  %3964 = vmatpush1.bf16.msra.mxu0 %v2789
  %3965 = vmatprep.subr.bf16.mxu0 %v2794
  %3966 = vmatpush1.bf16.msra.mxu0 %v2793
  %3967 = vmatprep.subr.bf16.mxu0 %v2798
  %3968 = vmatpush1.bf16.msra.mxu0 %v2797
  %3969 = vmatprep.subr.bf16.mxu0 %v2802
  %3970 = vmatpush1.bf16.msra.mxu0 %v2801
  %3971 = vmatprep.subr.bf16.mxu0 %v2806
  %3972 = vmatpush1.bf16.msra.mxu0 %v2805
  %3973 = vmatprep.subr.bf16.mxu0 %v2810
  %3974 = vmatpush1.bf16.msra.mxu0 %v2809
  %3975 = vmatprep.subr.bf16.mxu0 %v2814
  %3976 = vmatpush1.bf16.msra.mxu0 %v2813
  %3977 = vmatprep.subr.bf16.mxu0 %v2818
  %3978 = vmatpush1.bf16.msra.mxu0 %v2817
  %3979 = vmatprep.subr.bf16.mxu0 0
  %3980 = vmatpush1.bf16.msra.mxu0 0
  %3981 = vmatprep.subr.bf16.mxu0 0
  %3982 = vmatpush1.bf16.msra.mxu0 0
  %3983 = vmatprep.subr.bf16.mxu0 0
  %3984 = vmatpush1.bf16.msra.mxu0 0
  %3985 = vmatprep.subr.bf16.mxu0 0
  %3986 = vmatpush1.bf16.msra.mxu0 0
  %3987 = vmatprep.subr.bf16.mxu0 0
  %3988 = vmatpush1.bf16.msra.mxu0 0
  %3989 = vmatprep.subr.bf16.mxu0 0
  %3990 = vmatpush1.bf16.msra.mxu0 0
  %3991 = vmatprep.subr.bf16.mxu0 0
  %3992 = vmatpush1.bf16.msra.mxu0 0
  %3993 = vmatprep.subr.bf16.mxu0 0
  %3994 = vmatpush1.bf16.msra.mxu0 0
  %3995 = vmatprep.mubr.bf16.mxu0 0
  %3996 = vmatmul.mubr.bf16.gmra.mrb[0].mxu0 %v3921
  %v3997 = vpop.f32.mrb[0].mxu0
  %v3998 = vadd.f32 0.0, %v3997
  %v3999 = vpop.f32.mrb[0].mxu0
  %v4000 = vadd.f32 0.0, %v3999
  %v4001 = vpop.f32.mrb[0].mxu0
  %v4002 = vpop.f32.mrb[0].mxu0
  %4003 = vdwg.mxu0
  %v4004 = vadd.f32 %v3916, %v3957
  %v4005 = vadd.f32 %v3917, %v3959
  %v4006 = vadd.f32 %v3918, %v3998
  %v4007 = vadd.f32 %v3919, %v4000
  %v4008 = vxor.u32 %v4004, 2147483648
  %v4009 = vmul.f32 %v4008, 1.442695
  %v4010 = vpow.pop %v4009
  %v4011 = vadd.f32 %v4010, 1.0
  %v4012 = vrcp.pop %v4011
  %v4013 = vmul.f32 1.0, %v4012
  %v4014 = vxor.u32 %v4005, 2147483648
  %v4015 = vmul.f32 %v4014, 1.442695
  %v4016 = vpow.pop %v4015
  %v4017 = vadd.f32 %v4016, 1.0
  %v4018 = vrcp.pop %v4017
  %v4019 = vmul.f32 1.0, %v4018
  %v4020 = vtanh.pop %v4006
  %v4021 = vxor.u32 %v4007, 2147483648
  %v4022 = vmul.f32 %v4021, 1.442695
  %v4023 = vpow.pop %v4022
  %v4024 = vadd.f32 %v4023, 1.0
  %v4025 = vrcp.pop %v4024
  %v4026 = vmul.f32 1.0, %v4025
  %v4027 = vld [vmem:[#allocation4] sm:$0xff]
  %v4028 = vmul.f32 %v4019, %v4027
  %v4029 = vmul.f32 %v4013, %v4020
  %v4030 = vadd.f32 %v4028, %v4029
  %4031 = vst [vmem:[#allocation4] sm:$0xff] %v4030
  %v4032 = vtanh.pop %v4030
  %v4033 = vmul.f32 %v4026, %v4032
  %4034 = vst [vmem:[#allocation3] sm:$0xff] %v4033
  %v4035 = vld [vmem:[#allocation2 + $0x140] sm:$0xff]
  %v4036 = vld [vmem:[#allocation2 + $0x148] sm:$0xff]
  %v4037 = vld [vmem:[#allocation2 + $0x150] sm:$0xff]
  %v4038 = vld [vmem:[#allocation2 + $0x158] sm:$0xff]
  %v4039 = vld [vmem:[#allocation3] sm:$0xff]
  %v4040 = vpack.c.bf16 %v4039, %v4039
  %4041 = vmatprep.subr.bf16.mxu0 %v2788
  %4042 = vmatpush1.bf16.msra.mxu0 %v2787
  %4043 = vmatprep.subr.bf16.mxu0 %v2792
  %4044 = vmatpush1.bf16.msra.mxu0 %v2791
  %4045 = vmatprep.subr.bf16.mxu0 %v2796
  %4046 = vmatpush1.bf16.msra.mxu0 %v2795
  %4047 = vmatprep.subr.bf16.mxu0 %v2800
  %4048 = vmatpush1.bf16.msra.mxu0 %v2799
  %4049 = vmatprep.subr.bf16.mxu0 %v2804
  %4050 = vmatpush1.bf16.msra.mxu0 %v2803
  %4051 = vmatprep.subr.bf16.mxu0 %v2808
  %4052 = vmatpush1.bf16.msra.mxu0 %v2807
  %4053 = vmatprep.subr.bf16.mxu0 %v2812
  %4054 = vmatpush1.bf16.msra.mxu0 %v2811
  %4055 = vmatprep.subr.bf16.mxu0 %v2816
  %4056 = vmatpush1.bf16.msra.mxu0 %v2815
  %4057 = vmatprep.subr.bf16.mxu0 0
  %4058 = vmatpush1.bf16.msra.mxu0 0
  %4059 = vmatprep.subr.bf16.mxu0 0
  %4060 = vmatpush1.bf16.msra.mxu0 0
  %4061 = vmatprep.subr.bf16.mxu0 0
  %4062 = vmatpush1.bf16.msra.mxu0 0
  %4063 = vmatprep.subr.bf16.mxu0 0
  %4064 = vmatpush1.bf16.msra.mxu0 0
  %4065 = vmatprep.subr.bf16.mxu0 0
  %4066 = vmatpush1.bf16.msra.mxu0 0
  %4067 = vmatprep.subr.bf16.mxu0 0
  %4068 = vmatpush1.bf16.msra.mxu0 0
  %4069 = vmatprep.subr.bf16.mxu0 0
  %4070 = vmatpush1.bf16.msra.mxu0 0
  %4071 = vmatprep.subr.bf16.mxu0 0
  %4072 = vmatpush1.bf16.msra.mxu0 0
  %4073 = vmatprep.mubr.bf16.mxu0 0
  %4074 = vmatmul.mubr.bf16.gmra.mrb[0].mxu0 %v4040
  %v4075 = vpop.f32.mrb[0].mxu0
  %v4076 = vadd.f32 0.0, %v4075
  %v4077 = vpop.f32.mrb[0].mxu0
  %v4078 = vadd.f32 0.0, %v4077
  %v4079 = vpop.f32.mrb[0].mxu0
  %v4080 = vpop.f32.mrb[0].mxu0
  %4081 = vdwg.mxu0
  %4082 = vmatprep.subr.bf16.mxu0 %v2790
  %4083 = vmatpush1.bf16.msra.mxu0 %v2789
  %4084 = vmatprep.subr.bf16.mxu0 %v2794
  %4085 = vmatpush1.bf16.msra.mxu0 %v2793
  %4086 = vmatprep.subr.bf16.mxu0 %v2798
  %4087 = vmatpush1.bf16.msra.mxu0 %v2797
  %4088 = vmatprep.subr.bf16.mxu0 %v2802
  %4089 = vmatpush1.bf16.msra.mxu0 %v2801
  %4090 = vmatprep.subr.bf16.mxu0 %v2806
  %4091 = vmatpush1.bf16.msra.mxu0 %v2805
  %4092 = vmatprep.subr.bf16.mxu0 %v2810
  %4093 = vmatpush1.bf16.msra.mxu0 %v2809
  %4094 = vmatprep.subr.bf16.mxu0 %v2814
  %4095 = vmatpush1.bf16.msra.mxu0 %v2813
  %4096 = vmatprep.subr.bf16.mxu0 %v2818
  %4097 = vmatpush1.bf16.msra.mxu0 %v2817
  %4098 = vmatprep.subr.bf16.mxu0 0
  %4099 = vmatpush1.bf16.msra.mxu0 0
  %4100 = vmatprep.subr.bf16.mxu0 0
  %4101 = vmatpush1.bf16.msra.mxu0 0
  %4102 = vmatprep.subr.bf16.mxu0 0
  %4103 = vmatpush1.bf16.msra.mxu0 0
  %4104 = vmatprep.subr.bf16.mxu0 0
  %4105 = vmatpush1.bf16.msra.mxu0 0
  %4106 = vmatprep.subr.bf16.mxu0 0
  %4107 = vmatpush1.bf16.msra.mxu0 0
  %4108 = vmatprep.subr.bf16.mxu0 0
  %4109 = vmatpush1.bf16.msra.mxu0 0
  %4110 = vmatprep.subr.bf16.mxu0 0
  %4111 = vmatpush1.bf16.msra.mxu0 0
  %4112 = vmatprep.subr.bf16.mxu0 0
  %4113 = vmatpush1.bf16.msra.mxu0 0
  %4114 = vmatprep.mubr.bf16.mxu0 0
  %4115 = vmatmul.mubr.bf16.gmra.mrb[0].mxu0 %v4040
  %v4116 = vpop.f32.mrb[0].mxu0
  %v4117 = vadd.f32 0.0, %v4116
  %v4118 = vpop.f32.mrb[0].mxu0
  %v4119 = vadd.f32 0.0, %v4118
  %v4120 = vpop.f32.mrb[0].mxu0
  %v4121 = vpop.f32.mrb[0].mxu0
  %4122 = vdwg.mxu0
  %v4123 = vadd.f32 %v4035, %v4076
  %v4124 = vadd.f32 %v4036, %v4078
  %v4125 = vadd.f32 %v4037, %v4117
  %v4126 = vadd.f32 %v4038, %v4119
  %v4127 = vxor.u32 %v4123, 2147483648
  %v4128 = vmul.f32 %v4127, 1.442695
  %v4129 = vpow.pop %v4128
  %v4130 = vadd.f32 %v4129, 1.0
  %v4131 = vrcp.pop %v4130
  %v4132 = vmul.f32 1.0, %v4131
  %v4133 = vxor.u32 %v4124, 2147483648
  %v4134 = vmul.f32 %v4133, 1.442695
  %v4135 = vpow.pop %v4134
  %v4136 = vadd.f32 %v4135, 1.0
  %v4137 = vrcp.pop %v4136
  %v4138 = vmul.f32 1.0, %v4137
  %v4139 = vtanh.pop %v4125
  %v4140 = vxor.u32 %v4126, 2147483648
  %v4141 = vmul.f32 %v4140, 1.442695
  %v4142 = vpow.pop %v4141
  %v4143 = vadd.f32 %v4142, 1.0
  %v4144 = vrcp.pop %v4143
  %v4145 = vmul.f32 1.0, %v4144
  %v4146 = vld [vmem:[#allocation4] sm:$0xff]
  %v4147 = vmul.f32 %v4138, %v4146
  %v4148 = vmul.f32 %v4132, %v4139
  %v4149 = vadd.f32 %v4147, %v4148
  %4150 = vst [vmem:[#allocation4] sm:$0xff] %v4149
  %v4151 = vtanh.pop %v4149
  %v4152 = vmul.f32 %v4145, %v4151
  %4153 = vst [vmem:[#allocation3] sm:$0xff] %v4152
  %v4154 = vld [vmem:[#allocation2 + $0x160] sm:$0xff]
  %v4155 = vld [vmem:[#allocation2 + $0x168] sm:$0xff]
  %v4156 = vld [vmem:[#allocation2 + $0x170] sm:$0xff]
  %v4157 = vld [vmem:[#allocation2 + $0x178] sm:$0xff]
  %v4158 = vld [vmem:[#allocation3] sm:$0xff]
  %v4159 = vpack.c.bf16 %v4158, %v4158
  %4160 = vmatprep.subr.bf16.mxu0 %v2788
  %4161 = vmatpush1.bf16.msra.mxu0 %v2787
  %4162 = vmatprep.subr.bf16.mxu0 %v2792
  %4163 = vmatpush1.bf16.msra.mxu0 %v2791
  %4164 = vmatprep.subr.bf16.mxu0 %v2796
  %4165 = vmatpush1.bf16.msra.mxu0 %v2795
  %4166 = vmatprep.subr.bf16.mxu0 %v2800
  %4167 = vmatpush1.bf16.msra.mxu0 %v2799
  %4168 = vmatprep.subr.bf16.mxu0 %v2804
  %4169 = vmatpush1.bf16.msra.mxu0 %v2803
  %4170 = vmatprep.subr.bf16.mxu0 %v2808
  %4171 = vmatpush1.bf16.msra.mxu0 %v2807
  %4172 = vmatprep.subr.bf16.mxu0 %v2812
  %4173 = vmatpush1.bf16.msra.mxu0 %v2811
  %4174 = vmatprep.subr.bf16.mxu0 %v2816
  %4175 = vmatpush1.bf16.msra.mxu0 %v2815
  %4176 = vmatprep.subr.bf16.mxu0 0
  %4177 = vmatpush1.bf16.msra.mxu0 0
  %4178 = vmatprep.subr.bf16.mxu0 0
  %4179 = vmatpush1.bf16.msra.mxu0 0
  %4180 = vmatprep.subr.bf16.mxu0 0
  %4181 = vmatpush1.bf16.msra.mxu0 0
  %4182 = vmatprep.subr.bf16.mxu0 0
  %4183 = vmatpush1.bf16.msra.mxu0 0
  %4184 = vmatprep.subr.bf16.mxu0 0
  %4185 = vmatpush1.bf16.msra.mxu0 0
  %4186 = vmatprep.subr.bf16.mxu0 0
  %4187 = vmatpush1.bf16.msra.mxu0 0
  %4188 = vmatprep.subr.bf16.mxu0 0
  %4189 = vmatpush1.bf16.msra.mxu0 0
  %4190 = vmatprep.subr.bf16.mxu0 0
  %4191 = vmatpush1.bf16.msra.mxu0 0
  %4192 = vmatprep.mubr.bf16.mxu0 0
  %4193 = vmatmul.mubr.bf16.gmra.mrb[0].mxu0 %v4159
  %v4194 = vpop.f32.mrb[0].mxu0
  %v4195 = vadd.f32 0.0, %v4194
  %v4196 = vpop.f32.mrb[0].mxu0
  %v4197 = vadd.f32 0.0, %v4196
  %v4198 = vpop.f32.mrb[0].mxu0
  %v4199 = vpop.f32.mrb[0].mxu0
  %4200 = vdwg.mxu0
  %4201 = vmatprep.subr.bf16.mxu0 %v2790
  %4202 = vmatpush1.bf16.msra.mxu0 %v2789
  %4203 = vmatprep.subr.bf16.mxu0 %v2794
  %4204 = vmatpush1.bf16.msra.mxu0 %v2793
  %4205 = vmatprep.subr.bf16.mxu0 %v2798
  %4206 = vmatpush1.bf16.msra.mxu0 %v2797
  %4207 = vmatprep.subr.bf16.mxu0 %v2802
  %4208 = vmatpush1.bf16.msra.mxu0 %v2801
  %4209 = vmatprep.subr.bf16.mxu0 %v2806
  %4210 = vmatpush1.bf16.msra.mxu0 %v2805
  %4211 = vmatprep.subr.bf16.mxu0 %v2810
  %4212 = vmatpush1.bf16.msra.mxu0 %v2809
  %4213 = vmatprep.subr.bf16.mxu0 %v2814
  %4214 = vmatpush1.bf16.msra.mxu0 %v2813
  %4215 = vmatprep.subr.bf16.mxu0 %v2818
  %4216 = vmatpush1.bf16.msra.mxu0 %v2817
  %4217 = vmatprep.subr.bf16.mxu0 0
  %4218 = vmatpush1.bf16.msra.mxu0 0
  %4219 = vmatprep.subr.bf16.mxu0 0
  %4220 = vmatpush1.bf16.msra.mxu0 0
  %4221 = vmatprep.subr.bf16.mxu0 0
  %4222 = vmatpush1.bf16.msra.mxu0 0
  %4223 = vmatprep.subr.bf16.mxu0 0
  %4224 = vmatpush1.bf16.msra.mxu0 0
  %4225 = vmatprep.subr.bf16.mxu0 0
  %4226 = vmatpush1.bf16.msra.mxu0 0
  %4227 = vmatprep.subr.bf16.mxu0 0
  %4228 = vmatpush1.bf16.msra.mxu0 0
  %4229 = vmatprep.subr.bf16.mxu0 0
  %4230 = vmatpush1.bf16.msra.mxu0 0
  %4231 = vmatprep.subr.bf16.mxu0 0
  %4232 = vmatpush1.bf16.msra.mxu0 0
  %4233 = vmatprep.mubr.bf16.mxu0 0
  %4234 = vmatmul.mubr.bf16.gmra.mrb[0].mxu0 %v4159
  %v4235 = vpop.f32.mrb[0].mxu0
  %v4236 = vadd.f32 0.0, %v4235
  %v4237 = vpop.f32.mrb[0].mxu0
  %v4238 = vadd.f32 0.0, %v4237
  %v4239 = vpop.f32.mrb[0].mxu0
  %v4240 = vpop.f32.mrb[0].mxu0
  %4241 = vdwg.mxu0
  %v4242 = vadd.f32 %v4154, %v4195
  %v4243 = vadd.f32 %v4155, %v4197
  %v4244 = vadd.f32 %v4156, %v4236
  %v4245 = vadd.f32 %v4157, %v4238
  %v4246 = vxor.u32 %v4242, 2147483648
  %v4247 = vmul.f32 %v4246, 1.442695
  %v4248 = vpow.pop %v4247
  %v4249 = vadd.f32 %v4248, 1.0
  %v4250 = vrcp.pop %v4249
  %v4251 = vmul.f32 1.0, %v4250
  %v4252 = vxor.u32 %v4243, 2147483648
  %v4253 = vmul.f32 %v4252, 1.442695
  %v4254 = vpow.pop %v4253
  %v4255 = vadd.f32 %v4254, 1.0
  %v4256 = vrcp.pop %v4255
  %v4257 = vmul.f32 1.0, %v4256
  %v4258 = vtanh.pop %v4244
  %v4259 = vxor.u32 %v4245, 2147483648
  %v4260 = vmul.f32 %v4259, 1.442695
  %v4261 = vpow.pop %v4260
  %v4262 = vadd.f32 %v4261, 1.0
  %v4263 = vrcp.pop %v4262
  %v4264 = vmul.f32 1.0, %v4263
  %v4265 = vld [vmem:[#allocation4] sm:$0xff]
  %v4266 = vmul.f32 %v4257, %v4265
  %v4267 = vmul.f32 %v4251, %v4258
  %v4268 = vadd.f32 %v4266, %v4267
  %4269 = vst [vmem:[#allocation4] sm:$0xff] %v4268
  %v4270 = vtanh.pop %v4268
  %v4271 = vmul.f32 %v4264, %v4270
  %4272 = vst [vmem:[#allocation3] sm:$0xff] %v4271
  %v4273 = vld [vmem:[#allocation2 + $0x180] sm:$0xff]
  %v4274 = vld [vmem:[#allocation2 + $0x188] sm:$0xff]
  %v4275 = vld [vmem:[#allocation2 + $0x190] sm:$0xff]
  %v4276 = vld [vmem:[#allocation2 + $0x198] sm:$0xff]
  %v4277 = vld [vmem:[#allocation3] sm:$0xff]
  %v4278 = vpack.c.bf16 %v4277, %v4277
  %4279 = vmatprep.subr.bf16.mxu0 %v2788
  %4280 = vmatpush1.bf16.msra.mxu0 %v2787
  %4281 = vmatprep.subr.bf16.mxu0 %v2792
  %4282 = vmatpush1.bf16.msra.mxu0 %v2791
  %4283 = vmatprep.subr.bf16.mxu0 %v2796
  %4284 = vmatpush1.bf16.msra.mxu0 %v2795
  %4285 = vmatprep.subr.bf16.mxu0 %v2800
  %4286 = vmatpush1.bf16.msra.mxu0 %v2799
  %4287 = vmatprep.subr.bf16.mxu0 %v2804
  %4288 = vmatpush1.bf16.msra.mxu0 %v2803
  %4289 = vmatprep.subr.bf16.mxu0 %v2808
  %4290 = vmatpush1.bf16.msra.mxu0 %v2807
  %4291 = vmatprep.subr.bf16.mxu0 %v2812
  %4292 = vmatpush1.bf16.msra.mxu0 %v2811
  %4293 = vmatprep.subr.bf16.mxu0 %v2816
  %4294 = vmatpush1.bf16.msra.mxu0 %v2815
  %4295 = vmatprep.subr.bf16.mxu0 0
  %4296 = vmatpush1.bf16.msra.mxu0 0
  %4297 = vmatprep.subr.bf16.mxu0 0
  %4298 = vmatpush1.bf16.msra.mxu0 0
  %4299 = vmatprep.subr.bf16.mxu0 0
  %4300 = vmatpush1.bf16.msra.mxu0 0
  %4301 = vmatprep.subr.bf16.mxu0 0
  %4302 = vmatpush1.bf16.msra.mxu0 0
  %4303 = vmatprep.subr.bf16.mxu0 0
  %4304 = vmatpush1.bf16.msra.mxu0 0
  %4305 = vmatprep.subr.bf16.mxu0 0
  %4306 = vmatpush1.bf16.msra.mxu0 0
  %4307 = vmatprep.subr.bf16.mxu0 0
  %4308 = vmatpush1.bf16.msra.mxu0 0
  %4309 = vmatprep.subr.bf16.mxu0 0
  %4310 = vmatpush1.bf16.msra.mxu0 0
  %4311 = vmatprep.mubr.bf16.mxu0 0
  %4312 = vmatmul.mubr.bf16.gmra.mrb[0].mxu0 %v4278
  %v4313 = vpop.f32.mrb[0].mxu0
  %v4314 = vadd.f32 0.0, %v4313
  %v4315 = vpop.f32.mrb[0].mxu0
  %v4316 = vadd.f32 0.0, %v4315
  %v4317 = vpop.f32.mrb[0].mxu0
  %v4318 = vpop.f32.mrb[0].mxu0
  %4319 = vdwg.mxu0
  %4320 = vmatprep.subr.bf16.mxu0 %v2790
  %4321 = vmatpush1.bf16.msra.mxu0 %v2789
  %4322 = vmatprep.subr.bf16.mxu0 %v2794
  %4323 = vmatpush1.bf16.msra.mxu0 %v2793
  %4324 = vmatprep.subr.bf16.mxu0 %v2798
  %4325 = vmatpush1.bf16.msra.mxu0 %v2797
  %4326 = vmatprep.subr.bf16.mxu0 %v2802
  %4327 = vmatpush1.bf16.msra.mxu0 %v2801
  %4328 = vmatprep.subr.bf16.mxu0 %v2806
  %4329 = vmatpush1.bf16.msra.mxu0 %v2805
  %4330 = vmatprep.subr.bf16.mxu0 %v2810
  %4331 = vmatpush1.bf16.msra.mxu0 %v2809
  %4332 = vmatprep.subr.bf16.mxu0 %v2814
  %4333 = vmatpush1.bf16.msra.mxu0 %v2813
  %4334 = vmatprep.subr.bf16.mxu0 %v2818
  %4335 = vmatpush1.bf16.msra.mxu0 %v2817
  %4336 = vmatprep.subr.bf16.mxu0 0
  %4337 = vmatpush1.bf16.msra.mxu0 0
  %4338 = vmatprep.subr.bf16.mxu0 0
  %4339 = vmatpush1.bf16.msra.mxu0 0
  %4340 = vmatprep.subr.bf16.mxu0 0
  %4341 = vmatpush1.bf16.msra.mxu0 0
  %4342 = vmatprep.subr.bf16.mxu0 0
  %4343 = vmatpush1.bf16.msra.mxu0 0
  %4344 = vmatprep.subr.bf16.mxu0 0
  %4345 = vmatpush1.bf16.msra.mxu0 0
  %4346 = vmatprep.subr.bf16.mxu0 0
  %4347 = vmatpush1.bf16.msra.mxu0 0
  %4348 = vmatprep.subr.bf16.mxu0 0
  %4349 = vmatpush1.bf16.msra.mxu0 0
  %4350 = vmatprep.subr.bf16.mxu0 0
  %4351 = vmatpush1.bf16.msra.mxu0 0
  %4352 = vmatprep.mubr.bf16.mxu0 0
  %4353 = vmatmul.mubr.bf16.gmra.mrb[0].mxu0 %v4278
  %v4354 = vpop.f32.mrb[0].mxu0
  %v4355 = vadd.f32 0.0, %v4354
  %v4356 = vpop.f32.mrb[0].mxu0
  %v4357 = vadd.f32 0.0, %v4356
  %v4358 = vpop.f32.mrb[0].mxu0
  %v4359 = vpop.f32.mrb[0].mxu0
  %4360 = vdwg.mxu0
  %v4361 = vadd.f32 %v4273, %v4314
  %v4362 = vadd.f32 %v4274, %v4316
  %v4363 = vadd.f32 %v4275, %v4355
  %v4364 = vadd.f32 %v4276, %v4357
  %v4365 = vxor.u32 %v4361, 2147483648
  %v4366 = vmul.f32 %v4365, 1.442695
  %v4367 = vpow.pop %v4366
  %v4368 = vadd.f32 %v4367, 1.0
  %v4369 = vrcp.pop %v4368
  %v4370 = vmul.f32 1.0, %v4369
  %v4371 = vxor.u32 %v4362, 2147483648
  %v4372 = vmul.f32 %v4371, 1.442695
  %v4373 = vpow.pop %v4372
  %v4374 = vadd.f32 %v4373, 1.0
  %v4375 = vrcp.pop %v4374
  %v4376 = vmul.f32 1.0, %v4375
  %v4377 = vtanh.pop %v4363
  %v4378 = vxor.u32 %v4364, 2147483648
  %v4379 = vmul.f32 %v4378, 1.442695
  %v4380 = vpow.pop %v4379
  %v4381 = vadd.f32 %v4380, 1.0
  %v4382 = vrcp.pop %v4381
  %v4383 = vmul.f32 1.0, %v4382
  %v4384 = vld [vmem:[#allocation4] sm:$0xff]
  %v4385 = vmul.f32 %v4376, %v4384
  %v4386 = vmul.f32 %v4370, %v4377
  %v4387 = vadd.f32 %v4385, %v4386
  %4388 = vst [vmem:[#allocation4] sm:$0xff] %v4387
  %v4389 = vtanh.pop %v4387
  %v4390 = vmul.f32 %v4383, %v4389
  %4391 = vst [vmem:[#allocation3] sm:$0xff] %v4390
  %v4392 = vld [vmem:[#allocation2 + $0x1a0] sm:$0xff]
  %v4393 = vld [vmem:[#allocation2 + $0x1a8] sm:$0xff]
  %v4394 = vld [vmem:[#allocation2 + $0x1b0] sm:$0xff]
  %v4395 = vld [vmem:[#allocation2 + $0x1b8] sm:$0xff]
  %v4396 = vld [vmem:[#allocation3] sm:$0xff]
  %v4397 = vpack.c.bf16 %v4396, %v4396
  %4398 = vmatprep.subr.bf16.mxu0 %v2788
  %4399 = vmatpush1.bf16.msra.mxu0 %v2787
  %4400 = vmatprep.subr.bf16.mxu0 %v2792
  %4401 = vmatpush1.bf16.msra.mxu0 %v2791
  %4402 = vmatprep.subr.bf16.mxu0 %v2796
  %4403 = vmatpush1.bf16.msra.mxu0 %v2795
  %4404 = vmatprep.subr.bf16.mxu0 %v2800
  %4405 = vmatpush1.bf16.msra.mxu0 %v2799
  %4406 = vmatprep.subr.bf16.mxu0 %v2804
  %4407 = vmatpush1.bf16.msra.mxu0 %v2803
  %4408 = vmatprep.subr.bf16.mxu0 %v2808
  %4409 = vmatpush1.bf16.msra.mxu0 %v2807
  %4410 = vmatprep.subr.bf16.mxu0 %v2812
  %4411 = vmatpush1.bf16.msra.mxu0 %v2811
  %4412 = vmatprep.subr.bf16.mxu0 %v2816
  %4413 = vmatpush1.bf16.msra.mxu0 %v2815
  %4414 = vmatprep.subr.bf16.mxu0 0
  %4415 = vmatpush1.bf16.msra.mxu0 0
  %4416 = vmatprep.subr.bf16.mxu0 0
  %4417 = vmatpush1.bf16.msra.mxu0 0
  %4418 = vmatprep.subr.bf16.mxu0 0
  %4419 = vmatpush1.bf16.msra.mxu0 0
  %4420 = vmatprep.subr.bf16.mxu0 0
  %4421 = vmatpush1.bf16.msra.mxu0 0
  %4422 = vmatprep.subr.bf16.mxu0 0
  %4423 = vmatpush1.bf16.msra.mxu0 0
  %4424 = vmatprep.subr.bf16.mxu0 0
  %4425 = vmatpush1.bf16.msra.mxu0 0
  %4426 = vmatprep.subr.bf16.mxu0 0
  %4427 = vmatpush1.bf16.msra.mxu0 0
  %4428 = vmatprep.subr.bf16.mxu0 0
  %4429 = vmatpush1.bf16.msra.mxu0 0
  %4430 = vmatprep.mubr.bf16.mxu0 0
  %4431 = vmatmul.mubr.bf16.gmra.mrb[0].mxu0 %v4397
  %v4432 = vpop.f32.mrb[0].mxu0
  %v4433 = vadd.f32 0.0, %v4432
  %v4434 = vpop.f32.mrb[0].mxu0
  %v4435 = vadd.f32 0.0, %v4434
  %v4436 = vpop.f32.mrb[0].mxu0
  %v4437 = vpop.f32.mrb[0].mxu0
  %4438 = vdwg.mxu0
  %4439 = vmatprep.subr.bf16.mxu0 %v2790
  %4440 = vmatpush1.bf16.msra.mxu0 %v2789
  %4441 = vmatprep.subr.bf16.mxu0 %v2794
  %4442 = vmatpush1.bf16.msra.mxu0 %v2793
  %4443 = vmatprep.subr.bf16.mxu0 %v2798
  %4444 = vmatpush1.bf16.msra.mxu0 %v2797
  %4445 = vmatprep.subr.bf16.mxu0 %v2802
  %4446 = vmatpush1.bf16.msra.mxu0 %v2801
  %4447 = vmatprep.subr.bf16.mxu0 %v2806
  %4448 = vmatpush1.bf16.msra.mxu0 %v2805
  %4449 = vmatprep.subr.bf16.mxu0 %v2810
  %4450 = vmatpush1.bf16.msra.mxu0 %v2809
  %4451 = vmatprep.subr.bf16.mxu0 %v2814
  %4452 = vmatpush1.bf16.msra.mxu0 %v2813
  %4453 = vmatprep.subr.bf16.mxu0 %v2818
  %4454 = vmatpush1.bf16.msra.mxu0 %v2817
  %4455 = vmatprep.subr.bf16.mxu0 0
  %4456 = vmatpush1.bf16.msra.mxu0 0
  %4457 = vmatprep.subr.bf16.mxu0 0
  %4458 = vmatpush1.bf16.msra.mxu0 0
  %4459 = vmatprep.subr.bf16.mxu0 0
  %4460 = vmatpush1.bf16.msra.mxu0 0
  %4461 = vmatprep.subr.bf16.mxu0 0
  %4462 = vmatpush1.bf16.msra.mxu0 0
  %4463 = vmatprep.subr.bf16.mxu0 0
  %4464 = vmatpush1.bf16.msra.mxu0 0
  %4465 = vmatprep.subr.bf16.mxu0 0
  %4466 = vmatpush1.bf16.msra.mxu0 0
  %4467 = vmatprep.subr.bf16.mxu0 0
  %4468 = vmatpush1.bf16.msra.mxu0 0
  %4469 = vmatprep.subr.bf16.mxu0 0
  %4470 = vmatpush1.bf16.msra.mxu0 0
  %4471 = vmatprep.mubr.bf16.mxu0 0
  %4472 = vmatmul.mubr.bf16.gmra.mrb[0].mxu0 %v4397
  %v4473 = vpop.f32.mrb[0].mxu0
  %v4474 = vadd.f32 0.0, %v4473
  %v4475 = vpop.f32.mrb[0].mxu0
  %v4476 = vadd.f32 0.0, %v4475
  %v4477 = vpop.f32.mrb[0].mxu0
  %v4478 = vpop.f32.mrb[0].mxu0
  %4479 = vdwg.mxu0
  %v4480 = vadd.f32 %v4392, %v4433
  %v4481 = vadd.f32 %v4393, %v4435
  %v4482 = vadd.f32 %v4394, %v4474
  %v4483 = vadd.f32 %v4395, %v4476
  %v4484 = vxor.u32 %v4480, 2147483648
  %v4485 = vmul.f32 %v4484, 1.442695
  %v4486 = vpow.pop %v4485
  %v4487 = vadd.f32 %v4486, 1.0
  %v4488 = vrcp.pop %v4487
  %v4489 = vmul.f32 1.0, %v4488
  %v4490 = vxor.u32 %v4481, 2147483648
  %v4491 = vmul.f32 %v4490, 1.442695
  %v4492 = vpow.pop %v4491
  %v4493 = vadd.f32 %v4492, 1.0
  %v4494 = vrcp.pop %v4493
  %v4495 = vmul.f32 1.0, %v4494
  %v4496 = vtanh.pop %v4482
  %v4497 = vxor.u32 %v4483, 2147483648
  %v4498 = vmul.f32 %v4497, 1.442695
  %v4499 = vpow.pop %v4498
  %v4500 = vadd.f32 %v4499, 1.0
  %v4501 = vrcp.pop %v4500
  %v4502 = vmul.f32 1.0, %v4501
  %v4503 = vld [vmem:[#allocation4] sm:$0xff]
  %v4504 = vmul.f32 %v4495, %v4503
  %v4505 = vmul.f32 %v4489, %v4496
  %v4506 = vadd.f32 %v4504, %v4505
  %4507 = vst [vmem:[#allocation4] sm:$0xff] %v4506
  %v4508 = vtanh.pop %v4506
  %v4509 = vmul.f32 %v4502, %v4508
  %4510 = vst [vmem:[#allocation3] sm:$0xff] %v4509
  %v4511 = vld [vmem:[#allocation2 + $0x1c0] sm:$0xff]
  %v4512 = vld [vmem:[#allocation2 + $0x1c8] sm:$0xff]
  %v4513 = vld [vmem:[#allocation2 + $0x1d0] sm:$0xff]
  %v4514 = vld [vmem:[#allocation2 + $0x1d8] sm:$0xff]
  %v4515 = vld [vmem:[#allocation3] sm:$0xff]
  %v4516 = vpack.c.bf16 %v4515, %v4515
  %4517 = vmatprep.subr.bf16.mxu0 %v2788
  %4518 = vmatpush1.bf16.msra.mxu0 %v2787
  %4519 = vmatprep.subr.bf16.mxu0 %v2792
  %4520 = vmatpush1.bf16.msra.mxu0 %v2791
  %4521 = vmatprep.subr.bf16.mxu0 %v2796
  %4522 = vmatpush1.bf16.msra.mxu0 %v2795
  %4523 = vmatprep.subr.bf16.mxu0 %v2800
  %4524 = vmatpush1.bf16.msra.mxu0 %v2799
  %4525 = vmatprep.subr.bf16.mxu0 %v2804
  %4526 = vmatpush1.bf16.msra.mxu0 %v2803
  %4527 = vmatprep.subr.bf16.mxu0 %v2808
  %4528 = vmatpush1.bf16.msra.mxu0 %v2807
  %4529 = vmatprep.subr.bf16.mxu0 %v2812
  %4530 = vmatpush1.bf16.msra.mxu0 %v2811
  %4531 = vmatprep.subr.bf16.mxu0 %v2816
  %4532 = vmatpush1.bf16.msra.mxu0 %v2815
  %4533 = vmatprep.subr.bf16.mxu0 0
  %4534 = vmatpush1.bf16.msra.mxu0 0
  %4535 = vmatprep.subr.bf16.mxu0 0
  %4536 = vmatpush1.bf16.msra.mxu0 0
  %4537 = vmatprep.subr.bf16.mxu0 0
  %4538 = vmatpush1.bf16.msra.mxu0 0
  %4539 = vmatprep.subr.bf16.mxu0 0
  %4540 = vmatpush1.bf16.msra.mxu0 0
  %4541 = vmatprep.subr.bf16.mxu0 0
  %4542 = vmatpush1.bf16.msra.mxu0 0
  %4543 = vmatprep.subr.bf16.mxu0 0
  %4544 = vmatpush1.bf16.msra.mxu0 0
  %4545 = vmatprep.subr.bf16.mxu0 0
  %4546 = vmatpush1.bf16.msra.mxu0 0
  %4547 = vmatprep.subr.bf16.mxu0 0
  %4548 = vmatpush1.bf16.msra.mxu0 0
  %4549 = vmatprep.mubr.bf16.mxu0 0
  %4550 = vmatmul.mubr.bf16.gmra.mrb[0].mxu0 %v4516
  %v4551 = vpop.f32.mrb[0].mxu0
  %v4552 = vadd.f32 0.0, %v4551
  %v4553 = vpop.f32.mrb[0].mxu0
  %v4554 = vadd.f32 0.0, %v4553
  %v4555 = vpop.f32.mrb[0].mxu0
  %v4556 = vpop.f32.mrb[0].mxu0
  %4557 = vdwg.mxu0
  %4558 = vmatprep.subr.bf16.mxu0 %v2790
  %4559 = vmatpush1.bf16.msra.mxu0 %v2789
  %4560 = vmatprep.subr.bf16.mxu0 %v2794
  %4561 = vmatpush1.bf16.msra.mxu0 %v2793
  %4562 = vmatprep.subr.bf16.mxu0 %v2798
  %4563 = vmatpush1.bf16.msra.mxu0 %v2797
  %4564 = vmatprep.subr.bf16.mxu0 %v2802
  %4565 = vmatpush1.bf16.msra.mxu0 %v2801
  %4566 = vmatprep.subr.bf16.mxu0 %v2806
  %4567 = vmatpush1.bf16.msra.mxu0 %v2805
  %4568 = vmatprep.subr.bf16.mxu0 %v2810
  %4569 = vmatpush1.bf16.msra.mxu0 %v2809
  %4570 = vmatprep.subr.bf16.mxu0 %v2814
  %4571 = vmatpush1.bf16.msra.mxu0 %v2813
  %4572 = vmatprep.subr.bf16.mxu0 %v2818
  %4573 = vmatpush1.bf16.msra.mxu0 %v2817
  %4574 = vmatprep.subr.bf16.mxu0 0
  %4575 = vmatpush1.bf16.msra.mxu0 0
  %4576 = vmatprep.subr.bf16.mxu0 0
  %4577 = vmatpush1.bf16.msra.mxu0 0
  %4578 = vmatprep.subr.bf16.mxu0 0
  %4579 = vmatpush1.bf16.msra.mxu0 0
  %4580 = vmatprep.subr.bf16.mxu0 0
  %4581 = vmatpush1.bf16.msra.mxu0 0
  %4582 = vmatprep.subr.bf16.mxu0 0
  %4583 = vmatpush1.bf16.msra.mxu0 0
  %4584 = vmatprep.subr.bf16.mxu0 0
  %4585 = vmatpush1.bf16.msra.mxu0 0
  %4586 = vmatprep.subr.bf16.mxu0 0
  %4587 = vmatpush1.bf16.msra.mxu0 0
  %4588 = vmatprep.subr.bf16.mxu0 0
  %4589 = vmatpush1.bf16.msra.mxu0 0
  %4590 = vmatprep.mubr.bf16.mxu0 0
  %4591 = vmatmul.mubr.bf16.gmra.mrb[0].mxu0 %v4516
  %v4592 = vpop.f32.mrb[0].mxu0
  %v4593 = vadd.f32 0.0, %v4592
  %v4594 = vpop.f32.mrb[0].mxu0
  %v4595 = vadd.f32 0.0, %v4594
  %v4596 = vpop.f32.mrb[0].mxu0
  %v4597 = vpop.f32.mrb[0].mxu0
  %4598 = vdwg.mxu0
  %v4599 = vadd.f32 %v4511, %v4552
  %v4600 = vadd.f32 %v4512, %v4554
  %v4601 = vadd.f32 %v4513, %v4593
  %v4602 = vadd.f32 %v4514, %v4595
  %v4603 = vxor.u32 %v4599, 2147483648
  %v4604 = vmul.f32 %v4603, 1.442695
  %v4605 = vpow.pop %v4604
  %v4606 = vadd.f32 %v4605, 1.0
  %v4607 = vrcp.pop %v4606
  %v4608 = vmul.f32 1.0, %v4607
  %v4609 = vxor.u32 %v4600, 2147483648
  %v4610 = vmul.f32 %v4609, 1.442695
  %v4611 = vpow.pop %v4610
  %v4612 = vadd.f32 %v4611, 1.0
  %v4613 = vrcp.pop %v4612
  %v4614 = vmul.f32 1.0, %v4613
  %v4615 = vtanh.pop %v4601
  %v4616 = vxor.u32 %v4602, 2147483648
  %v4617 = vmul.f32 %v4616, 1.442695
  %v4618 = vpow.pop %v4617
  %v4619 = vadd.f32 %v4618, 1.0
  %v4620 = vrcp.pop %v4619
  %v4621 = vmul.f32 1.0, %v4620
  %v4622 = vld [vmem:[#allocation4] sm:$0xff]
  %v4623 = vmul.f32 %v4614, %v4622
  %v4624 = vmul.f32 %v4608, %v4615
  %v4625 = vadd.f32 %v4623, %v4624
  %4626 = vst [vmem:[#allocation4] sm:$0xff] %v4625
  %v4627 = vtanh.pop %v4625
  %v4628 = vmul.f32 %v4621, %v4627
  %4629 = vst [vmem:[#allocation3] sm:$0xff] %v4628
  %v4630 = vld [vmem:[#allocation2 + $0x1e0] sm:$0xff]
  %v4631 = vld [vmem:[#allocation2 + $0x1e8] sm:$0xff]
  %v4632 = vld [vmem:[#allocation2 + $0x1f0] sm:$0xff]
  %v4633 = vld [vmem:[#allocation2 + $0x1f8] sm:$0xff]
  %v4634 = vld [vmem:[#allocation3] sm:$0xff]
  %v4635 = vpack.c.bf16 %v4634, %v4634
  %4636 = vmatprep.subr.bf16.mxu0 %v2788
  %4637 = vmatpush1.bf16.msra.mxu0 %v2787
  %4638 = vmatprep.subr.bf16.mxu0 %v2792
  %4639 = vmatpush1.bf16.msra.mxu0 %v2791
  %4640 = vmatprep.subr.bf16.mxu0 %v2796
  %4641 = vmatpush1.bf16.msra.mxu0 %v2795
  %4642 = vmatprep.subr.bf16.mxu0 %v2800
  %4643 = vmatpush1.bf16.msra.mxu0 %v2799
  %4644 = vmatprep.subr.bf16.mxu0 %v2804
  %4645 = vmatpush1.bf16.msra.mxu0 %v2803
  %4646 = vmatprep.subr.bf16.mxu0 %v2808
  %4647 = vmatpush1.bf16.msra.mxu0 %v2807
  %4648 = vmatprep.subr.bf16.mxu0 %v2812
  %4649 = vmatpush1.bf16.msra.mxu0 %v2811
  %4650 = vmatprep.subr.bf16.mxu0 %v2816
  %4651 = vmatpush1.bf16.msra.mxu0 %v2815
  %4652 = vmatprep.subr.bf16.mxu0 0
  %4653 = vmatpush1.bf16.msra.mxu0 0
  %4654 = vmatprep.subr.bf16.mxu0 0
  %4655 = vmatpush1.bf16.msra.mxu0 0
  %4656 = vmatprep.subr.bf16.mxu0 0
  %4657 = vmatpush1.bf16.msra.mxu0 0
  %4658 = vmatprep.subr.bf16.mxu0 0
  %4659 = vmatpush1.bf16.msra.mxu0 0
  %4660 = vmatprep.subr.bf16.mxu0 0
  %4661 = vmatpush1.bf16.msra.mxu0 0
  %4662 = vmatprep.subr.bf16.mxu0 0
  %4663 = vmatpush1.bf16.msra.mxu0 0
  %4664 = vmatprep.subr.bf16.mxu0 0
  %4665 = vmatpush1.bf16.msra.mxu0 0
  %4666 = vmatprep.subr.bf16.mxu0 0
  %4667 = vmatpush1.bf16.msra.mxu0 0
  %4668 = vmatprep.mubr.bf16.mxu0 0
  %4669 = vmatmul.mubr.bf16.gmra.mrb[0].mxu0 %v4635
  %v4670 = vpop.f32.mrb[0].mxu0
  %v4671 = vadd.f32 0.0, %v4670
  %v4672 = vpop.f32.mrb[0].mxu0
  %v4673 = vadd.f32 0.0, %v4672
  %v4674 = vpop.f32.mrb[0].mxu0
  %v4675 = vpop.f32.mrb[0].mxu0
  %4676 = vdwg.mxu0
  %4677 = vmatprep.subr.bf16.mxu0 %v2790
  %4678 = vmatpush1.bf16.msra.mxu0 %v2789
  %4679 = vmatprep.subr.bf16.mxu0 %v2794
  %4680 = vmatpush1.bf16.msra.mxu0 %v2793
  %4681 = vmatprep.subr.bf16.mxu0 %v2798
  %4682 = vmatpush1.bf16.msra.mxu0 %v2797
  %4683 = vmatprep.subr.bf16.mxu0 %v2802
  %4684 = vmatpush1.bf16.msra.mxu0 %v2801
  %4685 = vmatprep.subr.bf16.mxu0 %v2806
  %4686 = vmatpush1.bf16.msra.mxu0 %v2805
  %4687 = vmatprep.subr.bf16.mxu0 %v2810
  %4688 = vmatpush1.bf16.msra.mxu0 %v2809
  %4689 = vmatprep.subr.bf16.mxu0 %v2814
  %4690 = vmatpush1.bf16.msra.mxu0 %v2813
  %4691 = vmatprep.subr.bf16.mxu0 %v2818
  %4692 = vmatpush1.bf16.msra.mxu0 %v2817
  %4693 = vmatprep.subr.bf16.mxu0 0
  %4694 = vmatpush1.bf16.msra.mxu0 0
  %4695 = vmatprep.subr.bf16.mxu0 0
  %4696 = vmatpush1.bf16.msra.mxu0 0
  %4697 = vmatprep.subr.bf16.mxu0 0
  %4698 = vmatpush1.bf16.msra.mxu0 0
  %4699 = vmatprep.subr.bf16.mxu0 0
  %4700 = vmatpush1.bf16.msra.mxu0 0
  %4701 = vmatprep.subr.bf16.mxu0 0
  %4702 = vmatpush1.bf16.msra.mxu0 0
  %4703 = vmatprep.subr.bf16.mxu0 0
  %4704 = vmatpush1.bf16.msra.mxu0 0
  %4705 = vmatprep.subr.bf16.mxu0 0
  %4706 = vmatpush1.bf16.msra.mxu0 0
  %4707 = vmatprep.subr.bf16.mxu0 0
  %4708 = vmatpush1.bf16.msra.mxu0 0
  %4709 = vmatprep.mubr.bf16.mxu0 0
  %4710 = vmatmul.mubr.bf16.gmra.mrb[0].mxu0 %v4635
  %v4711 = vpop.f32.mrb[0].mxu0
  %v4712 = vadd.f32 0.0, %v4711
  %v4713 = vpop.f32.mrb[0].mxu0
  %v4714 = vadd.f32 0.0, %v4713
  %v4715 = vpop.f32.mrb[0].mxu0
  %v4716 = vpop.f32.mrb[0].mxu0
  %4717 = vdwg.mxu0
  %v4718 = vadd.f32 %v4630, %v4671
  %v4719 = vadd.f32 %v4631, %v4673
  %v4720 = vadd.f32 %v4632, %v4712
  %v4721 = vadd.f32 %v4633, %v4714
  %v4722 = vxor.u32 %v4718, 2147483648
  %v4723 = vmul.f32 %v4722, 1.442695
  %v4724 = vpow.pop %v4723
  %v4725 = vadd.f32 %v4724, 1.0
  %v4726 = vrcp.pop %v4725
  %v4727 = vmul.f32 1.0, %v4726
  %v4728 = vxor.u32 %v4719, 2147483648
  %v4729 = vmul.f32 %v4728, 1.442695
  %v4730 = vpow.pop %v4729
  %v4731 = vadd.f32 %v4730, 1.0
  %v4732 = vrcp.pop %v4731
  %v4733 = vmul.f32 1.0, %v4732
  %v4734 = vtanh.pop %v4720
  %v4735 = vxor.u32 %v4721, 2147483648
  %v4736 = vmul.f32 %v4735, 1.442695
  %v4737 = vpow.pop %v4736
  %v4738 = vadd.f32 %v4737, 1.0
  %v4739 = vrcp.pop %v4738
  %v4740 = vmul.f32 1.0, %v4739
  %v4741 = vld [vmem:[#allocation4] sm:$0xff]
  %v4742 = vmul.f32 %v4733, %v4741
  %v4743 = vmul.f32 %v4727, %v4734
  %v4744 = vadd.f32 %v4742, %v4743
  %4745 = vst [vmem:[#allocation4] sm:$0xff] %v4744
  %v4746 = vtanh.pop %v4744
  %v4747 = vmul.f32 %v4740, %v4746
  %4748 = vst [vmem:[#allocation3] sm:$0xff] %v4747
  %v4749 = vld [vmem:[#allocation2 + $0x200] sm:$0xff]
  %v4750 = vld [vmem:[#allocation2 + $0x208] sm:$0xff]
  %v4751 = vld [vmem:[#allocation2 + $0x210] sm:$0xff]
  %v4752 = vld [vmem:[#allocation2 + $0x218] sm:$0xff]
  %v4753 = vld [vmem:[#allocation3] sm:$0xff]
  %v4754 = vpack.c.bf16 %v4753, %v4753
  %4755 = vmatprep.subr.bf16.mxu0 %v2788
  %4756 = vmatpush1.bf16.msra.mxu0 %v2787
  %4757 = vmatprep.subr.bf16.mxu0 %v2792
  %4758 = vmatpush1.bf16.msra.mxu0 %v2791
  %4759 = vmatprep.subr.bf16.mxu0 %v2796
  %4760 = vmatpush1.bf16.msra.mxu0 %v2795
  %4761 = vmatprep.subr.bf16.mxu0 %v2800
  %4762 = vmatpush1.bf16.msra.mxu0 %v2799
  %4763 = vmatprep.subr.bf16.mxu0 %v2804
  %4764 = vmatpush1.bf16.msra.mxu0 %v2803
  %4765 = vmatprep.subr.bf16.mxu0 %v2808
  %4766 = vmatpush1.bf16.msra.mxu0 %v2807
  %4767 = vmatprep.subr.bf16.mxu0 %v2812
  %4768 = vmatpush1.bf16.msra.mxu0 %v2811
  %4769 = vmatprep.subr.bf16.mxu0 %v2816
  %4770 = vmatpush1.bf16.msra.mxu0 %v2815
  %4771 = vmatprep.subr.bf16.mxu0 0
  %4772 = vmatpush1.bf16.msra.mxu0 0
  %4773 = vmatprep.subr.bf16.mxu0 0
  %4774 = vmatpush1.bf16.msra.mxu0 0
  %4775 = vmatprep.subr.bf16.mxu0 0
  %4776 = vmatpush1.bf16.msra.mxu0 0
  %4777 = vmatprep.subr.bf16.mxu0 0
  %4778 = vmatpush1.bf16.msra.mxu0 0
  %4779 = vmatprep.subr.bf16.mxu0 0
  %4780 = vmatpush1.bf16.msra.mxu0 0
  %4781 = vmatprep.subr.bf16.mxu0 0
  %4782 = vmatpush1.bf16.msra.mxu0 0
  %4783 = vmatprep.subr.bf16.mxu0 0
  %4784 = vmatpush1.bf16.msra.mxu0 0
  %4785 = vmatprep.subr.bf16.mxu0 0
  %4786 = vmatpush1.bf16.msra.mxu0 0
  %4787 = vmatprep.mubr.bf16.mxu0 0
  %4788 = vmatmul.mubr.bf16.gmra.mrb[0].mxu0 %v4754
  %v4789 = vpop.f32.mrb[0].mxu0
  %v4790 = vadd.f32 0.0, %v4789
  %v4791 = vpop.f32.mrb[0].mxu0
  %v4792 = vadd.f32 0.0, %v4791
  %v4793 = vpop.f32.mrb[0].mxu0
  %v4794 = vpop.f32.mrb[0].mxu0
  %4795 = vdwg.mxu0
  %4796 = vmatprep.subr.bf16.mxu0 %v2790
  %4797 = vmatpush1.bf16.msra.mxu0 %v2789
  %4798 = vmatprep.subr.bf16.mxu0 %v2794
  %4799 = vmatpush1.bf16.msra.mxu0 %v2793
  %4800 = vmatprep.subr.bf16.mxu0 %v2798
  %4801 = vmatpush1.bf16.msra.mxu0 %v2797
  %4802 = vmatprep.subr.bf16.mxu0 %v2802
  %4803 = vmatpush1.bf16.msra.mxu0 %v2801
  %4804 = vmatprep.subr.bf16.mxu0 %v2806
  %4805 = vmatpush1.bf16.msra.mxu0 %v2805
  %4806 = vmatprep.subr.bf16.mxu0 %v2810
  %4807 = vmatpush1.bf16.msra.mxu0 %v2809
  %4808 = vmatprep.subr.bf16.mxu0 %v2814
  %4809 = vmatpush1.bf16.msra.mxu0 %v2813
  %4810 = vmatprep.subr.bf16.mxu0 %v2818
  %4811 = vmatpush1.bf16.msra.mxu0 %v2817
  %4812 = vmatprep.subr.bf16.mxu0 0
  %4813 = vmatpush1.bf16.msra.mxu0 0
  %4814 = vmatprep.subr.bf16.mxu0 0
  %4815 = vmatpush1.bf16.msra.mxu0 0
  %4816 = vmatprep.subr.bf16.mxu0 0
  %4817 = vmatpush1.bf16.msra.mxu0 0
  %4818 = vmatprep.subr.bf16.mxu0 0
  %4819 = vmatpush1.bf16.msra.mxu0 0
  %4820 = vmatprep.subr.bf16.mxu0 0
  %4821 = vmatpush1.bf16.msra.mxu0 0
  %4822 = vmatprep.subr.bf16.mxu0 0
  %4823 = vmatpush1.bf16.msra.mxu0 0
  %4824 = vmatprep.subr.bf16.mxu0 0
  %4825 = vmatpush1.bf16.msra.mxu0 0
  %4826 = vmatprep.subr.bf16.mxu0 0
  %4827 = vmatpush1.bf16.msra.mxu0 0
  %4828 = vmatprep.mubr.bf16.mxu0 0
  %4829 = vmatmul.mubr.bf16.gmra.mrb[0].mxu0 %v4754
  %v4830 = vpop.f32.mrb[0].mxu0
  %v4831 = vadd.f32 0.0, %v4830
  %v4832 = vpop.f32.mrb[0].mxu0
  %v4833 = vadd.f32 0.0, %v4832
  %v4834 = vpop.f32.mrb[0].mxu0
  %v4835 = vpop.f32.mrb[0].mxu0
  %4836 = vdwg.mxu0
  %v4837 = vadd.f32 %v4749, %v4790
  %v4838 = vadd.f32 %v4750, %v4792
  %v4839 = vadd.f32 %v4751, %v4831
  %v4840 = vadd.f32 %v4752, %v4833
  %v4841 = vxor.u32 %v4837, 2147483648
  %v4842 = vmul.f32 %v4841, 1.442695
  %v4843 = vpow.pop %v4842
  %v4844 = vadd.f32 %v4843, 1.0
  %v4845 = vrcp.pop %v4844
  %v4846 = vmul.f32 1.0, %v4845
  %v4847 = vxor.u32 %v4838, 2147483648
  %v4848 = vmul.f32 %v4847, 1.442695
  %v4849 = vpow.pop %v4848
  %v4850 = vadd.f32 %v4849, 1.0
  %v4851 = vrcp.pop %v4850
  %v4852 = vmul.f32 1.0, %v4851
  %v4853 = vtanh.pop %v4839
  %v4854 = vxor.u32 %v4840, 2147483648
  %v4855 = vmul.f32 %v4854, 1.442695
  %v4856 = vpow.pop %v4855
  %v4857 = vadd.f32 %v4856, 1.0
  %v4858 = vrcp.pop %v4857
  %v4859 = vmul.f32 1.0, %v4858
  %v4860 = vld [vmem:[#allocation4] sm:$0xff]
  %v4861 = vmul.f32 %v4852, %v4860
  %v4862 = vmul.f32 %v4846, %v4853
  %v4863 = vadd.f32 %v4861, %v4862
  %4864 = vst [vmem:[#allocation4] sm:$0xff] %v4863
  %v4865 = vtanh.pop %v4863
  %v4866 = vmul.f32 %v4859, %v4865
  %4867 = vst [vmem:[#allocation3] sm:$0xff] %v4866
  %v4868 = vld [vmem:[#allocation2 + $0x220] sm:$0xff]
  %v4869 = vld [vmem:[#allocation2 + $0x228] sm:$0xff]
  %v4870 = vld [vmem:[#allocation2 + $0x230] sm:$0xff]
  %v4871 = vld [vmem:[#allocation2 + $0x238] sm:$0xff]
  %v4872 = vld [vmem:[#allocation3] sm:$0xff]
  %v4873 = vpack.c.bf16 %v4872, %v4872
  %4874 = vmatprep.subr.bf16.mxu0 %v2788
  %4875 = vmatpush1.bf16.msra.mxu0 %v2787
  %4876 = vmatprep.subr.bf16.mxu0 %v2792
  %4877 = vmatpush1.bf16.msra.mxu0 %v2791
  %4878 = vmatprep.subr.bf16.mxu0 %v2796
  %4879 = vmatpush1.bf16.msra.mxu0 %v2795
  %4880 = vmatprep.subr.bf16.mxu0 %v2800
  %4881 = vmatpush1.bf16.msra.mxu0 %v2799
  %4882 = vmatprep.subr.bf16.mxu0 %v2804
  %4883 = vmatpush1.bf16.msra.mxu0 %v2803
  %4884 = vmatprep.subr.bf16.mxu0 %v2808
  %4885 = vmatpush1.bf16.msra.mxu0 %v2807
  %4886 = vmatprep.subr.bf16.mxu0 %v2812
  %4887 = vmatpush1.bf16.msra.mxu0 %v2811
  %4888 = vmatprep.subr.bf16.mxu0 %v2816
  %4889 = vmatpush1.bf16.msra.mxu0 %v2815
  %4890 = vmatprep.subr.bf16.mxu0 0
  %4891 = vmatpush1.bf16.msra.mxu0 0
  %4892 = vmatprep.subr.bf16.mxu0 0
  %4893 = vmatpush1.bf16.msra.mxu0 0
  %4894 = vmatprep.subr.bf16.mxu0 0
  %4895 = vmatpush1.bf16.msra.mxu0 0
  %4896 = vmatprep.subr.bf16.mxu0 0
  %4897 = vmatpush1.bf16.msra.mxu0 0
  %4898 = vmatprep.subr.bf16.mxu0 0
  %4899 = vmatpush1.bf16.msra.mxu0 0
  %4900 = vmatprep.subr.bf16.mxu0 0
  %4901 = vmatpush1.bf16.msra.mxu0 0
  %4902 = vmatprep.subr.bf16.mxu0 0
  %4903 = vmatpush1.bf16.msra.mxu0 0
  %4904 = vmatprep.subr.bf16.mxu0 0
  %4905 = vmatpush1.bf16.msra.mxu0 0
  %4906 = vmatprep.mubr.bf16.mxu0 0
  %4907 = vmatmul.mubr.bf16.gmra.mrb[0].mxu0 %v4873
  %v4908 = vpop.f32.mrb[0].mxu0
  %v4909 = vadd.f32 0.0, %v4908
  %v4910 = vpop.f32.mrb[0].mxu0
  %v4911 = vadd.f32 0.0, %v4910
  %v4912 = vpop.f32.mrb[0].mxu0
  %v4913 = vpop.f32.mrb[0].mxu0
  %4914 = vdwg.mxu0
  %4915 = vmatprep.subr.bf16.mxu0 %v2790
  %4916 = vmatpush1.bf16.msra.mxu0 %v2789
  %4917 = vmatprep.subr.bf16.mxu0 %v2794
  %4918 = vmatpush1.bf16.msra.mxu0 %v2793
  %4919 = vmatprep.subr.bf16.mxu0 %v2798
  %4920 = vmatpush1.bf16.msra.mxu0 %v2797
  %4921 = vmatprep.subr.bf16.mxu0 %v2802
  %4922 = vmatpush1.bf16.msra.mxu0 %v2801
  %4923 = vmatprep.subr.bf16.mxu0 %v2806
  %4924 = vmatpush1.bf16.msra.mxu0 %v2805
  %4925 = vmatprep.subr.bf16.mxu0 %v2810
  %4926 = vmatpush1.bf16.msra.mxu0 %v2809
  %4927 = vmatprep.subr.bf16.mxu0 %v2814
  %4928 = vmatpush1.bf16.msra.mxu0 %v2813
  %4929 = vmatprep.subr.bf16.mxu0 %v2818
  %4930 = vmatpush1.bf16.msra.mxu0 %v2817
  %4931 = vmatprep.subr.bf16.mxu0 0
  %4932 = vmatpush1.bf16.msra.mxu0 0
  %4933 = vmatprep.subr.bf16.mxu0 0
  %4934 = vmatpush1.bf16.msra.mxu0 0
  %4935 = vmatprep.subr.bf16.mxu0 0
  %4936 = vmatpush1.bf16.msra.mxu0 0
  %4937 = vmatprep.subr.bf16.mxu0 0
  %4938 = vmatpush1.bf16.msra.mxu0 0
  %4939 = vmatprep.subr.bf16.mxu0 0
  %4940 = vmatpush1.bf16.msra.mxu0 0
  %4941 = vmatprep.subr.bf16.mxu0 0
  %4942 = vmatpush1.bf16.msra.mxu0 0
  %4943 = vmatprep.subr.bf16.mxu0 0
  %4944 = vmatpush1.bf16.msra.mxu0 0
  %4945 = vmatprep.subr.bf16.mxu0 0
  %4946 = vmatpush1.bf16.msra.mxu0 0
  %4947 = vmatprep.mubr.bf16.mxu0 0
  %4948 = vmatmul.mubr.bf16.gmra.mrb[0].mxu0 %v4873
  %v4949 = vpop.f32.mrb[0].mxu0
  %v4950 = vadd.f32 0.0, %v4949
  %v4951 = vpop.f32.mrb[0].mxu0
  %v4952 = vadd.f32 0.0, %v4951
  %v4953 = vpop.f32.mrb[0].mxu0
  %v4954 = vpop.f32.mrb[0].mxu0
  %4955 = vdwg.mxu0
  %v4956 = vadd.f32 %v4868, %v4909
  %v4957 = vadd.f32 %v4869, %v4911
  %v4958 = vadd.f32 %v4870, %v4950
  %v4959 = vadd.f32 %v4871, %v4952
  %v4960 = vxor.u32 %v4956, 2147483648
  %v4961 = vmul.f32 %v4960, 1.442695
  %v4962 = vpow.pop %v4961
  %v4963 = vadd.f32 %v4962, 1.0
  %v4964 = vrcp.pop %v4963
  %v4965 = vmul.f32 1.0, %v4964
  %v4966 = vxor.u32 %v4957, 2147483648
  %v4967 = vmul.f32 %v4966, 1.442695
  %v4968 = vpow.pop %v4967
  %v4969 = vadd.f32 %v4968, 1.0
  %v4970 = vrcp.pop %v4969
  %v4971 = vmul.f32 1.0, %v4970
  %v4972 = vtanh.pop %v4958
  %v4973 = vxor.u32 %v4959, 2147483648
  %v4974 = vmul.f32 %v4973, 1.442695
  %v4975 = vpow.pop %v4974
  %v4976 = vadd.f32 %v4975, 1.0
  %v4977 = vrcp.pop %v4976
  %v4978 = vmul.f32 1.0, %v4977
  %v4979 = vld [vmem:[#allocation4] sm:$0xff]
  %v4980 = vmul.f32 %v4971, %v4979
  %v4981 = vmul.f32 %v4965, %v4972
  %v4982 = vadd.f32 %v4980, %v4981
  %4983 = vst [vmem:[#allocation4] sm:$0xff] %v4982
  %v4984 = vtanh.pop %v4982
  %v4985 = vmul.f32 %v4978, %v4984
  %4986 = vst [vmem:[#allocation3] sm:$0xff] %v4985
  %v4987 = vld [vmem:[#allocation2 + $0x240] sm:$0xff]
  %v4988 = vld [vmem:[#allocation2 + $0x248] sm:$0xff]
  %v4989 = vld [vmem:[#allocation2 + $0x250] sm:$0xff]
  %v4990 = vld [vmem:[#allocation2 + $0x258] sm:$0xff]
  %v4991 = vld [vmem:[#allocation3] sm:$0xff]
  %v4992 = vpack.c.bf16 %v4991, %v4991
  %4993 = vmatprep.subr.bf16.mxu0 %v2788
  %4994 = vmatpush1.bf16.msra.mxu0 %v2787
  %4995 = vmatprep.subr.bf16.mxu0 %v2792
  %4996 = vmatpush1.bf16.msra.mxu0 %v2791
  %4997 = vmatprep.subr.bf16.mxu0 %v2796
  %4998 = vmatpush1.bf16.msra.mxu0 %v2795
  %4999 = vmatprep.subr.bf16.mxu0 %v2800
  %5000 = vmatpush1.bf16.msra.mxu0 %v2799
  %5001 = vmatprep.subr.bf16.mxu0 %v2804
  %5002 = vmatpush1.bf16.msra.mxu0 %v2803
  %5003 = vmatprep.subr.bf16.mxu0 %v2808
  %5004 = vmatpush1.bf16.msra.mxu0 %v2807
  %5005 = vmatprep.subr.bf16.mxu0 %v2812
  %5006 = vmatpush1.bf16.msra.mxu0 %v2811
  %5007 = vmatprep.subr.bf16.mxu0 %v2816
  %5008 = vmatpush1.bf16.msra.mxu0 %v2815
  %5009 = vmatprep.subr.bf16.mxu0 0
  %5010 = vmatpush1.bf16.msra.mxu0 0
  %5011 = vmatprep.subr.bf16.mxu0 0
  %5012 = vmatpush1.bf16.msra.mxu0 0
  %5013 = vmatprep.subr.bf16.mxu0 0
  %5014 = vmatpush1.bf16.msra.mxu0 0
  %5015 = vmatprep.subr.bf16.mxu0 0
  %5016 = vmatpush1.bf16.msra.mxu0 0
  %5017 = vmatprep.subr.bf16.mxu0 0
  %5018 = vmatpush1.bf16.msra.mxu0 0
  %5019 = vmatprep.subr.bf16.mxu0 0
  %5020 = vmatpush1.bf16.msra.mxu0 0
  %5021 = vmatprep.subr.bf16.mxu0 0
  %5022 = vmatpush1.bf16.msra.mxu0 0
  %5023 = vmatprep.subr.bf16.mxu0 0
  %5024 = vmatpush1.bf16.msra.mxu0 0
  %5025 = vmatprep.mubr.bf16.mxu0 0
  %5026 = vmatmul.mubr.bf16.gmra.mrb[0].mxu0 %v4992
  %v5027 = vpop.f32.mrb[0].mxu0
  %v5028 = vadd.f32 0.0, %v5027
  %v5029 = vpop.f32.mrb[0].mxu0
  %v5030 = vadd.f32 0.0, %v5029
  %v5031 = vpop.f32.mrb[0].mxu0
  %v5032 = vpop.f32.mrb[0].mxu0
  %5033 = vdwg.mxu0
  %5034 = vmatprep.subr.bf16.mxu0 %v2790
  %5035 = vmatpush1.bf16.msra.mxu0 %v2789
  %5036 = vmatprep.subr.bf16.mxu0 %v2794
  %5037 = vmatpush1.bf16.msra.mxu0 %v2793
  %5038 = vmatprep.subr.bf16.mxu0 %v2798
  %5039 = vmatpush1.bf16.msra.mxu0 %v2797
  %5040 = vmatprep.subr.bf16.mxu0 %v2802
  %5041 = vmatpush1.bf16.msra.mxu0 %v2801
  %5042 = vmatprep.subr.bf16.mxu0 %v2806
  %5043 = vmatpush1.bf16.msra.mxu0 %v2805
  %5044 = vmatprep.subr.bf16.mxu0 %v2810
  %5045 = vmatpush1.bf16.msra.mxu0 %v2809
  %5046 = vmatprep.subr.bf16.mxu0 %v2814
  %5047 = vmatpush1.bf16.msra.mxu0 %v2813
  %5048 = vmatprep.subr.bf16.mxu0 %v2818
  %5049 = vmatpush1.bf16.msra.mxu0 %v2817
  %5050 = vmatprep.subr.bf16.mxu0 0
  %5051 = vmatpush1.bf16.msra.mxu0 0
  %5052 = vmatprep.subr.bf16.mxu0 0
  %5053 = vmatpush1.bf16.msra.mxu0 0
  %5054 = vmatprep.subr.bf16.mxu0 0
  %5055 = vmatpush1.bf16.msra.mxu0 0
  %5056 = vmatprep.subr.bf16.mxu0 0
  %5057 = vmatpush1.bf16.msra.mxu0 0
  %5058 = vmatprep.subr.bf16.mxu0 0
  %5059 = vmatpush1.bf16.msra.mxu0 0
  %5060 = vmatprep.subr.bf16.mxu0 0
  %5061 = vmatpush1.bf16.msra.mxu0 0
  %5062 = vmatprep.subr.bf16.mxu0 0
  %5063 = vmatpush1.bf16.msra.mxu0 0
  %5064 = vmatprep.subr.bf16.mxu0 0
  %5065 = vmatpush1.bf16.msra.mxu0 0
  %5066 = vmatprep.mubr.bf16.mxu0 0
  %5067 = vmatmul.mubr.bf16.gmra.mrb[0].mxu0 %v4992
  %v5068 = vpop.f32.mrb[0].mxu0
  %v5069 = vadd.f32 0.0, %v5068
  %v5070 = vpop.f32.mrb[0].mxu0
  %v5071 = vadd.f32 0.0, %v5070
  %v5072 = vpop.f32.mrb[0].mxu0
  %v5073 = vpop.f32.mrb[0].mxu0
  %5074 = vdwg.mxu0
  %v5075 = vadd.f32 %v4987, %v5028
  %v5076 = vadd.f32 %v4988, %v5030
  %v5077 = vadd.f32 %v4989, %v5069
  %v5078 = vadd.f32 %v4990, %v5071
  %v5079 = vxor.u32 %v5075, 2147483648
  %v5080 = vmul.f32 %v5079, 1.442695
  %v5081 = vpow.pop %v5080
  %v5082 = vadd.f32 %v5081, 1.0
  %v5083 = vrcp.pop %v5082
  %v5084 = vmul.f32 1.0, %v5083
  %v5085 = vxor.u32 %v5076, 2147483648
  %v5086 = vmul.f32 %v5085, 1.442695
  %v5087 = vpow.pop %v5086
  %v5088 = vadd.f32 %v5087, 1.0
  %v5089 = vrcp.pop %v5088
  %v5090 = vmul.f32 1.0, %v5089
  %v5091 = vtanh.pop %v5077
  %v5092 = vxor.u32 %v5078, 2147483648
  %v5093 = vmul.f32 %v5092, 1.442695
  %v5094 = vpow.pop %v5093
  %v5095 = vadd.f32 %v5094, 1.0
  %v5096 = vrcp.pop %v5095
  %v5097 = vmul.f32 1.0, %v5096
  %v5098 = vld [vmem:[#allocation4] sm:$0xff]
  %v5099 = vmul.f32 %v5090, %v5098
  %v5100 = vmul.f32 %v5084, %v5091
  %v5101 = vadd.f32 %v5099, %v5100
  %5102 = vst [vmem:[#allocation4] sm:$0xff] %v5101
  %v5103 = vtanh.pop %v5101
  %v5104 = vmul.f32 %v5097, %v5103
  %5105 = vst [vmem:[#allocation3] sm:$0xff] %v5104
  %v5106 = vld [vmem:[#allocation2 + $0x260] sm:$0xff]
  %v5107 = vld [vmem:[#allocation2 + $0x268] sm:$0xff]
  %v5108 = vld [vmem:[#allocation2 + $0x270] sm:$0xff]
  %v5109 = vld [vmem:[#allocation2 + $0x278] sm:$0xff]
  %v5110 = vld [vmem:[#allocation3] sm:$0xff]
  %v5111 = vpack.c.bf16 %v5110, %v5110
  %5112 = vmatprep.subr.bf16.mxu0 %v2788
  %5113 = vmatpush1.bf16.msra.mxu0 %v2787
  %5114 = vmatprep.subr.bf16.mxu0 %v2792
  %5115 = vmatpush1.bf16.msra.mxu0 %v2791
  %5116 = vmatprep.subr.bf16.mxu0 %v2796
  %5117 = vmatpush1.bf16.msra.mxu0 %v2795
  %5118 = vmatprep.subr.bf16.mxu0 %v2800
  %5119 = vmatpush1.bf16.msra.mxu0 %v2799
  %5120 = vmatprep.subr.bf16.mxu0 %v2804
  %5121 = vmatpush1.bf16.msra.mxu0 %v2803
  %5122 = vmatprep.subr.bf16.mxu0 %v2808
  %5123 = vmatpush1.bf16.msra.mxu0 %v2807
  %5124 = vmatprep.subr.bf16.mxu0 %v2812
  %5125 = vmatpush1.bf16.msra.mxu0 %v2811
  %5126 = vmatprep.subr.bf16.mxu0 %v2816
  %5127 = vmatpush1.bf16.msra.mxu0 %v2815
  %5128 = vmatprep.subr.bf16.mxu0 0
  %5129 = vmatpush1.bf16.msra.mxu0 0
  %5130 = vmatprep.subr.bf16.mxu0 0
  %5131 = vmatpush1.bf16.msra.mxu0 0
  %5132 = vmatprep.subr.bf16.mxu0 0
  %5133 = vmatpush1.bf16.msra.mxu0 0
  %5134 = vmatprep.subr.bf16.mxu0 0
  %5135 = vmatpush1.bf16.msra.mxu0 0
  %5136 = vmatprep.subr.bf16.mxu0 0
  %5137 = vmatpush1.bf16.msra.mxu0 0
  %5138 = vmatprep.subr.bf16.mxu0 0
  %5139 = vmatpush1.bf16.msra.mxu0 0
  %5140 = vmatprep.subr.bf16.mxu0 0
  %5141 = vmatpush1.bf16.msra.mxu0 0
  %5142 = vmatprep.subr.bf16.mxu0 0
  %5143 = vmatpush1.bf16.msra.mxu0 0
  %5144 = vmatprep.mubr.bf16.mxu0 0
  %5145 = vmatmul.mubr.bf16.gmra.mrb[0].mxu0 %v5111
  %v5146 = vpop.f32.mrb[0].mxu0
  %v5147 = vadd.f32 0.0, %v5146
  %v5148 = vpop.f32.mrb[0].mxu0
  %v5149 = vadd.f32 0.0, %v5148
  %v5150 = vpop.f32.mrb[0].mxu0
  %v5151 = vpop.f32.mrb[0].mxu0
  %5152 = vdwg.mxu0
  %5153 = vmatprep.subr.bf16.mxu0 %v2790
  %5154 = vmatpush1.bf16.msra.mxu0 %v2789
  %5155 = vmatprep.subr.bf16.mxu0 %v2794
  %5156 = vmatpush1.bf16.msra.mxu0 %v2793
  %5157 = vmatprep.subr.bf16.mxu0 %v2798
  %5158 = vmatpush1.bf16.msra.mxu0 %v2797
  %5159 = vmatprep.subr.bf16.mxu0 %v2802
  %5160 = vmatpush1.bf16.msra.mxu0 %v2801
  %5161 = vmatprep.subr.bf16.mxu0 %v2806
  %5162 = vmatpush1.bf16.msra.mxu0 %v2805
  %5163 = vmatprep.subr.bf16.mxu0 %v2810
  %5164 = vmatpush1.bf16.msra.mxu0 %v2809
  %5165 = vmatprep.subr.bf16.mxu0 %v2814
  %5166 = vmatpush1.bf16.msra.mxu0 %v2813
  %5167 = vmatprep.subr.bf16.mxu0 %v2818
  %5168 = vmatpush1.bf16.msra.mxu0 %v2817
  %5169 = vmatprep.subr.bf16.mxu0 0
  %5170 = vmatpush1.bf16.msra.mxu0 0
  %5171 = vmatprep.subr.bf16.mxu0 0
  %5172 = vmatpush1.bf16.msra.mxu0 0
  %5173 = vmatprep.subr.bf16.mxu0 0
  %5174 = vmatpush1.bf16.msra.mxu0 0
  %5175 = vmatprep.subr.bf16.mxu0 0
  %5176 = vmatpush1.bf16.msra.mxu0 0
  %5177 = vmatprep.subr.bf16.mxu0 0
  %5178 = vmatpush1.bf16.msra.mxu0 0
  %5179 = vmatprep.subr.bf16.mxu0 0
  %5180 = vmatpush1.bf16.msra.mxu0 0
  %5181 = vmatprep.subr.bf16.mxu0 0
  %5182 = vmatpush1.bf16.msra.mxu0 0
  %5183 = vmatprep.subr.bf16.mxu0 0
  %5184 = vmatpush1.bf16.msra.mxu0 0
  %5185 = vmatprep.mubr.bf16.mxu0 0
  %5186 = vmatmul.mubr.bf16.gmra.mrb[0].mxu0 %v5111
  %v5187 = vpop.f32.mrb[0].mxu0
  %v5188 = vadd.f32 0.0, %v5187
  %v5189 = vpop.f32.mrb[0].mxu0
  %v5190 = vadd.f32 0.0, %v5189
  %v5191 = vpop.f32.mrb[0].mxu0
  %v5192 = vpop.f32.mrb[0].mxu0
  %5193 = vdwg.mxu0
  %v5194 = vadd.f32 %v5106, %v5147
  %v5195 = vadd.f32 %v5107, %v5149
  %v5196 = vadd.f32 %v5108, %v5188
  %v5197 = vadd.f32 %v5109, %v5190
  %v5198 = vxor.u32 %v5194, 2147483648
  %v5199 = vmul.f32 %v5198, 1.442695
  %v5200 = vpow.pop %v5199
  %v5201 = vadd.f32 %v5200, 1.0
  %v5202 = vrcp.pop %v5201
  %v5203 = vmul.f32 1.0, %v5202
  %v5204 = vxor.u32 %v5195, 2147483648
  %v5205 = vmul.f32 %v5204, 1.442695
  %v5206 = vpow.pop %v5205
  %v5207 = vadd.f32 %v5206, 1.0
  %v5208 = vrcp.pop %v5207
  %v5209 = vmul.f32 1.0, %v5208
  %v5210 = vtanh.pop %v5196
  %v5211 = vxor.u32 %v5197, 2147483648
  %v5212 = vmul.f32 %v5211, 1.442695
  %v5213 = vpow.pop %v5212
  %v5214 = vadd.f32 %v5213, 1.0
  %v5215 = vrcp.pop %v5214
  %v5216 = vmul.f32 1.0, %v5215
  %v5217 = vld [vmem:[#allocation4] sm:$0xff]
  %v5218 = vmul.f32 %v5209, %v5217
  %v5219 = vmul.f32 %v5203, %v5210
  %v5220 = vadd.f32 %v5218, %v5219
  %5221 = vst [vmem:[#allocation4] sm:$0xff] %v5220
  %v5222 = vtanh.pop %v5220
  %v5223 = vmul.f32 %v5216, %v5222
  %5224 = vst [vmem:[#allocation3] sm:$0xff] %v5223
  %v5225 = vld [vmem:[#allocation2 + $0x280] sm:$0xff]
  %v5226 = vld [vmem:[#allocation2 + $0x288] sm:$0xff]
  %v5227 = vld [vmem:[#allocation2 + $0x290] sm:$0xff]
  %v5228 = vld [vmem:[#allocation2 + $0x298] sm:$0xff]
  %v5229 = vld [vmem:[#allocation3] sm:$0xff]
  %v5230 = vpack.c.bf16 %v5229, %v5229
  %5231 = vmatprep.subr.bf16.mxu0 %v2788
  %5232 = vmatpush1.bf16.msra.mxu0 %v2787
  %5233 = vmatprep.subr.bf16.mxu0 %v2792
  %5234 = vmatpush1.bf16.msra.mxu0 %v2791
  %5235 = vmatprep.subr.bf16.mxu0 %v2796
  %5236 = vmatpush1.bf16.msra.mxu0 %v2795
  %5237 = vmatprep.subr.bf16.mxu0 %v2800
  %5238 = vmatpush1.bf16.msra.mxu0 %v2799
  %5239 = vmatprep.subr.bf16.mxu0 %v2804
  %5240 = vmatpush1.bf16.msra.mxu0 %v2803
  %5241 = vmatprep.subr.bf16.mxu0 %v2808
  %5242 = vmatpush1.bf16.msra.mxu0 %v2807
  %5243 = vmatprep.subr.bf16.mxu0 %v2812
  %5244 = vmatpush1.bf16.msra.mxu0 %v2811
  %5245 = vmatprep.subr.bf16.mxu0 %v2816
  %5246 = vmatpush1.bf16.msra.mxu0 %v2815
  %5247 = vmatprep.subr.bf16.mxu0 0
  %5248 = vmatpush1.bf16.msra.mxu0 0
  %5249 = vmatprep.subr.bf16.mxu0 0
  %5250 = vmatpush1.bf16.msra.mxu0 0
  %5251 = vmatprep.subr.bf16.mxu0 0
  %5252 = vmatpush1.bf16.msra.mxu0 0
  %5253 = vmatprep.subr.bf16.mxu0 0
  %5254 = vmatpush1.bf16.msra.mxu0 0
  %5255 = vmatprep.subr.bf16.mxu0 0
  %5256 = vmatpush1.bf16.msra.mxu0 0
  %5257 = vmatprep.subr.bf16.mxu0 0
  %5258 = vmatpush1.bf16.msra.mxu0 0
  %5259 = vmatprep.subr.bf16.mxu0 0
  %5260 = vmatpush1.bf16.msra.mxu0 0
  %5261 = vmatprep.subr.bf16.mxu0 0
  %5262 = vmatpush1.bf16.msra.mxu0 0
  %5263 = vmatprep.mubr.bf16.mxu0 0
  %5264 = vmatmul.mubr.bf16.gmra.mrb[0].mxu0 %v5230
  %v5265 = vpop.f32.mrb[0].mxu0
  %v5266 = vadd.f32 0.0, %v5265
  %v5267 = vpop.f32.mrb[0].mxu0
  %v5268 = vadd.f32 0.0, %v5267
  %v5269 = vpop.f32.mrb[0].mxu0
  %v5270 = vpop.f32.mrb[0].mxu0
  %5271 = vdwg.mxu0
  %5272 = vmatprep.subr.bf16.mxu0 %v2790
  %5273 = vmatpush1.bf16.msra.mxu0 %v2789
  %5274 = vmatprep.subr.bf16.mxu0 %v2794
  %5275 = vmatpush1.bf16.msra.mxu0 %v2793
  %5276 = vmatprep.subr.bf16.mxu0 %v2798
  %5277 = vmatpush1.bf16.msra.mxu0 %v2797
  %5278 = vmatprep.subr.bf16.mxu0 %v2802
  %5279 = vmatpush1.bf16.msra.mxu0 %v2801
  %5280 = vmatprep.subr.bf16.mxu0 %v2806
  %5281 = vmatpush1.bf16.msra.mxu0 %v2805
  %5282 = vmatprep.subr.bf16.mxu0 %v2810
  %5283 = vmatpush1.bf16.msra.mxu0 %v2809
  %5284 = vmatprep.subr.bf16.mxu0 %v2814
  %5285 = vmatpush1.bf16.msra.mxu0 %v2813
  %5286 = vmatprep.subr.bf16.mxu0 %v2818
  %5287 = vmatpush1.bf16.msra.mxu0 %v2817
  %5288 = vmatprep.subr.bf16.mxu0 0
  %5289 = vmatpush1.bf16.msra.mxu0 0
  %5290 = vmatprep.subr.bf16.mxu0 0
  %5291 = vmatpush1.bf16.msra.mxu0 0
  %5292 = vmatprep.subr.bf16.mxu0 0
  %5293 = vmatpush1.bf16.msra.mxu0 0
  %5294 = vmatprep.subr.bf16.mxu0 0
  %5295 = vmatpush1.bf16.msra.mxu0 0
  %5296 = vmatprep.subr.bf16.mxu0 0
  %5297 = vmatpush1.bf16.msra.mxu0 0
  %5298 = vmatprep.subr.bf16.mxu0 0
  %5299 = vmatpush1.bf16.msra.mxu0 0
  %5300 = vmatprep.subr.bf16.mxu0 0
  %5301 = vmatpush1.bf16.msra.mxu0 0
  %5302 = vmatprep.subr.bf16.mxu0 0
  %5303 = vmatpush1.bf16.msra.mxu0 0
  %5304 = vmatprep.mubr.bf16.mxu0 0
  %5305 = vmatmul.mubr.bf16.gmra.mrb[0].mxu0 %v5230
  %v5306 = vpop.f32.mrb[0].mxu0
  %v5307 = vadd.f32 0.0, %v5306
  %v5308 = vpop.f32.mrb[0].mxu0
  %v5309 = vadd.f32 0.0, %v5308
  %v5310 = vpop.f32.mrb[0].mxu0
  %v5311 = vpop.f32.mrb[0].mxu0
  %5312 = vdwg.mxu0
  %v5313 = vadd.f32 %v5225, %v5266
  %v5314 = vadd.f32 %v5226, %v5268
  %v5315 = vadd.f32 %v5227, %v5307
  %v5316 = vadd.f32 %v5228, %v5309
  %v5317 = vxor.u32 %v5313, 2147483648
  %v5318 = vmul.f32 %v5317, 1.442695
  %v5319 = vpow.pop %v5318
  %v5320 = vadd.f32 %v5319, 1.0
  %v5321 = vrcp.pop %v5320
  %v5322 = vmul.f32 1.0, %v5321
  %v5323 = vxor.u32 %v5314, 2147483648
  %v5324 = vmul.f32 %v5323, 1.442695
  %v5325 = vpow.pop %v5324
  %v5326 = vadd.f32 %v5325, 1.0
  %v5327 = vrcp.pop %v5326
  %v5328 = vmul.f32 1.0, %v5327
  %v5329 = vtanh.pop %v5315
  %v5330 = vxor.u32 %v5316, 2147483648
  %v5331 = vmul.f32 %v5330, 1.442695
  %v5332 = vpow.pop %v5331
  %v5333 = vadd.f32 %v5332, 1.0
  %v5334 = vrcp.pop %v5333
  %v5335 = vmul.f32 1.0, %v5334
  %v5336 = vld [vmem:[#allocation4] sm:$0xff]
  %v5337 = vmul.f32 %v5328, %v5336
  %v5338 = vmul.f32 %v5322, %v5329
  %v5339 = vadd.f32 %v5337, %v5338
  %5340 = vst [vmem:[#allocation4] sm:$0xff] %v5339
  %v5341 = vtanh.pop %v5339
  %v5342 = vmul.f32 %v5335, %v5341
  %5343 = vst [vmem:[#allocation3] sm:$0xff] %v5342
  %v5344 = vld [vmem:[#allocation2 + $0x2a0] sm:$0xff]
  %v5345 = vld [vmem:[#allocation2 + $0x2a8] sm:$0xff]
  %v5346 = vld [vmem:[#allocation2 + $0x2b0] sm:$0xff]
  %v5347 = vld [vmem:[#allocation2 + $0x2b8] sm:$0xff]
  %v5348 = vld [vmem:[#allocation3] sm:$0xff]
  %v5349 = vpack.c.bf16 %v5348, %v5348
  %5350 = vmatprep.subr.bf16.mxu0 %v2788
  %5351 = vmatpush1.bf16.msra.mxu0 %v2787
  %5352 = vmatprep.subr.bf16.mxu0 %v2792
  %5353 = vmatpush1.bf16.msra.mxu0 %v2791
  %5354 = vmatprep.subr.bf16.mxu0 %v2796
  %5355 = vmatpush1.bf16.msra.mxu0 %v2795
  %5356 = vmatprep.subr.bf16.mxu0 %v2800
  %5357 = vmatpush1.bf16.msra.mxu0 %v2799
  %5358 = vmatprep.subr.bf16.mxu0 %v2804
  %5359 = vmatpush1.bf16.msra.mxu0 %v2803
  %5360 = vmatprep.subr.bf16.mxu0 %v2808
  %5361 = vmatpush1.bf16.msra.mxu0 %v2807
  %5362 = vmatprep.subr.bf16.mxu0 %v2812
  %5363 = vmatpush1.bf16.msra.mxu0 %v2811
  %5364 = vmatprep.subr.bf16.mxu0 %v2816
  %5365 = vmatpush1.bf16.msra.mxu0 %v2815
  %5366 = vmatprep.subr.bf16.mxu0 0
  %5367 = vmatpush1.bf16.msra.mxu0 0
  %5368 = vmatprep.subr.bf16.mxu0 0
  %5369 = vmatpush1.bf16.msra.mxu0 0
  %5370 = vmatprep.subr.bf16.mxu0 0
  %5371 = vmatpush1.bf16.msra.mxu0 0
  %5372 = vmatprep.subr.bf16.mxu0 0
  %5373 = vmatpush1.bf16.msra.mxu0 0
  %5374 = vmatprep.subr.bf16.mxu0 0
  %5375 = vmatpush1.bf16.msra.mxu0 0
  %5376 = vmatprep.subr.bf16.mxu0 0
  %5377 = vmatpush1.bf16.msra.mxu0 0
  %5378 = vmatprep.subr.bf16.mxu0 0
  %5379 = vmatpush1.bf16.msra.mxu0 0
  %5380 = vmatprep.subr.bf16.mxu0 0
  %5381 = vmatpush1.bf16.msra.mxu0 0
  %5382 = vmatprep.mubr.bf16.mxu0 0
  %5383 = vmatmul.mubr.bf16.gmra.mrb[0].mxu0 %v5349
  %v5384 = vpop.f32.mrb[0].mxu0
  %v5385 = vadd.f32 0.0, %v5384
  %v5386 = vpop.f32.mrb[0].mxu0
  %v5387 = vadd.f32 0.0, %v5386
  %v5388 = vpop.f32.mrb[0].mxu0
  %v5389 = vpop.f32.mrb[0].mxu0
  %5390 = vdwg.mxu0
  %5391 = vmatprep.subr.bf16.mxu0 %v2790
  %5392 = vmatpush1.bf16.msra.mxu0 %v2789
  %5393 = vmatprep.subr.bf16.mxu0 %v2794
  %5394 = vmatpush1.bf16.msra.mxu0 %v2793
  %5395 = vmatprep.subr.bf16.mxu0 %v2798
  %5396 = vmatpush1.bf16.msra.mxu0 %v2797
  %5397 = vmatprep.subr.bf16.mxu0 %v2802
  %5398 = vmatpush1.bf16.msra.mxu0 %v2801
  %5399 = vmatprep.subr.bf16.mxu0 %v2806
  %5400 = vmatpush1.bf16.msra.mxu0 %v2805
  %5401 = vmatprep.subr.bf16.mxu0 %v2810
  %5402 = vmatpush1.bf16.msra.mxu0 %v2809
  %5403 = vmatprep.subr.bf16.mxu0 %v2814
  %5404 = vmatpush1.bf16.msra.mxu0 %v2813
  %5405 = vmatprep.subr.bf16.mxu0 %v2818
  %5406 = vmatpush1.bf16.msra.mxu0 %v2817
  %5407 = vmatprep.subr.bf16.mxu0 0
  %5408 = vmatpush1.bf16.msra.mxu0 0
  %5409 = vmatprep.subr.bf16.mxu0 0
  %5410 = vmatpush1.bf16.msra.mxu0 0
  %5411 = vmatprep.subr.bf16.mxu0 0
  %5412 = vmatpush1.bf16.msra.mxu0 0
  %5413 = vmatprep.subr.bf16.mxu0 0
  %5414 = vmatpush1.bf16.msra.mxu0 0
  %5415 = vmatprep.subr.bf16.mxu0 0
  %5416 = vmatpush1.bf16.msra.mxu0 0
  %5417 = vmatprep.subr.bf16.mxu0 0
  %5418 = vmatpush1.bf16.msra.mxu0 0
  %5419 = vmatprep.subr.bf16.mxu0 0
  %5420 = vmatpush1.bf16.msra.mxu0 0
  %5421 = vmatprep.subr.bf16.mxu0 0
  %5422 = vmatpush1.bf16.msra.mxu0 0
  %5423 = vmatprep.mubr.bf16.mxu0 0
  %5424 = vmatmul.mubr.bf16.gmra.mrb[0].mxu0 %v5349
  %v5425 = vpop.f32.mrb[0].mxu0
  %v5426 = vadd.f32 0.0, %v5425
  %v5427 = vpop.f32.mrb[0].mxu0
  %v5428 = vadd.f32 0.0, %v5427
  %v5429 = vpop.f32.mrb[0].mxu0
  %v5430 = vpop.f32.mrb[0].mxu0
  %5431 = vdwg.mxu0
  %v5432 = vadd.f32 %v5344, %v5385
  %v5433 = vadd.f32 %v5345, %v5387
  %v5434 = vadd.f32 %v5346, %v5426
  %v5435 = vadd.f32 %v5347, %v5428
  %v5436 = vxor.u32 %v5432, 2147483648
  %v5437 = vmul.f32 %v5436, 1.442695
  %v5438 = vpow.pop %v5437
  %v5439 = vadd.f32 %v5438, 1.0
  %v5440 = vrcp.pop %v5439
  %v5441 = vmul.f32 1.0, %v5440
  %v5442 = vxor.u32 %v5433, 2147483648
  %v5443 = vmul.f32 %v5442, 1.442695
  %v5444 = vpow.pop %v5443
  %v5445 = vadd.f32 %v5444, 1.0
  %v5446 = vrcp.pop %v5445
  %v5447 = vmul.f32 1.0, %v5446
  %v5448 = vtanh.pop %v5434
  %v5449 = vxor.u32 %v5435, 2147483648
  %v5450 = vmul.f32 %v5449, 1.442695
  %v5451 = vpow.pop %v5450
  %v5452 = vadd.f32 %v5451, 1.0
  %v5453 = vrcp.pop %v5452
  %v5454 = vmul.f32 1.0, %v5453
  %v5455 = vld [vmem:[#allocation4] sm:$0xff]
  %v5456 = vmul.f32 %v5447, %v5455
  %v5457 = vmul.f32 %v5441, %v5448
  %v5458 = vadd.f32 %v5456, %v5457
  %5459 = vst [vmem:[#allocation4] sm:$0xff] %v5458
  %v5460 = vtanh.pop %v5458
  %v5461 = vmul.f32 %v5454, %v5460
  %5462 = vst [vmem:[#allocation3] sm:$0xff] %v5461
  %v5463 = vld [vmem:[#allocation2 + $0x2c0] sm:$0xff]
  %v5464 = vld [vmem:[#allocation2 + $0x2c8] sm:$0xff]
  %v5465 = vld [vmem:[#allocation2 + $0x2d0] sm:$0xff]
  %v5466 = vld [vmem:[#allocation2 + $0x2d8] sm:$0xff]
  %v5467 = vld [vmem:[#allocation3] sm:$0xff]
  %v5468 = vpack.c.bf16 %v5467, %v5467
  %5469 = vmatprep.subr.bf16.mxu0 %v2788
  %5470 = vmatpush1.bf16.msra.mxu0 %v2787
  %5471 = vmatprep.subr.bf16.mxu0 %v2792
  %5472 = vmatpush1.bf16.msra.mxu0 %v2791
  %5473 = vmatprep.subr.bf16.mxu0 %v2796
  %5474 = vmatpush1.bf16.msra.mxu0 %v2795
  %5475 = vmatprep.subr.bf16.mxu0 %v2800
  %5476 = vmatpush1.bf16.msra.mxu0 %v2799
  %5477 = vmatprep.subr.bf16.mxu0 %v2804
  %5478 = vmatpush1.bf16.msra.mxu0 %v2803
  %5479 = vmatprep.subr.bf16.mxu0 %v2808
  %5480 = vmatpush1.bf16.msra.mxu0 %v2807
  %5481 = vmatprep.subr.bf16.mxu0 %v2812
  %5482 = vmatpush1.bf16.msra.mxu0 %v2811
  %5483 = vmatprep.subr.bf16.mxu0 %v2816
  %5484 = vmatpush1.bf16.msra.mxu0 %v2815
  %5485 = vmatprep.subr.bf16.mxu0 0
  %5486 = vmatpush1.bf16.msra.mxu0 0
  %5487 = vmatprep.subr.bf16.mxu0 0
  %5488 = vmatpush1.bf16.msra.mxu0 0
  %5489 = vmatprep.subr.bf16.mxu0 0
  %5490 = vmatpush1.bf16.msra.mxu0 0
  %5491 = vmatprep.subr.bf16.mxu0 0
  %5492 = vmatpush1.bf16.msra.mxu0 0
  %5493 = vmatprep.subr.bf16.mxu0 0
  %5494 = vmatpush1.bf16.msra.mxu0 0
  %5495 = vmatprep.subr.bf16.mxu0 0
  %5496 = vmatpush1.bf16.msra.mxu0 0
  %5497 = vmatprep.subr.bf16.mxu0 0
  %5498 = vmatpush1.bf16.msra.mxu0 0
  %5499 = vmatprep.subr.bf16.mxu0 0
  %5500 = vmatpush1.bf16.msra.mxu0 0
  %5501 = vmatprep.mubr.bf16.mxu0 0
  %5502 = vmatmul.mubr.bf16.gmra.mrb[0].mxu0 %v5468
  %v5503 = vpop.f32.mrb[0].mxu0
  %v5504 = vadd.f32 0.0, %v5503
  %v5505 = vpop.f32.mrb[0].mxu0
  %v5506 = vadd.f32 0.0, %v5505
  %v5507 = vpop.f32.mrb[0].mxu0
  %v5508 = vpop.f32.mrb[0].mxu0
  %5509 = vdwg.mxu0
  %5510 = vmatprep.subr.bf16.mxu0 %v2790
  %5511 = vmatpush1.bf16.msra.mxu0 %v2789
  %5512 = vmatprep.subr.bf16.mxu0 %v2794
  %5513 = vmatpush1.bf16.msra.mxu0 %v2793
  %5514 = vmatprep.subr.bf16.mxu0 %v2798
  %5515 = vmatpush1.bf16.msra.mxu0 %v2797
  %5516 = vmatprep.subr.bf16.mxu0 %v2802
  %5517 = vmatpush1.bf16.msra.mxu0 %v2801
  %5518 = vmatprep.subr.bf16.mxu0 %v2806
  %5519 = vmatpush1.bf16.msra.mxu0 %v2805
  %5520 = vmatprep.subr.bf16.mxu0 %v2810
  %5521 = vmatpush1.bf16.msra.mxu0 %v2809
  %5522 = vmatprep.subr.bf16.mxu0 %v2814
  %5523 = vmatpush1.bf16.msra.mxu0 %v2813
  %5524 = vmatprep.subr.bf16.mxu0 %v2818
  %5525 = vmatpush1.bf16.msra.mxu0 %v2817
  %5526 = vmatprep.subr.bf16.mxu0 0
  %5527 = vmatpush1.bf16.msra.mxu0 0
  %5528 = vmatprep.subr.bf16.mxu0 0
  %5529 = vmatpush1.bf16.msra.mxu0 0
  %5530 = vmatprep.subr.bf16.mxu0 0
  %5531 = vmatpush1.bf16.msra.mxu0 0
  %5532 = vmatprep.subr.bf16.mxu0 0
  %5533 = vmatpush1.bf16.msra.mxu0 0
  %5534 = vmatprep.subr.bf16.mxu0 0
  %5535 = vmatpush1.bf16.msra.mxu0 0
  %5536 = vmatprep.subr.bf16.mxu0 0
  %5537 = vmatpush1.bf16.msra.mxu0 0
  %5538 = vmatprep.subr.bf16.mxu0 0
  %5539 = vmatpush1.bf16.msra.mxu0 0
  %5540 = vmatprep.subr.bf16.mxu0 0
  %5541 = vmatpush1.bf16.msra.mxu0 0
  %5542 = vmatprep.mubr.bf16.mxu0 0
  %5543 = vmatmul.mubr.bf16.gmra.mrb[0].mxu0 %v5468
  %v5544 = vpop.f32.mrb[0].mxu0
  %v5545 = vadd.f32 0.0, %v5544
  %v5546 = vpop.f32.mrb[0].mxu0
  %v5547 = vadd.f32 0.0, %v5546
  %v5548 = vpop.f32.mrb[0].mxu0
  %v5549 = vpop.f32.mrb[0].mxu0
  %5550 = vdwg.mxu0
  %v5551 = vadd.f32 %v5463, %v5504
  %v5552 = vadd.f32 %v5464, %v5506
  %v5553 = vadd.f32 %v5465, %v5545
  %v5554 = vadd.f32 %v5466, %v5547
  %v5555 = vxor.u32 %v5551, 2147483648
  %v5556 = vmul.f32 %v5555, 1.442695
  %v5557 = vpow.pop %v5556
  %v5558 = vadd.f32 %v5557, 1.0
  %v5559 = vrcp.pop %v5558
  %v5560 = vmul.f32 1.0, %v5559
  %v5561 = vxor.u32 %v5552, 2147483648
  %v5562 = vmul.f32 %v5561, 1.442695
  %v5563 = vpow.pop %v5562
  %v5564 = vadd.f32 %v5563, 1.0
  %v5565 = vrcp.pop %v5564
  %v5566 = vmul.f32 1.0, %v5565
  %v5567 = vtanh.pop %v5553
  %v5568 = vxor.u32 %v5554, 2147483648
  %v5569 = vmul.f32 %v5568, 1.442695
  %v5570 = vpow.pop %v5569
  %v5571 = vadd.f32 %v5570, 1.0
  %v5572 = vrcp.pop %v5571
  %v5573 = vmul.f32 1.0, %v5572
  %v5574 = vld [vmem:[#allocation4] sm:$0xff]
  %v5575 = vmul.f32 %v5566, %v5574
  %v5576 = vmul.f32 %v5560, %v5567
  %v5577 = vadd.f32 %v5575, %v5576
  %5578 = vst [vmem:[#allocation4] sm:$0xff] %v5577
  %v5579 = vtanh.pop %v5577
  %v5580 = vmul.f32 %v5573, %v5579
  %5581 = vst [vmem:[#allocation3] sm:$0xff] %v5580
  %v5582 = vld [vmem:[#allocation2 + $0x2e0] sm:$0xff]
  %v5583 = vld [vmem:[#allocation2 + $0x2e8] sm:$0xff]
  %v5584 = vld [vmem:[#allocation2 + $0x2f0] sm:$0xff]
  %v5585 = vld [vmem:[#allocation2 + $0x2f8] sm:$0xff]
  %v5586 = vld [vmem:[#allocation3] sm:$0xff]
  %v5587 = vpack.c.bf16 %v5586, %v5586
  %5588 = vmatprep.subr.bf16.mxu0 %v2788
  %5589 = vmatpush1.bf16.msra.mxu0 %v2787
  %5590 = vmatprep.subr.bf16.mxu0 %v2792
  %5591 = vmatpush1.bf16.msra.mxu0 %v2791
  %5592 = vmatprep.subr.bf16.mxu0 %v2796
  %5593 = vmatpush1.bf16.msra.mxu0 %v2795
  %5594 = vmatprep.subr.bf16.mxu0 %v2800
  %5595 = vmatpush1.bf16.msra.mxu0 %v2799
  %5596 = vmatprep.subr.bf16.mxu0 %v2804
  %5597 = vmatpush1.bf16.msra.mxu0 %v2803
  %5598 = vmatprep.subr.bf16.mxu0 %v2808
  %5599 = vmatpush1.bf16.msra.mxu0 %v2807
  %5600 = vmatprep.subr.bf16.mxu0 %v2812
  %5601 = vmatpush1.bf16.msra.mxu0 %v2811
  %5602 = vmatprep.subr.bf16.mxu0 %v2816
  %5603 = vmatpush1.bf16.msra.mxu0 %v2815
  %5604 = vmatprep.subr.bf16.mxu0 0
  %5605 = vmatpush1.bf16.msra.mxu0 0
  %5606 = vmatprep.subr.bf16.mxu0 0
  %5607 = vmatpush1.bf16.msra.mxu0 0
  %5608 = vmatprep.subr.bf16.mxu0 0
  %5609 = vmatpush1.bf16.msra.mxu0 0
  %5610 = vmatprep.subr.bf16.mxu0 0
  %5611 = vmatpush1.bf16.msra.mxu0 0
  %5612 = vmatprep.subr.bf16.mxu0 0
  %5613 = vmatpush1.bf16.msra.mxu0 0
  %5614 = vmatprep.subr.bf16.mxu0 0
  %5615 = vmatpush1.bf16.msra.mxu0 0
  %5616 = vmatprep.subr.bf16.mxu0 0
  %5617 = vmatpush1.bf16.msra.mxu0 0
  %5618 = vmatprep.subr.bf16.mxu0 0
  %5619 = vmatpush1.bf16.msra.mxu0 0
  %5620 = vmatprep.mubr.bf16.mxu0 0
  %5621 = vmatmul.mubr.bf16.gmra.mrb[0].mxu0 %v5587
  %v5622 = vpop.f32.mrb[0].mxu0
  %v5623 = vadd.f32 0.0, %v5622
  %v5624 = vpop.f32.mrb[0].mxu0
  %v5625 = vadd.f32 0.0, %v5624
  %v5626 = vpop.f32.mrb[0].mxu0
  %v5627 = vpop.f32.mrb[0].mxu0
  %5628 = vdwg.mxu0
  %5629 = vmatprep.subr.bf16.mxu0 %v2790
  %5630 = vmatpush1.bf16.msra.mxu0 %v2789
  %5631 = vmatprep.subr.bf16.mxu0 %v2794
  %5632 = vmatpush1.bf16.msra.mxu0 %v2793
  %5633 = vmatprep.subr.bf16.mxu0 %v2798
  %5634 = vmatpush1.bf16.msra.mxu0 %v2797
  %5635 = vmatprep.subr.bf16.mxu0 %v2802
  %5636 = vmatpush1.bf16.msra.mxu0 %v2801
  %5637 = vmatprep.subr.bf16.mxu0 %v2806
  %5638 = vmatpush1.bf16.msra.mxu0 %v2805
  %5639 = vmatprep.subr.bf16.mxu0 %v2810
  %5640 = vmatpush1.bf16.msra.mxu0 %v2809
  %5641 = vmatprep.subr.bf16.mxu0 %v2814
  %5642 = vmatpush1.bf16.msra.mxu0 %v2813
  %5643 = vmatprep.subr.bf16.mxu0 %v2818
  %5644 = vmatpush1.bf16.msra.mxu0 %v2817
  %5645 = vmatprep.subr.bf16.mxu0 0
  %5646 = vmatpush1.bf16.msra.mxu0 0
  %5647 = vmatprep.subr.bf16.mxu0 0
  %5648 = vmatpush1.bf16.msra.mxu0 0
  %5649 = vmatprep.subr.bf16.mxu0 0
  %5650 = vmatpush1.bf16.msra.mxu0 0
  %5651 = vmatprep.subr.bf16.mxu0 0
  %5652 = vmatpush1.bf16.msra.mxu0 0
  %5653 = vmatprep.subr.bf16.mxu0 0
  %5654 = vmatpush1.bf16.msra.mxu0 0
  %5655 = vmatprep.subr.bf16.mxu0 0
  %5656 = vmatpush1.bf16.msra.mxu0 0
  %5657 = vmatprep.subr.bf16.mxu0 0
  %5658 = vmatpush1.bf16.msra.mxu0 0
  %5659 = vmatprep.subr.bf16.mxu0 0
  %5660 = vmatpush1.bf16.msra.mxu0 0
  %5661 = vmatprep.mubr.bf16.mxu0 0
  %5662 = vmatmul.mubr.bf16.gmra.mrb[0].mxu0 %v5587
  %v5663 = vpop.f32.mrb[0].mxu0
  %v5664 = vadd.f32 0.0, %v5663
  %v5665 = vpop.f32.mrb[0].mxu0
  %v5666 = vadd.f32 0.0, %v5665
  %v5667 = vpop.f32.mrb[0].mxu0
  %v5668 = vpop.f32.mrb[0].mxu0
  %5669 = vdwg.mxu0
  %v5670 = vadd.f32 %v5582, %v5623
  %v5671 = vadd.f32 %v5583, %v5625
  %v5672 = vadd.f32 %v5584, %v5664
  %v5673 = vadd.f32 %v5585, %v5666
  %v5674 = vxor.u32 %v5670, 2147483648
  %v5675 = vmul.f32 %v5674, 1.442695
  %v5676 = vpow.pop %v5675
  %v5677 = vadd.f32 %v5676, 1.0
  %v5678 = vrcp.pop %v5677
  %v5679 = vmul.f32 1.0, %v5678
  %v5680 = vxor.u32 %v5671, 2147483648
  %v5681 = vmul.f32 %v5680, 1.442695
  %v5682 = vpow.pop %v5681
  %v5683 = vadd.f32 %v5682, 1.0
  %v5684 = vrcp.pop %v5683
  %v5685 = vmul.f32 1.0, %v5684
  %v5686 = vtanh.pop %v5672
  %v5687 = vxor.u32 %v5673, 2147483648
  %v5688 = vmul.f32 %v5687, 1.442695
  %v5689 = vpow.pop %v5688
  %v5690 = vadd.f32 %v5689, 1.0
  %v5691 = vrcp.pop %v5690
  %v5692 = vmul.f32 1.0, %v5691
  %v5693 = vld [vmem:[#allocation4] sm:$0xff]
  %v5694 = vmul.f32 %v5685, %v5693
  %v5695 = vmul.f32 %v5679, %v5686
  %v5696 = vadd.f32 %v5694, %v5695
  %5697 = vst [vmem:[#allocation4] sm:$0xff] %v5696
  %v5698 = vtanh.pop %v5696
  %v5699 = vmul.f32 %v5692, %v5698
  %5700 = vst [vmem:[#allocation3] sm:$0xff] %v5699
  %v5701 = vld [vmem:[#allocation2 + $0x300] sm:$0xff]
  %v5702 = vld [vmem:[#allocation2 + $0x308] sm:$0xff]
  %v5703 = vld [vmem:[#allocation2 + $0x310] sm:$0xff]
  %v5704 = vld [vmem:[#allocation2 + $0x318] sm:$0xff]
  %v5705 = vld [vmem:[#allocation3] sm:$0xff]
  %v5706 = vpack.c.bf16 %v5705, %v5705
  %5707 = vmatprep.subr.bf16.mxu0 %v2788
  %5708 = vmatpush1.bf16.msra.mxu0 %v2787
  %5709 = vmatprep.subr.bf16.mxu0 %v2792
  %5710 = vmatpush1.bf16.msra.mxu0 %v2791
  %5711 = vmatprep.subr.bf16.mxu0 %v2796
  %5712 = vmatpush1.bf16.msra.mxu0 %v2795
  %5713 = vmatprep.subr.bf16.mxu0 %v2800
  %5714 = vmatpush1.bf16.msra.mxu0 %v2799
  %5715 = vmatprep.subr.bf16.mxu0 %v2804
  %5716 = vmatpush1.bf16.msra.mxu0 %v2803
  %5717 = vmatprep.subr.bf16.mxu0 %v2808
  %5718 = vmatpush1.bf16.msra.mxu0 %v2807
  %5719 = vmatprep.subr.bf16.mxu0 %v2812
  %5720 = vmatpush1.bf16.msra.mxu0 %v2811
  %5721 = vmatprep.subr.bf16.mxu0 %v2816
  %5722 = vmatpush1.bf16.msra.mxu0 %v2815
  %5723 = vmatprep.subr.bf16.mxu0 0
  %5724 = vmatpush1.bf16.msra.mxu0 0
  %5725 = vmatprep.subr.bf16.mxu0 0
  %5726 = vmatpush1.bf16.msra.mxu0 0
  %5727 = vmatprep.subr.bf16.mxu0 0
  %5728 = vmatpush1.bf16.msra.mxu0 0
  %5729 = vmatprep.subr.bf16.mxu0 0
  %5730 = vmatpush1.bf16.msra.mxu0 0
  %5731 = vmatprep.subr.bf16.mxu0 0
  %5732 = vmatpush1.bf16.msra.mxu0 0
  %5733 = vmatprep.subr.bf16.mxu0 0
  %5734 = vmatpush1.bf16.msra.mxu0 0
  %5735 = vmatprep.subr.bf16.mxu0 0
  %5736 = vmatpush1.bf16.msra.mxu0 0
  %5737 = vmatprep.subr.bf16.mxu0 0
  %5738 = vmatpush1.bf16.msra.mxu0 0
  %5739 = vmatprep.mubr.bf16.mxu0 0
  %5740 = vmatmul.mubr.bf16.gmra.mrb[0].mxu0 %v5706
  %v5741 = vpop.f32.mrb[0].mxu0
  %v5742 = vadd.f32 0.0, %v5741
  %v5743 = vpop.f32.mrb[0].mxu0
  %v5744 = vadd.f32 0.0, %v5743
  %v5745 = vpop.f32.mrb[0].mxu0
  %v5746 = vpop.f32.mrb[0].mxu0
  %5747 = vdwg.mxu0
  %5748 = vmatprep.subr.bf16.mxu0 %v2790
  %5749 = vmatpush1.bf16.msra.mxu0 %v2789
  %5750 = vmatprep.subr.bf16.mxu0 %v2794
  %5751 = vmatpush1.bf16.msra.mxu0 %v2793
  %5752 = vmatprep.subr.bf16.mxu0 %v2798
  %5753 = vmatpush1.bf16.msra.mxu0 %v2797
  %5754 = vmatprep.subr.bf16.mxu0 %v2802
  %5755 = vmatpush1.bf16.msra.mxu0 %v2801
  %5756 = vmatprep.subr.bf16.mxu0 %v2806
  %5757 = vmatpush1.bf16.msra.mxu0 %v2805
  %5758 = vmatprep.subr.bf16.mxu0 %v2810
  %5759 = vmatpush1.bf16.msra.mxu0 %v2809
  %5760 = vmatprep.subr.bf16.mxu0 %v2814
  %5761 = vmatpush1.bf16.msra.mxu0 %v2813
  %5762 = vmatprep.subr.bf16.mxu0 %v2818
  %5763 = vmatpush1.bf16.msra.mxu0 %v2817
  %5764 = vmatprep.subr.bf16.mxu0 0
  %5765 = vmatpush1.bf16.msra.mxu0 0
  %5766 = vmatprep.subr.bf16.mxu0 0
  %5767 = vmatpush1.bf16.msra.mxu0 0
  %5768 = vmatprep.subr.bf16.mxu0 0
  %5769 = vmatpush1.bf16.msra.mxu0 0
  %5770 = vmatprep.subr.bf16.mxu0 0
  %5771 = vmatpush1.bf16.msra.mxu0 0
  %5772 = vmatprep.subr.bf16.mxu0 0
  %5773 = vmatpush1.bf16.msra.mxu0 0
  %5774 = vmatprep.subr.bf16.mxu0 0
  %5775 = vmatpush1.bf16.msra.mxu0 0
  %5776 = vmatprep.subr.bf16.mxu0 0
  %5777 = vmatpush1.bf16.msra.mxu0 0
  %5778 = vmatprep.subr.bf16.mxu0 0
  %5779 = vmatpush1.bf16.msra.mxu0 0
  %5780 = vmatprep.mubr.bf16.mxu0 0
  %5781 = vmatmul.mubr.bf16.gmra.mrb[0].mxu0 %v5706
  %v5782 = vpop.f32.mrb[0].mxu0
  %v5783 = vadd.f32 0.0, %v5782
  %v5784 = vpop.f32.mrb[0].mxu0
  %v5785 = vadd.f32 0.0, %v5784
  %v5786 = vpop.f32.mrb[0].mxu0
  %v5787 = vpop.f32.mrb[0].mxu0
  %5788 = vdwg.mxu0
  %v5789 = vadd.f32 %v5701, %v5742
  %v5790 = vadd.f32 %v5702, %v5744
  %v5791 = vadd.f32 %v5703, %v5783
  %v5792 = vadd.f32 %v5704, %v5785
  %v5793 = vxor.u32 %v5789, 2147483648
  %v5794 = vmul.f32 %v5793, 1.442695
  %v5795 = vpow.pop %v5794
  %v5796 = vadd.f32 %v5795, 1.0
  %v5797 = vrcp.pop %v5796
  %v5798 = vmul.f32 1.0, %v5797
  %v5799 = vxor.u32 %v5790, 2147483648
  %v5800 = vmul.f32 %v5799, 1.442695
  %v5801 = vpow.pop %v5800
  %v5802 = vadd.f32 %v5801, 1.0
  %v5803 = vrcp.pop %v5802
  %v5804 = vmul.f32 1.0, %v5803
  %v5805 = vtanh.pop %v5791
  %v5806 = vxor.u32 %v5792, 2147483648
  %v5807 = vmul.f32 %v5806, 1.442695
  %v5808 = vpow.pop %v5807
  %v5809 = vadd.f32 %v5808, 1.0
  %v5810 = vrcp.pop %v5809
  %v5811 = vmul.f32 1.0, %v5810
  %v5812 = vld [vmem:[#allocation4] sm:$0xff]
  %v5813 = vmul.f32 %v5804, %v5812
  %v5814 = vmul.f32 %v5798, %v5805
  %v5815 = vadd.f32 %v5813, %v5814
  %5816 = vst [vmem:[#allocation4] sm:$0xff] %v5815
  %v5817 = vtanh.pop %v5815
  %v5818 = vmul.f32 %v5811, %v5817
  %5819 = vst [vmem:[#allocation3] sm:$0xff] %v5818
  %v5820 = vld [vmem:[#allocation2 + $0x320] sm:$0xff]
  %v5821 = vld [vmem:[#allocation2 + $0x328] sm:$0xff]
  %v5822 = vld [vmem:[#allocation2 + $0x330] sm:$0xff]
  %v5823 = vld [vmem:[#allocation2 + $0x338] sm:$0xff]
  %v5824 = vld [vmem:[#allocation3] sm:$0xff]
  %v5825 = vpack.c.bf16 %v5824, %v5824
  %5826 = vmatprep.subr.bf16.mxu0 %v2788
  %5827 = vmatpush1.bf16.msra.mxu0 %v2787
  %5828 = vmatprep.subr.bf16.mxu0 %v2792
  %5829 = vmatpush1.bf16.msra.mxu0 %v2791
  %5830 = vmatprep.subr.bf16.mxu0 %v2796
  %5831 = vmatpush1.bf16.msra.mxu0 %v2795
  %5832 = vmatprep.subr.bf16.mxu0 %v2800
  %5833 = vmatpush1.bf16.msra.mxu0 %v2799
  %5834 = vmatprep.subr.bf16.mxu0 %v2804
  %5835 = vmatpush1.bf16.msra.mxu0 %v2803
  %5836 = vmatprep.subr.bf16.mxu0 %v2808
  %5837 = vmatpush1.bf16.msra.mxu0 %v2807
  %5838 = vmatprep.subr.bf16.mxu0 %v2812
  %5839 = vmatpush1.bf16.msra.mxu0 %v2811
  %5840 = vmatprep.subr.bf16.mxu0 %v2816
  %5841 = vmatpush1.bf16.msra.mxu0 %v2815
  %5842 = vmatprep.subr.bf16.mxu0 0
  %5843 = vmatpush1.bf16.msra.mxu0 0
  %5844 = vmatprep.subr.bf16.mxu0 0
  %5845 = vmatpush1.bf16.msra.mxu0 0
  %5846 = vmatprep.subr.bf16.mxu0 0
  %5847 = vmatpush1.bf16.msra.mxu0 0
  %5848 = vmatprep.subr.bf16.mxu0 0
  %5849 = vmatpush1.bf16.msra.mxu0 0
  %5850 = vmatprep.subr.bf16.mxu0 0
  %5851 = vmatpush1.bf16.msra.mxu0 0
  %5852 = vmatprep.subr.bf16.mxu0 0
  %5853 = vmatpush1.bf16.msra.mxu0 0
  %5854 = vmatprep.subr.bf16.mxu0 0
  %5855 = vmatpush1.bf16.msra.mxu0 0
  %5856 = vmatprep.subr.bf16.mxu0 0
  %5857 = vmatpush1.bf16.msra.mxu0 0
  %5858 = vmatprep.mubr.bf16.mxu0 0
  %5859 = vmatmul.mubr.bf16.gmra.mrb[0].mxu0 %v5825
  %v5860 = vpop.f32.mrb[0].mxu0
  %v5861 = vadd.f32 0.0, %v5860
  %v5862 = vpop.f32.mrb[0].mxu0
  %v5863 = vadd.f32 0.0, %v5862
  %v5864 = vpop.f32.mrb[0].mxu0
  %v5865 = vpop.f32.mrb[0].mxu0
  %5866 = vdwg.mxu0
  %5867 = vmatprep.subr.bf16.mxu0 %v2790
  %5868 = vmatpush1.bf16.msra.mxu0 %v2789
  %5869 = vmatprep.subr.bf16.mxu0 %v2794
  %5870 = vmatpush1.bf16.msra.mxu0 %v2793
  %5871 = vmatprep.subr.bf16.mxu0 %v2798
  %5872 = vmatpush1.bf16.msra.mxu0 %v2797
  %5873 = vmatprep.subr.bf16.mxu0 %v2802
  %5874 = vmatpush1.bf16.msra.mxu0 %v2801
  %5875 = vmatprep.subr.bf16.mxu0 %v2806
  %5876 = vmatpush1.bf16.msra.mxu0 %v2805
  %5877 = vmatprep.subr.bf16.mxu0 %v2810
  %5878 = vmatpush1.bf16.msra.mxu0 %v2809
  %5879 = vmatprep.subr.bf16.mxu0 %v2814
  %5880 = vmatpush1.bf16.msra.mxu0 %v2813
  %5881 = vmatprep.subr.bf16.mxu0 %v2818
  %5882 = vmatpush1.bf16.msra.mxu0 %v2817
  %5883 = vmatprep.subr.bf16.mxu0 0
  %5884 = vmatpush1.bf16.msra.mxu0 0
  %5885 = vmatprep.subr.bf16.mxu0 0
  %5886 = vmatpush1.bf16.msra.mxu0 0
  %5887 = vmatprep.subr.bf16.mxu0 0
  %5888 = vmatpush1.bf16.msra.mxu0 0
  %5889 = vmatprep.subr.bf16.mxu0 0
  %5890 = vmatpush1.bf16.msra.mxu0 0
  %5891 = vmatprep.subr.bf16.mxu0 0
  %5892 = vmatpush1.bf16.msra.mxu0 0
  %5893 = vmatprep.subr.bf16.mxu0 0
  %5894 = vmatpush1.bf16.msra.mxu0 0
  %5895 = vmatprep.subr.bf16.mxu0 0
  %5896 = vmatpush1.bf16.msra.mxu0 0
  %5897 = vmatprep.subr.bf16.mxu0 0
  %5898 = vmatpush1.bf16.msra.mxu0 0
  %5899 = vmatprep.mubr.bf16.mxu0 0
  %5900 = vmatmul.mubr.bf16.gmra.mrb[0].mxu0 %v5825
  %v5901 = vpop.f32.mrb[0].mxu0
  %v5902 = vadd.f32 0.0, %v5901
  %v5903 = vpop.f32.mrb[0].mxu0
  %v5904 = vadd.f32 0.0, %v5903
  %v5905 = vpop.f32.mrb[0].mxu0
  %v5906 = vpop.f32.mrb[0].mxu0
  %5907 = vdwg.mxu0
  %v5908 = vadd.f32 %v5820, %v5861
  %v5909 = vadd.f32 %v5821, %v5863
  %v5910 = vadd.f32 %v5822, %v5902
  %v5911 = vadd.f32 %v5823, %v5904
  %v5912 = vxor.u32 %v5908, 2147483648
  %v5913 = vmul.f32 %v5912, 1.442695
  %v5914 = vpow.pop %v5913
  %v5915 = vadd.f32 %v5914, 1.0
  %v5916 = vrcp.pop %v5915
  %v5917 = vmul.f32 1.0, %v5916
  %v5918 = vxor.u32 %v5909, 2147483648
  %v5919 = vmul.f32 %v5918, 1.442695
  %v5920 = vpow.pop %v5919
  %v5921 = vadd.f32 %v5920, 1.0
  %v5922 = vrcp.pop %v5921
  %v5923 = vmul.f32 1.0, %v5922
  %v5924 = vtanh.pop %v5910
  %v5925 = vxor.u32 %v5911, 2147483648
  %v5926 = vmul.f32 %v5925, 1.442695
  %v5927 = vpow.pop %v5926
  %v5928 = vadd.f32 %v5927, 1.0
  %v5929 = vrcp.pop %v5928
  %v5930 = vmul.f32 1.0, %v5929
  %v5931 = vld [vmem:[#allocation4] sm:$0xff]
  %v5932 = vmul.f32 %v5923, %v5931
  %v5933 = vmul.f32 %v5917, %v5924
  %v5934 = vadd.f32 %v5932, %v5933
  %5935 = vst [vmem:[#allocation4] sm:$0xff] %v5934
  %v5936 = vtanh.pop %v5934
  %v5937 = vmul.f32 %v5930, %v5936
  %5938 = vst [vmem:[#allocation3] sm:$0xff] %v5937
  %v5939 = vld [vmem:[#allocation2 + $0x340] sm:$0xff]
  %v5940 = vld [vmem:[#allocation2 + $0x348] sm:$0xff]
  %v5941 = vld [vmem:[#allocation2 + $0x350] sm:$0xff]
  %v5942 = vld [vmem:[#allocation2 + $0x358] sm:$0xff]
  %v5943 = vld [vmem:[#allocation3] sm:$0xff]
  %v5944 = vpack.c.bf16 %v5943, %v5943
  %5945 = vmatprep.subr.bf16.mxu0 %v2788
  %5946 = vmatpush1.bf16.msra.mxu0 %v2787
  %5947 = vmatprep.subr.bf16.mxu0 %v2792
  %5948 = vmatpush1.bf16.msra.mxu0 %v2791
  %5949 = vmatprep.subr.bf16.mxu0 %v2796
  %5950 = vmatpush1.bf16.msra.mxu0 %v2795
  %5951 = vmatprep.subr.bf16.mxu0 %v2800
  %5952 = vmatpush1.bf16.msra.mxu0 %v2799
  %5953 = vmatprep.subr.bf16.mxu0 %v2804
  %5954 = vmatpush1.bf16.msra.mxu0 %v2803
  %5955 = vmatprep.subr.bf16.mxu0 %v2808
  %5956 = vmatpush1.bf16.msra.mxu0 %v2807
  %5957 = vmatprep.subr.bf16.mxu0 %v2812
  %5958 = vmatpush1.bf16.msra.mxu0 %v2811
  %5959 = vmatprep.subr.bf16.mxu0 %v2816
  %5960 = vmatpush1.bf16.msra.mxu0 %v2815
  %5961 = vmatprep.subr.bf16.mxu0 0
  %5962 = vmatpush1.bf16.msra.mxu0 0
  %5963 = vmatprep.subr.bf16.mxu0 0
  %5964 = vmatpush1.bf16.msra.mxu0 0
  %5965 = vmatprep.subr.bf16.mxu0 0
  %5966 = vmatpush1.bf16.msra.mxu0 0
  %5967 = vmatprep.subr.bf16.mxu0 0
  %5968 = vmatpush1.bf16.msra.mxu0 0
  %5969 = vmatprep.subr.bf16.mxu0 0
  %5970 = vmatpush1.bf16.msra.mxu0 0
  %5971 = vmatprep.subr.bf16.mxu0 0
  %5972 = vmatpush1.bf16.msra.mxu0 0
  %5973 = vmatprep.subr.bf16.mxu0 0
  %5974 = vmatpush1.bf16.msra.mxu0 0
  %5975 = vmatprep.subr.bf16.mxu0 0
  %5976 = vmatpush1.bf16.msra.mxu0 0
  %5977 = vmatprep.mubr.bf16.mxu0 0
  %5978 = vmatmul.mubr.bf16.gmra.mrb[0].mxu0 %v5944
  %v5979 = vpop.f32.mrb[0].mxu0
  %v5980 = vadd.f32 0.0, %v5979
  %v5981 = vpop.f32.mrb[0].mxu0
  %v5982 = vadd.f32 0.0, %v5981
  %v5983 = vpop.f32.mrb[0].mxu0
  %v5984 = vpop.f32.mrb[0].mxu0
  %5985 = vdwg.mxu0
  %5986 = vmatprep.subr.bf16.mxu0 %v2790
  %5987 = vmatpush1.bf16.msra.mxu0 %v2789
  %5988 = vmatprep.subr.bf16.mxu0 %v2794
  %5989 = vmatpush1.bf16.msra.mxu0 %v2793
  %5990 = vmatprep.subr.bf16.mxu0 %v2798
  %5991 = vmatpush1.bf16.msra.mxu0 %v2797
  %5992 = vmatprep.subr.bf16.mxu0 %v2802
  %5993 = vmatpush1.bf16.msra.mxu0 %v2801
  %5994 = vmatprep.subr.bf16.mxu0 %v2806
  %5995 = vmatpush1.bf16.msra.mxu0 %v2805
  %5996 = vmatprep.subr.bf16.mxu0 %v2810
  %5997 = vmatpush1.bf16.msra.mxu0 %v2809
  %5998 = vmatprep.subr.bf16.mxu0 %v2814
  %5999 = vmatpush1.bf16.msra.mxu0 %v2813
  %6000 = vmatprep.subr.bf16.mxu0 %v2818
  %6001 = vmatpush1.bf16.msra.mxu0 %v2817
  %6002 = vmatprep.subr.bf16.mxu0 0
  %6003 = vmatpush1.bf16.msra.mxu0 0
  %6004 = vmatprep.subr.bf16.mxu0 0
  %6005 = vmatpush1.bf16.msra.mxu0 0
  %6006 = vmatprep.subr.bf16.mxu0 0
  %6007 = vmatpush1.bf16.msra.mxu0 0
  %6008 = vmatprep.subr.bf16.mxu0 0
  %6009 = vmatpush1.bf16.msra.mxu0 0
  %6010 = vmatprep.subr.bf16.mxu0 0
  %6011 = vmatpush1.bf16.msra.mxu0 0
  %6012 = vmatprep.subr.bf16.mxu0 0
  %6013 = vmatpush1.bf16.msra.mxu0 0
  %6014 = vmatprep.subr.bf16.mxu0 0
  %6015 = vmatpush1.bf16.msra.mxu0 0
  %6016 = vmatprep.subr.bf16.mxu0 0
  %6017 = vmatpush1.bf16.msra.mxu0 0
  %6018 = vmatprep.mubr.bf16.mxu0 0
  %6019 = vmatmul.mubr.bf16.gmra.mrb[0].mxu0 %v5944
  %v6020 = vpop.f32.mrb[0].mxu0
  %v6021 = vadd.f32 0.0, %v6020
  %v6022 = vpop.f32.mrb[0].mxu0
  %v6023 = vadd.f32 0.0, %v6022
  %v6024 = vpop.f32.mrb[0].mxu0
  %v6025 = vpop.f32.mrb[0].mxu0
  %6026 = vdwg.mxu0
  %v6027 = vadd.f32 %v5939, %v5980
  %v6028 = vadd.f32 %v5940, %v5982
  %v6029 = vadd.f32 %v5941, %v6021
  %v6030 = vadd.f32 %v5942, %v6023
  %v6031 = vxor.u32 %v6027, 2147483648
  %v6032 = vmul.f32 %v6031, 1.442695
  %v6033 = vpow.pop %v6032
  %v6034 = vadd.f32 %v6033, 1.0
  %v6035 = vrcp.pop %v6034
  %v6036 = vmul.f32 1.0, %v6035
  %v6037 = vxor.u32 %v6028, 2147483648
  %v6038 = vmul.f32 %v6037, 1.442695
  %v6039 = vpow.pop %v6038
  %v6040 = vadd.f32 %v6039, 1.0
  %v6041 = vrcp.pop %v6040
  %v6042 = vmul.f32 1.0, %v6041
  %v6043 = vtanh.pop %v6029
  %v6044 = vxor.u32 %v6030, 2147483648
  %v6045 = vmul.f32 %v6044, 1.442695
  %v6046 = vpow.pop %v6045
  %v6047 = vadd.f32 %v6046, 1.0
  %v6048 = vrcp.pop %v6047
  %v6049 = vmul.f32 1.0, %v6048
  %v6050 = vld [vmem:[#allocation4] sm:$0xff]
  %v6051 = vmul.f32 %v6042, %v6050
  %v6052 = vmul.f32 %v6036, %v6043
  %v6053 = vadd.f32 %v6051, %v6052
  %6054 = vst [vmem:[#allocation4] sm:$0xff] %v6053
  %v6055 = vtanh.pop %v6053
  %v6056 = vmul.f32 %v6049, %v6055
  %6057 = vst [vmem:[#allocation3] sm:$0xff] %v6056
  %v6058 = vld [vmem:[#allocation2 + $0x360] sm:$0xff]
  %v6059 = vld [vmem:[#allocation2 + $0x368] sm:$0xff]
  %v6060 = vld [vmem:[#allocation2 + $0x370] sm:$0xff]
  %v6061 = vld [vmem:[#allocation2 + $0x378] sm:$0xff]
  %v6062 = vld [vmem:[#allocation3] sm:$0xff]
  %v6063 = vpack.c.bf16 %v6062, %v6062
  %6064 = vmatprep.subr.bf16.mxu0 %v2788
  %6065 = vmatpush1.bf16.msra.mxu0 %v2787
  %6066 = vmatprep.subr.bf16.mxu0 %v2792
  %6067 = vmatpush1.bf16.msra.mxu0 %v2791
  %6068 = vmatprep.subr.bf16.mxu0 %v2796
  %6069 = vmatpush1.bf16.msra.mxu0 %v2795
  %6070 = vmatprep.subr.bf16.mxu0 %v2800
  %6071 = vmatpush1.bf16.msra.mxu0 %v2799
  %6072 = vmatprep.subr.bf16.mxu0 %v2804
  %6073 = vmatpush1.bf16.msra.mxu0 %v2803
  %6074 = vmatprep.subr.bf16.mxu0 %v2808
  %6075 = vmatpush1.bf16.msra.mxu0 %v2807
  %6076 = vmatprep.subr.bf16.mxu0 %v2812
  %6077 = vmatpush1.bf16.msra.mxu0 %v2811
  %6078 = vmatprep.subr.bf16.mxu0 %v2816
  %6079 = vmatpush1.bf16.msra.mxu0 %v2815
  %6080 = vmatprep.subr.bf16.mxu0 0
  %6081 = vmatpush1.bf16.msra.mxu0 0
  %6082 = vmatprep.subr.bf16.mxu0 0
  %6083 = vmatpush1.bf16.msra.mxu0 0
  %6084 = vmatprep.subr.bf16.mxu0 0
  %6085 = vmatpush1.bf16.msra.mxu0 0
  %6086 = vmatprep.subr.bf16.mxu0 0
  %6087 = vmatpush1.bf16.msra.mxu0 0
  %6088 = vmatprep.subr.bf16.mxu0 0
  %6089 = vmatpush1.bf16.msra.mxu0 0
  %6090 = vmatprep.subr.bf16.mxu0 0
  %6091 = vmatpush1.bf16.msra.mxu0 0
  %6092 = vmatprep.subr.bf16.mxu0 0
  %6093 = vmatpush1.bf16.msra.mxu0 0
  %6094 = vmatprep.subr.bf16.mxu0 0
  %6095 = vmatpush1.bf16.msra.mxu0 0
  %6096 = vmatprep.mubr.bf16.mxu0 0
  %6097 = vmatmul.mubr.bf16.gmra.mrb[0].mxu0 %v6063
  %v6098 = vpop.f32.mrb[0].mxu0
  %v6099 = vadd.f32 0.0, %v6098
  %v6100 = vpop.f32.mrb[0].mxu0
  %v6101 = vadd.f32 0.0, %v6100
  %v6102 = vpop.f32.mrb[0].mxu0
  %v6103 = vpop.f32.mrb[0].mxu0
  %6104 = vdwg.mxu0
  %6105 = vmatprep.subr.bf16.mxu0 %v2790
  %6106 = vmatpush1.bf16.msra.mxu0 %v2789
  %6107 = vmatprep.subr.bf16.mxu0 %v2794
  %6108 = vmatpush1.bf16.msra.mxu0 %v2793
  %6109 = vmatprep.subr.bf16.mxu0 %v2798
  %6110 = vmatpush1.bf16.msra.mxu0 %v2797
  %6111 = vmatprep.subr.bf16.mxu0 %v2802
  %6112 = vmatpush1.bf16.msra.mxu0 %v2801
  %6113 = vmatprep.subr.bf16.mxu0 %v2806
  %6114 = vmatpush1.bf16.msra.mxu0 %v2805
  %6115 = vmatprep.subr.bf16.mxu0 %v2810
  %6116 = vmatpush1.bf16.msra.mxu0 %v2809
  %6117 = vmatprep.subr.bf16.mxu0 %v2814
  %6118 = vmatpush1.bf16.msra.mxu0 %v2813
  %6119 = vmatprep.subr.bf16.mxu0 %v2818
  %6120 = vmatpush1.bf16.msra.mxu0 %v2817
  %6121 = vmatprep.subr.bf16.mxu0 0
  %6122 = vmatpush1.bf16.msra.mxu0 0
  %6123 = vmatprep.subr.bf16.mxu0 0
  %6124 = vmatpush1.bf16.msra.mxu0 0
  %6125 = vmatprep.subr.bf16.mxu0 0
  %6126 = vmatpush1.bf16.msra.mxu0 0
  %6127 = vmatprep.subr.bf16.mxu0 0
  %6128 = vmatpush1.bf16.msra.mxu0 0
  %6129 = vmatprep.subr.bf16.mxu0 0
  %6130 = vmatpush1.bf16.msra.mxu0 0
  %6131 = vmatprep.subr.bf16.mxu0 0
  %6132 = vmatpush1.bf16.msra.mxu0 0
  %6133 = vmatprep.subr.bf16.mxu0 0
  %6134 = vmatpush1.bf16.msra.mxu0 0
  %6135 = vmatprep.subr.bf16.mxu0 0
  %6136 = vmatpush1.bf16.msra.mxu0 0
  %6137 = vmatprep.mubr.bf16.mxu0 0
  %6138 = vmatmul.mubr.bf16.gmra.mrb[0].mxu0 %v6063
  %v6139 = vpop.f32.mrb[0].mxu0
  %v6140 = vadd.f32 0.0, %v6139
  %v6141 = vpop.f32.mrb[0].mxu0
  %v6142 = vadd.f32 0.0, %v6141
  %v6143 = vpop.f32.mrb[0].mxu0
  %v6144 = vpop.f32.mrb[0].mxu0
  %6145 = vdwg.mxu0
  %v6146 = vadd.f32 %v6058, %v6099
  %v6147 = vadd.f32 %v6059, %v6101
  %v6148 = vadd.f32 %v6060, %v6140
  %v6149 = vadd.f32 %v6061, %v6142
  %v6150 = vxor.u32 %v6146, 2147483648
  %v6151 = vmul.f32 %v6150, 1.442695
  %v6152 = vpow.pop %v6151
  %v6153 = vadd.f32 %v6152, 1.0
  %v6154 = vrcp.pop %v6153
  %v6155 = vmul.f32 1.0, %v6154
  %v6156 = vxor.u32 %v6147, 2147483648
  %v6157 = vmul.f32 %v6156, 1.442695
  %v6158 = vpow.pop %v6157
  %v6159 = vadd.f32 %v6158, 1.0
  %v6160 = vrcp.pop %v6159
  %v6161 = vmul.f32 1.0, %v6160
  %v6162 = vtanh.pop %v6148
  %v6163 = vxor.u32 %v6149, 2147483648
  %v6164 = vmul.f32 %v6163, 1.442695
  %v6165 = vpow.pop %v6164
  %v6166 = vadd.f32 %v6165, 1.0
  %v6167 = vrcp.pop %v6166
  %v6168 = vmul.f32 1.0, %v6167
  %v6169 = vld [vmem:[#allocation4] sm:$0xff]
  %v6170 = vmul.f32 %v6161, %v6169
  %v6171 = vmul.f32 %v6155, %v6162
  %v6172 = vadd.f32 %v6170, %v6171
  %6173 = vst [vmem:[#allocation4] sm:$0xff] %v6172
  %v6174 = vtanh.pop %v6172
  %v6175 = vmul.f32 %v6168, %v6174
  %6176 = vst [vmem:[#allocation3] sm:$0xff] %v6175
  %v6177 = vld [vmem:[#allocation3] sm:$0xff]
  %v6178 = vld [vmem:[%s4] sm:$0xff]
  %v6179 = vld [vmem:[%s4 + $0x8] sm:$0xff]
  %v6180 = vld [vmem:[%s4 + $0x10] sm:$0xff]
  %v6181 = vld [vmem:[%s4 + $0x18] sm:$0xff]
  %v6182 = vld [vmem:[%s4 + $0x20] sm:$0xff]
  %v6183 = vld [vmem:[%s4 + $0x28] sm:$0xff]
  %v6184 = vld [vmem:[%s4 + $0x30] sm:$0xff]
  %v6185 = vld [vmem:[%s4 + $0x38] sm:$0xff]
  %v6186 = vld [vmem:[%s4 + $0x40] sm:$0xff]
  %v6187 = vld [vmem:[%s4 + $0x48] sm:$0xff]
  %v6188 = vld [vmem:[%s4 + $0x50] sm:$0xff]
  %v6189 = vld [vmem:[%s4 + $0x58] sm:$0xff]
  %v6190 = vld [vmem:[%s4 + $0x60] sm:$0xff]
  %v6191 = vld [vmem:[%s4 + $0x68] sm:$0xff]
  %v6192 = vld [vmem:[%s4 + $0x70] sm:$0xff]
  %v6193 = vld [vmem:[%s4 + $0x78] sm:$0xff]
  %v6194 = vld [vmem:[%s5] sm:$0x1]
  %v6196 = vlaneseq
  %v6197 = vshrl.u32 %v6196, 7
  %v6198 = vsub.s32 0, %v6197
  %v6199 = vrot.slane %v6194, %v6198
  %6201 = vmatprep.subr.mxu0 0.0
  %6202 = vmatpush1.msra.mxu0 %v6178
  %6203 = vmatprep.subr.mxu0 0.0
  %6204 = vmatpush1.msra.mxu0 %v6179
  %6205 = vmatprep.subr.mxu0 0.0
  %6206 = vmatpush1.msra.mxu0 %v6180
  %6207 = vmatprep.subr.mxu0 0.0
  %6208 = vmatpush1.msra.mxu0 %v6181
  %6209 = vmatprep.subr.mxu0 0.0
  %6210 = vmatpush1.msra.mxu0 %v6182
  %6211 = vmatprep.subr.mxu0 0.0
  %6212 = vmatpush1.msra.mxu0 %v6183
  %6213 = vmatprep.subr.mxu0 0.0
  %6214 = vmatpush1.msra.mxu0 %v6184
  %6215 = vmatprep.subr.mxu0 0.0
  %6216 = vmatpush1.msra.mxu0 %v6185
  %6217 = vmatprep.subr.mxu0 0.0
  %6218 = vmatpush1.msra.mxu0 %v6186
  %6219 = vmatprep.subr.mxu0 0.0
  %6220 = vmatpush1.msra.mxu0 %v6187
  %6221 = vmatprep.subr.mxu0 0.0
  %6222 = vmatpush1.msra.mxu0 %v6188
  %6223 = vmatprep.subr.mxu0 0.0
  %6224 = vmatpush1.msra.mxu0 %v6189
  %6225 = vmatprep.subr.mxu0 0.0
  %6226 = vmatpush1.msra.mxu0 %v6190
  %6227 = vmatprep.subr.mxu0 0.0
  %6228 = vmatpush1.msra.mxu0 %v6191
  %6229 = vmatprep.subr.mxu0 0.0
  %6230 = vmatpush1.msra.mxu0 %v6192
  %6231 = vmatprep.subr.mxu0 0.0
  %6232 = vmatpush1.msra.mxu0 %v6193
  %6233 = vmatprep.subr.mxu0 0.0
  %6234 = vmatpush1.msra.mxu0 0.0
  %6235 = vmatprep.subr.mxu0 0.0
  %6236 = vmatpush1.msra.mxu0 0.0
  %6237 = vmatprep.subr.mxu0 0.0
  %6238 = vmatpush1.msra.mxu0 0.0
  %6239 = vmatprep.subr.mxu0 0.0
  %6240 = vmatpush1.msra.mxu0 0.0
  %6241 = vmatprep.subr.mxu0 0.0
  %6242 = vmatpush1.msra.mxu0 0.0
  %6243 = vmatprep.subr.mxu0 0.0
  %6244 = vmatpush1.msra.mxu0 0.0
  %6245 = vmatprep.subr.mxu0 0.0
  %6246 = vmatpush1.msra.mxu0 0.0
  %6247 = vmatprep.subr.mxu0 0.0
  %6248 = vmatpush1.msra.mxu0 0.0
  %6249 = vmatprep.subr.mxu0 0.0
  %6250 = vmatpush1.msra.mxu0 0.0
  %6251 = vmatprep.subr.mxu0 0.0
  %6252 = vmatpush1.msra.mxu0 0.0
  %6253 = vmatprep.subr.mxu0 0.0
  %6254 = vmatpush1.msra.mxu0 0.0
  %6255 = vmatprep.subr.mxu0 0.0
  %6256 = vmatpush1.msra.mxu0 0.0
  %6257 = vmatprep.subr.mxu0 0.0
  %6258 = vmatpush1.msra.mxu0 0.0
  %6259 = vmatprep.subr.mxu0 0.0
  %6260 = vmatpush1.msra.mxu0 0.0
  %6261 = vmatprep.subr.mxu0 0.0
  %6262 = vmatpush1.msra.mxu0 0.0
  %6263 = vmatprep.subr.mxu0 0.0
  %6264 = vmatpush1.msra.mxu0 0.0
  %6265 = vmatprep.mubr.f32.mxu0 0.0
  %6266 = vmatmul.mubr.f32.gmra.mrb[0].mxu0 %v6177
  %v6267 = vpop.f32.mrb[0].mxu0
  %v6268 = vadd.f32 %v6199, %v6267
  %v6269 = vpop.f32.mrb[0].mxu0
  %6270 = vdwg.mxu0
  %vm6271 = vcmask 80896
  %v6272 = vsel %vm6271, %v6268, -inf
  %6273 = vmax.xlane.f32.xlu0 %v6272
  %v6274 = vpop.xlane.xlu0 %6273
  %v6275 = vsub.f32 %v6268, %v6274
  %v6276 = vmul.f32 %v6275, 1.442695
  %v6277 = vpow.pop %v6276
  %v6278 = vsel %vm6271, %v6277, 0.0
  %6279 = vadd.xlane.f32.xlu0 %v6278
  %v6280 = vpop.xlane.xlu0 %6279
  %v6281 = vrcp.pop %v6280
  %v6282 = vmul.f32 %v6277, %v6281
  %6283 = vst.msk [vmem:[%s6] sm:$0xff] %vm6271, %v6282
  // Predicated region
  $region26: #{lstm_forward.1} parent=0 // pred_check
    _
  $region27: #{lstm_forward.1} parent=0 // pred_check_branch
    %6285 = sbr.rel (0) target = $region29
  $region28: #{lstm_forward.1} parent=0 // pred_region
    _
  $region29: #{lstm_forward.1} parent=0 // pred_fallthru
    _
  // Predicated region
  $region30: #{lstm_forward.1} parent=0 // pred_check
    _
  $region31: #{lstm_forward.1} parent=0 // pred_check_branch
    %6287 = sbr.rel (0) target = $region33
  $region32: #{lstm_forward.1} parent=0 // pred_region
    _
  $region33: #{lstm_forward.1} parent=0 // pred_fallthru
    _

</llo_original>
